<compile_context>
chip_gen: v6e
topology: v6e:2x2x1
jax: 0.10.0
libtpu: 0.0.40
codegen_flags: <defaults>
</compile_context>

<pallas_src>
import functools

import jax
import jax.numpy as jnp
from jax import lax
from jax.experimental import pallas as pl
from jax.experimental.pallas import tpu as pltpu


def _residual_block_kernel(x_ref, w1_ref, b1_ref, w2_ref, b2_ref, out_ref,
                           *scratch, use_dx_im2col, off):
    # x_ref   : (1, H, W, Cp)  f32   input image (channels zero-padded to Cp)
    # w1_ref  : (9*Cp, Cp)     bf16  conv1 weights, BN1 scale folded, rows (ky,kx,cin)
    # b1_ref  : (1, Cp)        f32   folded BN1 bias
    # w2_ref  : (9*Cp, Cp)     bf16  conv2 weights, BN2 scale folded
    # b2_ref  : (1, Cp)        f32   folded BN2 bias
    # out_ref : (1, H, W, Cp)  f32
    # scratch[0]: VMEM (H+2, W+2*off, Cp) bf16  halo-padded activations
    #             (interior at column offset `off` -> aligned interior stores)
    # scratch[1]: VMEM (H+2, W, 3*Cp)     bf16  dx-only im2col slab (Cp==128 path)
    xpad_ref = scratch[0]
    col_ref = scratch[1] if use_dx_im2col else None

    H = out_ref.shape[1]
    W = out_ref.shape[2]
    Cp = out_ref.shape[3]
    Wt = xpad_ref.shape[1]
    cdt = xpad_ref.dtype  # bf16 compute dtype for MXU operands

    # Zero only the 1-pixel halo; the interior is always overwritten below.
    # Kept per grid step (cheap vs. the interior stores) so megacore-sharded
    # iterations are also safe.  Top/bottom rows are full-width aligned stores.
    xpad_ref[0:1, :, :] = jnp.zeros((1, Wt, Cp), cdt)
    xpad_ref[H + 1:H + 2, :, :] = jnp.zeros((1, Wt, Cp), cdt)
    xpad_ref[:, off - 1:off, :] = jnp.zeros((H + 2, 1, Cp), cdt)
    xpad_ref[:, off + W:off + W + 1, :] = jnp.zeros((H + 2, 1, Cp), cdt)

    def conv3x3(w_ref, b_ref):
        acc = None
        if use_dx_im2col:
            # Build the dx slab ONCE per conv (3 tap copies); the dy shift is
            # just a row offset into the same slab.  K = 3*Cp per matmul.
            for dx in range(3):
                col_ref[:, :, dx * Cp:(dx + 1) * Cp] = \
                    xpad_ref[:, off - 1 + dx: off - 1 + dx + W, :]
            for dy in range(3):
                part = jnp.dot(
                    col_ref[dy:dy + H].reshape(H * W, 3 * Cp),
                    w_ref[dy * 3 * Cp:(dy + 1) * 3 * Cp, :],
                    preferred_element_type=jnp.float32)
                acc = part if acc is None else acc + part
        else:
            # Per-tap accumulation (Cp >= 256: K = Cp already fills the MXU;
            # also the right shape for v5e's 128-deep MXU).  No slab scratch.
            for dy in range(3):
                for dx in range(3):
                    k = dy * 3 + dx
                    part = jnp.dot(
                        xpad_ref[dy:dy + H,
                                 off - 1 + dx: off - 1 + dx + W, :]
                        .reshape(H * W, Cp),
                        w_ref[k * Cp:(k + 1) * Cp, :],
                        preferred_element_type=jnp.float32)
                    acc = part if acc is None else acc + part
        return acc + b_ref[0]  # BN scale already folded into the weights

    # ---- conv1 + BN1 + ReLU ----  (interior store is sublane-aligned)
    xpad_ref[1:H + 1, off:off + W, :] = x_ref[0].astype(cdt)
    out1 = jnp.maximum(conv3x3(w1_ref, b1_ref), 0.0)          # (H*W, Cp) f32

    # ---- conv2 + BN2 (reuse the padded scratch; halo is still zero) ----
    xpad_ref[1:H + 1, off:off + W, :] = out1.reshape(H, W, Cp).astype(cdt)
    out2 = conv3x3(w2_ref, b2_ref)                            # (H*W, Cp) f32

    # ---- residual add (input block already resident, f32-exact) + ReLU ----
    res = x_ref[0].reshape(H * W, Cp)
    out = jnp.maximum(out2 + res, 0.0)
    out_ref[...] = out.reshape(1, H, W, Cp).astype(out_ref.dtype)


def residual_block_forward(x_nchw, w1, g1, be1, rm1, rv1,
                           w2, g2, be2, rm2, rv2, eps=1e-5):
    """x_nchw: (N, Cin, H, W).  w1: (3,3,Cin,C) HWIO, w2: (3,3,C,C) HWIO."""
    N, Cin, H, W = x_nchw.shape
    C = w1.shape[-1]
    assert Cin == C, "stride=1 / downsample=None requires in_channels == n_filters"
    assert W % 8 == 0, "kernel assumes W % 8 == 0 (tile-aligned reshapes)"

    # Lane-dense channel count (multiple of 128) and aligned interior offset.
    Cp = ((C + 127) // 128) * 128
    OFF = 8
    Wt = W + 2 * OFF

    # Fold BN (inference) into a per-output-channel scale & bias; fold the
    # scale directly into the conv weights (exact: scale is per out channel).
    inv1 = g1 / jnp.sqrt(rv1 + eps)
    inv2 = g2 / jnp.sqrt(rv2 + eps)
    b1 = (be1 - rm1 * inv1).astype(jnp.float32)
    b2 = (be2 - rm2 * inv2).astype(jnp.float32)
    w1f = w1 * inv1                                   # scale on output channel
    w2f = w2 * inv2

    def pack_w(w, cin):
        # (3,3,cin,C) -> zero-pad channels -> (9*Cp, Cp), rows = (ky, kx, cin),
        # stored as bf16 MXU operands.
        w = jnp.pad(w, ((0, 0), (0, 0), (0, Cp - cin), (0, Cp - C)))
        return w.reshape(9 * Cp, Cp).astype(jnp.bfloat16)

    w1p = pack_w(w1f, Cin)
    w2p = pack_w(w2f, C)
    b1p = jnp.pad(b1, (0, Cp - C)).reshape(1, Cp)
    b2p = jnp.pad(b2, (0, Cp - C)).reshape(1, Cp)

    # NCHW -> NHWC, channels zero-padded to Cp (no spatial pad; residual
    # stays f32-exact inside the kernel).
    x = jnp.transpose(x_nchw, (0, 2, 3, 1)).astype(jnp.float32)
    x = jnp.pad(x, ((0, 0), (0, 0), (0, 0), (0, Cp - C)))

    # Conv strategy: dx-only im2col (K = 3*Cp) for Cp == 128; per-tap
    # accumulation (K = Cp, no slab) once Cp >= 256 fills the MXU by itself.
    use_dx_im2col = Cp < 256

    scratch_shapes = [pltpu.VMEM((H + 2, Wt, Cp), jnp.bfloat16)]
    col_bytes = 0
    if use_dx_im2col:
        scratch_shapes.append(pltpu.VMEM((H + 2, W, 3 * Cp), jnp.bfloat16))
        col_bytes = (H + 2) * W * 3 * Cp * 2

    # Explicit VMEM budget (double-buffered f32 image blocks + bf16 weights +
    # bf16 scratch), capped at ~75% of this generation's physical VMEM
    # (≈48 MiB on v7x, ≈96 MiB on v5e/v6e) to leave compiler headroom.
    vmem_est = (2 * H * W * Cp * 4            # input blocks (double-buffered)
                + 2 * H * W * Cp * 4          # output blocks (double-buffered)
                + 2 * 9 * Cp * Cp * 2         # both bf16 weight slabs
                + (H + 2) * Wt * Cp * 2       # bf16 halo-padded activations
                + col_bytes                   # bf16 dx im2col slab (if any)
                + (2 << 20))                  # slack
    try:
        phys_vmem = int(getattr(pltpu.get_tpu_info(),
                                "vmem_capacity_bytes", 64 << 20))
    except Exception:
        phys_vmem = 64 << 20
    vmem_limit = int(min(max(vmem_est, 32 << 20), (phys_vmem * 3) // 4))

    kernel = functools.partial(_residual_block_kernel,
                               use_dx_im2col=use_dx_im2col, off=OFF)

    out_nhwc = pl.pallas_call(
        kernel,
        out_shape=jax.ShapeDtypeStruct((N, H, W, Cp), jnp.float32),
        grid_spec=pltpu.PrefetchScalarGridSpec(
            num_scalar_prefetch=0,
            grid=(N,),
            in_specs=[
                pl.BlockSpec((1, H, W, Cp), lambda n: (n, 0, 0, 0)),
                pl.BlockSpec((9 * Cp, Cp), lambda n: (0, 0)),   # stays resident
                pl.BlockSpec((1, Cp), lambda n: (0, 0)),
                pl.BlockSpec((9 * Cp, Cp), lambda n: (0, 0)),
                pl.BlockSpec((1, Cp), lambda n: (0, 0)),
            ],
            out_specs=pl.BlockSpec((1, H, W, Cp), lambda n: (n, 0, 0, 0)),
            scratch_shapes=scratch_shapes,
        ),
        compiler_params=pltpu.CompilerParams(
            dimension_semantics=("parallel",),
            vmem_limit_bytes=vmem_limit,
        ),
    )(x, w1p, b1p, w2p, b2p)

    # Drop channel padding, NHWC -> NCHW.
    return jnp.transpose(out_nhwc[..., :C], (0, 3, 1, 2))


def _reference(x_nchw, w1, g1, be1, rm1, rv1, w2, g2, be2, rm2, rv2, eps=1e-5):
    """Pure-JAX f32 reference (lax conv, NHWC/HWIO) for a sanity check."""
    x = jnp.transpose(x_nchw, (0, 2, 3, 1))

    def conv(x, w):
        return lax.conv_general_dilated(
            x, w, window_strides=(1, 1), padding="SAME",
            dimension_numbers=("NHWC", "HWIO", "NHWC"))

    def bn(y, g, b, m, v):
        return (y - m) / jnp.sqrt(v + eps) * g + b

    out = jax.nn.relu(bn(conv(x, w1), g1, be1, rm1, rv1))
    out = bn(conv(out, w2), g2, be2, rm2, rv2)
    out = jax.nn.relu(out + x)
    return jnp.transpose(out, (0, 3, 1, 2))


if __name__ == "__main__":
    key = jax.random.PRNGKey(0)
    N, Cin, H, W = 2, 4, 16, 16
    C = Cin  # n_filters == in_channels (stride=1, downsample=None)

    ks = jax.random.split(key, 12)
    x = jax.random.normal(ks[0], (N, Cin, H, W), jnp.float32)

    # conv1 / BN1 params
    w1 = jax.random.normal(ks[1], (3, 3, Cin, C), jnp.float32) * 0.1
    g1 = 1.0 + 0.1 * jax.random.normal(ks[2], (C,), jnp.float32)
    be1 = 0.1 * jax.random.normal(ks[3], (C,), jnp.float32)
    rm1 = 0.1 * jax.random.normal(ks[4], (C,), jnp.float32)
    rv1 = jnp.abs(jax.random.normal(ks[5], (C,), jnp.float32)) + 0.5

    # conv2 / BN2 params
    w2 = jax.random.normal(ks[6], (3, 3, C, C), jnp.float32) * 0.1
    g2 = 1.0 + 0.1 * jax.random.normal(ks[7], (C,), jnp.float32)
    be2 = 0.1 * jax.random.normal(ks[8], (C,), jnp.float32)
    rm2 = 0.1 * jax.random.normal(ks[9], (C,), jnp.float32)
    rv2 = jnp.abs(jax.random.normal(ks[10], (C,), jnp.float32)) + 0.5

    out = residual_block_forward(x, w1, g1, be1, rm1, rv1,
                                 w2, g2, be2, rm2, rv2)
    out = jax.block_until_ready(out)

    ref = _reference(x, w1, g1, be1, rm1, rv1, w2, g2, be2, rm2, rv2)
    assert out.shape == (N, C, H, W)
    # Tolerance loosened for bf16 MXU operands (f32 accumulation & residual).
    assert jnp.allclose(out, ref, atol=5e-2, rtol=2e-2), "mismatch vs reference"

    print("KERNEL_OK")
</pallas_src>

<mosaic_0001>
module attributes {stable_mosaic.version = 11 : i64} {
  func.func @_residual_block_kernel(%arg0: i32, %arg1: memref<1x16x16x128xf32, #tpu.memory_space<vmem>>, %arg2: memref<1152x128xbf16, #tpu.memory_space<vmem>>, %arg3: memref<1x128xf32, #tpu.memory_space<vmem>>, %arg4: memref<1152x128xbf16, #tpu.memory_space<vmem>>, %arg5: memref<1x128xf32, #tpu.memory_space<vmem>>, %arg6: memref<1x16x16x128xf32, #tpu.memory_space<vmem>>, %arg7: memref<18x32x128xbf16, #tpu.memory_space<vmem>>, %arg8: memref<18x16x384xbf16, #tpu.memory_space<vmem>>) attributes {dimension_semantics = [#tpu.dimension_semantics<parallel>], iteration_bounds = array<i64: 2>, scalar_prefetch = 0 : i64, scratch_operands = 2 : i64, tpu.core_type = #tpu.core_type<tc>, window_params = [{transform_indices = @transform_0, window_bounds = array<i64: 1, 16, 16, 128>}, {pipeline_mode = #tpu.pipeline_mode<synchronous>, transform_indices = @transform_1, window_bounds = array<i64: 1152, 128>}, {pipeline_mode = #tpu.pipeline_mode<synchronous>, transform_indices = @transform_2, window_bounds = array<i64: 1, 128>}, {pipeline_mode = #tpu.pipeline_mode<synchronous>, transform_indices = @transform_3, window_bounds = array<i64: 1152, 128>}, {pipeline_mode = #tpu.pipeline_mode<synchronous>, transform_indices = @transform_4, window_bounds = array<i64: 1, 128>}, {transform_indices = @transform_5, window_bounds = array<i64: 1, 16, 16, 128>}]} {
    %cst = arith.constant 0.000000e+00 : bf16
    %0 = vector.broadcast %cst : bf16 to vector<1x32x128xbf16>
    %c0 = arith.constant 0 : index
    %c0_0 = arith.constant 0 : index
    %c0_1 = arith.constant 0 : index
    %1 = vector.load %arg7[%c0, %c0_0, %c0_1] : memref<18x32x128xbf16, #tpu.memory_space<vmem>>, vector<1x32x128xbf16>
    tpu.vector_store %arg7[%c0, %c0_0, %c0_1], %0 {strides = array<i32>} : memref<18x32x128xbf16, #tpu.memory_space<vmem>>, vector<1x32x128xbf16>,
    %cst_2 = arith.constant 0.000000e+00 : bf16
    %2 = vector.broadcast %cst_2 : bf16 to vector<1x32x128xbf16>
    %c17 = arith.constant 17 : index
    %c0_3 = arith.constant 0 : index
    %c0_4 = arith.constant 0 : index
    %3 = vector.load %arg7[%c17, %c0_3, %c0_4] : memref<18x32x128xbf16, #tpu.memory_space<vmem>>, vector<1x32x128xbf16>
    tpu.vector_store %arg7[%c17, %c0_3, %c0_4], %2 {strides = array<i32>} : memref<18x32x128xbf16, #tpu.memory_space<vmem>>, vector<1x32x128xbf16>,
    %cst_5 = arith.constant 0.000000e+00 : bf16
    %4 = vector.broadcast %cst_5 : bf16 to vector<18x1x128xbf16>
    %c0_6 = arith.constant 0 : index
    %c7 = arith.constant 7 : index
    %c0_7 = arith.constant 0 : index
    %5 = vector.load %arg7[%c0_6, %c7, %c0_7] : memref<18x32x128xbf16, #tpu.memory_space<vmem>>, vector<18x1x128xbf16>
    tpu.vector_store %arg7[%c0_6, %c7, %c0_7], %4 {strides = array<i32>} : memref<18x32x128xbf16, #tpu.memory_space<vmem>>, vector<18x1x128xbf16>,
    %cst_8 = arith.constant 0.000000e+00 : bf16
    %6 = vector.broadcast %cst_8 : bf16 to vector<18x1x128xbf16>
    %c0_9 = arith.constant 0 : index
    %c24 = arith.constant 24 : index
    %c0_10 = arith.constant 0 : index
    %7 = vector.load %arg7[%c0_9, %c24, %c0_10] : memref<18x32x128xbf16, #tpu.memory_space<vmem>>, vector<18x1x128xbf16>
    tpu.vector_store %arg7[%c0_9, %c24, %c0_10], %6 {strides = array<i32>} : memref<18x32x128xbf16, #tpu.memory_space<vmem>>, vector<18x1x128xbf16>,
    %c0_11 = arith.constant 0 : index
    %c0_12 = arith.constant 0 : index
    %c0_13 = arith.constant 0 : index
    %c0_14 = arith.constant 0 : index
    %8 = vector.load %arg1[%c0_11, %c0_12, %c0_13, %c0_14] : memref<1x16x16x128xf32, #tpu.memory_space<vmem>>, vector<1x16x16x128xf32>
    %9 = vector.shape_cast %8 : vector<1x16x16x128xf32> to vector<16x16x128xf32>
    %10 = arith.truncf %9 : vector<16x16x128xf32> to vector<16x16x128xbf16>
    %c1 = arith.constant 1 : index
    %c8 = arith.constant 8 : index
    %c0_15 = arith.constant 0 : index
    %11 = vector.load %arg7[%c1, %c8, %c0_15] : memref<18x32x128xbf16, #tpu.memory_space<vmem>>, vector<16x16x128xbf16>
    tpu.vector_store %arg7[%c1, %c8, %c0_15], %10 {strides = array<i32>} : memref<18x32x128xbf16, #tpu.memory_space<vmem>>, vector<16x16x128xbf16>,
    %c0_16 = arith.constant 0 : index
    %c7_17 = arith.constant 7 : index
    %c0_18 = arith.constant 0 : index
    %12 = vector.load %arg7[%c0_16, %c7_17, %c0_18] : memref<18x32x128xbf16, #tpu.memory_space<vmem>>, vector<18x16x128xbf16>
    %c0_19 = arith.constant 0 : index
    %c0_20 = arith.constant 0 : index
    %c0_21 = arith.constant 0 : index
    %13 = vector.load %arg8[%c0_19, %c0_20, %c0_21] : memref<18x16x384xbf16, #tpu.memory_space<vmem>>, vector<18x16x128xbf16>
    tpu.vector_store %arg8[%c0_19, %c0_20, %c0_21], %12 {strides = array<i32>} : memref<18x16x384xbf16, #tpu.memory_space<vmem>>, vector<18x16x128xbf16>,
    %c0_22 = arith.constant 0 : index
    %c8_23 = arith.constant 8 : index
    %c0_24 = arith.constant 0 : index
    %14 = vector.load %arg7[%c0_22, %c8_23, %c0_24] : memref<18x32x128xbf16, #tpu.memory_space<vmem>>, vector<18x16x128xbf16>
    %c0_25 = arith.constant 0 : index
    %c0_26 = arith.constant 0 : index
    %c128 = arith.constant 128 : index
    %15 = vector.load %arg8[%c0_25, %c0_26, %c128] : memref<18x16x384xbf16, #tpu.memory_space<vmem>>, vector<18x16x128xbf16>
    tpu.vector_store %arg8[%c0_25, %c0_26, %c128], %14 {strides = array<i32>} : memref<18x16x384xbf16, #tpu.memory_space<vmem>>, vector<18x16x128xbf16>,
    %c0_27 = arith.constant 0 : index
    %c9 = arith.constant 9 : index
    %c0_28 = arith.constant 0 : index
    %16 = vector.load %arg7[%c0_27, %c9, %c0_28] : memref<18x32x128xbf16, #tpu.memory_space<vmem>>, vector<18x16x128xbf16>
    %c0_29 = arith.constant 0 : index
    %c0_30 = arith.constant 0 : index
    %c256 = arith.constant 256 : index
    %17 = vector.load %arg8[%c0_29, %c0_30, %c256] : memref<18x16x384xbf16, #tpu.memory_space<vmem>>, vector<18x16x128xbf16>
    tpu.vector_store %arg8[%c0_29, %c0_30, %c256], %16 {strides = array<i32>} : memref<18x16x384xbf16, #tpu.memory_space<vmem>>, vector<18x16x128xbf16>,
    %c0_31 = arith.constant 0 : index
    %c0_32 = arith.constant 0 : index
    %c0_33 = arith.constant 0 : index
    %18 = vector.load %arg8[%c0_31, %c0_32, %c0_33] : memref<18x16x384xbf16, #tpu.memory_space<vmem>>, vector<16x16x384xbf16>
    %19 = vector.shape_cast %18 : vector<16x16x384xbf16> to vector<256x384xbf16>
    %c0_34 = arith.constant 0 : index
    %c0_35 = arith.constant 0 : index
    %20 = vector.load %arg2[%c0_34, %c0_35] : memref<1152x128xbf16, #tpu.memory_space<vmem>>, vector<384x128xbf16>
    %cst_36 = arith.constant dense<0.000000e+00> : vector<256x128xf32>
    %21 = tpu.matmul %19, %20, %cst_36 {dimension_numbers = #tpu.dot_dimension_numbers<[1], [0], [0], [1], [0, 0, 1, 1], [], []>} : vector<256x384xbf16>, vector<384x128xbf16>, vector<256x128xf32> -> vector<256x128xf32>
    %c1_37 = arith.constant 1 : index
    %c0_38 = arith.constant 0 : index
    %c0_39 = arith.constant 0 : index
    %22 = vector.load %arg8[%c1_37, %c0_38, %c0_39] : memref<18x16x384xbf16, #tpu.memory_space<vmem>>, vector<16x16x384xbf16>
    %23 = vector.shape_cast %22 : vector<16x16x384xbf16> to vector<256x384xbf16>
    %c384 = arith.constant 384 : index
    %c0_40 = arith.constant 0 : index
    %24 = vector.load %arg2[%c384, %c0_40] : memref<1152x128xbf16, #tpu.memory_space<vmem>>, vector<384x128xbf16>
    %cst_41 = arith.constant dense<0.000000e+00> : vector<256x128xf32>
    %25 = tpu.matmul %23, %24, %cst_41 {dimension_numbers = #tpu.dot_dimension_numbers<[1], [0], [0], [1], [0, 0, 1, 1], [], []>} : vector<256x384xbf16>, vector<384x128xbf16>, vector<256x128xf32> -> vector<256x128xf32>
    %26 = arith.addf %21, %25 : vector<256x128xf32>
    %c2 = arith.constant 2 : index
    %c0_42 = arith.constant 0 : index
    %c0_43 = arith.constant 0 : index
    %27 = vector.load %arg8[%c2, %c0_42, %c0_43] : memref<18x16x384xbf16, #tpu.memory_space<vmem>>, vector<16x16x384xbf16>
    %28 = vector.shape_cast %27 : vector<16x16x384xbf16> to vector<256x384xbf16>
    %c768 = arith.constant 768 : index
    %c0_44 = arith.constant 0 : index
    %29 = vector.load %arg2[%c768, %c0_44] : memref<1152x128xbf16, #tpu.memory_space<vmem>>, vector<384x128xbf16>
    %cst_45 = arith.constant dense<0.000000e+00> : vector<256x128xf32>
    %30 = tpu.matmul %28, %29, %cst_45 {dimension_numbers = #tpu.dot_dimension_numbers<[1], [0], [0], [1], [0, 0, 1, 1], [], []>} : vector<256x384xbf16>, vector<384x128xbf16>, vector<256x128xf32> -> vector<256x128xf32>
    %31 = arith.addf %26, %30 : vector<256x128xf32>
    %c0_46 = arith.constant 0 : index
    %c0_47 = arith.constant 0 : index
    %32 = vector.load %arg3[%c0_46, %c0_47] : memref<1x128xf32, #tpu.memory_space<vmem>>, vector<1x128xf32>
    %33 = vector.shape_cast %32 : vector<1x128xf32> to vector<128xf32>
    %34 = vector.shape_cast %33 : vector<128xf32> to vector<1x128xf32>
    %35 = vector.broadcast %34 : vector<1x128xf32> to vector<256x128xf32>
    %36 = arith.addf %31, %35 : vector<256x128xf32>
    %cst_48 = arith.constant 0.000000e+00 : f32
    %37 = vector.broadcast %cst_48 : f32 to vector<256x128xf32>
    %38 = arith.maximumf %36, %37 : vector<256x128xf32>
    %39 = vector.shape_cast %38 : vector<256x128xf32> to vector<16x16x128xf32>
    %40 = arith.truncf %39 : vector<16x16x128xf32> to vector<16x16x128xbf16>
    %c1_49 = arith.constant 1 : index
    %c8_50 = arith.constant 8 : index
    %c0_51 = arith.constant 0 : index
    %41 = vector.load %arg7[%c1_49, %c8_50, %c0_51] : memref<18x32x128xbf16, #tpu.memory_space<vmem>>, vector<16x16x128xbf16>
    tpu.vector_store %arg7[%c1_49, %c8_50, %c0_51], %40 {strides = array<i32>} : memref<18x32x128xbf16, #tpu.memory_space<vmem>>, vector<16x16x128xbf16>,
    %c0_52 = arith.constant 0 : index
    %c7_53 = arith.constant 7 : index
    %c0_54 = arith.constant 0 : index
    %42 = vector.load %arg7[%c0_52, %c7_53, %c0_54] : memref<18x32x128xbf16, #tpu.memory_space<vmem>>, vector<18x16x128xbf16>
    %c0_55 = arith.constant 0 : index
    %c0_56 = arith.constant 0 : index
    %c0_57 = arith.constant 0 : index
    %43 = vector.load %arg8[%c0_55, %c0_56, %c0_57] : memref<18x16x384xbf16, #tpu.memory_space<vmem>>, vector<18x16x128xbf16>
    tpu.vector_store %arg8[%c0_55, %c0_56, %c0_57], %42 {strides = array<i32>} : memref<18x16x384xbf16, #tpu.memory_space<vmem>>, vector<18x16x128xbf16>,
    %c0_58 = arith.constant 0 : index
    %c8_59 = arith.constant 8 : index
    %c0_60 = arith.constant 0 : index
    %44 = vector.load %arg7[%c0_58, %c8_59, %c0_60] : memref<18x32x128xbf16, #tpu.memory_space<vmem>>, vector<18x16x128xbf16>
    %c0_61 = arith.constant 0 : index
    %c0_62 = arith.constant 0 : index
    %c128_63 = arith.constant 128 : index
    %45 = vector.load %arg8[%c0_61, %c0_62, %c128_63] : memref<18x16x384xbf16, #tpu.memory_space<vmem>>, vector<18x16x128xbf16>
    tpu.vector_store %arg8[%c0_61, %c0_62, %c128_63], %44 {strides = array<i32>} : memref<18x16x384xbf16, #tpu.memory_space<vmem>>, vector<18x16x128xbf16>,
    %c0_64 = arith.constant 0 : index
    %c9_65 = arith.constant 9 : index
    %c0_66 = arith.constant 0 : index
    %46 = vector.load %arg7[%c0_64, %c9_65, %c0_66] : memref<18x32x128xbf16, #tpu.memory_space<vmem>>, vector<18x16x128xbf16>
    %c0_67 = arith.constant 0 : index
    %c0_68 = arith.constant 0 : index
    %c256_69 = arith.constant 256 : index
    %47 = vector.load %arg8[%c0_67, %c0_68, %c256_69] : memref<18x16x384xbf16, #tpu.memory_space<vmem>>, vector<18x16x128xbf16>
    tpu.vector_store %arg8[%c0_67, %c0_68, %c256_69], %46 {strides = array<i32>} : memref<18x16x384xbf16, #tpu.memory_space<vmem>>, vector<18x16x128xbf16>,
    %c0_70 = arith.constant 0 : index
    %c0_71 = arith.constant 0 : index
    %c0_72 = arith.constant 0 : index
    %48 = vector.load %arg8[%c0_70, %c0_71, %c0_72] : memref<18x16x384xbf16, #tpu.memory_space<vmem>>, vector<16x16x384xbf16>
    %49 = vector.shape_cast %48 : vector<16x16x384xbf16> to vector<256x384xbf16>
    %c0_73 = arith.constant 0 : index
    %c0_74 = arith.constant 0 : index
    %50 = vector.load %arg4[%c0_73, %c0_74] : memref<1152x128xbf16, #tpu.memory_space<vmem>>, vector<384x128xbf16>
    %cst_75 = arith.constant dense<0.000000e+00> : vector<256x128xf32>
    %51 = tpu.matmul %49, %50, %cst_75 {dimension_numbers = #tpu.dot_dimension_numbers<[1], [0], [0], [1], [0, 0, 1, 1], [], []>} : vector<256x384xbf16>, vector<384x128xbf16>, vector<256x128xf32> -> vector<256x128xf32>
    %c1_76 = arith.constant 1 : index
    %c0_77 = arith.constant 0 : index
    %c0_78 = arith.constant 0 : index
    %52 = vector.load %arg8[%c1_76, %c0_77, %c0_78] : memref<18x16x384xbf16, #tpu.memory_space<vmem>>, vector<16x16x384xbf16>
    %53 = vector.shape_cast %52 : vector<16x16x384xbf16> to vector<256x384xbf16>
    %c384_79 = arith.constant 384 : index
    %c0_80 = arith.constant 0 : index
    %54 = vector.load %arg4[%c384_79, %c0_80] : memref<1152x128xbf16, #tpu.memory_space<vmem>>, vector<384x128xbf16>
    %cst_81 = arith.constant dense<0.000000e+00> : vector<256x128xf32>
    %55 = tpu.matmul %53, %54, %cst_81 {dimension_numbers = #tpu.dot_dimension_numbers<[1], [0], [0], [1], [0, 0, 1, 1], [], []>} : vector<256x384xbf16>, vector<384x128xbf16>, vector<256x128xf32> -> vector<256x128xf32>
    %56 = arith.addf %51, %55 : vector<256x128xf32>
    %c2_82 = arith.constant 2 : index
    %c0_83 = arith.constant 0 : index
    %c0_84 = arith.constant 0 : index
    %57 = vector.load %arg8[%c2_82, %c0_83, %c0_84] : memref<18x16x384xbf16, #tpu.memory_space<vmem>>, vector<16x16x384xbf16>
    %58 = vector.shape_cast %57 : vector<16x16x384xbf16> to vector<256x384xbf16>
    %c768_85 = arith.constant 768 : index
    %c0_86 = arith.constant 0 : index
    %59 = vector.load %arg4[%c768_85, %c0_86] : memref<1152x128xbf16, #tpu.memory_space<vmem>>, vector<384x128xbf16>
    %cst_87 = arith.constant dense<0.000000e+00> : vector<256x128xf32>
    %60 = tpu.matmul %58, %59, %cst_87 {dimension_numbers = #tpu.dot_dimension_numbers<[1], [0], [0], [1], [0, 0, 1, 1], [], []>} : vector<256x384xbf16>, vector<384x128xbf16>, vector<256x128xf32> -> vector<256x128xf32>
    %61 = arith.addf %56, %60 : vector<256x128xf32>
    %c0_88 = arith.constant 0 : index
    %c0_89 = arith.constant 0 : index
    %62 = vector.load %arg5[%c0_88, %c0_89] : memref<1x128xf32, #tpu.memory_space<vmem>>, vector<1x128xf32>
    %63 = vector.shape_cast %62 : vector<1x128xf32> to vector<128xf32>
    %64 = vector.shape_cast %63 : vector<128xf32> to vector<1x128xf32>
    %65 = vector.broadcast %64 : vector<1x128xf32> to vector<256x128xf32>
    %66 = arith.addf %61, %65 : vector<256x128xf32>
    %c0_90 = arith.constant 0 : index
    %c0_91 = arith.constant 0 : index
    %c0_92 = arith.constant 0 : index
    %c0_93 = arith.constant 0 : index
    %67 = vector.load %arg1[%c0_90, %c0_91, %c0_92, %c0_93] : memref<1x16x16x128xf32, #tpu.memory_space<vmem>>, vector<1x16x16x128xf32>
    %68 = vector.shape_cast %67 : vector<1x16x16x128xf32> to vector<16x16x128xf32>
    %69 = vector.shape_cast %68 : vector<16x16x128xf32> to vector<256x128xf32>
    %70 = arith.addf %66, %69 : vector<256x128xf32>
    %cst_94 = arith.constant 0.000000e+00 : f32
    %71 = vector.broadcast %cst_94 : f32 to vector<256x128xf32>
    %72 = arith.maximumf %70, %71 : vector<256x128xf32>
    %73 = vector.shape_cast %72 : vector<256x128xf32> to vector<1x16x16x128xf32>
    %c0_95 = arith.constant 0 : index
    %c0_96 = arith.constant 0 : index
    %c0_97 = arith.constant 0 : index
    %c0_98 = arith.constant 0 : index
    %74 = vector.load %arg6[%c0_95, %c0_96, %c0_97, %c0_98] : memref<1x16x16x128xf32, #tpu.memory_space<vmem>>, vector<1x16x16x128xf32>
    tpu.vector_store %arg6[%c0_95, %c0_96, %c0_97, %c0_98], %73 {strides = array<i32>} : memref<1x16x16x128xf32, #tpu.memory_space<vmem>>, vector<1x16x16x128xf32>,
    return
  }
  func.func @transform_0(%arg0: i32) -> (i32, i32, i32, i32) {
    %c0_i32 = arith.constant 0 : i32
    %c0_i32_0 = arith.constant 0 : i32
    %c0_i32_1 = arith.constant 0 : i32
    %c0_i32_2 = arith.constant 0 : i32
    return %arg0, %c0_i32, %c0_i32_0, %c0_i32_1 : i32, i32, i32, i32
  }
  func.func @transform_1(%arg0: i32) -> (i32, i32) {
    %c0_i32 = arith.constant 0 : i32
    %c0_i32_0 = arith.constant 0 : i32
    %c0_i32_1 = arith.constant 0 : i32
    return %c0_i32, %c0_i32_0 : i32, i32
  }
  func.func @transform_2(%arg0: i32) -> (i32, i32) {
    %c0_i32 = arith.constant 0 : i32
    %c0_i32_0 = arith.constant 0 : i32
    %c0_i32_1 = arith.constant 0 : i32
    return %c0_i32, %c0_i32_0 : i32, i32
  }
  func.func @transform_3(%arg0: i32) -> (i32, i32) {
    %c0_i32 = arith.constant 0 : i32
    %c0_i32_0 = arith.constant 0 : i32
    %c0_i32_1 = arith.constant 0 : i32
    return %c0_i32, %c0_i32_0 : i32, i32
  }
  func.func @transform_4(%arg0: i32) -> (i32, i32) {
    %c0_i32 = arith.constant 0 : i32
    %c0_i32_0 = arith.constant 0 : i32
    %c0_i32_1 = arith.constant 0 : i32
    return %c0_i32, %c0_i32_0 : i32, i32
  }
  func.func @transform_5(%arg0: i32) -> (i32, i32, i32, i32) {
    %c0_i32 = arith.constant 0 : i32
    %c0_i32_0 = arith.constant 0 : i32
    %c0_i32_1 = arith.constant 0 : i32
    %c0_i32_2 = arith.constant 0 : i32
    return %arg0, %c0_i32, %c0_i32_0, %c0_i32_1 : i32, i32, i32, i32
  }
}

</mosaic_0001>

<llo_original>
// kernel: tpu_custom_call.1
$region0: #{tpu_custom_call.1}
  #allocation0 [shape = 'u32[]', space=smem, size = 0x4, offset = 0x4, fixed_abs, tag = 'smem constant byte address 0x4 - core index']
  #allocation1 [shape = 'u32[144,128]{1,0:T(1,128)}', space=vmem, size = 0x12000, scoped, tag = 'internal scratch']
  #allocation2 [shape = 'bf16[18,32,128]{2,1,0:T(8,128)(2,1)}', space=vmem, size = 0x24000, scoped, tag = 'scratch operand']
  #allocation3 [shape = 'bf16[18,16,384]{2,1,0:T(8,128)(2,1)}', space=vmem, size = 0x36000, scoped, tag = 'scratch operand']
  %s0 = inlined_call_operand.hbm [shape: f32[2,16,16,128], index: 0, kind: input, shape index: {}]
  %s1 = inlined_call_operand.hbm [shape: bf16[1152,128], index: 1, kind: input, shape index: {}]
  %s2 = inlined_call_operand.vmem [shape: f32[1,128], index: 2, kind: input, shape index: {}]
  %s3 = inlined_call_operand.hbm [shape: bf16[1152,128], index: 3, kind: input, shape index: {}]
  %s4 = inlined_call_operand.vmem [shape: f32[1,128], index: 4, kind: input, shape index: {}]
  %s5 = inlined_call_operand.hbm [shape: f32[2,16,16,128], index: 5, kind: output, shape index: {}]
  %s6 = sld [smem:[#allocation0]]
  $region65: #{tpu_custom_call.1} parent=0
    _
  %s8 = ssub.s32 1, %s6
  %s9 = scalar_select 0, %s8, %s6
  $region1: #{tpu_custom_call.1} parent=0
    #allocation4 [shape = 'u8[262144]{0}', space=vmem, size = 0x40000, scoped, tag = 'input window, operand 0']
    #allocation5 [shape = 's32[2]{0}', space=sflag, size = 0x8, scoped, tag = 'scoped memory for tpu_custom_call.1']
    #allocation6 [shape = 's32[2]{0}', space=sflag, size = 0x8, scoped, tag = 'scoped memory for tpu_custom_call.1']
    #allocation7 [shape = 'u8[294912]{0}', space=vmem, size = 0x48000, scoped, tag = 'input window, operand 1, single buffered']
    #allocation8 [shape = 's32[1]{0}', space=sflag, size = 0x4, scoped, tag = 'scoped memory for tpu_custom_call.1']
    #allocation9 [shape = 'u8[294912]{0}', space=vmem, size = 0x48000, scoped, tag = 'input window, operand 3, single buffered']
    #allocation10 [shape = 'u8[262144]{0}', space=vmem, size = 0x40000, scoped, tag = 'output window, operand 0']
    %10 = vsyncpa [#allocation5], 0
    %s11 = scalar_lea.sflag [#allocation5], 1
    %12 = vsyncpa %s11, 0
    %13 = vsyncpa [#allocation8], 0
    %14 = vsyncpa [#allocation6], 0
    %s15 = scalar_lea.sflag [#allocation6], 1
    %16 = vsyncpa %s15, 0
    loop: start=0, step=1, limit=4
    $region2: #{tpu_custom_call.1} parent=1 // loop_pre_header
      _
    $region3: #{tpu_custom_call.1} parent=1 // loop_header
      %s18 = sphi 0, %s22
      %p19 = scmp.ge.s32.totalorder %s18, 4
      %s28 = sphi 0, %s30
      %s31 = sphi 0, %s28
      %s32 = sphi 0, %s31
      %s48 = sphi 0, %s32
      %s52 = sphi 0, %s52
      %s54 = sphi 0, %s52
      %s55 = sphi 0, %s54
      %s69 = sphi 0, %s55
      %s73 = sphi 0, %s73
      %s75 = sphi 0, %s73
      %s76 = sphi 0, %s75
      %s90 = sphi 0, %s76
      %s94 = sphi 0, %s94
      %s96 = sphi 0, %s94
      %s97 = sphi 0, %s96
      %s111 = sphi 0, %s97
      %s115 = sphi 0, %s115
      %s117 = sphi 0, %s115
      %s118 = sphi 0, %s117
      %s132 = sphi 0, %s118
      %s138 = sphi 0, %s140
      %s141 = sphi 0, %s138
      %s142 = sphi 0, %s141
      %s158 = sphi 0, %s142
    $region4: #{tpu_custom_call.1} parent=1 // loop_header_branch
      %21 = sbr.rel (%p19) target = $region8
    $region5: #{tpu_custom_call.1} parent=1 // loop_body
      %s23 = ssub.s32 %s18, 1
      %s24 = ssub.s32 %s18, 2
      %s25 = sadd.s32 %s18, 1
      %s26 = ssub.s32 %s18, %s25
      %p27 = scmp.eq.s32.totalorder %s26, 0
      %s29 = sadd.s32 %s28, 1
      %s30 = scalar_select %p27, %s28, %s29
      %p33 = pneg %p27
      %p34 = scmp.eq.s32.totalorder %s18, 1
      %p35 = por %p33, %p34
      %p36 = scmp.ne.s32.totalorder %s28, %s31
      %p37 = scmp.eq.s32.totalorder %s18, 0
      %p38 = por %p36, %p37
      %p39 = scmp.ne.s32.totalorder %s28, %s31
      %p40 = scmp.eq.s32.totalorder %s23, 1
      %p41 = por %p39, %p40
      %p42 = scmp.ne.s32.totalorder %s31, %s32
      %p43 = scmp.eq.s32.totalorder %s23, 0
      %p44 = por %p42, %p43
      %p45 = scmp.ne.s32.totalorder %s31, %s32
      %p46 = scmp.eq.s32.totalorder %s24, 1
      %p47 = por %p45, %p46
      %p49 = scmp.ne.s32.totalorder %s32, %s48
      %p50 = scmp.eq.s32.totalorder %s24, 0
      %p51 = por %p49, %p50
      %s53 = sadd.s32 %s52, 1
      %p56 = scmp.eq.s32.totalorder %s18, 1
      %p57 = scmp.ne.s32.totalorder %s52, %s54
      %p58 = scmp.eq.s32.totalorder %s18, 0
      %p59 = por %p57, %p58
      %p60 = scmp.ne.s32.totalorder %s52, %s54
      %p61 = scmp.eq.s32.totalorder %s23, 1
      %p62 = por %p60, %p61
      %p63 = scmp.ne.s32.totalorder %s54, %s55
      %p64 = scmp.eq.s32.totalorder %s23, 0
      %p65 = por %p63, %p64
      %p66 = scmp.ne.s32.totalorder %s54, %s55
      %p67 = scmp.eq.s32.totalorder %s24, 1
      %p68 = por %p66, %p67
      %p70 = scmp.ne.s32.totalorder %s55, %s69
      %p71 = scmp.eq.s32.totalorder %s24, 0
      %p72 = por %p70, %p71
      %s74 = sadd.s32 %s73, 1
      %p77 = scmp.eq.s32.totalorder %s18, 1
      %p78 = scmp.ne.s32.totalorder %s73, %s75
      %p79 = scmp.eq.s32.totalorder %s18, 0
      %p80 = por %p78, %p79
      %p81 = scmp.ne.s32.totalorder %s73, %s75
      %p82 = scmp.eq.s32.totalorder %s23, 1
      %p83 = por %p81, %p82
      %p84 = scmp.ne.s32.totalorder %s75, %s76
      %p85 = scmp.eq.s32.totalorder %s23, 0
      %p86 = por %p84, %p85
      %p87 = scmp.ne.s32.totalorder %s75, %s76
      %p88 = scmp.eq.s32.totalorder %s24, 1
      %p89 = por %p87, %p88
      %p91 = scmp.ne.s32.totalorder %s76, %s90
      %p92 = scmp.eq.s32.totalorder %s24, 0
      %p93 = por %p91, %p92
      %s95 = sadd.s32 %s94, 1
      %p98 = scmp.eq.s32.totalorder %s18, 1
      %p99 = scmp.ne.s32.totalorder %s94, %s96
      %p100 = scmp.eq.s32.totalorder %s18, 0
      %p101 = por %p99, %p100
      %p102 = scmp.ne.s32.totalorder %s94, %s96
      %p103 = scmp.eq.s32.totalorder %s23, 1
      %p104 = por %p102, %p103
      %p105 = scmp.ne.s32.totalorder %s96, %s97
      %p106 = scmp.eq.s32.totalorder %s23, 0
      %p107 = por %p105, %p106
      %p108 = scmp.ne.s32.totalorder %s96, %s97
      %p109 = scmp.eq.s32.totalorder %s24, 1
      %p110 = por %p108, %p109
      %p112 = scmp.ne.s32.totalorder %s97, %s111
      %p113 = scmp.eq.s32.totalorder %s24, 0
      %p114 = por %p112, %p113
      %s116 = sadd.s32 %s115, 1
      %p119 = scmp.eq.s32.totalorder %s18, 1
      %p120 = scmp.ne.s32.totalorder %s115, %s117
      %p121 = scmp.eq.s32.totalorder %s18, 0
      %p122 = por %p120, %p121
      %p123 = scmp.ne.s32.totalorder %s115, %s117
      %p124 = scmp.eq.s32.totalorder %s23, 1
      %p125 = por %p123, %p124
      %p126 = scmp.ne.s32.totalorder %s117, %s118
      %p127 = scmp.eq.s32.totalorder %s23, 0
      %p128 = por %p126, %p127
      %p129 = scmp.ne.s32.totalorder %s117, %s118
      %p130 = scmp.eq.s32.totalorder %s24, 1
      %p131 = por %p129, %p130
      %p133 = scmp.ne.s32.totalorder %s118, %s132
      %p134 = scmp.eq.s32.totalorder %s24, 0
      %p135 = por %p133, %p134
      %s136 = ssub.s32 %s18, %s25
      %p137 = scmp.eq.s32.totalorder %s136, 0
      %s139 = sadd.s32 %s138, 1
      %s140 = scalar_select %p137, %s138, %s139
      %p143 = pneg %p137
      %p144 = scmp.eq.s32.totalorder %s18, 1
      %p145 = por %p143, %p144
      %p146 = scmp.ne.s32.totalorder %s138, %s141
      %p147 = scmp.eq.s32.totalorder %s18, 0
      %p148 = por %p146, %p147
      %p149 = scmp.ne.s32.totalorder %s138, %s141
      %p150 = scmp.eq.s32.totalorder %s23, 1
      %p151 = por %p149, %p150
      %p152 = scmp.ne.s32.totalorder %s141, %s142
      %p153 = scmp.eq.s32.totalorder %s23, 0
      %p154 = por %p152, %p153
      %p155 = scmp.ne.s32.totalorder %s141, %s142
      %p156 = scmp.eq.s32.totalorder %s24, 1
      %p157 = por %p155, %p156
      %p159 = scmp.ne.s32.totalorder %s142, %s158
      %p160 = scmp.eq.s32.totalorder %s24, 0
      %p161 = por %p159, %p160
      %p162 = scmp.le.s32.totalorder 1, %s18
      %p163 = scmp.lt.s32.totalorder %s18, 3
      %p164 = pnand %p162, %p163
      %p165 = pneg %p164
      // Predicated region
      $region9: #{tpu_custom_call.1} parent=5 // pred_check
        _
      $region10: #{tpu_custom_call.1} parent=5 // pred_check_branch
        %167 = sbr.rel (%p164) target = $region12
      $region11: #{tpu_custom_call.1} parent=5 // pred_region
        %s168 = ssub.s32 %s18, 1
        // Predicated region
        $region13: #{tpu_custom_call.1} parent=11 // pred_check
          %p169 = pneg %p65
        $region14: #{tpu_custom_call.1} parent=11 // pred_check_branch
          %171 = sbr.rel (%p169) target = $region16
        $region15: #{tpu_custom_call.1} parent=11 // pred_region
          %s173 = ssub.s32 9216, 9216
          %174 = vsyncadd [#allocation8], %s173
          %s175 = sshll.u32 [#allocation7], 4
          %s176 = int_to_ptr.vmem [resolvable:$true] %s175
          %181 = dma.hbm_to_vmem [thread:$0]  %s1, 9216, %s176, [#allocation8], 64, 64, 4
        $region16: #{tpu_custom_call.1} parent=11 // pred_fallthru
          _
        // Predicated region
        $region17: #{tpu_custom_call.1} parent=11 // pred_check
          %p182 = pneg %p86
        $region18: #{tpu_custom_call.1} parent=11 // pred_check_branch
          %184 = sbr.rel (%p182) target = $region20
        $region19: #{tpu_custom_call.1} parent=11 // pred_region
          _
        $region20: #{tpu_custom_call.1} parent=11 // pred_fallthru
          _
        // Predicated region
        $region21: #{tpu_custom_call.1} parent=11 // pred_check
          %p185 = pneg %p107
        $region22: #{tpu_custom_call.1} parent=11 // pred_check_branch
          %187 = sbr.rel (%p185) target = $region24
        $region23: #{tpu_custom_call.1} parent=11 // pred_region
          %s189 = ssub.s32 9216, 9216
          %190 = vsyncadd [#allocation8], %s189
          %s191 = sshll.u32 [#allocation9], 4
          %s192 = int_to_ptr.vmem [resolvable:$true] %s191
          %197 = dma.hbm_to_vmem [thread:$0]  %s3, 9216, %s192, [#allocation8], 64, 64, 4
        $region24: #{tpu_custom_call.1} parent=11 // pred_fallthru
          _
        // Predicated region
        $region25: #{tpu_custom_call.1} parent=11 // pred_check
          %p198 = pneg %p128
        $region26: #{tpu_custom_call.1} parent=11 // pred_check_branch
          %200 = sbr.rel (%p198) target = $region28
        $region27: #{tpu_custom_call.1} parent=11 // pred_region
          _
        $region28: #{tpu_custom_call.1} parent=11 // pred_fallthru
          _
      $region12: #{tpu_custom_call.1} parent=5 // pred_fallthru
        _
      %p201 = scmp.lt.s32.totalorder %s18, 2
      // Predicated region
      $region29: #{tpu_custom_call.1} parent=5 // pred_check
        %p202 = pneg %p201
      $region30: #{tpu_custom_call.1} parent=5 // pred_check_branch
        %204 = sbr.rel (%p202) target = $region32
      $region31: #{tpu_custom_call.1} parent=5 // pred_region
        // Predicated region
        $region33: #{tpu_custom_call.1} parent=31 // pred_check
          %p205 = pneg %p38
        $region34: #{tpu_custom_call.1} parent=31 // pred_check_branch
          %207 = sbr.rel (%p205) target = $region36
        $region35: #{tpu_custom_call.1} parent=31 // pred_region
          %s208 = sand.u32 %s28, 1
          %s209 = scalar_lea.sflag [#allocation5], %s208
          %s210 = sand.u32 %s28, 1
          %s211 = smul.addr %s210, 256
          %s212 = scalar_lea.vmem [#allocation4], %s211
          %s214 = ssub.s32 4096, 4096
          %215 = vsyncadd %s209, %s214
          %s216 = smul.addr %s18, 32
          %s217 = smul.addr %s216, 128
          %s218 = scalar_lea.hbm %s0, %s217
          %s219 = sshll.u32 %s212, 4
          %s220 = int_to_ptr.vmem [resolvable:$true] %s219
          %225 = dma.hbm_to_vmem [thread:$0]  %s218, 4096, %s220, %s209, 128, 128, 8
        $region36: #{tpu_custom_call.1} parent=31 // pred_fallthru
          _
      $region32: #{tpu_custom_call.1} parent=5 // pred_fallthru
        _
      %p226 = scmp.le.s32.totalorder 1, %s18
      %p227 = scmp.lt.s32.totalorder %s18, 3
      %p228 = pnand %p226, %p227
      %p229 = pneg %p228
      // Predicated region
      $region37: #{tpu_custom_call.1} parent=5 // pred_check
        _
      $region38: #{tpu_custom_call.1} parent=5 // pred_check_branch
        %231 = sbr.rel (%p228) target = $region40
      $region39: #{tpu_custom_call.1} parent=5 // pred_region
        %s232 = ssub.s32 %s18, 1
        %s233 = sand.u32 %s31, 1
        %s234 = scalar_lea.sflag [#allocation5], %s233
        %s235 = sand.u32 %s31, 1
        %s236 = smul.addr %s235, 256
        %s237 = scalar_lea.vmem [#allocation4], %s236
        // Predicated region
        $region41: #{tpu_custom_call.1} parent=39 // pred_check
          %p238 = pneg %p44
        $region42: #{tpu_custom_call.1} parent=39 // pred_check_branch
          %240 = sbr.rel (%p238) target = $region44
        $region43: #{tpu_custom_call.1} parent=39 // pred_region
          %241 = dma.done %s234, 4096
        $region44: #{tpu_custom_call.1} parent=39 // pred_fallthru
          _
        // Predicated region
        $region45: #{tpu_custom_call.1} parent=39 // pred_check
          %p242 = pneg %p65
        $region46: #{tpu_custom_call.1} parent=39 // pred_check_branch
          %244 = sbr.rel (%p242) target = $region48
        $region47: #{tpu_custom_call.1} parent=39 // pred_region
          %245 = dma.done [#allocation8], 9216
        $region48: #{tpu_custom_call.1} parent=39 // pred_fallthru
          _
        // Predicated region
        $region49: #{tpu_custom_call.1} parent=39 // pred_check
          %p246 = pneg %p107
        $region50: #{tpu_custom_call.1} parent=39 // pred_check_branch
          %248 = sbr.rel (%p246) target = $region52
        $region51: #{tpu_custom_call.1} parent=39 // pred_region
          %249 = dma.done [#allocation8], 9216
        $region52: #{tpu_custom_call.1} parent=39 // pred_fallthru
          _
        %s250 = sand.u32 %s31, 1
        %s251 = scalar_lea.sflag [#allocation5], %s250
        %s252 = sand.u32 %s31, 1
        %s253 = smul.addr %s252, 256
        %s254 = scalar_lea.vmem [#allocation4], %s253
        %p255 = pneg %p44
        %p256 = pneg %p41
        %p257 = pneg %p65
        %p258 = pneg %p62
        %p259 = pneg %p86
        %p260 = pneg %p83
        %p261 = pneg %p107
        %p262 = pneg %p104
        %p263 = pneg %p128
        %p264 = pneg %p125
        %p265 = pneg %p154
        %p266 = pneg %p151
        %s267 = sand.u32 %s141, 1
        %s268 = scalar_lea.sflag [#allocation6], %s267
        %s269 = sand.u32 %s141, 1
        %s270 = smul.addr %s269, 256
        %s271 = scalar_lea.vmem [#allocation10], %s270
        %273 = vst [vmem:[#allocation2] sm:$0xf] 0
        %274 = vst [vmem:[#allocation2 + $0x4] sm:$0xf] 0
        %275 = vst [vmem:[#allocation2 + $0x8] sm:$0xf] 0
        %276 = vst [vmem:[#allocation2 + $0xc] sm:$0xf] 0
        %s277 = scalar_lea.vmem [#allocation2], 272
        %278 = vst [vmem:[%s277] sm:$0xf] 0
        %279 = vst [vmem:[%s277 + $0x4] sm:$0xf] 0
        %280 = vst [vmem:[%s277 + $0x8] sm:$0xf] 0
        %281 = vst [vmem:[%s277 + $0xc] sm:$0xf] 0
        %vm282 = vcmask 1043459
        %vm283 = vsmask.f32 7950
        %vm284 = vmand %vm282, %vm283
        %v285 = vld [vmem:[#allocation2] sm:$0x8]
        %v286 = vsel %vm284, 0, %v285
        %287 = vst [vmem:[#allocation2] sm:$0x8] %v286
        %v288 = vld [vmem:[#allocation2 + $0x10] sm:$0x8]
        %v289 = vsel %vm284, 0, %v288
        %290 = vst [vmem:[#allocation2 + $0x10] sm:$0x8] %v289
        %v291 = vld [vmem:[#allocation2 + $0x20] sm:$0x8]
        %v292 = vsel %vm284, 0, %v291
        %293 = vst [vmem:[#allocation2 + $0x20] sm:$0x8] %v292
        %v294 = vld [vmem:[#allocation2 + $0x30] sm:$0x8]
        %v295 = vsel %vm284, 0, %v294
        %296 = vst [vmem:[#allocation2 + $0x30] sm:$0x8] %v295
        %v297 = vld [vmem:[#allocation2 + $0x40] sm:$0x8]
        %v298 = vsel %vm284, 0, %v297
        %299 = vst [vmem:[#allocation2 + $0x40] sm:$0x8] %v298
        %v300 = vld [vmem:[#allocation2 + $0x50] sm:$0x8]
        %v301 = vsel %vm284, 0, %v300
        %302 = vst [vmem:[#allocation2 + $0x50] sm:$0x8] %v301
        %v303 = vld [vmem:[#allocation2 + $0x60] sm:$0x8]
        %v304 = vsel %vm284, 0, %v303
        %305 = vst [vmem:[#allocation2 + $0x60] sm:$0x8] %v304
        %v306 = vld [vmem:[#allocation2 + $0x70] sm:$0x8]
        %v307 = vsel %vm284, 0, %v306
        %308 = vst [vmem:[#allocation2 + $0x70] sm:$0x8] %v307
        %v309 = vld [vmem:[#allocation2 + $0x80] sm:$0x8]
        %v310 = vsel %vm284, 0, %v309
        %311 = vst [vmem:[#allocation2 + $0x80] sm:$0x8] %v310
        %v312 = vld [vmem:[#allocation2 + $0x90] sm:$0x8]
        %v313 = vsel %vm284, 0, %v312
        %314 = vst [vmem:[#allocation2 + $0x90] sm:$0x8] %v313
        %v315 = vld [vmem:[#allocation2 + $0xa0] sm:$0x8]
        %v316 = vsel %vm284, 0, %v315
        %317 = vst [vmem:[#allocation2 + $0xa0] sm:$0x8] %v316
        %v318 = vld [vmem:[#allocation2 + $0xb0] sm:$0x8]
        %v319 = vsel %vm284, 0, %v318
        %320 = vst [vmem:[#allocation2 + $0xb0] sm:$0x8] %v319
        %v321 = vld [vmem:[#allocation2 + $0xc0] sm:$0x8]
        %v322 = vsel %vm284, 0, %v321
        %323 = vst [vmem:[#allocation2 + $0xc0] sm:$0x8] %v322
        %v324 = vld [vmem:[#allocation2 + $0xd0] sm:$0x8]
        %v325 = vsel %vm284, 0, %v324
        %326 = vst [vmem:[#allocation2 + $0xd0] sm:$0x8] %v325
        %v327 = vld [vmem:[#allocation2 + $0xe0] sm:$0x8]
        %v328 = vsel %vm284, 0, %v327
        %329 = vst [vmem:[#allocation2 + $0xe0] sm:$0x8] %v328
        %v330 = vld [vmem:[#allocation2 + $0xf0] sm:$0x8]
        %v331 = vsel %vm284, 0, %v330
        %332 = vst [vmem:[#allocation2 + $0xf0] sm:$0x8] %v331
        %v333 = vld [vmem:[#allocation2 + $0x100] sm:$0x8]
        %v334 = vsel %vm284, 0, %v333
        %335 = vst [vmem:[#allocation2 + $0x100] sm:$0x8] %v334
        %v336 = vld [vmem:[#allocation2 + $0x110] sm:$0x8]
        %v337 = vsel %vm284, 0, %v336
        %338 = vst [vmem:[#allocation2 + $0x110] sm:$0x8] %v337
        %vm339 = vcmask 1040384
        %vm340 = vsmask.f32 256
        %vm341 = vmand %vm339, %vm340
        %v342 = vld [vmem:[#allocation2 + $0xc] sm:$0x1]
        %v343 = vsel %vm341, 0, %v342
        %344 = vst [vmem:[#allocation2 + $0xc] sm:$0x1] %v343
        %v345 = vld [vmem:[#allocation2 + $0x1c] sm:$0x1]
        %v346 = vsel %vm341, 0, %v345
        %347 = vst [vmem:[#allocation2 + $0x1c] sm:$0x1] %v346
        %v348 = vld [vmem:[#allocation2 + $0x2c] sm:$0x1]
        %v349 = vsel %vm341, 0, %v348
        %350 = vst [vmem:[#allocation2 + $0x2c] sm:$0x1] %v349
        %v351 = vld [vmem:[#allocation2 + $0x3c] sm:$0x1]
        %v352 = vsel %vm341, 0, %v351
        %353 = vst [vmem:[#allocation2 + $0x3c] sm:$0x1] %v352
        %v354 = vld [vmem:[#allocation2 + $0x4c] sm:$0x1]
        %v355 = vsel %vm341, 0, %v354
        %356 = vst [vmem:[#allocation2 + $0x4c] sm:$0x1] %v355
        %v357 = vld [vmem:[#allocation2 + $0x5c] sm:$0x1]
        %v358 = vsel %vm341, 0, %v357
        %359 = vst [vmem:[#allocation2 + $0x5c] sm:$0x1] %v358
        %v360 = vld [vmem:[#allocation2 + $0x6c] sm:$0x1]
        %v361 = vsel %vm341, 0, %v360
        %362 = vst [vmem:[#allocation2 + $0x6c] sm:$0x1] %v361
        %v363 = vld [vmem:[#allocation2 + $0x7c] sm:$0x1]
        %v364 = vsel %vm341, 0, %v363
        %365 = vst [vmem:[#allocation2 + $0x7c] sm:$0x1] %v364
        %v366 = vld [vmem:[#allocation2 + $0x8c] sm:$0x1]
        %v367 = vsel %vm341, 0, %v366
        %368 = vst [vmem:[#allocation2 + $0x8c] sm:$0x1] %v367
        %v369 = vld [vmem:[#allocation2 + $0x9c] sm:$0x1]
        %v370 = vsel %vm341, 0, %v369
        %371 = vst [vmem:[#allocation2 + $0x9c] sm:$0x1] %v370
        %v372 = vld [vmem:[#allocation2 + $0xac] sm:$0x1]
        %v373 = vsel %vm341, 0, %v372
        %374 = vst [vmem:[#allocation2 + $0xac] sm:$0x1] %v373
        %v375 = vld [vmem:[#allocation2 + $0xbc] sm:$0x1]
        %v376 = vsel %vm341, 0, %v375
        %377 = vst [vmem:[#allocation2 + $0xbc] sm:$0x1] %v376
        %v378 = vld [vmem:[#allocation2 + $0xcc] sm:$0x1]
        %v379 = vsel %vm341, 0, %v378
        %380 = vst [vmem:[#allocation2 + $0xcc] sm:$0x1] %v379
        %v381 = vld [vmem:[#allocation2 + $0xdc] sm:$0x1]
        %v382 = vsel %vm341, 0, %v381
        %383 = vst [vmem:[#allocation2 + $0xdc] sm:$0x1] %v382
        %v384 = vld [vmem:[#allocation2 + $0xec] sm:$0x1]
        %v385 = vsel %vm341, 0, %v384
        %386 = vst [vmem:[#allocation2 + $0xec] sm:$0x1] %v385
        %v387 = vld [vmem:[#allocation2 + $0xfc] sm:$0x1]
        %v388 = vsel %vm341, 0, %v387
        %389 = vst [vmem:[#allocation2 + $0xfc] sm:$0x1] %v388
        %v390 = vld [vmem:[#allocation2 + $0x10c] sm:$0x1]
        %v391 = vsel %vm341, 0, %v390
        %392 = vst [vmem:[#allocation2 + $0x10c] sm:$0x1] %v391
        %v393 = vld [vmem:[#allocation2 + $0x11c] sm:$0x1]
        %v394 = vsel %vm341, 0, %v393
        %395 = vst [vmem:[#allocation2 + $0x11c] sm:$0x1] %v394
        %v396 = vld [vmem:[%s237] sm:$0xff]
        %v397 = vld [vmem:[%s237 + $0x8] sm:$0xff]
        %v398 = vld [vmem:[%s237 + $0x10] sm:$0xff]
        %v399 = vld [vmem:[%s237 + $0x18] sm:$0xff]
        %v400 = vld [vmem:[%s237 + $0x20] sm:$0xff]
        %v401 = vld [vmem:[%s237 + $0x28] sm:$0xff]
        %v402 = vld [vmem:[%s237 + $0x30] sm:$0xff]
        %v403 = vld [vmem:[%s237 + $0x38] sm:$0xff]
        %v404 = vld [vmem:[%s237 + $0x40] sm:$0xff]
        %v405 = vld [vmem:[%s237 + $0x48] sm:$0xff]
        %v406 = vld [vmem:[%s237 + $0x50] sm:$0xff]
        %v407 = vld [vmem:[%s237 + $0x58] sm:$0xff]
        %v408 = vld [vmem:[%s237 + $0x60] sm:$0xff]
        %v409 = vld [vmem:[%s237 + $0x68] sm:$0xff]
        %v410 = vld [vmem:[%s237 + $0x70] sm:$0xff]
        %v411 = vld [vmem:[%s237 + $0x78] sm:$0xff]
        %v412 = vld [vmem:[%s237 + $0x80] sm:$0xff]
        %v413 = vld [vmem:[%s237 + $0x88] sm:$0xff]
        %v414 = vld [vmem:[%s237 + $0x90] sm:$0xff]
        %v415 = vld [vmem:[%s237 + $0x98] sm:$0xff]
        %v416 = vld [vmem:[%s237 + $0xa0] sm:$0xff]
        %v417 = vld [vmem:[%s237 + $0xa8] sm:$0xff]
        %v418 = vld [vmem:[%s237 + $0xb0] sm:$0xff]
        %v419 = vld [vmem:[%s237 + $0xb8] sm:$0xff]
        %v420 = vld [vmem:[%s237 + $0xc0] sm:$0xff]
        %v421 = vld [vmem:[%s237 + $0xc8] sm:$0xff]
        %v422 = vld [vmem:[%s237 + $0xd0] sm:$0xff]
        %v423 = vld [vmem:[%s237 + $0xd8] sm:$0xff]
        %v424 = vld [vmem:[%s237 + $0xe0] sm:$0xff]
        %v425 = vld [vmem:[%s237 + $0xe8] sm:$0xff]
        %v426 = vld [vmem:[%s237 + $0xf0] sm:$0xff]
        %v427 = vld [vmem:[%s237 + $0xf8] sm:$0xff]
        %v428 = vpack.c.bf16 %v397, %v396
        %v429 = vpack.c.bf16 %v399, %v398
        %v430 = vpack.c.bf16 %v401, %v400
        %v431 = vpack.c.bf16 %v403, %v402
        %v432 = vpack.c.bf16 %v405, %v404
        %v433 = vpack.c.bf16 %v407, %v406
        %v434 = vpack.c.bf16 %v409, %v408
        %v435 = vpack.c.bf16 %v411, %v410
        %v436 = vpack.c.bf16 %v413, %v412
        %v437 = vpack.c.bf16 %v415, %v414
        %v438 = vpack.c.bf16 %v417, %v416
        %v439 = vpack.c.bf16 %v419, %v418
        %v440 = vpack.c.bf16 %v421, %v420
        %v441 = vpack.c.bf16 %v423, %v422
        %v442 = vpack.c.bf16 %v425, %v424
        %v443 = vpack.c.bf16 %v427, %v426
        %v460 = vunpack.c.l.b16 %v428
        %v461 = vunpack.c.h.b16 %v428
        %v462 = vunpack.c.l.b16 %v429
        %v463 = vunpack.c.h.b16 %v429
        %v464 = vunpack.c.l.b16 %v430
        %v465 = vunpack.c.h.b16 %v430
        %v466 = vunpack.c.l.b16 %v431
        %v467 = vunpack.c.h.b16 %v431
        %v468 = vunpack.c.l.b16 %v432
        %v469 = vunpack.c.h.b16 %v432
        %v470 = vunpack.c.l.b16 %v433
        %v471 = vunpack.c.h.b16 %v433
        %v472 = vunpack.c.l.b16 %v434
        %v473 = vunpack.c.h.b16 %v434
        %v474 = vunpack.c.l.b16 %v435
        %v475 = vunpack.c.h.b16 %v435
        %v476 = vunpack.c.l.b16 %v436
        %v477 = vunpack.c.h.b16 %v436
        %v478 = vunpack.c.l.b16 %v437
        %v479 = vunpack.c.h.b16 %v437
        %v480 = vunpack.c.l.b16 %v438
        %v481 = vunpack.c.h.b16 %v438
        %v482 = vunpack.c.l.b16 %v439
        %v483 = vunpack.c.h.b16 %v439
        %v484 = vunpack.c.l.b16 %v440
        %v485 = vunpack.c.h.b16 %v440
        %v486 = vunpack.c.l.b16 %v441
        %v487 = vunpack.c.h.b16 %v441
        %v488 = vunpack.c.l.b16 %v442
        %v489 = vunpack.c.h.b16 %v442
        %v490 = vunpack.c.l.b16 %v443
        %v491 = vunpack.c.h.b16 %v443
        %v492 = vpack.c.b16 %v460, %v460
        %v493 = vpack.c.b16 %v461, %v461
        %v494 = vpack.c.b16 %v462, %v462
        %v495 = vpack.c.b16 %v463, %v463
        %v496 = vpack.c.b16 %v464, %v464
        %v497 = vpack.c.b16 %v465, %v465
        %v498 = vpack.c.b16 %v466, %v466
        %v499 = vpack.c.b16 %v467, %v467
        %v500 = vpack.c.b16 %v468, %v468
        %v501 = vpack.c.b16 %v469, %v469
        %v502 = vpack.c.b16 %v470, %v470
        %v503 = vpack.c.b16 %v471, %v471
        %v504 = vpack.c.b16 %v472, %v472
        %v505 = vpack.c.b16 %v473, %v473
        %v506 = vpack.c.b16 %v474, %v474
        %v507 = vpack.c.b16 %v475, %v475
        %v508 = vpack.c.b16 %v476, %v476
        %v509 = vpack.c.b16 %v477, %v477
        %v510 = vpack.c.b16 %v478, %v478
        %v511 = vpack.c.b16 %v479, %v479
        %v512 = vpack.c.b16 %v480, %v480
        %v513 = vpack.c.b16 %v481, %v481
        %v514 = vpack.c.b16 %v482, %v482
        %v515 = vpack.c.b16 %v483, %v483
        %v516 = vpack.c.b16 %v484, %v484
        %v517 = vpack.c.b16 %v485, %v485
        %v518 = vpack.c.b16 %v486, %v486
        %v519 = vpack.c.b16 %v487, %v487
        %v520 = vpack.c.b16 %v488, %v488
        %v521 = vpack.c.b16 %v489, %v489
        %v522 = vpack.c.b16 %v490, %v490
        %v523 = vpack.c.b16 %v491, %v491
        %s556 = scalar_lea.vmem [#allocation2], 16
        %557 = vst [vmem:[%s556 + $0x4] sm:$0xf] %v492
        %558 = vst [vmem:[%s556 + $0x8] sm:$0xf] %v493
        %559 = vst [vmem:[%s556 + $0x14] sm:$0xf] %v494
        %560 = vst [vmem:[%s556 + $0x18] sm:$0xf] %v495
        %561 = vst [vmem:[%s556 + $0x24] sm:$0xf] %v496
        %562 = vst [vmem:[%s556 + $0x28] sm:$0xf] %v497
        %563 = vst [vmem:[%s556 + $0x34] sm:$0xf] %v498
        %564 = vst [vmem:[%s556 + $0x38] sm:$0xf] %v499
        %565 = vst [vmem:[%s556 + $0x44] sm:$0xf] %v500
        %566 = vst [vmem:[%s556 + $0x48] sm:$0xf] %v501
        %567 = vst [vmem:[%s556 + $0x54] sm:$0xf] %v502
        %568 = vst [vmem:[%s556 + $0x58] sm:$0xf] %v503
        %569 = vst [vmem:[%s556 + $0x64] sm:$0xf] %v504
        %570 = vst [vmem:[%s556 + $0x68] sm:$0xf] %v505
        %571 = vst [vmem:[%s556 + $0x74] sm:$0xf] %v506
        %572 = vst [vmem:[%s556 + $0x78] sm:$0xf] %v507
        %573 = vst [vmem:[%s556 + $0x84] sm:$0xf] %v508
        %574 = vst [vmem:[%s556 + $0x88] sm:$0xf] %v509
        %575 = vst [vmem:[%s556 + $0x94] sm:$0xf] %v510
        %576 = vst [vmem:[%s556 + $0x98] sm:$0xf] %v511
        %577 = vst [vmem:[%s556 + $0xa4] sm:$0xf] %v512
        %578 = vst [vmem:[%s556 + $0xa8] sm:$0xf] %v513
        %579 = vst [vmem:[%s556 + $0xb4] sm:$0xf] %v514
        %580 = vst [vmem:[%s556 + $0xb8] sm:$0xf] %v515
        %581 = vst [vmem:[%s556 + $0xc4] sm:$0xf] %v516
        %582 = vst [vmem:[%s556 + $0xc8] sm:$0xf] %v517
        %583 = vst [vmem:[%s556 + $0xd4] sm:$0xf] %v518
        %584 = vst [vmem:[%s556 + $0xd8] sm:$0xf] %v519
        %585 = vst [vmem:[%s556 + $0xe4] sm:$0xf] %v520
        %586 = vst [vmem:[%s556 + $0xe8] sm:$0xf] %v521
        %587 = vst [vmem:[%s556 + $0xf4] sm:$0xf] %v522
        %588 = vst [vmem:[%s556 + $0xf8] sm:$0xf] %v523
        %v589 = vld [vmem:[#allocation2] sm:$0x8]
        %v590 = vld [vmem:[#allocation2 + $0x4] sm:$0xf]
        %v591 = vld [vmem:[#allocation2 + $0x8] sm:$0xf]
        %v592 = vld [vmem:[#allocation2 + $0x10] sm:$0x8]
        %v593 = vld [vmem:[#allocation2 + $0x14] sm:$0xf]
        %v594 = vld [vmem:[#allocation2 + $0x18] sm:$0xf]
        %v595 = vld [vmem:[#allocation2 + $0x20] sm:$0x8]
        %v596 = vld [vmem:[#allocation2 + $0x24] sm:$0xf]
        %v597 = vld [vmem:[#allocation2 + $0x28] sm:$0xf]
        %v598 = vld [vmem:[#allocation2 + $0x30] sm:$0x8]
        %v599 = vld [vmem:[#allocation2 + $0x34] sm:$0xf]
        %v600 = vld [vmem:[#allocation2 + $0x38] sm:$0xf]
        %v601 = vld [vmem:[#allocation2 + $0x40] sm:$0x8]
        %v602 = vld [vmem:[#allocation2 + $0x44] sm:$0xf]
        %v603 = vld [vmem:[#allocation2 + $0x48] sm:$0xf]
        %v604 = vld [vmem:[#allocation2 + $0x50] sm:$0x8]
        %v605 = vld [vmem:[#allocation2 + $0x54] sm:$0xf]
        %v606 = vld [vmem:[#allocation2 + $0x58] sm:$0xf]
        %v607 = vld [vmem:[#allocation2 + $0x60] sm:$0x8]
        %v608 = vld [vmem:[#allocation2 + $0x64] sm:$0xf]
        %v609 = vld [vmem:[#allocation2 + $0x68] sm:$0xf]
        %v610 = vld [vmem:[#allocation2 + $0x70] sm:$0x8]
        %v611 = vld [vmem:[#allocation2 + $0x74] sm:$0xf]
        %v612 = vld [vmem:[#allocation2 + $0x78] sm:$0xf]
        %v613 = vld [vmem:[#allocation2 + $0x80] sm:$0x8]
        %v614 = vld [vmem:[#allocation2 + $0x84] sm:$0xf]
        %v615 = vld [vmem:[#allocation2 + $0x88] sm:$0xf]
        %v616 = vld [vmem:[#allocation2 + $0x90] sm:$0x8]
        %v617 = vld [vmem:[#allocation2 + $0x94] sm:$0xf]
        %v618 = vld [vmem:[#allocation2 + $0x98] sm:$0xf]
        %v619 = vld [vmem:[#allocation2 + $0xa0] sm:$0x8]
        %v620 = vld [vmem:[#allocation2 + $0xa4] sm:$0xf]
        %v621 = vld [vmem:[#allocation2 + $0xa8] sm:$0xf]
        %v622 = vld [vmem:[#allocation2 + $0xb0] sm:$0x8]
        %v623 = vld [vmem:[#allocation2 + $0xb4] sm:$0xf]
        %v624 = vld [vmem:[#allocation2 + $0xb8] sm:$0xf]
        %v625 = vld [vmem:[#allocation2 + $0xc0] sm:$0x8]
        %v626 = vld [vmem:[#allocation2 + $0xc4] sm:$0xf]
        %v627 = vld [vmem:[#allocation2 + $0xc8] sm:$0xf]
        %v628 = vld [vmem:[#allocation2 + $0xd0] sm:$0x8]
        %v629 = vld [vmem:[#allocation2 + $0xd4] sm:$0xf]
        %v630 = vld [vmem:[#allocation2 + $0xd8] sm:$0xf]
        %v631 = vld [vmem:[#allocation2 + $0xe0] sm:$0x8]
        %v632 = vld [vmem:[#allocation2 + $0xe4] sm:$0xf]
        %v633 = vld [vmem:[#allocation2 + $0xe8] sm:$0xf]
        %v634 = vld [vmem:[#allocation2 + $0xf0] sm:$0x8]
        %v635 = vld [vmem:[#allocation2 + $0xf4] sm:$0xf]
        %v636 = vld [vmem:[#allocation2 + $0xf8] sm:$0xf]
        %v637 = vld [vmem:[#allocation2 + $0x100] sm:$0x8]
        %v638 = vld [vmem:[#allocation2 + $0x104] sm:$0xf]
        %v639 = vld [vmem:[#allocation2 + $0x108] sm:$0xf]
        %v640 = vld [vmem:[#allocation2 + $0x110] sm:$0x8]
        %v641 = vld [vmem:[#allocation2 + $0x114] sm:$0xf]
        %v642 = vld [vmem:[#allocation2 + $0x118] sm:$0xf]
        %vm643 = vsmask.f32 4368
        %vm644 = vmor %vm340, %vm643
        %v646 = vshrl.u32 %v589, 16
        %v648 = vrot.slane %v646, 7
        %v649 = vrot.slane %v648, 4
        %v651 = vshrl.u32 %v590, 16
        %v653 = vrot.slane %v651, 7
        %v654 = vshll.u32 %v590, 16
        %v656 = vor.u32 %v653, %v654
        %v657 = vsel %vm644, %v649, %v656
        %v658 = vrot.slane %v653, 4
        %v660 = vshrl.u32 %v591, 16
        %v662 = vrot.slane %v660, 7
        %v663 = vshll.u32 %v591, 16
        %v665 = vor.u32 %v662, %v663
        %v666 = vsel %vm644, %v658, %v665
        %v668 = vshrl.u32 %v592, 16
        %v670 = vrot.slane %v668, 7
        %v671 = vrot.slane %v670, 4
        %v673 = vshrl.u32 %v593, 16
        %v675 = vrot.slane %v673, 7
        %v676 = vshll.u32 %v593, 16
        %v678 = vor.u32 %v675, %v676
        %v679 = vsel %vm644, %v671, %v678
        %v680 = vrot.slane %v675, 4
        %v682 = vshrl.u32 %v594, 16
        %v684 = vrot.slane %v682, 7
        %v685 = vshll.u32 %v594, 16
        %v687 = vor.u32 %v684, %v685
        %v688 = vsel %vm644, %v680, %v687
        %v690 = vshrl.u32 %v595, 16
        %v692 = vrot.slane %v690, 7
        %v693 = vrot.slane %v692, 4
        %v695 = vshrl.u32 %v596, 16
        %v697 = vrot.slane %v695, 7
        %v698 = vshll.u32 %v596, 16
        %v700 = vor.u32 %v697, %v698
        %v701 = vsel %vm644, %v693, %v700
        %v702 = vrot.slane %v697, 4
        %v704 = vshrl.u32 %v597, 16
        %v706 = vrot.slane %v704, 7
        %v707 = vshll.u32 %v597, 16
        %v709 = vor.u32 %v706, %v707
        %v710 = vsel %vm644, %v702, %v709
        %v712 = vshrl.u32 %v598, 16
        %v714 = vrot.slane %v712, 7
        %v715 = vrot.slane %v714, 4
        %v717 = vshrl.u32 %v599, 16
        %v719 = vrot.slane %v717, 7
        %v720 = vshll.u32 %v599, 16
        %v722 = vor.u32 %v719, %v720
        %v723 = vsel %vm644, %v715, %v722
        %v724 = vrot.slane %v719, 4
        %v726 = vshrl.u32 %v600, 16
        %v728 = vrot.slane %v726, 7
        %v729 = vshll.u32 %v600, 16
        %v731 = vor.u32 %v728, %v729
        %v732 = vsel %vm644, %v724, %v731
        %v734 = vshrl.u32 %v601, 16
        %v736 = vrot.slane %v734, 7
        %v737 = vrot.slane %v736, 4
        %v739 = vshrl.u32 %v602, 16
        %v741 = vrot.slane %v739, 7
        %v742 = vshll.u32 %v602, 16
        %v744 = vor.u32 %v741, %v742
        %v745 = vsel %vm644, %v737, %v744
        %v746 = vrot.slane %v741, 4
        %v748 = vshrl.u32 %v603, 16
        %v750 = vrot.slane %v748, 7
        %v751 = vshll.u32 %v603, 16
        %v753 = vor.u32 %v750, %v751
        %v754 = vsel %vm644, %v746, %v753
        %v756 = vshrl.u32 %v604, 16
        %v758 = vrot.slane %v756, 7
        %v759 = vrot.slane %v758, 4
        %v761 = vshrl.u32 %v605, 16
        %v763 = vrot.slane %v761, 7
        %v764 = vshll.u32 %v605, 16
        %v766 = vor.u32 %v763, %v764
        %v767 = vsel %vm644, %v759, %v766
        %v768 = vrot.slane %v763, 4
        %v770 = vshrl.u32 %v606, 16
        %v772 = vrot.slane %v770, 7
        %v773 = vshll.u32 %v606, 16
        %v775 = vor.u32 %v772, %v773
        %v776 = vsel %vm644, %v768, %v775
        %v778 = vshrl.u32 %v607, 16
        %v780 = vrot.slane %v778, 7
        %v781 = vrot.slane %v780, 4
        %v783 = vshrl.u32 %v608, 16
        %v785 = vrot.slane %v783, 7
        %v786 = vshll.u32 %v608, 16
        %v788 = vor.u32 %v785, %v786
        %v789 = vsel %vm644, %v781, %v788
        %v790 = vrot.slane %v785, 4
        %v792 = vshrl.u32 %v609, 16
        %v794 = vrot.slane %v792, 7
        %v795 = vshll.u32 %v609, 16
        %v797 = vor.u32 %v794, %v795
        %v798 = vsel %vm644, %v790, %v797
        %v800 = vshrl.u32 %v610, 16
        %v802 = vrot.slane %v800, 7
        %v803 = vrot.slane %v802, 4
        %v805 = vshrl.u32 %v611, 16
        %v807 = vrot.slane %v805, 7
        %v808 = vshll.u32 %v611, 16
        %v810 = vor.u32 %v807, %v808
        %v811 = vsel %vm644, %v803, %v810
        %v812 = vrot.slane %v807, 4
        %v814 = vshrl.u32 %v612, 16
        %v816 = vrot.slane %v814, 7
        %v817 = vshll.u32 %v612, 16
        %v819 = vor.u32 %v816, %v817
        %v820 = vsel %vm644, %v812, %v819
        %v822 = vshrl.u32 %v613, 16
        %v824 = vrot.slane %v822, 7
        %v825 = vrot.slane %v824, 4
        %v827 = vshrl.u32 %v614, 16
        %v829 = vrot.slane %v827, 7
        %v830 = vshll.u32 %v614, 16
        %v832 = vor.u32 %v829, %v830
        %v833 = vsel %vm644, %v825, %v832
        %v834 = vrot.slane %v829, 4
        %v836 = vshrl.u32 %v615, 16
        %v838 = vrot.slane %v836, 7
        %v839 = vshll.u32 %v615, 16
        %v841 = vor.u32 %v838, %v839
        %v842 = vsel %vm644, %v834, %v841
        %v844 = vshrl.u32 %v616, 16
        %v846 = vrot.slane %v844, 7
        %v847 = vrot.slane %v846, 4
        %v849 = vshrl.u32 %v617, 16
        %v851 = vrot.slane %v849, 7
        %v852 = vshll.u32 %v617, 16
        %v854 = vor.u32 %v851, %v852
        %v855 = vsel %vm644, %v847, %v854
        %v856 = vrot.slane %v851, 4
        %v858 = vshrl.u32 %v618, 16
        %v860 = vrot.slane %v858, 7
        %v861 = vshll.u32 %v618, 16
        %v863 = vor.u32 %v860, %v861
        %v864 = vsel %vm644, %v856, %v863
        %v866 = vshrl.u32 %v619, 16
        %v868 = vrot.slane %v866, 7
        %v869 = vrot.slane %v868, 4
        %v871 = vshrl.u32 %v620, 16
        %v873 = vrot.slane %v871, 7
        %v874 = vshll.u32 %v620, 16
        %v876 = vor.u32 %v873, %v874
        %v877 = vsel %vm644, %v869, %v876
        %v878 = vrot.slane %v873, 4
        %v880 = vshrl.u32 %v621, 16
        %v882 = vrot.slane %v880, 7
        %v883 = vshll.u32 %v621, 16
        %v885 = vor.u32 %v882, %v883
        %v886 = vsel %vm644, %v878, %v885
        %v888 = vshrl.u32 %v622, 16
        %v890 = vrot.slane %v888, 7
        %v891 = vrot.slane %v890, 4
        %v893 = vshrl.u32 %v623, 16
        %v895 = vrot.slane %v893, 7
        %v896 = vshll.u32 %v623, 16
        %v898 = vor.u32 %v895, %v896
        %v899 = vsel %vm644, %v891, %v898
        %v900 = vrot.slane %v895, 4
        %v902 = vshrl.u32 %v624, 16
        %v904 = vrot.slane %v902, 7
        %v905 = vshll.u32 %v624, 16
        %v907 = vor.u32 %v904, %v905
        %v908 = vsel %vm644, %v900, %v907
        %v910 = vshrl.u32 %v625, 16
        %v912 = vrot.slane %v910, 7
        %v913 = vrot.slane %v912, 4
        %v915 = vshrl.u32 %v626, 16
        %v917 = vrot.slane %v915, 7
        %v918 = vshll.u32 %v626, 16
        %v920 = vor.u32 %v917, %v918
        %v921 = vsel %vm644, %v913, %v920
        %v922 = vrot.slane %v917, 4
        %v924 = vshrl.u32 %v627, 16
        %v926 = vrot.slane %v924, 7
        %v927 = vshll.u32 %v627, 16
        %v929 = vor.u32 %v926, %v927
        %v930 = vsel %vm644, %v922, %v929
        %v932 = vshrl.u32 %v628, 16
        %v934 = vrot.slane %v932, 7
        %v935 = vrot.slane %v934, 4
        %v937 = vshrl.u32 %v629, 16
        %v939 = vrot.slane %v937, 7
        %v940 = vshll.u32 %v629, 16
        %v942 = vor.u32 %v939, %v940
        %v943 = vsel %vm644, %v935, %v942
        %v944 = vrot.slane %v939, 4
        %v946 = vshrl.u32 %v630, 16
        %v948 = vrot.slane %v946, 7
        %v949 = vshll.u32 %v630, 16
        %v951 = vor.u32 %v948, %v949
        %v952 = vsel %vm644, %v944, %v951
        %v954 = vshrl.u32 %v631, 16
        %v956 = vrot.slane %v954, 7
        %v957 = vrot.slane %v956, 4
        %v959 = vshrl.u32 %v632, 16
        %v961 = vrot.slane %v959, 7
        %v962 = vshll.u32 %v632, 16
        %v964 = vor.u32 %v961, %v962
        %v965 = vsel %vm644, %v957, %v964
        %v966 = vrot.slane %v961, 4
        %v968 = vshrl.u32 %v633, 16
        %v970 = vrot.slane %v968, 7
        %v971 = vshll.u32 %v633, 16
        %v973 = vor.u32 %v970, %v971
        %v974 = vsel %vm644, %v966, %v973
        %v976 = vshrl.u32 %v634, 16
        %v978 = vrot.slane %v976, 7
        %v979 = vrot.slane %v978, 4
        %v981 = vshrl.u32 %v635, 16
        %v983 = vrot.slane %v981, 7
        %v984 = vshll.u32 %v635, 16
        %v986 = vor.u32 %v983, %v984
        %v987 = vsel %vm644, %v979, %v986
        %v988 = vrot.slane %v983, 4
        %v990 = vshrl.u32 %v636, 16
        %v992 = vrot.slane %v990, 7
        %v993 = vshll.u32 %v636, 16
        %v995 = vor.u32 %v992, %v993
        %v996 = vsel %vm644, %v988, %v995
        %v998 = vshrl.u32 %v637, 16
        %v1000 = vrot.slane %v998, 7
        %v1001 = vrot.slane %v1000, 4
        %v1003 = vshrl.u32 %v638, 16
        %v1005 = vrot.slane %v1003, 7
        %v1006 = vshll.u32 %v638, 16
        %v1008 = vor.u32 %v1005, %v1006
        %v1009 = vsel %vm644, %v1001, %v1008
        %v1010 = vrot.slane %v1005, 4
        %v1012 = vshrl.u32 %v639, 16
        %v1014 = vrot.slane %v1012, 7
        %v1015 = vshll.u32 %v639, 16
        %v1017 = vor.u32 %v1014, %v1015
        %v1018 = vsel %vm644, %v1010, %v1017
        %v1020 = vshrl.u32 %v640, 16
        %v1022 = vrot.slane %v1020, 7
        %v1023 = vrot.slane %v1022, 4
        %v1025 = vshrl.u32 %v641, 16
        %v1027 = vrot.slane %v1025, 7
        %v1028 = vshll.u32 %v641, 16
        %v1030 = vor.u32 %v1027, %v1028
        %v1031 = vsel %vm644, %v1023, %v1030
        %v1032 = vrot.slane %v1027, 4
        %v1034 = vshrl.u32 %v642, 16
        %v1036 = vrot.slane %v1034, 7
        %v1037 = vshll.u32 %v642, 16
        %v1039 = vor.u32 %v1036, %v1037
        %v1040 = vsel %vm644, %v1032, %v1039
        %1077 = vst [vmem:[#allocation3] sm:$0xf] %v657
        %1078 = vst [vmem:[#allocation3 + $0xc] sm:$0xf] %v666
        %1079 = vst [vmem:[#allocation3 + $0x18] sm:$0xf] %v679
        %1080 = vst [vmem:[#allocation3 + $0x24] sm:$0xf] %v688
        %1081 = vst [vmem:[#allocation3 + $0x30] sm:$0xf] %v701
        %1082 = vst [vmem:[#allocation3 + $0x3c] sm:$0xf] %v710
        %1083 = vst [vmem:[#allocation3 + $0x48] sm:$0xf] %v723
        %1084 = vst [vmem:[#allocation3 + $0x54] sm:$0xf] %v732
        %1085 = vst [vmem:[#allocation3 + $0x60] sm:$0xf] %v745
        %1086 = vst [vmem:[#allocation3 + $0x6c] sm:$0xf] %v754
        %1087 = vst [vmem:[#allocation3 + $0x78] sm:$0xf] %v767
        %1088 = vst [vmem:[#allocation3 + $0x84] sm:$0xf] %v776
        %1089 = vst [vmem:[#allocation3 + $0x90] sm:$0xf] %v789
        %1090 = vst [vmem:[#allocation3 + $0x9c] sm:$0xf] %v798
        %1091 = vst [vmem:[#allocation3 + $0xa8] sm:$0xf] %v811
        %1092 = vst [vmem:[#allocation3 + $0xb4] sm:$0xf] %v820
        %1093 = vst [vmem:[#allocation3 + $0xc0] sm:$0xf] %v833
        %1094 = vst [vmem:[#allocation3 + $0xcc] sm:$0xf] %v842
        %1095 = vst [vmem:[#allocation3 + $0xd8] sm:$0xf] %v855
        %1096 = vst [vmem:[#allocation3 + $0xe4] sm:$0xf] %v864
        %1097 = vst [vmem:[#allocation3 + $0xf0] sm:$0xf] %v877
        %1098 = vst [vmem:[#allocation3 + $0xfc] sm:$0xf] %v886
        %1099 = vst [vmem:[#allocation3 + $0x108] sm:$0xf] %v899
        %1100 = vst [vmem:[#allocation3 + $0x114] sm:$0xf] %v908
        %1101 = vst [vmem:[#allocation3 + $0x120] sm:$0xf] %v921
        %1102 = vst [vmem:[#allocation3 + $0x12c] sm:$0xf] %v930
        %1103 = vst [vmem:[#allocation3 + $0x138] sm:$0xf] %v943
        %1104 = vst [vmem:[#allocation3 + $0x144] sm:$0xf] %v952
        %1105 = vst [vmem:[#allocation3 + $0x150] sm:$0xf] %v965
        %1106 = vst [vmem:[#allocation3 + $0x15c] sm:$0xf] %v974
        %1107 = vst [vmem:[#allocation3 + $0x168] sm:$0xf] %v987
        %1108 = vst [vmem:[#allocation3 + $0x174] sm:$0xf] %v996
        %1109 = vst [vmem:[#allocation3 + $0x180] sm:$0xf] %v1009
        %1110 = vst [vmem:[#allocation3 + $0x18c] sm:$0xf] %v1018
        %1111 = vst [vmem:[#allocation3 + $0x198] sm:$0xf] %v1031
        %1112 = vst [vmem:[#allocation3 + $0x1a4] sm:$0xf] %v1040
        %v1113 = vld [vmem:[#allocation2 + $0x4] sm:$0xf]
        %v1114 = vld [vmem:[#allocation2 + $0x8] sm:$0xf]
        %v1115 = vld [vmem:[#allocation2 + $0x14] sm:$0xf]
        %v1116 = vld [vmem:[#allocation2 + $0x18] sm:$0xf]
        %v1117 = vld [vmem:[#allocation2 + $0x24] sm:$0xf]
        %v1118 = vld [vmem:[#allocation2 + $0x28] sm:$0xf]
        %v1119 = vld [vmem:[#allocation2 + $0x34] sm:$0xf]
        %v1120 = vld [vmem:[#allocation2 + $0x38] sm:$0xf]
        %v1121 = vld [vmem:[#allocation2 + $0x44] sm:$0xf]
        %v1122 = vld [vmem:[#allocation2 + $0x48] sm:$0xf]
        %v1123 = vld [vmem:[#allocation2 + $0x54] sm:$0xf]
        %v1124 = vld [vmem:[#allocation2 + $0x58] sm:$0xf]
        %v1125 = vld [vmem:[#allocation2 + $0x64] sm:$0xf]
        %v1126 = vld [vmem:[#allocation2 + $0x68] sm:$0xf]
        %v1127 = vld [vmem:[#allocation2 + $0x74] sm:$0xf]
        %v1128 = vld [vmem:[#allocation2 + $0x78] sm:$0xf]
        %v1129 = vld [vmem:[#allocation2 + $0x84] sm:$0xf]
        %v1130 = vld [vmem:[#allocation2 + $0x88] sm:$0xf]
        %v1131 = vld [vmem:[#allocation2 + $0x94] sm:$0xf]
        %v1132 = vld [vmem:[#allocation2 + $0x98] sm:$0xf]
        %v1133 = vld [vmem:[#allocation2 + $0xa4] sm:$0xf]
        %v1134 = vld [vmem:[#allocation2 + $0xa8] sm:$0xf]
        %v1135 = vld [vmem:[#allocation2 + $0xb4] sm:$0xf]
        %v1136 = vld [vmem:[#allocation2 + $0xb8] sm:$0xf]
        %v1137 = vld [vmem:[#allocation2 + $0xc4] sm:$0xf]
        %v1138 = vld [vmem:[#allocation2 + $0xc8] sm:$0xf]
        %v1139 = vld [vmem:[#allocation2 + $0xd4] sm:$0xf]
        %v1140 = vld [vmem:[#allocation2 + $0xd8] sm:$0xf]
        %v1141 = vld [vmem:[#allocation2 + $0xe4] sm:$0xf]
        %v1142 = vld [vmem:[#allocation2 + $0xe8] sm:$0xf]
        %v1143 = vld [vmem:[#allocation2 + $0xf4] sm:$0xf]
        %v1144 = vld [vmem:[#allocation2 + $0xf8] sm:$0xf]
        %v1145 = vld [vmem:[#allocation2 + $0x104] sm:$0xf]
        %v1146 = vld [vmem:[#allocation2 + $0x108] sm:$0xf]
        %v1147 = vld [vmem:[#allocation2 + $0x114] sm:$0xf]
        %v1148 = vld [vmem:[#allocation2 + $0x118] sm:$0xf]
        %1149 = vst [vmem:[#allocation3 + $0x4] sm:$0xf] %v1113
        %1150 = vst [vmem:[#allocation3 + $0x10] sm:$0xf] %v1114
        %1151 = vst [vmem:[#allocation3 + $0x1c] sm:$0xf] %v1115
        %1152 = vst [vmem:[#allocation3 + $0x28] sm:$0xf] %v1116
        %1153 = vst [vmem:[#allocation3 + $0x34] sm:$0xf] %v1117
        %1154 = vst [vmem:[#allocation3 + $0x40] sm:$0xf] %v1118
        %1155 = vst [vmem:[#allocation3 + $0x4c] sm:$0xf] %v1119
        %1156 = vst [vmem:[#allocation3 + $0x58] sm:$0xf] %v1120
        %1157 = vst [vmem:[#allocation3 + $0x64] sm:$0xf] %v1121
        %1158 = vst [vmem:[#allocation3 + $0x70] sm:$0xf] %v1122
        %1159 = vst [vmem:[#allocation3 + $0x7c] sm:$0xf] %v1123
        %1160 = vst [vmem:[#allocation3 + $0x88] sm:$0xf] %v1124
        %1161 = vst [vmem:[#allocation3 + $0x94] sm:$0xf] %v1125
        %1162 = vst [vmem:[#allocation3 + $0xa0] sm:$0xf] %v1126
        %1163 = vst [vmem:[#allocation3 + $0xac] sm:$0xf] %v1127
        %1164 = vst [vmem:[#allocation3 + $0xb8] sm:$0xf] %v1128
        %1165 = vst [vmem:[#allocation3 + $0xc4] sm:$0xf] %v1129
        %1166 = vst [vmem:[#allocation3 + $0xd0] sm:$0xf] %v1130
        %1167 = vst [vmem:[#allocation3 + $0xdc] sm:$0xf] %v1131
        %1168 = vst [vmem:[#allocation3 + $0xe8] sm:$0xf] %v1132
        %1169 = vst [vmem:[#allocation3 + $0xf4] sm:$0xf] %v1133
        %1170 = vst [vmem:[#allocation3 + $0x100] sm:$0xf] %v1134
        %1171 = vst [vmem:[#allocation3 + $0x10c] sm:$0xf] %v1135
        %1172 = vst [vmem:[#allocation3 + $0x118] sm:$0xf] %v1136
        %1173 = vst [vmem:[#allocation3 + $0x124] sm:$0xf] %v1137
        %1174 = vst [vmem:[#allocation3 + $0x130] sm:$0xf] %v1138
        %1175 = vst [vmem:[#allocation3 + $0x13c] sm:$0xf] %v1139
        %1176 = vst [vmem:[#allocation3 + $0x148] sm:$0xf] %v1140
        %1177 = vst [vmem:[#allocation3 + $0x154] sm:$0xf] %v1141
        %1178 = vst [vmem:[#allocation3 + $0x160] sm:$0xf] %v1142
        %1179 = vst [vmem:[#allocation3 + $0x16c] sm:$0xf] %v1143
        %1180 = vst [vmem:[#allocation3 + $0x178] sm:$0xf] %v1144
        %1181 = vst [vmem:[#allocation3 + $0x184] sm:$0xf] %v1145
        %1182 = vst [vmem:[#allocation3 + $0x190] sm:$0xf] %v1146
        %1183 = vst [vmem:[#allocation3 + $0x19c] sm:$0xf] %v1147
        %1184 = vst [vmem:[#allocation3 + $0x1a8] sm:$0xf] %v1148
        %v1185 = vld [vmem:[#allocation2 + $0x4] sm:$0xf]
        %v1186 = vld [vmem:[#allocation2 + $0x8] sm:$0xf]
        %v1187 = vld [vmem:[#allocation2 + $0xc] sm:$0x1]
        %v1188 = vld [vmem:[#allocation2 + $0x14] sm:$0xf]
        %v1189 = vld [vmem:[#allocation2 + $0x18] sm:$0xf]
        %v1190 = vld [vmem:[#allocation2 + $0x1c] sm:$0x1]
        %v1191 = vld [vmem:[#allocation2 + $0x24] sm:$0xf]
        %v1192 = vld [vmem:[#allocation2 + $0x28] sm:$0xf]
        %v1193 = vld [vmem:[#allocation2 + $0x2c] sm:$0x1]
        %v1194 = vld [vmem:[#allocation2 + $0x34] sm:$0xf]
        %v1195 = vld [vmem:[#allocation2 + $0x38] sm:$0xf]
        %v1196 = vld [vmem:[#allocation2 + $0x3c] sm:$0x1]
        %v1197 = vld [vmem:[#allocation2 + $0x44] sm:$0xf]
        %v1198 = vld [vmem:[#allocation2 + $0x48] sm:$0xf]
        %v1199 = vld [vmem:[#allocation2 + $0x4c] sm:$0x1]
        %v1200 = vld [vmem:[#allocation2 + $0x54] sm:$0xf]
        %v1201 = vld [vmem:[#allocation2 + $0x58] sm:$0xf]
        %v1202 = vld [vmem:[#allocation2 + $0x5c] sm:$0x1]
        %v1203 = vld [vmem:[#allocation2 + $0x64] sm:$0xf]
        %v1204 = vld [vmem:[#allocation2 + $0x68] sm:$0xf]
        %v1205 = vld [vmem:[#allocation2 + $0x6c] sm:$0x1]
        %v1206 = vld [vmem:[#allocation2 + $0x74] sm:$0xf]
        %v1207 = vld [vmem:[#allocation2 + $0x78] sm:$0xf]
        %v1208 = vld [vmem:[#allocation2 + $0x7c] sm:$0x1]
        %v1209 = vld [vmem:[#allocation2 + $0x84] sm:$0xf]
        %v1210 = vld [vmem:[#allocation2 + $0x88] sm:$0xf]
        %v1211 = vld [vmem:[#allocation2 + $0x8c] sm:$0x1]
        %v1212 = vld [vmem:[#allocation2 + $0x94] sm:$0xf]
        %v1213 = vld [vmem:[#allocation2 + $0x98] sm:$0xf]
        %v1214 = vld [vmem:[#allocation2 + $0x9c] sm:$0x1]
        %v1215 = vld [vmem:[#allocation2 + $0xa4] sm:$0xf]
        %v1216 = vld [vmem:[#allocation2 + $0xa8] sm:$0xf]
        %v1217 = vld [vmem:[#allocation2 + $0xac] sm:$0x1]
        %v1218 = vld [vmem:[#allocation2 + $0xb4] sm:$0xf]
        %v1219 = vld [vmem:[#allocation2 + $0xb8] sm:$0xf]
        %v1220 = vld [vmem:[#allocation2 + $0xbc] sm:$0x1]
        %v1221 = vld [vmem:[#allocation2 + $0xc4] sm:$0xf]
        %v1222 = vld [vmem:[#allocation2 + $0xc8] sm:$0xf]
        %v1223 = vld [vmem:[#allocation2 + $0xcc] sm:$0x1]
        %v1224 = vld [vmem:[#allocation2 + $0xd4] sm:$0xf]
        %v1225 = vld [vmem:[#allocation2 + $0xd8] sm:$0xf]
        %v1226 = vld [vmem:[#allocation2 + $0xdc] sm:$0x1]
        %v1227 = vld [vmem:[#allocation2 + $0xe4] sm:$0xf]
        %v1228 = vld [vmem:[#allocation2 + $0xe8] sm:$0xf]
        %v1229 = vld [vmem:[#allocation2 + $0xec] sm:$0x1]
        %v1230 = vld [vmem:[#allocation2 + $0xf4] sm:$0xf]
        %v1231 = vld [vmem:[#allocation2 + $0xf8] sm:$0xf]
        %v1232 = vld [vmem:[#allocation2 + $0xfc] sm:$0x1]
        %v1233 = vld [vmem:[#allocation2 + $0x104] sm:$0xf]
        %v1234 = vld [vmem:[#allocation2 + $0x108] sm:$0xf]
        %v1235 = vld [vmem:[#allocation2 + $0x10c] sm:$0x1]
        %v1236 = vld [vmem:[#allocation2 + $0x114] sm:$0xf]
        %v1237 = vld [vmem:[#allocation2 + $0x118] sm:$0xf]
        %v1238 = vld [vmem:[#allocation2 + $0x11c] sm:$0x1]
        %vm1239 = vsmask.f32 3328
        %vm1240 = vsmask.f32 7440
        %vm1241 = vmor %vm1239, %vm1240
        %v1243 = vshrl.u32 %v1185, 16
        %v1245 = vrot.slane %v1243, 4
        %v1246 = vshll.u32 %v1185, 16
        %v1248 = vrot.slane %v1246, 5
        %v1249 = vor.u32 %v1245, %v1248
        %v1250 = vrot.slane %v1249, 4
        %v1252 = vshll.u32 %v1186, 16
        %v1254 = vrot.slane %v1252, 5
        %v1255 = vsel %vm1241, %v1250, %v1254
        %v1256 = vshrl.u32 %v1186, 16
        %v1258 = vrot.slane %v1256, 4
        %v1259 = vor.u32 %v1258, %v1254
        %v1260 = vrot.slane %v1259, 4
        %v1262 = vshll.u32 %v1187, 16
        %v1264 = vrot.slane %v1262, 5
        %v1265 = vsel %vm1241, %v1260, %v1264
        %v1267 = vshrl.u32 %v1188, 16
        %v1269 = vrot.slane %v1267, 4
        %v1270 = vshll.u32 %v1188, 16
        %v1272 = vrot.slane %v1270, 5
        %v1273 = vor.u32 %v1269, %v1272
        %v1274 = vrot.slane %v1273, 4
        %v1276 = vshll.u32 %v1189, 16
        %v1278 = vrot.slane %v1276, 5
        %v1279 = vsel %vm1241, %v1274, %v1278
        %v1280 = vshrl.u32 %v1189, 16
        %v1282 = vrot.slane %v1280, 4
        %v1283 = vor.u32 %v1282, %v1278
        %v1284 = vrot.slane %v1283, 4
        %v1286 = vshll.u32 %v1190, 16
        %v1288 = vrot.slane %v1286, 5
        %v1289 = vsel %vm1241, %v1284, %v1288
        %v1291 = vshrl.u32 %v1191, 16
        %v1293 = vrot.slane %v1291, 4
        %v1294 = vshll.u32 %v1191, 16
        %v1296 = vrot.slane %v1294, 5
        %v1297 = vor.u32 %v1293, %v1296
        %v1298 = vrot.slane %v1297, 4
        %v1300 = vshll.u32 %v1192, 16
        %v1302 = vrot.slane %v1300, 5
        %v1303 = vsel %vm1241, %v1298, %v1302
        %v1304 = vshrl.u32 %v1192, 16
        %v1306 = vrot.slane %v1304, 4
        %v1307 = vor.u32 %v1306, %v1302
        %v1308 = vrot.slane %v1307, 4
        %v1310 = vshll.u32 %v1193, 16
        %v1312 = vrot.slane %v1310, 5
        %v1313 = vsel %vm1241, %v1308, %v1312
        %v1315 = vshrl.u32 %v1194, 16
        %v1317 = vrot.slane %v1315, 4
        %v1318 = vshll.u32 %v1194, 16
        %v1320 = vrot.slane %v1318, 5
        %v1321 = vor.u32 %v1317, %v1320
        %v1322 = vrot.slane %v1321, 4
        %v1324 = vshll.u32 %v1195, 16
        %v1326 = vrot.slane %v1324, 5
        %v1327 = vsel %vm1241, %v1322, %v1326
        %v1328 = vshrl.u32 %v1195, 16
        %v1330 = vrot.slane %v1328, 4
        %v1331 = vor.u32 %v1330, %v1326
        %v1332 = vrot.slane %v1331, 4
        %v1334 = vshll.u32 %v1196, 16
        %v1336 = vrot.slane %v1334, 5
        %v1337 = vsel %vm1241, %v1332, %v1336
        %v1339 = vshrl.u32 %v1197, 16
        %v1341 = vrot.slane %v1339, 4
        %v1342 = vshll.u32 %v1197, 16
        %v1344 = vrot.slane %v1342, 5
        %v1345 = vor.u32 %v1341, %v1344
        %v1346 = vrot.slane %v1345, 4
        %v1348 = vshll.u32 %v1198, 16
        %v1350 = vrot.slane %v1348, 5
        %v1351 = vsel %vm1241, %v1346, %v1350
        %v1352 = vshrl.u32 %v1198, 16
        %v1354 = vrot.slane %v1352, 4
        %v1355 = vor.u32 %v1354, %v1350
        %v1356 = vrot.slane %v1355, 4
        %v1358 = vshll.u32 %v1199, 16
        %v1360 = vrot.slane %v1358, 5
        %v1361 = vsel %vm1241, %v1356, %v1360
        %v1363 = vshrl.u32 %v1200, 16
        %v1365 = vrot.slane %v1363, 4
        %v1366 = vshll.u32 %v1200, 16
        %v1368 = vrot.slane %v1366, 5
        %v1369 = vor.u32 %v1365, %v1368
        %v1370 = vrot.slane %v1369, 4
        %v1372 = vshll.u32 %v1201, 16
        %v1374 = vrot.slane %v1372, 5
        %v1375 = vsel %vm1241, %v1370, %v1374
        %v1376 = vshrl.u32 %v1201, 16
        %v1378 = vrot.slane %v1376, 4
        %v1379 = vor.u32 %v1378, %v1374
        %v1380 = vrot.slane %v1379, 4
        %v1382 = vshll.u32 %v1202, 16
        %v1384 = vrot.slane %v1382, 5
        %v1385 = vsel %vm1241, %v1380, %v1384
        %v1387 = vshrl.u32 %v1203, 16
        %v1389 = vrot.slane %v1387, 4
        %v1390 = vshll.u32 %v1203, 16
        %v1392 = vrot.slane %v1390, 5
        %v1393 = vor.u32 %v1389, %v1392
        %v1394 = vrot.slane %v1393, 4
        %v1396 = vshll.u32 %v1204, 16
        %v1398 = vrot.slane %v1396, 5
        %v1399 = vsel %vm1241, %v1394, %v1398
        %v1400 = vshrl.u32 %v1204, 16
        %v1402 = vrot.slane %v1400, 4
        %v1403 = vor.u32 %v1402, %v1398
        %v1404 = vrot.slane %v1403, 4
        %v1406 = vshll.u32 %v1205, 16
        %v1408 = vrot.slane %v1406, 5
        %v1409 = vsel %vm1241, %v1404, %v1408
        %v1411 = vshrl.u32 %v1206, 16
        %v1413 = vrot.slane %v1411, 4
        %v1414 = vshll.u32 %v1206, 16
        %v1416 = vrot.slane %v1414, 5
        %v1417 = vor.u32 %v1413, %v1416
        %v1418 = vrot.slane %v1417, 4
        %v1420 = vshll.u32 %v1207, 16
        %v1422 = vrot.slane %v1420, 5
        %v1423 = vsel %vm1241, %v1418, %v1422
        %v1424 = vshrl.u32 %v1207, 16
        %v1426 = vrot.slane %v1424, 4
        %v1427 = vor.u32 %v1426, %v1422
        %v1428 = vrot.slane %v1427, 4
        %v1430 = vshll.u32 %v1208, 16
        %v1432 = vrot.slane %v1430, 5
        %v1433 = vsel %vm1241, %v1428, %v1432
        %v1435 = vshrl.u32 %v1209, 16
        %v1437 = vrot.slane %v1435, 4
        %v1438 = vshll.u32 %v1209, 16
        %v1440 = vrot.slane %v1438, 5
        %v1441 = vor.u32 %v1437, %v1440
        %v1442 = vrot.slane %v1441, 4
        %v1444 = vshll.u32 %v1210, 16
        %v1446 = vrot.slane %v1444, 5
        %v1447 = vsel %vm1241, %v1442, %v1446
        %v1448 = vshrl.u32 %v1210, 16
        %v1450 = vrot.slane %v1448, 4
        %v1451 = vor.u32 %v1450, %v1446
        %v1452 = vrot.slane %v1451, 4
        %v1454 = vshll.u32 %v1211, 16
        %v1456 = vrot.slane %v1454, 5
        %v1457 = vsel %vm1241, %v1452, %v1456
        %v1459 = vshrl.u32 %v1212, 16
        %v1461 = vrot.slane %v1459, 4
        %v1462 = vshll.u32 %v1212, 16
        %v1464 = vrot.slane %v1462, 5
        %v1465 = vor.u32 %v1461, %v1464
        %v1466 = vrot.slane %v1465, 4
        %v1468 = vshll.u32 %v1213, 16
        %v1470 = vrot.slane %v1468, 5
        %v1471 = vsel %vm1241, %v1466, %v1470
        %v1472 = vshrl.u32 %v1213, 16
        %v1474 = vrot.slane %v1472, 4
        %v1475 = vor.u32 %v1474, %v1470
        %v1476 = vrot.slane %v1475, 4
        %v1478 = vshll.u32 %v1214, 16
        %v1480 = vrot.slane %v1478, 5
        %v1481 = vsel %vm1241, %v1476, %v1480
        %v1483 = vshrl.u32 %v1215, 16
        %v1485 = vrot.slane %v1483, 4
        %v1486 = vshll.u32 %v1215, 16
        %v1488 = vrot.slane %v1486, 5
        %v1489 = vor.u32 %v1485, %v1488
        %v1490 = vrot.slane %v1489, 4
        %v1492 = vshll.u32 %v1216, 16
        %v1494 = vrot.slane %v1492, 5
        %v1495 = vsel %vm1241, %v1490, %v1494
        %v1496 = vshrl.u32 %v1216, 16
        %v1498 = vrot.slane %v1496, 4
        %v1499 = vor.u32 %v1498, %v1494
        %v1500 = vrot.slane %v1499, 4
        %v1502 = vshll.u32 %v1217, 16
        %v1504 = vrot.slane %v1502, 5
        %v1505 = vsel %vm1241, %v1500, %v1504
        %v1507 = vshrl.u32 %v1218, 16
        %v1509 = vrot.slane %v1507, 4
        %v1510 = vshll.u32 %v1218, 16
        %v1512 = vrot.slane %v1510, 5
        %v1513 = vor.u32 %v1509, %v1512
        %v1514 = vrot.slane %v1513, 4
        %v1516 = vshll.u32 %v1219, 16
        %v1518 = vrot.slane %v1516, 5
        %v1519 = vsel %vm1241, %v1514, %v1518
        %v1520 = vshrl.u32 %v1219, 16
        %v1522 = vrot.slane %v1520, 4
        %v1523 = vor.u32 %v1522, %v1518
        %v1524 = vrot.slane %v1523, 4
        %v1526 = vshll.u32 %v1220, 16
        %v1528 = vrot.slane %v1526, 5
        %v1529 = vsel %vm1241, %v1524, %v1528
        %v1531 = vshrl.u32 %v1221, 16
        %v1533 = vrot.slane %v1531, 4
        %v1534 = vshll.u32 %v1221, 16
        %v1536 = vrot.slane %v1534, 5
        %v1537 = vor.u32 %v1533, %v1536
        %v1538 = vrot.slane %v1537, 4
        %v1540 = vshll.u32 %v1222, 16
        %v1542 = vrot.slane %v1540, 5
        %v1543 = vsel %vm1241, %v1538, %v1542
        %v1544 = vshrl.u32 %v1222, 16
        %v1546 = vrot.slane %v1544, 4
        %v1547 = vor.u32 %v1546, %v1542
        %v1548 = vrot.slane %v1547, 4
        %v1550 = vshll.u32 %v1223, 16
        %v1552 = vrot.slane %v1550, 5
        %v1553 = vsel %vm1241, %v1548, %v1552
        %v1555 = vshrl.u32 %v1224, 16
        %v1557 = vrot.slane %v1555, 4
        %v1558 = vshll.u32 %v1224, 16
        %v1560 = vrot.slane %v1558, 5
        %v1561 = vor.u32 %v1557, %v1560
        %v1562 = vrot.slane %v1561, 4
        %v1564 = vshll.u32 %v1225, 16
        %v1566 = vrot.slane %v1564, 5
        %v1567 = vsel %vm1241, %v1562, %v1566
        %v1568 = vshrl.u32 %v1225, 16
        %v1570 = vrot.slane %v1568, 4
        %v1571 = vor.u32 %v1570, %v1566
        %v1572 = vrot.slane %v1571, 4
        %v1574 = vshll.u32 %v1226, 16
        %v1576 = vrot.slane %v1574, 5
        %v1577 = vsel %vm1241, %v1572, %v1576
        %v1579 = vshrl.u32 %v1227, 16
        %v1581 = vrot.slane %v1579, 4
        %v1582 = vshll.u32 %v1227, 16
        %v1584 = vrot.slane %v1582, 5
        %v1585 = vor.u32 %v1581, %v1584
        %v1586 = vrot.slane %v1585, 4
        %v1588 = vshll.u32 %v1228, 16
        %v1590 = vrot.slane %v1588, 5
        %v1591 = vsel %vm1241, %v1586, %v1590
        %v1592 = vshrl.u32 %v1228, 16
        %v1594 = vrot.slane %v1592, 4
        %v1595 = vor.u32 %v1594, %v1590
        %v1596 = vrot.slane %v1595, 4
        %v1598 = vshll.u32 %v1229, 16
        %v1600 = vrot.slane %v1598, 5
        %v1601 = vsel %vm1241, %v1596, %v1600
        %v1603 = vshrl.u32 %v1230, 16
        %v1605 = vrot.slane %v1603, 4
        %v1606 = vshll.u32 %v1230, 16
        %v1608 = vrot.slane %v1606, 5
        %v1609 = vor.u32 %v1605, %v1608
        %v1610 = vrot.slane %v1609, 4
        %v1612 = vshll.u32 %v1231, 16
        %v1614 = vrot.slane %v1612, 5
        %v1615 = vsel %vm1241, %v1610, %v1614
        %v1616 = vshrl.u32 %v1231, 16
        %v1618 = vrot.slane %v1616, 4
        %v1619 = vor.u32 %v1618, %v1614
        %v1620 = vrot.slane %v1619, 4
        %v1622 = vshll.u32 %v1232, 16
        %v1624 = vrot.slane %v1622, 5
        %v1625 = vsel %vm1241, %v1620, %v1624
        %v1627 = vshrl.u32 %v1233, 16
        %v1629 = vrot.slane %v1627, 4
        %v1630 = vshll.u32 %v1233, 16
        %v1632 = vrot.slane %v1630, 5
        %v1633 = vor.u32 %v1629, %v1632
        %v1634 = vrot.slane %v1633, 4
        %v1636 = vshll.u32 %v1234, 16
        %v1638 = vrot.slane %v1636, 5
        %v1639 = vsel %vm1241, %v1634, %v1638
        %v1640 = vshrl.u32 %v1234, 16
        %v1642 = vrot.slane %v1640, 4
        %v1643 = vor.u32 %v1642, %v1638
        %v1644 = vrot.slane %v1643, 4
        %v1646 = vshll.u32 %v1235, 16
        %v1648 = vrot.slane %v1646, 5
        %v1649 = vsel %vm1241, %v1644, %v1648
        %v1651 = vshrl.u32 %v1236, 16
        %v1653 = vrot.slane %v1651, 4
        %v1654 = vshll.u32 %v1236, 16
        %v1656 = vrot.slane %v1654, 5
        %v1657 = vor.u32 %v1653, %v1656
        %v1658 = vrot.slane %v1657, 4
        %v1660 = vshll.u32 %v1237, 16
        %v1662 = vrot.slane %v1660, 5
        %v1663 = vsel %vm1241, %v1658, %v1662
        %v1664 = vshrl.u32 %v1237, 16
        %v1666 = vrot.slane %v1664, 4
        %v1667 = vor.u32 %v1666, %v1662
        %v1668 = vrot.slane %v1667, 4
        %v1670 = vshll.u32 %v1238, 16
        %v1672 = vrot.slane %v1670, 5
        %v1673 = vsel %vm1241, %v1668, %v1672
        %1710 = vst [vmem:[#allocation3 + $0x8] sm:$0xf] %v1255
        %1711 = vst [vmem:[#allocation3 + $0x14] sm:$0xf] %v1265
        %1712 = vst [vmem:[#allocation3 + $0x20] sm:$0xf] %v1279
        %1713 = vst [vmem:[#allocation3 + $0x2c] sm:$0xf] %v1289
        %1714 = vst [vmem:[#allocation3 + $0x38] sm:$0xf] %v1303
        %1715 = vst [vmem:[#allocation3 + $0x44] sm:$0xf] %v1313
        %1716 = vst [vmem:[#allocation3 + $0x50] sm:$0xf] %v1327
        %1717 = vst [vmem:[#allocation3 + $0x5c] sm:$0xf] %v1337
        %1718 = vst [vmem:[#allocation3 + $0x68] sm:$0xf] %v1351
        %1719 = vst [vmem:[#allocation3 + $0x74] sm:$0xf] %v1361
        %1720 = vst [vmem:[#allocation3 + $0x80] sm:$0xf] %v1375
        %1721 = vst [vmem:[#allocation3 + $0x8c] sm:$0xf] %v1385
        %1722 = vst [vmem:[#allocation3 + $0x98] sm:$0xf] %v1399
        %1723 = vst [vmem:[#allocation3 + $0xa4] sm:$0xf] %v1409
        %1724 = vst [vmem:[#allocation3 + $0xb0] sm:$0xf] %v1423
        %1725 = vst [vmem:[#allocation3 + $0xbc] sm:$0xf] %v1433
        %1726 = vst [vmem:[#allocation3 + $0xc8] sm:$0xf] %v1447
        %1727 = vst [vmem:[#allocation3 + $0xd4] sm:$0xf] %v1457
        %1728 = vst [vmem:[#allocation3 + $0xe0] sm:$0xf] %v1471
        %1729 = vst [vmem:[#allocation3 + $0xec] sm:$0xf] %v1481
        %1730 = vst [vmem:[#allocation3 + $0xf8] sm:$0xf] %v1495
        %1731 = vst [vmem:[#allocation3 + $0x104] sm:$0xf] %v1505
        %1732 = vst [vmem:[#allocation3 + $0x110] sm:$0xf] %v1519
        %1733 = vst [vmem:[#allocation3 + $0x11c] sm:$0xf] %v1529
        %1734 = vst [vmem:[#allocation3 + $0x128] sm:$0xf] %v1543
        %1735 = vst [vmem:[#allocation3 + $0x134] sm:$0xf] %v1553
        %1736 = vst [vmem:[#allocation3 + $0x140] sm:$0xf] %v1567
        %1737 = vst [vmem:[#allocation3 + $0x14c] sm:$0xf] %v1577
        %1738 = vst [vmem:[#allocation3 + $0x158] sm:$0xf] %v1591
        %1739 = vst [vmem:[#allocation3 + $0x164] sm:$0xf] %v1601
        %1740 = vst [vmem:[#allocation3 + $0x170] sm:$0xf] %v1615
        %1741 = vst [vmem:[#allocation3 + $0x17c] sm:$0xf] %v1625
        %1742 = vst [vmem:[#allocation3 + $0x188] sm:$0xf] %v1639
        %1743 = vst [vmem:[#allocation3 + $0x194] sm:$0xf] %v1649
        %1744 = vst [vmem:[#allocation3 + $0x1a0] sm:$0xf] %v1663
        %1745 = vst [vmem:[#allocation3 + $0x1ac] sm:$0xf] %v1673
        %v1746 = vld [vmem:[#allocation3] sm:$0xff]
        %v1747 = vld [vmem:[#allocation3 + $0x8] sm:$0xf]
        %v1748 = vld [vmem:[#allocation3 + $0xc] sm:$0xff]
        %v1749 = vld [vmem:[#allocation3 + $0x14] sm:$0xf]
        %v1750 = vld [vmem:[#allocation3 + $0x18] sm:$0xff]
        %v1751 = vld [vmem:[#allocation3 + $0x20] sm:$0xf]
        %v1752 = vld [vmem:[#allocation3 + $0x24] sm:$0xff]
        %v1753 = vld [vmem:[#allocation3 + $0x2c] sm:$0xf]
        %v1754 = vld [vmem:[#allocation3 + $0x30] sm:$0xff]
        %v1755 = vld [vmem:[#allocation3 + $0x38] sm:$0xf]
        %v1756 = vld [vmem:[#allocation3 + $0x3c] sm:$0xff]
        %v1757 = vld [vmem:[#allocation3 + $0x44] sm:$0xf]
        %v1758 = vld [vmem:[#allocation3 + $0x48] sm:$0xff]
        %v1759 = vld [vmem:[#allocation3 + $0x50] sm:$0xf]
        %v1760 = vld [vmem:[#allocation3 + $0x54] sm:$0xff]
        %v1761 = vld [vmem:[#allocation3 + $0x5c] sm:$0xf]
        %v1762 = vld [vmem:[#allocation3 + $0x60] sm:$0xff]
        %v1763 = vld [vmem:[#allocation3 + $0x68] sm:$0xf]
        %v1764 = vld [vmem:[#allocation3 + $0x6c] sm:$0xff]
        %v1765 = vld [vmem:[#allocation3 + $0x74] sm:$0xf]
        %v1766 = vld [vmem:[#allocation3 + $0x78] sm:$0xff]
        %v1767 = vld [vmem:[#allocation3 + $0x80] sm:$0xf]
        %v1768 = vld [vmem:[#allocation3 + $0x84] sm:$0xff]
        %v1769 = vld [vmem:[#allocation3 + $0x8c] sm:$0xf]
        %v1770 = vld [vmem:[#allocation3 + $0x90] sm:$0xff]
        %v1771 = vld [vmem:[#allocation3 + $0x98] sm:$0xf]
        %v1772 = vld [vmem:[#allocation3 + $0x9c] sm:$0xff]
        %v1773 = vld [vmem:[#allocation3 + $0xa4] sm:$0xf]
        %v1774 = vld [vmem:[#allocation3 + $0xa8] sm:$0xff]
        %v1775 = vld [vmem:[#allocation3 + $0xb0] sm:$0xf]
        %v1776 = vld [vmem:[#allocation3 + $0xb4] sm:$0xff]
        %v1777 = vld [vmem:[#allocation3 + $0xbc] sm:$0xf]
        %v1778 = vld [vmem:[#allocation3 + $0xc0] sm:$0xff]
        %v1779 = vld [vmem:[#allocation3 + $0xc8] sm:$0xf]
        %v1780 = vld [vmem:[#allocation3 + $0xcc] sm:$0xff]
        %v1781 = vld [vmem:[#allocation3 + $0xd4] sm:$0xf]
        %v1782 = vld [vmem:[#allocation3 + $0xd8] sm:$0xff]
        %v1783 = vld [vmem:[#allocation3 + $0xe0] sm:$0xf]
        %v1784 = vld [vmem:[#allocation3 + $0xe4] sm:$0xff]
        %v1785 = vld [vmem:[#allocation3 + $0xec] sm:$0xf]
        %v1786 = vld [vmem:[#allocation3 + $0xf0] sm:$0xff]
        %v1787 = vld [vmem:[#allocation3 + $0xf8] sm:$0xf]
        %v1788 = vld [vmem:[#allocation3 + $0xfc] sm:$0xff]
        %v1789 = vld [vmem:[#allocation3 + $0x104] sm:$0xf]
        %v1790 = vld [vmem:[#allocation3 + $0x108] sm:$0xff]
        %v1791 = vld [vmem:[#allocation3 + $0x110] sm:$0xf]
        %v1792 = vld [vmem:[#allocation3 + $0x114] sm:$0xff]
        %v1793 = vld [vmem:[#allocation3 + $0x11c] sm:$0xf]
        %v1794 = vld [vmem:[#allocation3 + $0x120] sm:$0xff]
        %v1795 = vld [vmem:[#allocation3 + $0x128] sm:$0xf]
        %v1796 = vld [vmem:[#allocation3 + $0x12c] sm:$0xff]
        %v1797 = vld [vmem:[#allocation3 + $0x134] sm:$0xf]
        %v1798 = vld [vmem:[#allocation3 + $0x138] sm:$0xff]
        %v1799 = vld [vmem:[#allocation3 + $0x140] sm:$0xf]
        %v1800 = vld [vmem:[#allocation3 + $0x144] sm:$0xff]
        %v1801 = vld [vmem:[#allocation3 + $0x14c] sm:$0xf]
        %v1802 = vld [vmem:[#allocation3 + $0x150] sm:$0xff]
        %v1803 = vld [vmem:[#allocation3 + $0x158] sm:$0xf]
        %v1804 = vld [vmem:[#allocation3 + $0x15c] sm:$0xff]
        %v1805 = vld [vmem:[#allocation3 + $0x164] sm:$0xf]
        %v1806 = vld [vmem:[#allocation3 + $0x168] sm:$0xff]
        %v1807 = vld [vmem:[#allocation3 + $0x170] sm:$0xf]
        %v1808 = vld [vmem:[#allocation3 + $0x174] sm:$0xff]
        %v1809 = vld [vmem:[#allocation3 + $0x17c] sm:$0xf]
        %v1810 = vld [vmem:[#allocation7] sm:$0xf]
        %v1811 = vld [vmem:[#allocation7 + $0x4] sm:$0xf]
        %v1812 = vld [vmem:[#allocation7 + $0x8] sm:$0xf]
        %v1813 = vld [vmem:[#allocation7 + $0xc] sm:$0xf]
        %v1814 = vld [vmem:[#allocation7 + $0x10] sm:$0xf]
        %v1815 = vld [vmem:[#allocation7 + $0x14] sm:$0xf]
        %v1816 = vld [vmem:[#allocation7 + $0x18] sm:$0xf]
        %v1817 = vld [vmem:[#allocation7 + $0x1c] sm:$0xf]
        %v1818 = vld [vmem:[#allocation7 + $0x20] sm:$0xf]
        %v1819 = vld [vmem:[#allocation7 + $0x24] sm:$0xf]
        %v1820 = vld [vmem:[#allocation7 + $0x28] sm:$0xf]
        %v1821 = vld [vmem:[#allocation7 + $0x2c] sm:$0xf]
        %v1822 = vld [vmem:[#allocation7 + $0x30] sm:$0xf]
        %v1823 = vld [vmem:[#allocation7 + $0x34] sm:$0xf]
        %v1824 = vld [vmem:[#allocation7 + $0x38] sm:$0xf]
        %v1825 = vld [vmem:[#allocation7 + $0x3c] sm:$0xf]
        %v1826 = vld [vmem:[#allocation7 + $0x40] sm:$0xf]
        %v1827 = vld [vmem:[#allocation7 + $0x44] sm:$0xf]
        %v1828 = vld [vmem:[#allocation7 + $0x48] sm:$0xf]
        %v1829 = vld [vmem:[#allocation7 + $0x4c] sm:$0xf]
        %v1830 = vld [vmem:[#allocation7 + $0x50] sm:$0xf]
        %v1831 = vld [vmem:[#allocation7 + $0x54] sm:$0xf]
        %v1832 = vld [vmem:[#allocation7 + $0x58] sm:$0xf]
        %v1833 = vld [vmem:[#allocation7 + $0x5c] sm:$0xf]
        %v1834 = vld [vmem:[#allocation7 + $0x60] sm:$0xf]
        %v1835 = vld [vmem:[#allocation7 + $0x64] sm:$0xf]
        %v1836 = vld [vmem:[#allocation7 + $0x68] sm:$0xf]
        %v1837 = vld [vmem:[#allocation7 + $0x6c] sm:$0xf]
        %v1838 = vld [vmem:[#allocation7 + $0x70] sm:$0xf]
        %v1839 = vld [vmem:[#allocation7 + $0x74] sm:$0xf]
        %v1840 = vld [vmem:[#allocation7 + $0x78] sm:$0xf]
        %v1841 = vld [vmem:[#allocation7 + $0x7c] sm:$0xf]
        %v1842 = vld [vmem:[#allocation7 + $0x80] sm:$0xf]
        %v1843 = vld [vmem:[#allocation7 + $0x84] sm:$0xf]
        %v1844 = vld [vmem:[#allocation7 + $0x88] sm:$0xf]
        %v1845 = vld [vmem:[#allocation7 + $0x8c] sm:$0xf]
        %v1846 = vld [vmem:[#allocation7 + $0x90] sm:$0xf]
        %v1847 = vld [vmem:[#allocation7 + $0x94] sm:$0xf]
        %v1848 = vld [vmem:[#allocation7 + $0x98] sm:$0xf]
        %v1849 = vld [vmem:[#allocation7 + $0x9c] sm:$0xf]
        %v1850 = vld [vmem:[#allocation7 + $0xa0] sm:$0xf]
        %v1851 = vld [vmem:[#allocation7 + $0xa4] sm:$0xf]
        %v1852 = vld [vmem:[#allocation7 + $0xa8] sm:$0xf]
        %v1853 = vld [vmem:[#allocation7 + $0xac] sm:$0xf]
        %v1854 = vld [vmem:[#allocation7 + $0xb0] sm:$0xf]
        %v1855 = vld [vmem:[#allocation7 + $0xb4] sm:$0xf]
        %v1856 = vld [vmem:[#allocation7 + $0xb8] sm:$0xf]
        %v1857 = vld [vmem:[#allocation7 + $0xbc] sm:$0xf]
        %s1858 = scalar_lea.vmem [#allocation3], 24
        %v1859 = vld [vmem:[%s1858] sm:$0xff]
        %v1860 = vld [vmem:[%s1858 + $0x8] sm:$0xf]
        %v1861 = vld [vmem:[%s1858 + $0xc] sm:$0xff]
        %v1862 = vld [vmem:[%s1858 + $0x14] sm:$0xf]
        %v1863 = vld [vmem:[%s1858 + $0x18] sm:$0xff]
        %v1864 = vld [vmem:[%s1858 + $0x20] sm:$0xf]
        %v1865 = vld [vmem:[%s1858 + $0x24] sm:$0xff]
        %v1866 = vld [vmem:[%s1858 + $0x2c] sm:$0xf]
        %v1867 = vld [vmem:[%s1858 + $0x30] sm:$0xff]
        %v1868 = vld [vmem:[%s1858 + $0x38] sm:$0xf]
        %v1869 = vld [vmem:[%s1858 + $0x3c] sm:$0xff]
        %v1870 = vld [vmem:[%s1858 + $0x44] sm:$0xf]
        %v1871 = vld [vmem:[%s1858 + $0x48] sm:$0xff]
        %v1872 = vld [vmem:[%s1858 + $0x50] sm:$0xf]
        %v1873 = vld [vmem:[%s1858 + $0x54] sm:$0xff]
        %v1874 = vld [vmem:[%s1858 + $0x5c] sm:$0xf]
        %v1875 = vld [vmem:[%s1858 + $0x60] sm:$0xff]
        %v1876 = vld [vmem:[%s1858 + $0x68] sm:$0xf]
        %v1877 = vld [vmem:[%s1858 + $0x6c] sm:$0xff]
        %v1878 = vld [vmem:[%s1858 + $0x74] sm:$0xf]
        %v1879 = vld [vmem:[%s1858 + $0x78] sm:$0xff]
        %v1880 = vld [vmem:[%s1858 + $0x80] sm:$0xf]
        %v1881 = vld [vmem:[%s1858 + $0x84] sm:$0xff]
        %v1882 = vld [vmem:[%s1858 + $0x8c] sm:$0xf]
        %v1883 = vld [vmem:[%s1858 + $0x90] sm:$0xff]
        %v1884 = vld [vmem:[%s1858 + $0x98] sm:$0xf]
        %v1885 = vld [vmem:[%s1858 + $0x9c] sm:$0xff]
        %v1886 = vld [vmem:[%s1858 + $0xa4] sm:$0xf]
        %v1887 = vld [vmem:[%s1858 + $0xa8] sm:$0xff]
        %v1888 = vld [vmem:[%s1858 + $0xb0] sm:$0xf]
        %v1889 = vld [vmem:[%s1858 + $0xb4] sm:$0xff]
        %v1890 = vld [vmem:[%s1858 + $0xbc] sm:$0xf]
        %v1891 = vld [vmem:[%s1858 + $0xc0] sm:$0xff]
        %v1892 = vld [vmem:[%s1858 + $0xc8] sm:$0xf]
        %v1893 = vld [vmem:[%s1858 + $0xcc] sm:$0xff]
        %v1894 = vld [vmem:[%s1858 + $0xd4] sm:$0xf]
        %v1895 = vld [vmem:[%s1858 + $0xd8] sm:$0xff]
        %v1896 = vld [vmem:[%s1858 + $0xe0] sm:$0xf]
        %v1897 = vld [vmem:[%s1858 + $0xe4] sm:$0xff]
        %v1898 = vld [vmem:[%s1858 + $0xec] sm:$0xf]
        %v1899 = vld [vmem:[%s1858 + $0xf0] sm:$0xff]
        %v1900 = vld [vmem:[%s1858 + $0xf8] sm:$0xf]
        %v1901 = vld [vmem:[%s1858 + $0xfc] sm:$0xff]
        %v1902 = vld [vmem:[%s1858 + $0x104] sm:$0xf]
        %v1903 = vld [vmem:[%s1858 + $0x108] sm:$0xff]
        %v1904 = vld [vmem:[%s1858 + $0x110] sm:$0xf]
        %v1905 = vld [vmem:[%s1858 + $0x114] sm:$0xff]
        %v1906 = vld [vmem:[%s1858 + $0x11c] sm:$0xf]
        %v1907 = vld [vmem:[%s1858 + $0x120] sm:$0xff]
        %v1908 = vld [vmem:[%s1858 + $0x128] sm:$0xf]
        %v1909 = vld [vmem:[%s1858 + $0x12c] sm:$0xff]
        %v1910 = vld [vmem:[%s1858 + $0x134] sm:$0xf]
        %v1911 = vld [vmem:[%s1858 + $0x138] sm:$0xff]
        %v1912 = vld [vmem:[%s1858 + $0x140] sm:$0xf]
        %v1913 = vld [vmem:[%s1858 + $0x144] sm:$0xff]
        %v1914 = vld [vmem:[%s1858 + $0x14c] sm:$0xf]
        %v1915 = vld [vmem:[%s1858 + $0x150] sm:$0xff]
        %v1916 = vld [vmem:[%s1858 + $0x158] sm:$0xf]
        %v1917 = vld [vmem:[%s1858 + $0x15c] sm:$0xff]
        %v1918 = vld [vmem:[%s1858 + $0x164] sm:$0xf]
        %v1919 = vld [vmem:[%s1858 + $0x168] sm:$0xff]
        %v1920 = vld [vmem:[%s1858 + $0x170] sm:$0xf]
        %v1921 = vld [vmem:[%s1858 + $0x174] sm:$0xff]
        %v1922 = vld [vmem:[%s1858 + $0x17c] sm:$0xf]
        %v1923 = vld [vmem:[#allocation7 + $0xc0] sm:$0xf]
        %v1924 = vld [vmem:[#allocation7 + $0xc4] sm:$0xf]
        %v1925 = vld [vmem:[#allocation7 + $0xc8] sm:$0xf]
        %v1926 = vld [vmem:[#allocation7 + $0xcc] sm:$0xf]
        %v1927 = vld [vmem:[#allocation7 + $0xd0] sm:$0xf]
        %v1928 = vld [vmem:[#allocation7 + $0xd4] sm:$0xf]
        %v1929 = vld [vmem:[#allocation7 + $0xd8] sm:$0xf]
        %v1930 = vld [vmem:[#allocation7 + $0xdc] sm:$0xf]
        %v1931 = vld [vmem:[#allocation7 + $0xe0] sm:$0xf]
        %v1932 = vld [vmem:[#allocation7 + $0xe4] sm:$0xf]
        %v1933 = vld [vmem:[#allocation7 + $0xe8] sm:$0xf]
        %v1934 = vld [vmem:[#allocation7 + $0xec] sm:$0xf]
        %v1935 = vld [vmem:[#allocation7 + $0xf0] sm:$0xf]
        %v1936 = vld [vmem:[#allocation7 + $0xf4] sm:$0xf]
        %v1937 = vld [vmem:[#allocation7 + $0xf8] sm:$0xf]
        %v1938 = vld [vmem:[#allocation7 + $0xfc] sm:$0xf]
        %v1939 = vld [vmem:[#allocation7 + $0x100] sm:$0xf]
        %v1940 = vld [vmem:[#allocation7 + $0x104] sm:$0xf]
        %v1941 = vld [vmem:[#allocation7 + $0x108] sm:$0xf]
        %v1942 = vld [vmem:[#allocation7 + $0x10c] sm:$0xf]
        %v1943 = vld [vmem:[#allocation7 + $0x110] sm:$0xf]
        %v1944 = vld [vmem:[#allocation7 + $0x114] sm:$0xf]
        %v1945 = vld [vmem:[#allocation7 + $0x118] sm:$0xf]
        %v1946 = vld [vmem:[#allocation7 + $0x11c] sm:$0xf]
        %v1947 = vld [vmem:[#allocation7 + $0x120] sm:$0xf]
        %v1948 = vld [vmem:[#allocation7 + $0x124] sm:$0xf]
        %v1949 = vld [vmem:[#allocation7 + $0x128] sm:$0xf]
        %v1950 = vld [vmem:[#allocation7 + $0x12c] sm:$0xf]
        %v1951 = vld [vmem:[#allocation7 + $0x130] sm:$0xf]
        %v1952 = vld [vmem:[#allocation7 + $0x134] sm:$0xf]
        %v1953 = vld [vmem:[#allocation7 + $0x138] sm:$0xf]
        %v1954 = vld [vmem:[#allocation7 + $0x13c] sm:$0xf]
        %v1955 = vld [vmem:[#allocation7 + $0x140] sm:$0xf]
        %v1956 = vld [vmem:[#allocation7 + $0x144] sm:$0xf]
        %v1957 = vld [vmem:[#allocation7 + $0x148] sm:$0xf]
        %v1958 = vld [vmem:[#allocation7 + $0x14c] sm:$0xf]
        %v1959 = vld [vmem:[#allocation7 + $0x150] sm:$0xf]
        %v1960 = vld [vmem:[#allocation7 + $0x154] sm:$0xf]
        %v1961 = vld [vmem:[#allocation7 + $0x158] sm:$0xf]
        %v1962 = vld [vmem:[#allocation7 + $0x15c] sm:$0xf]
        %v1963 = vld [vmem:[#allocation7 + $0x160] sm:$0xf]
        %v1964 = vld [vmem:[#allocation7 + $0x164] sm:$0xf]
        %v1965 = vld [vmem:[#allocation7 + $0x168] sm:$0xf]
        %v1966 = vld [vmem:[#allocation7 + $0x16c] sm:$0xf]
        %v1967 = vld [vmem:[#allocation7 + $0x170] sm:$0xf]
        %v1968 = vld [vmem:[#allocation7 + $0x174] sm:$0xf]
        %v1969 = vld [vmem:[#allocation7 + $0x178] sm:$0xf]
        %v1970 = vld [vmem:[#allocation7 + $0x17c] sm:$0xf]
        %v2035 = vunpack.c.l.b16 %v1859
        %v2036 = vunpack.c.h.b16 %v1859
        %v2037 = vunpack.c.l.b16 %v1860
        %v2038 = vunpack.c.l.b16 %v1861
        %v2039 = vunpack.c.h.b16 %v1861
        %v2040 = vunpack.c.l.b16 %v1862
        %v2041 = vunpack.c.l.b16 %v1863
        %v2042 = vunpack.c.h.b16 %v1863
        %v2043 = vunpack.c.l.b16 %v1864
        %v2044 = vunpack.c.l.b16 %v1865
        %v2045 = vunpack.c.h.b16 %v1865
        %v2046 = vunpack.c.l.b16 %v1866
        %v2047 = vunpack.c.l.b16 %v1867
        %v2048 = vunpack.c.h.b16 %v1867
        %v2049 = vunpack.c.l.b16 %v1868
        %v2050 = vunpack.c.l.b16 %v1869
        %v2051 = vunpack.c.h.b16 %v1869
        %v2052 = vunpack.c.l.b16 %v1870
        %v2053 = vunpack.c.l.b16 %v1871
        %v2054 = vunpack.c.h.b16 %v1871
        %v2055 = vunpack.c.l.b16 %v1872
        %v2056 = vunpack.c.l.b16 %v1873
        %v2057 = vunpack.c.h.b16 %v1873
        %v2058 = vunpack.c.l.b16 %v1874
        %v2059 = vunpack.c.l.b16 %v1875
        %v2060 = vunpack.c.h.b16 %v1875
        %v2061 = vunpack.c.l.b16 %v1876
        %v2062 = vunpack.c.l.b16 %v1877
        %v2063 = vunpack.c.h.b16 %v1877
        %v2064 = vunpack.c.l.b16 %v1878
        %v2065 = vunpack.c.l.b16 %v1879
        %v2066 = vunpack.c.h.b16 %v1879
        %v2067 = vunpack.c.l.b16 %v1880
        %v2068 = vunpack.c.l.b16 %v1881
        %v2069 = vunpack.c.h.b16 %v1881
        %v2070 = vunpack.c.l.b16 %v1882
        %v2071 = vunpack.c.l.b16 %v1883
        %v2072 = vunpack.c.h.b16 %v1883
        %v2073 = vunpack.c.l.b16 %v1884
        %v2074 = vunpack.c.l.b16 %v1885
        %v2075 = vunpack.c.h.b16 %v1885
        %v2076 = vunpack.c.l.b16 %v1886
        %v2077 = vunpack.c.l.b16 %v1887
        %v2078 = vunpack.c.h.b16 %v1887
        %v2079 = vunpack.c.l.b16 %v1888
        %v2080 = vunpack.c.l.b16 %v1889
        %v2081 = vunpack.c.h.b16 %v1889
        %v2082 = vunpack.c.l.b16 %v1890
        %v2083 = vunpack.c.l.b16 %v1891
        %v2084 = vunpack.c.h.b16 %v1891
        %v2085 = vunpack.c.l.b16 %v1892
        %v2086 = vunpack.c.l.b16 %v1893
        %v2087 = vunpack.c.h.b16 %v1893
        %v2088 = vunpack.c.l.b16 %v1894
        %v2089 = vunpack.c.l.b16 %v1895
        %v2090 = vunpack.c.h.b16 %v1895
        %v2091 = vunpack.c.l.b16 %v1896
        %v2092 = vunpack.c.l.b16 %v1897
        %v2093 = vunpack.c.h.b16 %v1897
        %v2094 = vunpack.c.l.b16 %v1898
        %v2095 = vunpack.c.l.b16 %v1899
        %v2096 = vunpack.c.h.b16 %v1899
        %v2097 = vunpack.c.l.b16 %v1900
        %v2098 = vunpack.c.l.b16 %v1901
        %v2099 = vunpack.c.h.b16 %v1901
        %v2100 = vunpack.c.l.b16 %v1902
        %v2101 = vunpack.c.l.b16 %v1903
        %v2102 = vunpack.c.h.b16 %v1903
        %v2103 = vunpack.c.l.b16 %v1904
        %v2104 = vunpack.c.l.b16 %v1905
        %v2105 = vunpack.c.h.b16 %v1905
        %v2106 = vunpack.c.l.b16 %v1906
        %v2107 = vunpack.c.l.b16 %v1907
        %v2108 = vunpack.c.h.b16 %v1907
        %v2109 = vunpack.c.l.b16 %v1908
        %v2110 = vunpack.c.l.b16 %v1909
        %v2111 = vunpack.c.h.b16 %v1909
        %v2112 = vunpack.c.l.b16 %v1910
        %v2113 = vunpack.c.l.b16 %v1911
        %v2114 = vunpack.c.h.b16 %v1911
        %v2115 = vunpack.c.l.b16 %v1912
        %v2116 = vunpack.c.l.b16 %v1913
        %v2117 = vunpack.c.h.b16 %v1913
        %v2118 = vunpack.c.l.b16 %v1914
        %v2119 = vunpack.c.l.b16 %v1915
        %v2120 = vunpack.c.h.b16 %v1915
        %v2121 = vunpack.c.l.b16 %v1916
        %v2122 = vunpack.c.l.b16 %v1917
        %v2123 = vunpack.c.h.b16 %v1917
        %v2124 = vunpack.c.l.b16 %v1918
        %v2125 = vunpack.c.l.b16 %v1919
        %v2126 = vunpack.c.h.b16 %v1919
        %v2127 = vunpack.c.l.b16 %v1920
        %v2128 = vunpack.c.l.b16 %v1921
        %v2129 = vunpack.c.h.b16 %v1921
        %v2130 = vunpack.c.l.b16 %v1922
        %v2131 = vpack.c.b16 %v2038, %v2035
        %v2132 = vpack.c.b16 %v2039, %v2036
        %v2133 = vpack.c.b16 %v2040, %v2037
        %v2134 = vpack.c.b16 %v2044, %v2041
        %v2135 = vpack.c.b16 %v2045, %v2042
        %v2136 = vpack.c.b16 %v2046, %v2043
        %v2137 = vpack.c.b16 %v2050, %v2047
        %v2138 = vpack.c.b16 %v2051, %v2048
        %v2139 = vpack.c.b16 %v2052, %v2049
        %v2140 = vpack.c.b16 %v2056, %v2053
        %v2141 = vpack.c.b16 %v2057, %v2054
        %v2142 = vpack.c.b16 %v2058, %v2055
        %v2143 = vpack.c.b16 %v2062, %v2059
        %v2144 = vpack.c.b16 %v2063, %v2060
        %v2145 = vpack.c.b16 %v2064, %v2061
        %v2146 = vpack.c.b16 %v2068, %v2065
        %v2147 = vpack.c.b16 %v2069, %v2066
        %v2148 = vpack.c.b16 %v2070, %v2067
        %v2149 = vpack.c.b16 %v2074, %v2071
        %v2150 = vpack.c.b16 %v2075, %v2072
        %v2151 = vpack.c.b16 %v2076, %v2073
        %v2152 = vpack.c.b16 %v2080, %v2077
        %v2153 = vpack.c.b16 %v2081, %v2078
        %v2154 = vpack.c.b16 %v2082, %v2079
        %v2155 = vpack.c.b16 %v2086, %v2083
        %v2156 = vpack.c.b16 %v2087, %v2084
        %v2157 = vpack.c.b16 %v2088, %v2085
        %v2158 = vpack.c.b16 %v2092, %v2089
        %v2159 = vpack.c.b16 %v2093, %v2090
        %v2160 = vpack.c.b16 %v2094, %v2091
        %v2161 = vpack.c.b16 %v2098, %v2095
        %v2162 = vpack.c.b16 %v2099, %v2096
        %v2163 = vpack.c.b16 %v2100, %v2097
        %v2164 = vpack.c.b16 %v2104, %v2101
        %v2165 = vpack.c.b16 %v2105, %v2102
        %v2166 = vpack.c.b16 %v2106, %v2103
        %v2167 = vpack.c.b16 %v2110, %v2107
        %v2168 = vpack.c.b16 %v2111, %v2108
        %v2169 = vpack.c.b16 %v2112, %v2109
        %v2170 = vpack.c.b16 %v2116, %v2113
        %v2171 = vpack.c.b16 %v2117, %v2114
        %v2172 = vpack.c.b16 %v2118, %v2115
        %v2173 = vpack.c.b16 %v2122, %v2119
        %v2174 = vpack.c.b16 %v2123, %v2120
        %v2175 = vpack.c.b16 %v2124, %v2121
        %v2176 = vpack.c.b16 %v2128, %v2125
        %v2177 = vpack.c.b16 %v2129, %v2126
        %v2178 = vpack.c.b16 %v2130, %v2127
        %v2275 = vunpack.c.l.b16 %v1923
        %v2276 = vunpack.c.l.b16 %v1924
        %v2277 = vunpack.c.l.b16 %v1925
        %v2278 = vunpack.c.l.b16 %v1926
        %v2279 = vunpack.c.l.b16 %v1927
        %v2280 = vunpack.c.l.b16 %v1928
        %v2281 = vunpack.c.l.b16 %v1929
        %v2282 = vunpack.c.l.b16 %v1930
        %v2283 = vunpack.c.l.b16 %v1931
        %v2284 = vunpack.c.l.b16 %v1932
        %v2285 = vunpack.c.l.b16 %v1933
        %v2286 = vunpack.c.l.b16 %v1934
        %v2287 = vunpack.c.l.b16 %v1935
        %v2288 = vunpack.c.l.b16 %v1936
        %v2289 = vunpack.c.l.b16 %v1937
        %v2290 = vunpack.c.l.b16 %v1938
        %v2291 = vunpack.c.l.b16 %v1939
        %v2292 = vunpack.c.l.b16 %v1940
        %v2293 = vunpack.c.l.b16 %v1941
        %v2294 = vunpack.c.l.b16 %v1942
        %v2295 = vunpack.c.l.b16 %v1943
        %v2296 = vunpack.c.l.b16 %v1944
        %v2297 = vunpack.c.l.b16 %v1945
        %v2298 = vunpack.c.l.b16 %v1946
        %v2299 = vunpack.c.l.b16 %v1947
        %v2300 = vunpack.c.l.b16 %v1948
        %v2301 = vunpack.c.l.b16 %v1949
        %v2302 = vunpack.c.l.b16 %v1950
        %v2303 = vunpack.c.l.b16 %v1951
        %v2304 = vunpack.c.l.b16 %v1952
        %v2305 = vunpack.c.l.b16 %v1953
        %v2306 = vunpack.c.l.b16 %v1954
        %v2307 = vunpack.c.l.b16 %v1955
        %v2308 = vunpack.c.l.b16 %v1956
        %v2309 = vunpack.c.l.b16 %v1957
        %v2310 = vunpack.c.l.b16 %v1958
        %v2311 = vunpack.c.l.b16 %v1959
        %v2312 = vunpack.c.l.b16 %v1960
        %v2313 = vunpack.c.l.b16 %v1961
        %v2314 = vunpack.c.l.b16 %v1962
        %v2315 = vunpack.c.l.b16 %v1963
        %v2316 = vunpack.c.l.b16 %v1964
        %v2317 = vunpack.c.l.b16 %v1965
        %v2318 = vunpack.c.l.b16 %v1966
        %v2319 = vunpack.c.l.b16 %v1967
        %v2320 = vunpack.c.l.b16 %v1968
        %v2321 = vunpack.c.l.b16 %v1969
        %v2322 = vunpack.c.l.b16 %v1970
        %v2323 = vpack.c.b16 %v2276, %v2275
        %v2324 = vpack.c.b16 %v2278, %v2277
        %v2325 = vpack.c.b16 %v2280, %v2279
        %v2326 = vpack.c.b16 %v2282, %v2281
        %v2327 = vpack.c.b16 %v2284, %v2283
        %v2328 = vpack.c.b16 %v2286, %v2285
        %v2329 = vpack.c.b16 %v2288, %v2287
        %v2330 = vpack.c.b16 %v2290, %v2289
        %v2331 = vpack.c.b16 %v2292, %v2291
        %v2332 = vpack.c.b16 %v2294, %v2293
        %v2333 = vpack.c.b16 %v2296, %v2295
        %v2334 = vpack.c.b16 %v2298, %v2297
        %v2335 = vpack.c.b16 %v2300, %v2299
        %v2336 = vpack.c.b16 %v2302, %v2301
        %v2337 = vpack.c.b16 %v2304, %v2303
        %v2338 = vpack.c.b16 %v2306, %v2305
        %v2339 = vpack.c.b16 %v2308, %v2307
        %v2340 = vpack.c.b16 %v2310, %v2309
        %v2341 = vpack.c.b16 %v2312, %v2311
        %v2342 = vpack.c.b16 %v2314, %v2313
        %v2343 = vpack.c.b16 %v2316, %v2315
        %v2344 = vpack.c.b16 %v2318, %v2317
        %v2345 = vpack.c.b16 %v2320, %v2319
        %v2346 = vpack.c.b16 %v2322, %v2321
        %2371 = vmatprep.subr.bf16.mxu0 0
        %2372 = vmatpush1.bf16.msra.mxu0 %v2330
        %2373 = vmatprep.subr.bf16.mxu0 0
        %2374 = vmatpush1.bf16.msra.mxu0 %v2329
        %2375 = vmatprep.subr.bf16.mxu0 0
        %2376 = vmatpush1.bf16.msra.mxu0 %v2328
        %2377 = vmatprep.subr.bf16.mxu0 0
        %2378 = vmatpush1.bf16.msra.mxu0 %v2327
        %2379 = vmatprep.subr.bf16.mxu0 0
        %2380 = vmatpush1.bf16.msra.mxu0 %v2326
        %2381 = vmatprep.subr.bf16.mxu0 0
        %2382 = vmatpush1.bf16.msra.mxu0 %v2325
        %2383 = vmatprep.subr.bf16.mxu0 0
        %2384 = vmatpush1.bf16.msra.mxu0 %v2324
        %2385 = vmatprep.subr.bf16.mxu0 0
        %2386 = vmatpush1.bf16.msra.mxu0 %v2323
        %2387 = vmatprep.subr.bf16.mxu0 0
        %2388 = vmatpush2.bf16.msra.mxu0 %v2338
        %2389 = vmatprep.subr.bf16.mxu0 0
        %2390 = vmatpush2.bf16.msra.mxu0 %v2337
        %2391 = vmatprep.subr.bf16.mxu0 0
        %2392 = vmatpush2.bf16.msra.mxu0 %v2336
        %2393 = vmatprep.subr.bf16.mxu0 0
        %2394 = vmatpush2.bf16.msra.mxu0 %v2335
        %2395 = vmatprep.subr.bf16.mxu0 0
        %2396 = vmatpush2.bf16.msra.mxu0 %v2334
        %2397 = vmatprep.subr.bf16.mxu0 0
        %2398 = vmatpush2.bf16.msra.mxu0 %v2333
        %2399 = vmatprep.subr.bf16.mxu0 0
        %2400 = vmatpush2.bf16.msra.mxu0 %v2332
        %2401 = vmatprep.subr.bf16.mxu0 0
        %2402 = vmatpush2.bf16.msra.mxu0 %v2331
        %2403 = vmatprep.mubr.bf16.mxu0 %v2132
        %2404 = vmatmul.mubr.bf16.gmra.mxu0 %v2131
        %v2405 = vpop.f32.mrf.mxu0
        %v2406 = vadd.f32 0.0, %v2405
        %v2407 = vpop.f32.mrf.mxu0
        %v2408 = vpop.f32.mrf.mxu0
        %v2409 = vadd.f32 0.0, %v2408
        %v2410 = vpop.f32.mrf.mxu0
        %2411 = vmatprep.mubr.bf16.mxu0 %v2135
        %2412 = vmatmul.mubr.bf16.gmra.mxu0 %v2134
        %v2413 = vpop.f32.mrf.mxu0
        %v2414 = vadd.f32 0.0, %v2413
        %v2415 = vpop.f32.mrf.mxu0
        %v2416 = vpop.f32.mrf.mxu0
        %v2417 = vadd.f32 0.0, %v2416
        %v2418 = vpop.f32.mrf.mxu0
        %2419 = vmatprep.mubr.bf16.mxu0 %v2138
        %2420 = vmatmul.mubr.bf16.gmra.mxu0 %v2137
        %v2421 = vpop.f32.mrf.mxu0
        %v2422 = vadd.f32 0.0, %v2421
        %v2423 = vpop.f32.mrf.mxu0
        %v2424 = vpop.f32.mrf.mxu0
        %v2425 = vadd.f32 0.0, %v2424
        %v2426 = vpop.f32.mrf.mxu0
        %2427 = vmatprep.mubr.bf16.mxu0 %v2141
        %2428 = vmatmul.mubr.bf16.gmra.mxu0 %v2140
        %v2429 = vpop.f32.mrf.mxu0
        %v2430 = vadd.f32 0.0, %v2429
        %v2431 = vpop.f32.mrf.mxu0
        %v2432 = vpop.f32.mrf.mxu0
        %v2433 = vadd.f32 0.0, %v2432
        %v2434 = vpop.f32.mrf.mxu0
        %2435 = vmatprep.mubr.bf16.mxu0 %v2144
        %2436 = vmatmul.mubr.bf16.gmra.mxu0 %v2143
        %v2437 = vpop.f32.mrf.mxu0
        %v2438 = vadd.f32 0.0, %v2437
        %v2439 = vpop.f32.mrf.mxu0
        %v2440 = vpop.f32.mrf.mxu0
        %v2441 = vadd.f32 0.0, %v2440
        %v2442 = vpop.f32.mrf.mxu0
        %2443 = vmatprep.mubr.bf16.mxu0 %v2147
        %2444 = vmatmul.mubr.bf16.gmra.mxu0 %v2146
        %v2445 = vpop.f32.mrf.mxu0
        %v2446 = vadd.f32 0.0, %v2445
        %v2447 = vpop.f32.mrf.mxu0
        %v2448 = vpop.f32.mrf.mxu0
        %v2449 = vadd.f32 0.0, %v2448
        %v2450 = vpop.f32.mrf.mxu0
        %2451 = vmatprep.mubr.bf16.mxu0 %v2150
        %2452 = vmatmul.mubr.bf16.gmra.mxu0 %v2149
        %v2453 = vpop.f32.mrf.mxu0
        %v2454 = vadd.f32 0.0, %v2453
        %v2455 = vpop.f32.mrf.mxu0
        %v2456 = vpop.f32.mrf.mxu0
        %v2457 = vadd.f32 0.0, %v2456
        %v2458 = vpop.f32.mrf.mxu0
        %2459 = vmatprep.mubr.bf16.mxu0 %v2153
        %2460 = vmatmul.mubr.bf16.gmra.mxu0 %v2152
        %v2461 = vpop.f32.mrf.mxu0
        %v2462 = vadd.f32 0.0, %v2461
        %v2463 = vpop.f32.mrf.mxu0
        %v2464 = vpop.f32.mrf.mxu0
        %v2465 = vadd.f32 0.0, %v2464
        %v2466 = vpop.f32.mrf.mxu0
        %2467 = vmatprep.mubr.bf16.mxu0 %v2156
        %2468 = vmatmul.mubr.bf16.gmra.mxu0 %v2155
        %v2469 = vpop.f32.mrf.mxu0
        %v2470 = vadd.f32 0.0, %v2469
        %v2471 = vpop.f32.mrf.mxu0
        %v2472 = vpop.f32.mrf.mxu0
        %v2473 = vadd.f32 0.0, %v2472
        %v2474 = vpop.f32.mrf.mxu0
        %2475 = vmatprep.mubr.bf16.mxu0 %v2159
        %2476 = vmatmul.mubr.bf16.gmra.mxu0 %v2158
        %v2477 = vpop.f32.mrf.mxu0
        %v2478 = vadd.f32 0.0, %v2477
        %v2479 = vpop.f32.mrf.mxu0
        %v2480 = vpop.f32.mrf.mxu0
        %v2481 = vadd.f32 0.0, %v2480
        %v2482 = vpop.f32.mrf.mxu0
        %2483 = vmatprep.mubr.bf16.mxu0 %v2162
        %2484 = vmatmul.mubr.bf16.gmra.mxu0 %v2161
        %v2485 = vpop.f32.mrf.mxu0
        %v2486 = vadd.f32 0.0, %v2485
        %v2487 = vpop.f32.mrf.mxu0
        %v2488 = vpop.f32.mrf.mxu0
        %v2489 = vadd.f32 0.0, %v2488
        %v2490 = vpop.f32.mrf.mxu0
        %2491 = vmatprep.mubr.bf16.mxu0 %v2165
        %2492 = vmatmul.mubr.bf16.gmra.mxu0 %v2164
        %v2493 = vpop.f32.mrf.mxu0
        %v2494 = vadd.f32 0.0, %v2493
        %v2495 = vpop.f32.mrf.mxu0
        %v2496 = vpop.f32.mrf.mxu0
        %v2497 = vadd.f32 0.0, %v2496
        %v2498 = vpop.f32.mrf.mxu0
        %2499 = vmatprep.mubr.bf16.mxu0 %v2168
        %2500 = vmatmul.mubr.bf16.gmra.mxu0 %v2167
        %v2501 = vpop.f32.mrf.mxu0
        %v2502 = vadd.f32 0.0, %v2501
        %v2503 = vpop.f32.mrf.mxu0
        %v2504 = vpop.f32.mrf.mxu0
        %v2505 = vadd.f32 0.0, %v2504
        %v2506 = vpop.f32.mrf.mxu0
        %2507 = vmatprep.mubr.bf16.mxu0 %v2171
        %2508 = vmatmul.mubr.bf16.gmra.mxu0 %v2170
        %v2509 = vpop.f32.mrf.mxu0
        %v2510 = vadd.f32 0.0, %v2509
        %v2511 = vpop.f32.mrf.mxu0
        %v2512 = vpop.f32.mrf.mxu0
        %v2513 = vadd.f32 0.0, %v2512
        %v2514 = vpop.f32.mrf.mxu0
        %2515 = vmatprep.mubr.bf16.mxu0 %v2174
        %2516 = vmatmul.mubr.bf16.gmra.mxu0 %v2173
        %v2517 = vpop.f32.mrf.mxu0
        %v2518 = vadd.f32 0.0, %v2517
        %v2519 = vpop.f32.mrf.mxu0
        %v2520 = vpop.f32.mrf.mxu0
        %v2521 = vadd.f32 0.0, %v2520
        %v2522 = vpop.f32.mrf.mxu0
        %2523 = vmatprep.mubr.bf16.mxu0 %v2177
        %2524 = vmatmul.mubr.bf16.gmra.mxu0 %v2176
        %v2525 = vpop.f32.mrf.mxu0
        %v2526 = vadd.f32 0.0, %v2525
        %v2527 = vpop.f32.mrf.mxu0
        %v2528 = vpop.f32.mrf.mxu0
        %v2529 = vadd.f32 0.0, %v2528
        %v2530 = vpop.f32.mrf.mxu0
        %2531 = vdwg.mxu0
        %2532 = vmatprep.subr.bf16.mxu0 0
        %2533 = vmatpush1.bf16.msra.mxu0 %v2346
        %2534 = vmatprep.subr.bf16.mxu0 0
        %2535 = vmatpush1.bf16.msra.mxu0 %v2345
        %2536 = vmatprep.subr.bf16.mxu0 0
        %2537 = vmatpush1.bf16.msra.mxu0 %v2344
        %2538 = vmatprep.subr.bf16.mxu0 0
        %2539 = vmatpush1.bf16.msra.mxu0 %v2343
        %2540 = vmatprep.subr.bf16.mxu0 0
        %2541 = vmatpush1.bf16.msra.mxu0 %v2342
        %2542 = vmatprep.subr.bf16.mxu0 0
        %2543 = vmatpush1.bf16.msra.mxu0 %v2341
        %2544 = vmatprep.subr.bf16.mxu0 0
        %2545 = vmatpush1.bf16.msra.mxu0 %v2340
        %2546 = vmatprep.subr.bf16.mxu0 0
        %2547 = vmatpush1.bf16.msra.mxu0 %v2339
        %2548 = vmatprep.subr.bf16.mxu0 0
        %2549 = vmatpush2.bf16.msra.mxu0 0
        %2550 = vmatprep.subr.bf16.mxu0 0
        %2551 = vmatpush2.bf16.msra.mxu0 0
        %2552 = vmatprep.subr.bf16.mxu0 0
        %2553 = vmatpush2.bf16.msra.mxu0 0
        %2554 = vmatprep.subr.bf16.mxu0 0
        %2555 = vmatpush2.bf16.msra.mxu0 0
        %2556 = vmatprep.subr.bf16.mxu0 0
        %2557 = vmatpush2.bf16.msra.mxu0 0
        %2558 = vmatprep.subr.bf16.mxu0 0
        %2559 = vmatpush2.bf16.msra.mxu0 0
        %2560 = vmatprep.subr.bf16.mxu0 0
        %2561 = vmatpush2.bf16.msra.mxu0 0
        %2562 = vmatprep.subr.bf16.mxu0 0
        %2563 = vmatpush2.bf16.msra.mxu0 0
        %2564 = vmatprep.mubr.bf16.mxu0 0
        %2565 = vmatmul.mubr.bf16.gmra.mxu0 %v2133
        %v2566 = vpop.f32.mrf.mxu0
        %v2567 = vadd.f32 %v2406, %v2566
        %v2568 = vpop.f32.mrf.mxu0
        %v2569 = vpop.f32.mrf.mxu0
        %v2570 = vadd.f32 %v2409, %v2569
        %v2571 = vpop.f32.mrf.mxu0
        %2572 = vmatprep.mubr.bf16.mxu0 0
        %2573 = vmatmul.mubr.bf16.gmra.mxu0 %v2136
        %v2574 = vpop.f32.mrf.mxu0
        %v2575 = vadd.f32 %v2414, %v2574
        %v2576 = vpop.f32.mrf.mxu0
        %v2577 = vpop.f32.mrf.mxu0
        %v2578 = vadd.f32 %v2417, %v2577
        %v2579 = vpop.f32.mrf.mxu0
        %2580 = vmatprep.mubr.bf16.mxu0 0
        %2581 = vmatmul.mubr.bf16.gmra.mxu0 %v2139
        %v2582 = vpop.f32.mrf.mxu0
        %v2583 = vadd.f32 %v2422, %v2582
        %v2584 = vpop.f32.mrf.mxu0
        %v2585 = vpop.f32.mrf.mxu0
        %v2586 = vadd.f32 %v2425, %v2585
        %v2587 = vpop.f32.mrf.mxu0
        %2588 = vmatprep.mubr.bf16.mxu0 0
        %2589 = vmatmul.mubr.bf16.gmra.mxu0 %v2142
        %v2590 = vpop.f32.mrf.mxu0
        %v2591 = vadd.f32 %v2430, %v2590
        %v2592 = vpop.f32.mrf.mxu0
        %v2593 = vpop.f32.mrf.mxu0
        %v2594 = vadd.f32 %v2433, %v2593
        %v2595 = vpop.f32.mrf.mxu0
        %2596 = vmatprep.mubr.bf16.mxu0 0
        %2597 = vmatmul.mubr.bf16.gmra.mxu0 %v2145
        %v2598 = vpop.f32.mrf.mxu0
        %v2599 = vadd.f32 %v2438, %v2598
        %v2600 = vpop.f32.mrf.mxu0
        %v2601 = vpop.f32.mrf.mxu0
        %v2602 = vadd.f32 %v2441, %v2601
        %v2603 = vpop.f32.mrf.mxu0
        %2604 = vmatprep.mubr.bf16.mxu0 0
        %2605 = vmatmul.mubr.bf16.gmra.mxu0 %v2148
        %v2606 = vpop.f32.mrf.mxu0
        %v2607 = vadd.f32 %v2446, %v2606
        %v2608 = vpop.f32.mrf.mxu0
        %v2609 = vpop.f32.mrf.mxu0
        %v2610 = vadd.f32 %v2449, %v2609
        %v2611 = vpop.f32.mrf.mxu0
        %2612 = vmatprep.mubr.bf16.mxu0 0
        %2613 = vmatmul.mubr.bf16.gmra.mxu0 %v2151
        %v2614 = vpop.f32.mrf.mxu0
        %v2615 = vadd.f32 %v2454, %v2614
        %v2616 = vpop.f32.mrf.mxu0
        %v2617 = vpop.f32.mrf.mxu0
        %v2618 = vadd.f32 %v2457, %v2617
        %v2619 = vpop.f32.mrf.mxu0
        %2620 = vmatprep.mubr.bf16.mxu0 0
        %2621 = vmatmul.mubr.bf16.gmra.mxu0 %v2154
        %v2622 = vpop.f32.mrf.mxu0
        %v2623 = vadd.f32 %v2462, %v2622
        %v2624 = vpop.f32.mrf.mxu0
        %v2625 = vpop.f32.mrf.mxu0
        %v2626 = vadd.f32 %v2465, %v2625
        %v2627 = vpop.f32.mrf.mxu0
        %2628 = vmatprep.mubr.bf16.mxu0 0
        %2629 = vmatmul.mubr.bf16.gmra.mxu0 %v2157
        %v2630 = vpop.f32.mrf.mxu0
        %v2631 = vadd.f32 %v2470, %v2630
        %v2632 = vpop.f32.mrf.mxu0
        %v2633 = vpop.f32.mrf.mxu0
        %v2634 = vadd.f32 %v2473, %v2633
        %v2635 = vpop.f32.mrf.mxu0
        %2636 = vmatprep.mubr.bf16.mxu0 0
        %2637 = vmatmul.mubr.bf16.gmra.mxu0 %v2160
        %v2638 = vpop.f32.mrf.mxu0
        %v2639 = vadd.f32 %v2478, %v2638
        %v2640 = vpop.f32.mrf.mxu0
        %v2641 = vpop.f32.mrf.mxu0
        %v2642 = vadd.f32 %v2481, %v2641
        %v2643 = vpop.f32.mrf.mxu0
        %2644 = vmatprep.mubr.bf16.mxu0 0
        %2645 = vmatmul.mubr.bf16.gmra.mxu0 %v2163
        %v2646 = vpop.f32.mrf.mxu0
        %v2647 = vadd.f32 %v2486, %v2646
        %v2648 = vpop.f32.mrf.mxu0
        %v2649 = vpop.f32.mrf.mxu0
        %v2650 = vadd.f32 %v2489, %v2649
        %v2651 = vpop.f32.mrf.mxu0
        %2652 = vmatprep.mubr.bf16.mxu0 0
        %2653 = vmatmul.mubr.bf16.gmra.mxu0 %v2166
        %v2654 = vpop.f32.mrf.mxu0
        %v2655 = vadd.f32 %v2494, %v2654
        %v2656 = vpop.f32.mrf.mxu0
        %v2657 = vpop.f32.mrf.mxu0
        %v2658 = vadd.f32 %v2497, %v2657
        %v2659 = vpop.f32.mrf.mxu0
        %2660 = vmatprep.mubr.bf16.mxu0 0
        %2661 = vmatmul.mubr.bf16.gmra.mxu0 %v2169
        %v2662 = vpop.f32.mrf.mxu0
        %v2663 = vadd.f32 %v2502, %v2662
        %v2664 = vpop.f32.mrf.mxu0
        %v2665 = vpop.f32.mrf.mxu0
        %v2666 = vadd.f32 %v2505, %v2665
        %v2667 = vpop.f32.mrf.mxu0
        %2668 = vmatprep.mubr.bf16.mxu0 0
        %2669 = vmatmul.mubr.bf16.gmra.mxu0 %v2172
        %v2670 = vpop.f32.mrf.mxu0
        %v2671 = vadd.f32 %v2510, %v2670
        %v2672 = vpop.f32.mrf.mxu0
        %v2673 = vpop.f32.mrf.mxu0
        %v2674 = vadd.f32 %v2513, %v2673
        %v2675 = vpop.f32.mrf.mxu0
        %2676 = vmatprep.mubr.bf16.mxu0 0
        %2677 = vmatmul.mubr.bf16.gmra.mxu0 %v2175
        %v2678 = vpop.f32.mrf.mxu0
        %v2679 = vadd.f32 %v2518, %v2678
        %v2680 = vpop.f32.mrf.mxu0
        %v2681 = vpop.f32.mrf.mxu0
        %v2682 = vadd.f32 %v2521, %v2681
        %v2683 = vpop.f32.mrf.mxu0
        %2684 = vmatprep.mubr.bf16.mxu0 0
        %2685 = vmatmul.mubr.bf16.gmra.mxu0 %v2178
        %v2686 = vpop.f32.mrf.mxu0
        %v2687 = vadd.f32 %v2526, %v2686
        %v2688 = vpop.f32.mrf.mxu0
        %v2689 = vpop.f32.mrf.mxu0
        %v2690 = vadd.f32 %v2529, %v2689
        %v2691 = vpop.f32.mrf.mxu0
        %2692 = vdwg.mxu0
        %v2757 = vunpack.c.l.b16 %v1746
        %v2758 = vunpack.c.h.b16 %v1746
        %v2759 = vunpack.c.l.b16 %v1747
        %v2760 = vunpack.c.l.b16 %v1748
        %v2761 = vunpack.c.h.b16 %v1748
        %v2762 = vunpack.c.l.b16 %v1749
        %v2763 = vunpack.c.l.b16 %v1750
        %v2764 = vunpack.c.h.b16 %v1750
        %v2765 = vunpack.c.l.b16 %v1751
        %v2766 = vunpack.c.l.b16 %v1752
        %v2767 = vunpack.c.h.b16 %v1752
        %v2768 = vunpack.c.l.b16 %v1753
        %v2769 = vunpack.c.l.b16 %v1754
        %v2770 = vunpack.c.h.b16 %v1754
        %v2771 = vunpack.c.l.b16 %v1755
        %v2772 = vunpack.c.l.b16 %v1756
        %v2773 = vunpack.c.h.b16 %v1756
        %v2774 = vunpack.c.l.b16 %v1757
        %v2775 = vunpack.c.l.b16 %v1758
        %v2776 = vunpack.c.h.b16 %v1758
        %v2777 = vunpack.c.l.b16 %v1759
        %v2778 = vunpack.c.l.b16 %v1760
        %v2779 = vunpack.c.h.b16 %v1760
        %v2780 = vunpack.c.l.b16 %v1761
        %v2781 = vunpack.c.l.b16 %v1762
        %v2782 = vunpack.c.h.b16 %v1762
        %v2783 = vunpack.c.l.b16 %v1763
        %v2784 = vunpack.c.l.b16 %v1764
        %v2785 = vunpack.c.h.b16 %v1764
        %v2786 = vunpack.c.l.b16 %v1765
        %v2787 = vunpack.c.l.b16 %v1766
        %v2788 = vunpack.c.h.b16 %v1766
        %v2789 = vunpack.c.l.b16 %v1767
        %v2790 = vunpack.c.l.b16 %v1768
        %v2791 = vunpack.c.h.b16 %v1768
        %v2792 = vunpack.c.l.b16 %v1769
        %v2793 = vunpack.c.l.b16 %v1770
        %v2794 = vunpack.c.h.b16 %v1770
        %v2795 = vunpack.c.l.b16 %v1771
        %v2796 = vunpack.c.l.b16 %v1772
        %v2797 = vunpack.c.h.b16 %v1772
        %v2798 = vunpack.c.l.b16 %v1773
        %v2799 = vunpack.c.l.b16 %v1774
        %v2800 = vunpack.c.h.b16 %v1774
        %v2801 = vunpack.c.l.b16 %v1775
        %v2802 = vunpack.c.l.b16 %v1776
        %v2803 = vunpack.c.h.b16 %v1776
        %v2804 = vunpack.c.l.b16 %v1777
        %v2805 = vunpack.c.l.b16 %v1778
        %v2806 = vunpack.c.h.b16 %v1778
        %v2807 = vunpack.c.l.b16 %v1779
        %v2808 = vunpack.c.l.b16 %v1780
        %v2809 = vunpack.c.h.b16 %v1780
        %v2810 = vunpack.c.l.b16 %v1781
        %v2811 = vunpack.c.l.b16 %v1782
        %v2812 = vunpack.c.h.b16 %v1782
        %v2813 = vunpack.c.l.b16 %v1783
        %v2814 = vunpack.c.l.b16 %v1784
        %v2815 = vunpack.c.h.b16 %v1784
        %v2816 = vunpack.c.l.b16 %v1785
        %v2817 = vunpack.c.l.b16 %v1786
        %v2818 = vunpack.c.h.b16 %v1786
        %v2819 = vunpack.c.l.b16 %v1787
        %v2820 = vunpack.c.l.b16 %v1788
        %v2821 = vunpack.c.h.b16 %v1788
        %v2822 = vunpack.c.l.b16 %v1789
        %v2823 = vunpack.c.l.b16 %v1790
        %v2824 = vunpack.c.h.b16 %v1790
        %v2825 = vunpack.c.l.b16 %v1791
        %v2826 = vunpack.c.l.b16 %v1792
        %v2827 = vunpack.c.h.b16 %v1792
        %v2828 = vunpack.c.l.b16 %v1793
        %v2829 = vunpack.c.l.b16 %v1794
        %v2830 = vunpack.c.h.b16 %v1794
        %v2831 = vunpack.c.l.b16 %v1795
        %v2832 = vunpack.c.l.b16 %v1796
        %v2833 = vunpack.c.h.b16 %v1796
        %v2834 = vunpack.c.l.b16 %v1797
        %v2835 = vunpack.c.l.b16 %v1798
        %v2836 = vunpack.c.h.b16 %v1798
        %v2837 = vunpack.c.l.b16 %v1799
        %v2838 = vunpack.c.l.b16 %v1800
        %v2839 = vunpack.c.h.b16 %v1800
        %v2840 = vunpack.c.l.b16 %v1801
        %v2841 = vunpack.c.l.b16 %v1802
        %v2842 = vunpack.c.h.b16 %v1802
        %v2843 = vunpack.c.l.b16 %v1803
        %v2844 = vunpack.c.l.b16 %v1804
        %v2845 = vunpack.c.h.b16 %v1804
        %v2846 = vunpack.c.l.b16 %v1805
        %v2847 = vunpack.c.l.b16 %v1806
        %v2848 = vunpack.c.h.b16 %v1806
        %v2849 = vunpack.c.l.b16 %v1807
        %v2850 = vunpack.c.l.b16 %v1808
        %v2851 = vunpack.c.h.b16 %v1808
        %v2852 = vunpack.c.l.b16 %v1809
        %v2853 = vpack.c.b16 %v2760, %v2757
        %v2854 = vpack.c.b16 %v2761, %v2758
        %v2855 = vpack.c.b16 %v2762, %v2759
        %v2856 = vpack.c.b16 %v2766, %v2763
        %v2857 = vpack.c.b16 %v2767, %v2764
        %v2858 = vpack.c.b16 %v2768, %v2765
        %v2859 = vpack.c.b16 %v2772, %v2769
        %v2860 = vpack.c.b16 %v2773, %v2770
        %v2861 = vpack.c.b16 %v2774, %v2771
        %v2862 = vpack.c.b16 %v2778, %v2775
        %v2863 = vpack.c.b16 %v2779, %v2776
        %v2864 = vpack.c.b16 %v2780, %v2777
        %v2865 = vpack.c.b16 %v2784, %v2781
        %v2866 = vpack.c.b16 %v2785, %v2782
        %v2867 = vpack.c.b16 %v2786, %v2783
        %v2868 = vpack.c.b16 %v2790, %v2787
        %v2869 = vpack.c.b16 %v2791, %v2788
        %v2870 = vpack.c.b16 %v2792, %v2789
        %v2871 = vpack.c.b16 %v2796, %v2793
        %v2872 = vpack.c.b16 %v2797, %v2794
        %v2873 = vpack.c.b16 %v2798, %v2795
        %v2874 = vpack.c.b16 %v2802, %v2799
        %v2875 = vpack.c.b16 %v2803, %v2800
        %v2876 = vpack.c.b16 %v2804, %v2801
        %v2877 = vpack.c.b16 %v2808, %v2805
        %v2878 = vpack.c.b16 %v2809, %v2806
        %v2879 = vpack.c.b16 %v2810, %v2807
        %v2880 = vpack.c.b16 %v2814, %v2811
        %v2881 = vpack.c.b16 %v2815, %v2812
        %v2882 = vpack.c.b16 %v2816, %v2813
        %v2883 = vpack.c.b16 %v2820, %v2817
        %v2884 = vpack.c.b16 %v2821, %v2818
        %v2885 = vpack.c.b16 %v2822, %v2819
        %v2886 = vpack.c.b16 %v2826, %v2823
        %v2887 = vpack.c.b16 %v2827, %v2824
        %v2888 = vpack.c.b16 %v2828, %v2825
        %v2889 = vpack.c.b16 %v2832, %v2829
        %v2890 = vpack.c.b16 %v2833, %v2830
        %v2891 = vpack.c.b16 %v2834, %v2831
        %v2892 = vpack.c.b16 %v2838, %v2835
        %v2893 = vpack.c.b16 %v2839, %v2836
        %v2894 = vpack.c.b16 %v2840, %v2837
        %v2895 = vpack.c.b16 %v2844, %v2841
        %v2896 = vpack.c.b16 %v2845, %v2842
        %v2897 = vpack.c.b16 %v2846, %v2843
        %v2898 = vpack.c.b16 %v2850, %v2847
        %v2899 = vpack.c.b16 %v2851, %v2848
        %v2900 = vpack.c.b16 %v2852, %v2849
        %v2997 = vunpack.c.l.b16 %v1810
        %v2998 = vunpack.c.l.b16 %v1811
        %v2999 = vunpack.c.l.b16 %v1812
        %v3000 = vunpack.c.l.b16 %v1813
        %v3001 = vunpack.c.l.b16 %v1814
        %v3002 = vunpack.c.l.b16 %v1815
        %v3003 = vunpack.c.l.b16 %v1816
        %v3004 = vunpack.c.l.b16 %v1817
        %v3005 = vunpack.c.l.b16 %v1818
        %v3006 = vunpack.c.l.b16 %v1819
        %v3007 = vunpack.c.l.b16 %v1820
        %v3008 = vunpack.c.l.b16 %v1821
        %v3009 = vunpack.c.l.b16 %v1822
        %v3010 = vunpack.c.l.b16 %v1823
        %v3011 = vunpack.c.l.b16 %v1824
        %v3012 = vunpack.c.l.b16 %v1825
        %v3013 = vunpack.c.l.b16 %v1826
        %v3014 = vunpack.c.l.b16 %v1827
        %v3015 = vunpack.c.l.b16 %v1828
        %v3016 = vunpack.c.l.b16 %v1829
        %v3017 = vunpack.c.l.b16 %v1830
        %v3018 = vunpack.c.l.b16 %v1831
        %v3019 = vunpack.c.l.b16 %v1832
        %v3020 = vunpack.c.l.b16 %v1833
        %v3021 = vunpack.c.l.b16 %v1834
        %v3022 = vunpack.c.l.b16 %v1835
        %v3023 = vunpack.c.l.b16 %v1836
        %v3024 = vunpack.c.l.b16 %v1837
        %v3025 = vunpack.c.l.b16 %v1838
        %v3026 = vunpack.c.l.b16 %v1839
        %v3027 = vunpack.c.l.b16 %v1840
        %v3028 = vunpack.c.l.b16 %v1841
        %v3029 = vunpack.c.l.b16 %v1842
        %v3030 = vunpack.c.l.b16 %v1843
        %v3031 = vunpack.c.l.b16 %v1844
        %v3032 = vunpack.c.l.b16 %v1845
        %v3033 = vunpack.c.l.b16 %v1846
        %v3034 = vunpack.c.l.b16 %v1847
        %v3035 = vunpack.c.l.b16 %v1848
        %v3036 = vunpack.c.l.b16 %v1849
        %v3037 = vunpack.c.l.b16 %v1850
        %v3038 = vunpack.c.l.b16 %v1851
        %v3039 = vunpack.c.l.b16 %v1852
        %v3040 = vunpack.c.l.b16 %v1853
        %v3041 = vunpack.c.l.b16 %v1854
        %v3042 = vunpack.c.l.b16 %v1855
        %v3043 = vunpack.c.l.b16 %v1856
        %v3044 = vunpack.c.l.b16 %v1857
        %v3045 = vpack.c.b16 %v2998, %v2997
        %v3046 = vpack.c.b16 %v3000, %v2999
        %v3047 = vpack.c.b16 %v3002, %v3001
        %v3048 = vpack.c.b16 %v3004, %v3003
        %v3049 = vpack.c.b16 %v3006, %v3005
        %v3050 = vpack.c.b16 %v3008, %v3007
        %v3051 = vpack.c.b16 %v3010, %v3009
        %v3052 = vpack.c.b16 %v3012, %v3011
        %v3053 = vpack.c.b16 %v3014, %v3013
        %v3054 = vpack.c.b16 %v3016, %v3015
        %v3055 = vpack.c.b16 %v3018, %v3017
        %v3056 = vpack.c.b16 %v3020, %v3019
        %v3057 = vpack.c.b16 %v3022, %v3021
        %v3058 = vpack.c.b16 %v3024, %v3023
        %v3059 = vpack.c.b16 %v3026, %v3025
        %v3060 = vpack.c.b16 %v3028, %v3027
        %v3061 = vpack.c.b16 %v3030, %v3029
        %v3062 = vpack.c.b16 %v3032, %v3031
        %v3063 = vpack.c.b16 %v3034, %v3033
        %v3064 = vpack.c.b16 %v3036, %v3035
        %v3065 = vpack.c.b16 %v3038, %v3037
        %v3066 = vpack.c.b16 %v3040, %v3039
        %v3067 = vpack.c.b16 %v3042, %v3041
        %v3068 = vpack.c.b16 %v3044, %v3043
        %3093 = vmatprep.subr.bf16.mxu0 0
        %3094 = vmatpush1.bf16.msra.mxu0 %v3052
        %3095 = vmatprep.subr.bf16.mxu0 0
        %3096 = vmatpush1.bf16.msra.mxu0 %v3051
        %3097 = vmatprep.subr.bf16.mxu0 0
        %3098 = vmatpush1.bf16.msra.mxu0 %v3050
        %3099 = vmatprep.subr.bf16.mxu0 0
        %3100 = vmatpush1.bf16.msra.mxu0 %v3049
        %3101 = vmatprep.subr.bf16.mxu0 0
        %3102 = vmatpush1.bf16.msra.mxu0 %v3048
        %3103 = vmatprep.subr.bf16.mxu0 0
        %3104 = vmatpush1.bf16.msra.mxu0 %v3047
        %3105 = vmatprep.subr.bf16.mxu0 0
        %3106 = vmatpush1.bf16.msra.mxu0 %v3046
        %3107 = vmatprep.subr.bf16.mxu0 0
        %3108 = vmatpush1.bf16.msra.mxu0 %v3045
        %3109 = vmatprep.subr.bf16.mxu0 0
        %3110 = vmatpush2.bf16.msra.mxu0 %v3060
        %3111 = vmatprep.subr.bf16.mxu0 0
        %3112 = vmatpush2.bf16.msra.mxu0 %v3059
        %3113 = vmatprep.subr.bf16.mxu0 0
        %3114 = vmatpush2.bf16.msra.mxu0 %v3058
        %3115 = vmatprep.subr.bf16.mxu0 0
        %3116 = vmatpush2.bf16.msra.mxu0 %v3057
        %3117 = vmatprep.subr.bf16.mxu0 0
        %3118 = vmatpush2.bf16.msra.mxu0 %v3056
        %3119 = vmatprep.subr.bf16.mxu0 0
        %3120 = vmatpush2.bf16.msra.mxu0 %v3055
        %3121 = vmatprep.subr.bf16.mxu0 0
        %3122 = vmatpush2.bf16.msra.mxu0 %v3054
        %3123 = vmatprep.subr.bf16.mxu0 0
        %3124 = vmatpush2.bf16.msra.mxu0 %v3053
        %3125 = vmatprep.mubr.bf16.mxu0 %v2854
        %3126 = vmatmul.mubr.bf16.gmra.mxu0 %v2853
        %v3127 = vpop.f32.mrf.mxu0
        %v3128 = vadd.f32 %v2567, %v3127
        %v3129 = vpop.f32.mrf.mxu0
        %v3130 = vpop.f32.mrf.mxu0
        %v3131 = vadd.f32 %v2570, %v3130
        %v3132 = vpop.f32.mrf.mxu0
        %3133 = vmatprep.mubr.bf16.mxu0 %v2857
        %3134 = vmatmul.mubr.bf16.gmra.mxu0 %v2856
        %v3135 = vpop.f32.mrf.mxu0
        %v3136 = vadd.f32 %v2575, %v3135
        %v3137 = vpop.f32.mrf.mxu0
        %v3138 = vpop.f32.mrf.mxu0
        %v3139 = vadd.f32 %v2578, %v3138
        %v3140 = vpop.f32.mrf.mxu0
        %3141 = vmatprep.mubr.bf16.mxu0 %v2860
        %3142 = vmatmul.mubr.bf16.gmra.mxu0 %v2859
        %v3143 = vpop.f32.mrf.mxu0
        %v3144 = vadd.f32 %v2583, %v3143
        %v3145 = vpop.f32.mrf.mxu0
        %v3146 = vpop.f32.mrf.mxu0
        %v3147 = vadd.f32 %v2586, %v3146
        %v3148 = vpop.f32.mrf.mxu0
        %3149 = vmatprep.mubr.bf16.mxu0 %v2863
        %3150 = vmatmul.mubr.bf16.gmra.mxu0 %v2862
        %v3151 = vpop.f32.mrf.mxu0
        %v3152 = vadd.f32 %v2591, %v3151
        %v3153 = vpop.f32.mrf.mxu0
        %v3154 = vpop.f32.mrf.mxu0
        %v3155 = vadd.f32 %v2594, %v3154
        %v3156 = vpop.f32.mrf.mxu0
        %3157 = vmatprep.mubr.bf16.mxu0 %v2866
        %3158 = vmatmul.mubr.bf16.gmra.mxu0 %v2865
        %v3159 = vpop.f32.mrf.mxu0
        %v3160 = vadd.f32 %v2599, %v3159
        %v3161 = vpop.f32.mrf.mxu0
        %v3162 = vpop.f32.mrf.mxu0
        %v3163 = vadd.f32 %v2602, %v3162
        %v3164 = vpop.f32.mrf.mxu0
        %3165 = vmatprep.mubr.bf16.mxu0 %v2869
        %3166 = vmatmul.mubr.bf16.gmra.mxu0 %v2868
        %v3167 = vpop.f32.mrf.mxu0
        %v3168 = vadd.f32 %v2607, %v3167
        %v3169 = vpop.f32.mrf.mxu0
        %v3170 = vpop.f32.mrf.mxu0
        %v3171 = vadd.f32 %v2610, %v3170
        %v3172 = vpop.f32.mrf.mxu0
        %3173 = vmatprep.mubr.bf16.mxu0 %v2872
        %3174 = vmatmul.mubr.bf16.gmra.mxu0 %v2871
        %v3175 = vpop.f32.mrf.mxu0
        %v3176 = vadd.f32 %v2615, %v3175
        %v3177 = vpop.f32.mrf.mxu0
        %v3178 = vpop.f32.mrf.mxu0
        %v3179 = vadd.f32 %v2618, %v3178
        %v3180 = vpop.f32.mrf.mxu0
        %3181 = vmatprep.mubr.bf16.mxu0 %v2875
        %3182 = vmatmul.mubr.bf16.gmra.mxu0 %v2874
        %v3183 = vpop.f32.mrf.mxu0
        %v3184 = vadd.f32 %v2623, %v3183
        %v3185 = vpop.f32.mrf.mxu0
        %v3186 = vpop.f32.mrf.mxu0
        %v3187 = vadd.f32 %v2626, %v3186
        %v3188 = vpop.f32.mrf.mxu0
        %3189 = vmatprep.mubr.bf16.mxu0 %v2878
        %3190 = vmatmul.mubr.bf16.gmra.mxu0 %v2877
        %v3191 = vpop.f32.mrf.mxu0
        %v3192 = vadd.f32 %v2631, %v3191
        %v3193 = vpop.f32.mrf.mxu0
        %v3194 = vpop.f32.mrf.mxu0
        %v3195 = vadd.f32 %v2634, %v3194
        %v3196 = vpop.f32.mrf.mxu0
        %3197 = vmatprep.mubr.bf16.mxu0 %v2881
        %3198 = vmatmul.mubr.bf16.gmra.mxu0 %v2880
        %v3199 = vpop.f32.mrf.mxu0
        %v3200 = vadd.f32 %v2639, %v3199
        %v3201 = vpop.f32.mrf.mxu0
        %v3202 = vpop.f32.mrf.mxu0
        %v3203 = vadd.f32 %v2642, %v3202
        %v3204 = vpop.f32.mrf.mxu0
        %3205 = vmatprep.mubr.bf16.mxu0 %v2884
        %3206 = vmatmul.mubr.bf16.gmra.mxu0 %v2883
        %v3207 = vpop.f32.mrf.mxu0
        %v3208 = vadd.f32 %v2647, %v3207
        %v3209 = vpop.f32.mrf.mxu0
        %v3210 = vpop.f32.mrf.mxu0
        %v3211 = vadd.f32 %v2650, %v3210
        %v3212 = vpop.f32.mrf.mxu0
        %3213 = vmatprep.mubr.bf16.mxu0 %v2887
        %3214 = vmatmul.mubr.bf16.gmra.mxu0 %v2886
        %v3215 = vpop.f32.mrf.mxu0
        %v3216 = vadd.f32 %v2655, %v3215
        %v3217 = vpop.f32.mrf.mxu0
        %v3218 = vpop.f32.mrf.mxu0
        %v3219 = vadd.f32 %v2658, %v3218
        %v3220 = vpop.f32.mrf.mxu0
        %3221 = vmatprep.mubr.bf16.mxu0 %v2890
        %3222 = vmatmul.mubr.bf16.gmra.mxu0 %v2889
        %v3223 = vpop.f32.mrf.mxu0
        %v3224 = vadd.f32 %v2663, %v3223
        %v3225 = vpop.f32.mrf.mxu0
        %v3226 = vpop.f32.mrf.mxu0
        %v3227 = vadd.f32 %v2666, %v3226
        %v3228 = vpop.f32.mrf.mxu0
        %3229 = vmatprep.mubr.bf16.mxu0 %v2893
        %3230 = vmatmul.mubr.bf16.gmra.mxu0 %v2892
        %v3231 = vpop.f32.mrf.mxu0
        %v3232 = vadd.f32 %v2671, %v3231
        %v3233 = vpop.f32.mrf.mxu0
        %v3234 = vpop.f32.mrf.mxu0
        %v3235 = vadd.f32 %v2674, %v3234
        %v3236 = vpop.f32.mrf.mxu0
        %3237 = vmatprep.mubr.bf16.mxu0 %v2896
        %3238 = vmatmul.mubr.bf16.gmra.mxu0 %v2895
        %v3239 = vpop.f32.mrf.mxu0
        %v3240 = vadd.f32 %v2679, %v3239
        %v3241 = vpop.f32.mrf.mxu0
        %v3242 = vpop.f32.mrf.mxu0
        %v3243 = vadd.f32 %v2682, %v3242
        %v3244 = vpop.f32.mrf.mxu0
        %3245 = vmatprep.mubr.bf16.mxu0 %v2899
        %3246 = vmatmul.mubr.bf16.gmra.mxu0 %v2898
        %v3247 = vpop.f32.mrf.mxu0
        %v3248 = vadd.f32 %v2687, %v3247
        %v3249 = vpop.f32.mrf.mxu0
        %v3250 = vpop.f32.mrf.mxu0
        %v3251 = vadd.f32 %v2690, %v3250
        %v3252 = vpop.f32.mrf.mxu0
        %3253 = vdwg.mxu0
        %3254 = vmatprep.subr.bf16.mxu0 0
        %3255 = vmatpush1.bf16.msra.mxu0 %v3068
        %3256 = vmatprep.subr.bf16.mxu0 0
        %3257 = vmatpush1.bf16.msra.mxu0 %v3067
        %3258 = vmatprep.subr.bf16.mxu0 0
        %3259 = vmatpush1.bf16.msra.mxu0 %v3066
        %3260 = vmatprep.subr.bf16.mxu0 0
        %3261 = vmatpush1.bf16.msra.mxu0 %v3065
        %3262 = vmatprep.subr.bf16.mxu0 0
        %3263 = vmatpush1.bf16.msra.mxu0 %v3064
        %3264 = vmatprep.subr.bf16.mxu0 0
        %3265 = vmatpush1.bf16.msra.mxu0 %v3063
        %3266 = vmatprep.subr.bf16.mxu0 0
        %3267 = vmatpush1.bf16.msra.mxu0 %v3062
        %3268 = vmatprep.subr.bf16.mxu0 0
        %3269 = vmatpush1.bf16.msra.mxu0 %v3061
        %3270 = vmatprep.subr.bf16.mxu0 0
        %3271 = vmatpush2.bf16.msra.mxu0 0
        %3272 = vmatprep.subr.bf16.mxu0 0
        %3273 = vmatpush2.bf16.msra.mxu0 0
        %3274 = vmatprep.subr.bf16.mxu0 0
        %3275 = vmatpush2.bf16.msra.mxu0 0
        %3276 = vmatprep.subr.bf16.mxu0 0
        %3277 = vmatpush2.bf16.msra.mxu0 0
        %3278 = vmatprep.subr.bf16.mxu0 0
        %3279 = vmatpush2.bf16.msra.mxu0 0
        %3280 = vmatprep.subr.bf16.mxu0 0
        %3281 = vmatpush2.bf16.msra.mxu0 0
        %3282 = vmatprep.subr.bf16.mxu0 0
        %3283 = vmatpush2.bf16.msra.mxu0 0
        %3284 = vmatprep.subr.bf16.mxu0 0
        %3285 = vmatpush2.bf16.msra.mxu0 0
        %3286 = vmatprep.mubr.bf16.mxu0 0
        %3287 = vmatmul.mubr.bf16.gmra.mxu0 %v2855
        %v3288 = vpop.f32.mrf.mxu0
        %v3289 = vadd.f32 %v3128, %v3288
        %v3290 = vpop.f32.mrf.mxu0
        %v3291 = vpop.f32.mrf.mxu0
        %v3292 = vadd.f32 %v3131, %v3291
        %v3293 = vpop.f32.mrf.mxu0
        %3294 = vmatprep.mubr.bf16.mxu0 0
        %3295 = vmatmul.mubr.bf16.gmra.mxu0 %v2858
        %v3296 = vpop.f32.mrf.mxu0
        %v3297 = vadd.f32 %v3136, %v3296
        %v3298 = vpop.f32.mrf.mxu0
        %v3299 = vpop.f32.mrf.mxu0
        %v3300 = vadd.f32 %v3139, %v3299
        %v3301 = vpop.f32.mrf.mxu0
        %3302 = vmatprep.mubr.bf16.mxu0 0
        %3303 = vmatmul.mubr.bf16.gmra.mxu0 %v2861
        %v3304 = vpop.f32.mrf.mxu0
        %v3305 = vadd.f32 %v3144, %v3304
        %v3306 = vpop.f32.mrf.mxu0
        %v3307 = vpop.f32.mrf.mxu0
        %v3308 = vadd.f32 %v3147, %v3307
        %v3309 = vpop.f32.mrf.mxu0
        %3310 = vmatprep.mubr.bf16.mxu0 0
        %3311 = vmatmul.mubr.bf16.gmra.mxu0 %v2864
        %v3312 = vpop.f32.mrf.mxu0
        %v3313 = vadd.f32 %v3152, %v3312
        %v3314 = vpop.f32.mrf.mxu0
        %v3315 = vpop.f32.mrf.mxu0
        %v3316 = vadd.f32 %v3155, %v3315
        %v3317 = vpop.f32.mrf.mxu0
        %3318 = vmatprep.mubr.bf16.mxu0 0
        %3319 = vmatmul.mubr.bf16.gmra.mxu0 %v2867
        %v3320 = vpop.f32.mrf.mxu0
        %v3321 = vadd.f32 %v3160, %v3320
        %v3322 = vpop.f32.mrf.mxu0
        %v3323 = vpop.f32.mrf.mxu0
        %v3324 = vadd.f32 %v3163, %v3323
        %v3325 = vpop.f32.mrf.mxu0
        %3326 = vmatprep.mubr.bf16.mxu0 0
        %3327 = vmatmul.mubr.bf16.gmra.mxu0 %v2870
        %v3328 = vpop.f32.mrf.mxu0
        %v3329 = vadd.f32 %v3168, %v3328
        %v3330 = vpop.f32.mrf.mxu0
        %v3331 = vpop.f32.mrf.mxu0
        %v3332 = vadd.f32 %v3171, %v3331
        %v3333 = vpop.f32.mrf.mxu0
        %3334 = vmatprep.mubr.bf16.mxu0 0
        %3335 = vmatmul.mubr.bf16.gmra.mxu0 %v2873
        %v3336 = vpop.f32.mrf.mxu0
        %v3337 = vadd.f32 %v3176, %v3336
        %v3338 = vpop.f32.mrf.mxu0
        %v3339 = vpop.f32.mrf.mxu0
        %v3340 = vadd.f32 %v3179, %v3339
        %v3341 = vpop.f32.mrf.mxu0
        %3342 = vmatprep.mubr.bf16.mxu0 0
        %3343 = vmatmul.mubr.bf16.gmra.mxu0 %v2876
        %v3344 = vpop.f32.mrf.mxu0
        %v3345 = vadd.f32 %v3184, %v3344
        %v3346 = vpop.f32.mrf.mxu0
        %v3347 = vpop.f32.mrf.mxu0
        %v3348 = vadd.f32 %v3187, %v3347
        %v3349 = vpop.f32.mrf.mxu0
        %3350 = vmatprep.mubr.bf16.mxu0 0
        %3351 = vmatmul.mubr.bf16.gmra.mxu0 %v2879
        %v3352 = vpop.f32.mrf.mxu0
        %v3353 = vadd.f32 %v3192, %v3352
        %v3354 = vpop.f32.mrf.mxu0
        %v3355 = vpop.f32.mrf.mxu0
        %v3356 = vadd.f32 %v3195, %v3355
        %v3357 = vpop.f32.mrf.mxu0
        %3358 = vmatprep.mubr.bf16.mxu0 0
        %3359 = vmatmul.mubr.bf16.gmra.mxu0 %v2882
        %v3360 = vpop.f32.mrf.mxu0
        %v3361 = vadd.f32 %v3200, %v3360
        %v3362 = vpop.f32.mrf.mxu0
        %v3363 = vpop.f32.mrf.mxu0
        %v3364 = vadd.f32 %v3203, %v3363
        %v3365 = vpop.f32.mrf.mxu0
        %3366 = vmatprep.mubr.bf16.mxu0 0
        %3367 = vmatmul.mubr.bf16.gmra.mxu0 %v2885
        %v3368 = vpop.f32.mrf.mxu0
        %v3369 = vadd.f32 %v3208, %v3368
        %v3370 = vpop.f32.mrf.mxu0
        %v3371 = vpop.f32.mrf.mxu0
        %v3372 = vadd.f32 %v3211, %v3371
        %v3373 = vpop.f32.mrf.mxu0
        %3374 = vmatprep.mubr.bf16.mxu0 0
        %3375 = vmatmul.mubr.bf16.gmra.mxu0 %v2888
        %v3376 = vpop.f32.mrf.mxu0
        %v3377 = vadd.f32 %v3216, %v3376
        %v3378 = vpop.f32.mrf.mxu0
        %v3379 = vpop.f32.mrf.mxu0
        %v3380 = vadd.f32 %v3219, %v3379
        %v3381 = vpop.f32.mrf.mxu0
        %3382 = vmatprep.mubr.bf16.mxu0 0
        %3383 = vmatmul.mubr.bf16.gmra.mxu0 %v2891
        %v3384 = vpop.f32.mrf.mxu0
        %v3385 = vadd.f32 %v3224, %v3384
        %v3386 = vpop.f32.mrf.mxu0
        %v3387 = vpop.f32.mrf.mxu0
        %v3388 = vadd.f32 %v3227, %v3387
        %v3389 = vpop.f32.mrf.mxu0
        %3390 = vmatprep.mubr.bf16.mxu0 0
        %3391 = vmatmul.mubr.bf16.gmra.mxu0 %v2894
        %v3392 = vpop.f32.mrf.mxu0
        %v3393 = vadd.f32 %v3232, %v3392
        %v3394 = vpop.f32.mrf.mxu0
        %v3395 = vpop.f32.mrf.mxu0
        %v3396 = vadd.f32 %v3235, %v3395
        %v3397 = vpop.f32.mrf.mxu0
        %3398 = vmatprep.mubr.bf16.mxu0 0
        %3399 = vmatmul.mubr.bf16.gmra.mxu0 %v2897
        %v3400 = vpop.f32.mrf.mxu0
        %v3401 = vadd.f32 %v3240, %v3400
        %v3402 = vpop.f32.mrf.mxu0
        %v3403 = vpop.f32.mrf.mxu0
        %v3404 = vadd.f32 %v3243, %v3403
        %v3405 = vpop.f32.mrf.mxu0
        %3406 = vmatprep.mubr.bf16.mxu0 0
        %3407 = vmatmul.mubr.bf16.gmra.mxu0 %v2900
        %v3408 = vpop.f32.mrf.mxu0
        %v3409 = vadd.f32 %v3248, %v3408
        %v3410 = vpop.f32.mrf.mxu0
        %v3411 = vpop.f32.mrf.mxu0
        %v3412 = vadd.f32 %v3251, %v3411
        %v3413 = vpop.f32.mrf.mxu0
        %3414 = vdwg.mxu0
        %s3415 = scalar_lea.vmem [#allocation3], 48
        %v3416 = vld [vmem:[%s3415] sm:$0xff]
        %v3417 = vld [vmem:[%s3415 + $0x8] sm:$0xf]
        %v3418 = vld [vmem:[%s3415 + $0xc] sm:$0xff]
        %v3419 = vld [vmem:[%s3415 + $0x14] sm:$0xf]
        %v3420 = vld [vmem:[%s3415 + $0x18] sm:$0xff]
        %v3421 = vld [vmem:[%s3415 + $0x20] sm:$0xf]
        %v3422 = vld [vmem:[%s3415 + $0x24] sm:$0xff]
        %v3423 = vld [vmem:[%s3415 + $0x2c] sm:$0xf]
        %v3424 = vld [vmem:[%s3415 + $0x30] sm:$0xff]
        %v3425 = vld [vmem:[%s3415 + $0x38] sm:$0xf]
        %v3426 = vld [vmem:[%s3415 + $0x3c] sm:$0xff]
        %v3427 = vld [vmem:[%s3415 + $0x44] sm:$0xf]
        %v3428 = vld [vmem:[%s3415 + $0x48] sm:$0xff]
        %v3429 = vld [vmem:[%s3415 + $0x50] sm:$0xf]
        %v3430 = vld [vmem:[%s3415 + $0x54] sm:$0xff]
        %v3431 = vld [vmem:[%s3415 + $0x5c] sm:$0xf]
        %v3432 = vld [vmem:[%s3415 + $0x60] sm:$0xff]
        %v3433 = vld [vmem:[%s3415 + $0x68] sm:$0xf]
        %v3434 = vld [vmem:[%s3415 + $0x6c] sm:$0xff]
        %v3435 = vld [vmem:[%s3415 + $0x74] sm:$0xf]
        %v3436 = vld [vmem:[%s3415 + $0x78] sm:$0xff]
        %v3437 = vld [vmem:[%s3415 + $0x80] sm:$0xf]
        %v3438 = vld [vmem:[%s3415 + $0x84] sm:$0xff]
        %v3439 = vld [vmem:[%s3415 + $0x8c] sm:$0xf]
        %v3440 = vld [vmem:[%s3415 + $0x90] sm:$0xff]
        %v3441 = vld [vmem:[%s3415 + $0x98] sm:$0xf]
        %v3442 = vld [vmem:[%s3415 + $0x9c] sm:$0xff]
        %v3443 = vld [vmem:[%s3415 + $0xa4] sm:$0xf]
        %v3444 = vld [vmem:[%s3415 + $0xa8] sm:$0xff]
        %v3445 = vld [vmem:[%s3415 + $0xb0] sm:$0xf]
        %v3446 = vld [vmem:[%s3415 + $0xb4] sm:$0xff]
        %v3447 = vld [vmem:[%s3415 + $0xbc] sm:$0xf]
        %v3448 = vld [vmem:[%s3415 + $0xc0] sm:$0xff]
        %v3449 = vld [vmem:[%s3415 + $0xc8] sm:$0xf]
        %v3450 = vld [vmem:[%s3415 + $0xcc] sm:$0xff]
        %v3451 = vld [vmem:[%s3415 + $0xd4] sm:$0xf]
        %v3452 = vld [vmem:[%s3415 + $0xd8] sm:$0xff]
        %v3453 = vld [vmem:[%s3415 + $0xe0] sm:$0xf]
        %v3454 = vld [vmem:[%s3415 + $0xe4] sm:$0xff]
        %v3455 = vld [vmem:[%s3415 + $0xec] sm:$0xf]
        %v3456 = vld [vmem:[%s3415 + $0xf0] sm:$0xff]
        %v3457 = vld [vmem:[%s3415 + $0xf8] sm:$0xf]
        %v3458 = vld [vmem:[%s3415 + $0xfc] sm:$0xff]
        %v3459 = vld [vmem:[%s3415 + $0x104] sm:$0xf]
        %v3460 = vld [vmem:[%s3415 + $0x108] sm:$0xff]
        %v3461 = vld [vmem:[%s3415 + $0x110] sm:$0xf]
        %v3462 = vld [vmem:[%s3415 + $0x114] sm:$0xff]
        %v3463 = vld [vmem:[%s3415 + $0x11c] sm:$0xf]
        %v3464 = vld [vmem:[%s3415 + $0x120] sm:$0xff]
        %v3465 = vld [vmem:[%s3415 + $0x128] sm:$0xf]
        %v3466 = vld [vmem:[%s3415 + $0x12c] sm:$0xff]
        %v3467 = vld [vmem:[%s3415 + $0x134] sm:$0xf]
        %v3468 = vld [vmem:[%s3415 + $0x138] sm:$0xff]
        %v3469 = vld [vmem:[%s3415 + $0x140] sm:$0xf]
        %v3470 = vld [vmem:[%s3415 + $0x144] sm:$0xff]
        %v3471 = vld [vmem:[%s3415 + $0x14c] sm:$0xf]
        %v3472 = vld [vmem:[%s3415 + $0x150] sm:$0xff]
        %v3473 = vld [vmem:[%s3415 + $0x158] sm:$0xf]
        %v3474 = vld [vmem:[%s3415 + $0x15c] sm:$0xff]
        %v3475 = vld [vmem:[%s3415 + $0x164] sm:$0xf]
        %v3476 = vld [vmem:[%s3415 + $0x168] sm:$0xff]
        %v3477 = vld [vmem:[%s3415 + $0x170] sm:$0xf]
        %v3478 = vld [vmem:[%s3415 + $0x174] sm:$0xff]
        %v3479 = vld [vmem:[%s3415 + $0x17c] sm:$0xf]
        %v3480 = vld [vmem:[#allocation7 + $0x180] sm:$0xf]
        %v3481 = vld [vmem:[#allocation7 + $0x184] sm:$0xf]
        %v3482 = vld [vmem:[#allocation7 + $0x188] sm:$0xf]
        %v3483 = vld [vmem:[#allocation7 + $0x18c] sm:$0xf]
        %v3484 = vld [vmem:[#allocation7 + $0x190] sm:$0xf]
        %v3485 = vld [vmem:[#allocation7 + $0x194] sm:$0xf]
        %v3486 = vld [vmem:[#allocation7 + $0x198] sm:$0xf]
        %v3487 = vld [vmem:[#allocation7 + $0x19c] sm:$0xf]
        %v3488 = vld [vmem:[#allocation7 + $0x1a0] sm:$0xf]
        %v3489 = vld [vmem:[#allocation7 + $0x1a4] sm:$0xf]
        %v3490 = vld [vmem:[#allocation7 + $0x1a8] sm:$0xf]
        %v3491 = vld [vmem:[#allocation7 + $0x1ac] sm:$0xf]
        %v3492 = vld [vmem:[#allocation7 + $0x1b0] sm:$0xf]
        %v3493 = vld [vmem:[#allocation7 + $0x1b4] sm:$0xf]
        %v3494 = vld [vmem:[#allocation7 + $0x1b8] sm:$0xf]
        %v3495 = vld [vmem:[#allocation7 + $0x1bc] sm:$0xf]
        %v3496 = vld [vmem:[#allocation7 + $0x1c0] sm:$0xf]
        %v3497 = vld [vmem:[#allocation7 + $0x1c4] sm:$0xf]
        %v3498 = vld [vmem:[#allocation7 + $0x1c8] sm:$0xf]
        %v3499 = vld [vmem:[#allocation7 + $0x1cc] sm:$0xf]
        %v3500 = vld [vmem:[#allocation7 + $0x1d0] sm:$0xf]
        %v3501 = vld [vmem:[#allocation7 + $0x1d4] sm:$0xf]
        %v3502 = vld [vmem:[#allocation7 + $0x1d8] sm:$0xf]
        %v3503 = vld [vmem:[#allocation7 + $0x1dc] sm:$0xf]
        %v3504 = vld [vmem:[#allocation7 + $0x1e0] sm:$0xf]
        %v3505 = vld [vmem:[#allocation7 + $0x1e4] sm:$0xf]
        %v3506 = vld [vmem:[#allocation7 + $0x1e8] sm:$0xf]
        %v3507 = vld [vmem:[#allocation7 + $0x1ec] sm:$0xf]
        %v3508 = vld [vmem:[#allocation7 + $0x1f0] sm:$0xf]
        %v3509 = vld [vmem:[#allocation7 + $0x1f4] sm:$0xf]
        %v3510 = vld [vmem:[#allocation7 + $0x1f8] sm:$0xf]
        %v3511 = vld [vmem:[#allocation7 + $0x1fc] sm:$0xf]
        %v3512 = vld [vmem:[#allocation7 + $0x200] sm:$0xf]
        %v3513 = vld [vmem:[#allocation7 + $0x204] sm:$0xf]
        %v3514 = vld [vmem:[#allocation7 + $0x208] sm:$0xf]
        %v3515 = vld [vmem:[#allocation7 + $0x20c] sm:$0xf]
        %v3516 = vld [vmem:[#allocation7 + $0x210] sm:$0xf]
        %v3517 = vld [vmem:[#allocation7 + $0x214] sm:$0xf]
        %v3518 = vld [vmem:[#allocation7 + $0x218] sm:$0xf]
        %v3519 = vld [vmem:[#allocation7 + $0x21c] sm:$0xf]
        %v3520 = vld [vmem:[#allocation7 + $0x220] sm:$0xf]
        %v3521 = vld [vmem:[#allocation7 + $0x224] sm:$0xf]
        %v3522 = vld [vmem:[#allocation7 + $0x228] sm:$0xf]
        %v3523 = vld [vmem:[#allocation7 + $0x22c] sm:$0xf]
        %v3524 = vld [vmem:[#allocation7 + $0x230] sm:$0xf]
        %v3525 = vld [vmem:[#allocation7 + $0x234] sm:$0xf]
        %v3526 = vld [vmem:[#allocation7 + $0x238] sm:$0xf]
        %v3527 = vld [vmem:[#allocation7 + $0x23c] sm:$0xf]
        %v3592 = vunpack.c.l.b16 %v3416
        %v3593 = vunpack.c.h.b16 %v3416
        %v3594 = vunpack.c.l.b16 %v3417
        %v3595 = vunpack.c.l.b16 %v3418
        %v3596 = vunpack.c.h.b16 %v3418
        %v3597 = vunpack.c.l.b16 %v3419
        %v3598 = vunpack.c.l.b16 %v3420
        %v3599 = vunpack.c.h.b16 %v3420
        %v3600 = vunpack.c.l.b16 %v3421
        %v3601 = vunpack.c.l.b16 %v3422
        %v3602 = vunpack.c.h.b16 %v3422
        %v3603 = vunpack.c.l.b16 %v3423
        %v3604 = vunpack.c.l.b16 %v3424
        %v3605 = vunpack.c.h.b16 %v3424
        %v3606 = vunpack.c.l.b16 %v3425
        %v3607 = vunpack.c.l.b16 %v3426
        %v3608 = vunpack.c.h.b16 %v3426
        %v3609 = vunpack.c.l.b16 %v3427
        %v3610 = vunpack.c.l.b16 %v3428
        %v3611 = vunpack.c.h.b16 %v3428
        %v3612 = vunpack.c.l.b16 %v3429
        %v3613 = vunpack.c.l.b16 %v3430
        %v3614 = vunpack.c.h.b16 %v3430
        %v3615 = vunpack.c.l.b16 %v3431
        %v3616 = vunpack.c.l.b16 %v3432
        %v3617 = vunpack.c.h.b16 %v3432
        %v3618 = vunpack.c.l.b16 %v3433
        %v3619 = vunpack.c.l.b16 %v3434
        %v3620 = vunpack.c.h.b16 %v3434
        %v3621 = vunpack.c.l.b16 %v3435
        %v3622 = vunpack.c.l.b16 %v3436
        %v3623 = vunpack.c.h.b16 %v3436
        %v3624 = vunpack.c.l.b16 %v3437
        %v3625 = vunpack.c.l.b16 %v3438
        %v3626 = vunpack.c.h.b16 %v3438
        %v3627 = vunpack.c.l.b16 %v3439
        %v3628 = vunpack.c.l.b16 %v3440
        %v3629 = vunpack.c.h.b16 %v3440
        %v3630 = vunpack.c.l.b16 %v3441
        %v3631 = vunpack.c.l.b16 %v3442
        %v3632 = vunpack.c.h.b16 %v3442
        %v3633 = vunpack.c.l.b16 %v3443
        %v3634 = vunpack.c.l.b16 %v3444
        %v3635 = vunpack.c.h.b16 %v3444
        %v3636 = vunpack.c.l.b16 %v3445
        %v3637 = vunpack.c.l.b16 %v3446
        %v3638 = vunpack.c.h.b16 %v3446
        %v3639 = vunpack.c.l.b16 %v3447
        %v3640 = vunpack.c.l.b16 %v3448
        %v3641 = vunpack.c.h.b16 %v3448
        %v3642 = vunpack.c.l.b16 %v3449
        %v3643 = vunpack.c.l.b16 %v3450
        %v3644 = vunpack.c.h.b16 %v3450
        %v3645 = vunpack.c.l.b16 %v3451
        %v3646 = vunpack.c.l.b16 %v3452
        %v3647 = vunpack.c.h.b16 %v3452
        %v3648 = vunpack.c.l.b16 %v3453
        %v3649 = vunpack.c.l.b16 %v3454
        %v3650 = vunpack.c.h.b16 %v3454
        %v3651 = vunpack.c.l.b16 %v3455
        %v3652 = vunpack.c.l.b16 %v3456
        %v3653 = vunpack.c.h.b16 %v3456
        %v3654 = vunpack.c.l.b16 %v3457
        %v3655 = vunpack.c.l.b16 %v3458
        %v3656 = vunpack.c.h.b16 %v3458
        %v3657 = vunpack.c.l.b16 %v3459
        %v3658 = vunpack.c.l.b16 %v3460
        %v3659 = vunpack.c.h.b16 %v3460
        %v3660 = vunpack.c.l.b16 %v3461
        %v3661 = vunpack.c.l.b16 %v3462
        %v3662 = vunpack.c.h.b16 %v3462
        %v3663 = vunpack.c.l.b16 %v3463
        %v3664 = vunpack.c.l.b16 %v3464
        %v3665 = vunpack.c.h.b16 %v3464
        %v3666 = vunpack.c.l.b16 %v3465
        %v3667 = vunpack.c.l.b16 %v3466
        %v3668 = vunpack.c.h.b16 %v3466
        %v3669 = vunpack.c.l.b16 %v3467
        %v3670 = vunpack.c.l.b16 %v3468
        %v3671 = vunpack.c.h.b16 %v3468
        %v3672 = vunpack.c.l.b16 %v3469
        %v3673 = vunpack.c.l.b16 %v3470
        %v3674 = vunpack.c.h.b16 %v3470
        %v3675 = vunpack.c.l.b16 %v3471
        %v3676 = vunpack.c.l.b16 %v3472
        %v3677 = vunpack.c.h.b16 %v3472
        %v3678 = vunpack.c.l.b16 %v3473
        %v3679 = vunpack.c.l.b16 %v3474
        %v3680 = vunpack.c.h.b16 %v3474
        %v3681 = vunpack.c.l.b16 %v3475
        %v3682 = vunpack.c.l.b16 %v3476
        %v3683 = vunpack.c.h.b16 %v3476
        %v3684 = vunpack.c.l.b16 %v3477
        %v3685 = vunpack.c.l.b16 %v3478
        %v3686 = vunpack.c.h.b16 %v3478
        %v3687 = vunpack.c.l.b16 %v3479
        %v3688 = vpack.c.b16 %v3595, %v3592
        %v3689 = vpack.c.b16 %v3596, %v3593
        %v3690 = vpack.c.b16 %v3597, %v3594
        %v3691 = vpack.c.b16 %v3601, %v3598
        %v3692 = vpack.c.b16 %v3602, %v3599
        %v3693 = vpack.c.b16 %v3603, %v3600
        %v3694 = vpack.c.b16 %v3607, %v3604
        %v3695 = vpack.c.b16 %v3608, %v3605
        %v3696 = vpack.c.b16 %v3609, %v3606
        %v3697 = vpack.c.b16 %v3613, %v3610
        %v3698 = vpack.c.b16 %v3614, %v3611
        %v3699 = vpack.c.b16 %v3615, %v3612
        %v3700 = vpack.c.b16 %v3619, %v3616
        %v3701 = vpack.c.b16 %v3620, %v3617
        %v3702 = vpack.c.b16 %v3621, %v3618
        %v3703 = vpack.c.b16 %v3625, %v3622
        %v3704 = vpack.c.b16 %v3626, %v3623
        %v3705 = vpack.c.b16 %v3627, %v3624
        %v3706 = vpack.c.b16 %v3631, %v3628
        %v3707 = vpack.c.b16 %v3632, %v3629
        %v3708 = vpack.c.b16 %v3633, %v3630
        %v3709 = vpack.c.b16 %v3637, %v3634
        %v3710 = vpack.c.b16 %v3638, %v3635
        %v3711 = vpack.c.b16 %v3639, %v3636
        %v3712 = vpack.c.b16 %v3643, %v3640
        %v3713 = vpack.c.b16 %v3644, %v3641
        %v3714 = vpack.c.b16 %v3645, %v3642
        %v3715 = vpack.c.b16 %v3649, %v3646
        %v3716 = vpack.c.b16 %v3650, %v3647
        %v3717 = vpack.c.b16 %v3651, %v3648
        %v3718 = vpack.c.b16 %v3655, %v3652
        %v3719 = vpack.c.b16 %v3656, %v3653
        %v3720 = vpack.c.b16 %v3657, %v3654
        %v3721 = vpack.c.b16 %v3661, %v3658
        %v3722 = vpack.c.b16 %v3662, %v3659
        %v3723 = vpack.c.b16 %v3663, %v3660
        %v3724 = vpack.c.b16 %v3667, %v3664
        %v3725 = vpack.c.b16 %v3668, %v3665
        %v3726 = vpack.c.b16 %v3669, %v3666
        %v3727 = vpack.c.b16 %v3673, %v3670
        %v3728 = vpack.c.b16 %v3674, %v3671
        %v3729 = vpack.c.b16 %v3675, %v3672
        %v3730 = vpack.c.b16 %v3679, %v3676
        %v3731 = vpack.c.b16 %v3680, %v3677
        %v3732 = vpack.c.b16 %v3681, %v3678
        %v3733 = vpack.c.b16 %v3685, %v3682
        %v3734 = vpack.c.b16 %v3686, %v3683
        %v3735 = vpack.c.b16 %v3687, %v3684
        %v3832 = vunpack.c.l.b16 %v3480
        %v3833 = vunpack.c.l.b16 %v3481
        %v3834 = vunpack.c.l.b16 %v3482
        %v3835 = vunpack.c.l.b16 %v3483
        %v3836 = vunpack.c.l.b16 %v3484
        %v3837 = vunpack.c.l.b16 %v3485
        %v3838 = vunpack.c.l.b16 %v3486
        %v3839 = vunpack.c.l.b16 %v3487
        %v3840 = vunpack.c.l.b16 %v3488
        %v3841 = vunpack.c.l.b16 %v3489
        %v3842 = vunpack.c.l.b16 %v3490
        %v3843 = vunpack.c.l.b16 %v3491
        %v3844 = vunpack.c.l.b16 %v3492
        %v3845 = vunpack.c.l.b16 %v3493
        %v3846 = vunpack.c.l.b16 %v3494
        %v3847 = vunpack.c.l.b16 %v3495
        %v3848 = vunpack.c.l.b16 %v3496
        %v3849 = vunpack.c.l.b16 %v3497
        %v3850 = vunpack.c.l.b16 %v3498
        %v3851 = vunpack.c.l.b16 %v3499
        %v3852 = vunpack.c.l.b16 %v3500
        %v3853 = vunpack.c.l.b16 %v3501
        %v3854 = vunpack.c.l.b16 %v3502
        %v3855 = vunpack.c.l.b16 %v3503
        %v3856 = vunpack.c.l.b16 %v3504
        %v3857 = vunpack.c.l.b16 %v3505
        %v3858 = vunpack.c.l.b16 %v3506
        %v3859 = vunpack.c.l.b16 %v3507
        %v3860 = vunpack.c.l.b16 %v3508
        %v3861 = vunpack.c.l.b16 %v3509
        %v3862 = vunpack.c.l.b16 %v3510
        %v3863 = vunpack.c.l.b16 %v3511
        %v3864 = vunpack.c.l.b16 %v3512
        %v3865 = vunpack.c.l.b16 %v3513
        %v3866 = vunpack.c.l.b16 %v3514
        %v3867 = vunpack.c.l.b16 %v3515
        %v3868 = vunpack.c.l.b16 %v3516
        %v3869 = vunpack.c.l.b16 %v3517
        %v3870 = vunpack.c.l.b16 %v3518
        %v3871 = vunpack.c.l.b16 %v3519
        %v3872 = vunpack.c.l.b16 %v3520
        %v3873 = vunpack.c.l.b16 %v3521
        %v3874 = vunpack.c.l.b16 %v3522
        %v3875 = vunpack.c.l.b16 %v3523
        %v3876 = vunpack.c.l.b16 %v3524
        %v3877 = vunpack.c.l.b16 %v3525
        %v3878 = vunpack.c.l.b16 %v3526
        %v3879 = vunpack.c.l.b16 %v3527
        %v3880 = vpack.c.b16 %v3833, %v3832
        %v3881 = vpack.c.b16 %v3835, %v3834
        %v3882 = vpack.c.b16 %v3837, %v3836
        %v3883 = vpack.c.b16 %v3839, %v3838
        %v3884 = vpack.c.b16 %v3841, %v3840
        %v3885 = vpack.c.b16 %v3843, %v3842
        %v3886 = vpack.c.b16 %v3845, %v3844
        %v3887 = vpack.c.b16 %v3847, %v3846
        %v3888 = vpack.c.b16 %v3849, %v3848
        %v3889 = vpack.c.b16 %v3851, %v3850
        %v3890 = vpack.c.b16 %v3853, %v3852
        %v3891 = vpack.c.b16 %v3855, %v3854
        %v3892 = vpack.c.b16 %v3857, %v3856
        %v3893 = vpack.c.b16 %v3859, %v3858
        %v3894 = vpack.c.b16 %v3861, %v3860
        %v3895 = vpack.c.b16 %v3863, %v3862
        %v3896 = vpack.c.b16 %v3865, %v3864
        %v3897 = vpack.c.b16 %v3867, %v3866
        %v3898 = vpack.c.b16 %v3869, %v3868
        %v3899 = vpack.c.b16 %v3871, %v3870
        %v3900 = vpack.c.b16 %v3873, %v3872
        %v3901 = vpack.c.b16 %v3875, %v3874
        %v3902 = vpack.c.b16 %v3877, %v3876
        %v3903 = vpack.c.b16 %v3879, %v3878
        %3928 = vmatprep.subr.bf16.mxu0 0
        %3929 = vmatpush1.bf16.msra.mxu0 %v3887
        %3930 = vmatprep.subr.bf16.mxu0 0
        %3931 = vmatpush1.bf16.msra.mxu0 %v3886
        %3932 = vmatprep.subr.bf16.mxu0 0
        %3933 = vmatpush1.bf16.msra.mxu0 %v3885
        %3934 = vmatprep.subr.bf16.mxu0 0
        %3935 = vmatpush1.bf16.msra.mxu0 %v3884
        %3936 = vmatprep.subr.bf16.mxu0 0
        %3937 = vmatpush1.bf16.msra.mxu0 %v3883
        %3938 = vmatprep.subr.bf16.mxu0 0
        %3939 = vmatpush1.bf16.msra.mxu0 %v3882
        %3940 = vmatprep.subr.bf16.mxu0 0
        %3941 = vmatpush1.bf16.msra.mxu0 %v3881
        %3942 = vmatprep.subr.bf16.mxu0 0
        %3943 = vmatpush1.bf16.msra.mxu0 %v3880
        %3944 = vmatprep.subr.bf16.mxu0 0
        %3945 = vmatpush2.bf16.msra.mxu0 %v3895
        %3946 = vmatprep.subr.bf16.mxu0 0
        %3947 = vmatpush2.bf16.msra.mxu0 %v3894
        %3948 = vmatprep.subr.bf16.mxu0 0
        %3949 = vmatpush2.bf16.msra.mxu0 %v3893
        %3950 = vmatprep.subr.bf16.mxu0 0
        %3951 = vmatpush2.bf16.msra.mxu0 %v3892
        %3952 = vmatprep.subr.bf16.mxu0 0
        %3953 = vmatpush2.bf16.msra.mxu0 %v3891
        %3954 = vmatprep.subr.bf16.mxu0 0
        %3955 = vmatpush2.bf16.msra.mxu0 %v3890
        %3956 = vmatprep.subr.bf16.mxu0 0
        %3957 = vmatpush2.bf16.msra.mxu0 %v3889
        %3958 = vmatprep.subr.bf16.mxu0 0
        %3959 = vmatpush2.bf16.msra.mxu0 %v3888
        %3960 = vmatprep.mubr.bf16.mxu0 %v3689
        %3961 = vmatmul.mubr.bf16.gmra.mxu0 %v3688
        %v3962 = vpop.f32.mrf.mxu0
        %v3963 = vadd.f32 0.0, %v3962
        %v3964 = vpop.f32.mrf.mxu0
        %v3965 = vpop.f32.mrf.mxu0
        %v3966 = vadd.f32 0.0, %v3965
        %v3967 = vpop.f32.mrf.mxu0
        %3968 = vmatprep.mubr.bf16.mxu0 %v3692
        %3969 = vmatmul.mubr.bf16.gmra.mxu0 %v3691
        %v3970 = vpop.f32.mrf.mxu0
        %v3971 = vadd.f32 0.0, %v3970
        %v3972 = vpop.f32.mrf.mxu0
        %v3973 = vpop.f32.mrf.mxu0
        %v3974 = vadd.f32 0.0, %v3973
        %v3975 = vpop.f32.mrf.mxu0
        %3976 = vmatprep.mubr.bf16.mxu0 %v3695
        %3977 = vmatmul.mubr.bf16.gmra.mxu0 %v3694
        %v3978 = vpop.f32.mrf.mxu0
        %v3979 = vadd.f32 0.0, %v3978
        %v3980 = vpop.f32.mrf.mxu0
        %v3981 = vpop.f32.mrf.mxu0
        %v3982 = vadd.f32 0.0, %v3981
        %v3983 = vpop.f32.mrf.mxu0
        %3984 = vmatprep.mubr.bf16.mxu0 %v3698
        %3985 = vmatmul.mubr.bf16.gmra.mxu0 %v3697
        %v3986 = vpop.f32.mrf.mxu0
        %v3987 = vadd.f32 0.0, %v3986
        %v3988 = vpop.f32.mrf.mxu0
        %v3989 = vpop.f32.mrf.mxu0
        %v3990 = vadd.f32 0.0, %v3989
        %v3991 = vpop.f32.mrf.mxu0
        %3992 = vmatprep.mubr.bf16.mxu0 %v3701
        %3993 = vmatmul.mubr.bf16.gmra.mxu0 %v3700
        %v3994 = vpop.f32.mrf.mxu0
        %v3995 = vadd.f32 0.0, %v3994
        %v3996 = vpop.f32.mrf.mxu0
        %v3997 = vpop.f32.mrf.mxu0
        %v3998 = vadd.f32 0.0, %v3997
        %v3999 = vpop.f32.mrf.mxu0
        %4000 = vmatprep.mubr.bf16.mxu0 %v3704
        %4001 = vmatmul.mubr.bf16.gmra.mxu0 %v3703
        %v4002 = vpop.f32.mrf.mxu0
        %v4003 = vadd.f32 0.0, %v4002
        %v4004 = vpop.f32.mrf.mxu0
        %v4005 = vpop.f32.mrf.mxu0
        %v4006 = vadd.f32 0.0, %v4005
        %v4007 = vpop.f32.mrf.mxu0
        %4008 = vmatprep.mubr.bf16.mxu0 %v3707
        %4009 = vmatmul.mubr.bf16.gmra.mxu0 %v3706
        %v4010 = vpop.f32.mrf.mxu0
        %v4011 = vadd.f32 0.0, %v4010
        %v4012 = vpop.f32.mrf.mxu0
        %v4013 = vpop.f32.mrf.mxu0
        %v4014 = vadd.f32 0.0, %v4013
        %v4015 = vpop.f32.mrf.mxu0
        %4016 = vmatprep.mubr.bf16.mxu0 %v3710
        %4017 = vmatmul.mubr.bf16.gmra.mxu0 %v3709
        %v4018 = vpop.f32.mrf.mxu0
        %v4019 = vadd.f32 0.0, %v4018
        %v4020 = vpop.f32.mrf.mxu0
        %v4021 = vpop.f32.mrf.mxu0
        %v4022 = vadd.f32 0.0, %v4021
        %v4023 = vpop.f32.mrf.mxu0
        %4024 = vmatprep.mubr.bf16.mxu0 %v3713
        %4025 = vmatmul.mubr.bf16.gmra.mxu0 %v3712
        %v4026 = vpop.f32.mrf.mxu0
        %v4027 = vadd.f32 0.0, %v4026
        %v4028 = vpop.f32.mrf.mxu0
        %v4029 = vpop.f32.mrf.mxu0
        %v4030 = vadd.f32 0.0, %v4029
        %v4031 = vpop.f32.mrf.mxu0
        %4032 = vmatprep.mubr.bf16.mxu0 %v3716
        %4033 = vmatmul.mubr.bf16.gmra.mxu0 %v3715
        %v4034 = vpop.f32.mrf.mxu0
        %v4035 = vadd.f32 0.0, %v4034
        %v4036 = vpop.f32.mrf.mxu0
        %v4037 = vpop.f32.mrf.mxu0
        %v4038 = vadd.f32 0.0, %v4037
        %v4039 = vpop.f32.mrf.mxu0
        %4040 = vmatprep.mubr.bf16.mxu0 %v3719
        %4041 = vmatmul.mubr.bf16.gmra.mxu0 %v3718
        %v4042 = vpop.f32.mrf.mxu0
        %v4043 = vadd.f32 0.0, %v4042
        %v4044 = vpop.f32.mrf.mxu0
        %v4045 = vpop.f32.mrf.mxu0
        %v4046 = vadd.f32 0.0, %v4045
        %v4047 = vpop.f32.mrf.mxu0
        %4048 = vmatprep.mubr.bf16.mxu0 %v3722
        %4049 = vmatmul.mubr.bf16.gmra.mxu0 %v3721
        %v4050 = vpop.f32.mrf.mxu0
        %v4051 = vadd.f32 0.0, %v4050
        %v4052 = vpop.f32.mrf.mxu0
        %v4053 = vpop.f32.mrf.mxu0
        %v4054 = vadd.f32 0.0, %v4053
        %v4055 = vpop.f32.mrf.mxu0
        %4056 = vmatprep.mubr.bf16.mxu0 %v3725
        %4057 = vmatmul.mubr.bf16.gmra.mxu0 %v3724
        %v4058 = vpop.f32.mrf.mxu0
        %v4059 = vadd.f32 0.0, %v4058
        %v4060 = vpop.f32.mrf.mxu0
        %v4061 = vpop.f32.mrf.mxu0
        %v4062 = vadd.f32 0.0, %v4061
        %v4063 = vpop.f32.mrf.mxu0
        %4064 = vmatprep.mubr.bf16.mxu0 %v3728
        %4065 = vmatmul.mubr.bf16.gmra.mxu0 %v3727
        %v4066 = vpop.f32.mrf.mxu0
        %v4067 = vadd.f32 0.0, %v4066
        %v4068 = vpop.f32.mrf.mxu0
        %v4069 = vpop.f32.mrf.mxu0
        %v4070 = vadd.f32 0.0, %v4069
        %v4071 = vpop.f32.mrf.mxu0
        %4072 = vmatprep.mubr.bf16.mxu0 %v3731
        %4073 = vmatmul.mubr.bf16.gmra.mxu0 %v3730
        %v4074 = vpop.f32.mrf.mxu0
        %v4075 = vadd.f32 0.0, %v4074
        %v4076 = vpop.f32.mrf.mxu0
        %v4077 = vpop.f32.mrf.mxu0
        %v4078 = vadd.f32 0.0, %v4077
        %v4079 = vpop.f32.mrf.mxu0
        %4080 = vmatprep.mubr.bf16.mxu0 %v3734
        %4081 = vmatmul.mubr.bf16.gmra.mxu0 %v3733
        %v4082 = vpop.f32.mrf.mxu0
        %v4083 = vadd.f32 0.0, %v4082
        %v4084 = vpop.f32.mrf.mxu0
        %v4085 = vpop.f32.mrf.mxu0
        %v4086 = vadd.f32 0.0, %v4085
        %v4087 = vpop.f32.mrf.mxu0
        %4088 = vdwg.mxu0
        %4089 = vmatprep.subr.bf16.mxu0 0
        %4090 = vmatpush1.bf16.msra.mxu0 %v3903
        %4091 = vmatprep.subr.bf16.mxu0 0
        %4092 = vmatpush1.bf16.msra.mxu0 %v3902
        %4093 = vmatprep.subr.bf16.mxu0 0
        %4094 = vmatpush1.bf16.msra.mxu0 %v3901
        %4095 = vmatprep.subr.bf16.mxu0 0
        %4096 = vmatpush1.bf16.msra.mxu0 %v3900
        %4097 = vmatprep.subr.bf16.mxu0 0
        %4098 = vmatpush1.bf16.msra.mxu0 %v3899
        %4099 = vmatprep.subr.bf16.mxu0 0
        %4100 = vmatpush1.bf16.msra.mxu0 %v3898
        %4101 = vmatprep.subr.bf16.mxu0 0
        %4102 = vmatpush1.bf16.msra.mxu0 %v3897
        %4103 = vmatprep.subr.bf16.mxu0 0
        %4104 = vmatpush1.bf16.msra.mxu0 %v3896
        %4105 = vmatprep.subr.bf16.mxu0 0
        %4106 = vmatpush2.bf16.msra.mxu0 0
        %4107 = vmatprep.subr.bf16.mxu0 0
        %4108 = vmatpush2.bf16.msra.mxu0 0
        %4109 = vmatprep.subr.bf16.mxu0 0
        %4110 = vmatpush2.bf16.msra.mxu0 0
        %4111 = vmatprep.subr.bf16.mxu0 0
        %4112 = vmatpush2.bf16.msra.mxu0 0
        %4113 = vmatprep.subr.bf16.mxu0 0
        %4114 = vmatpush2.bf16.msra.mxu0 0
        %4115 = vmatprep.subr.bf16.mxu0 0
        %4116 = vmatpush2.bf16.msra.mxu0 0
        %4117 = vmatprep.subr.bf16.mxu0 0
        %4118 = vmatpush2.bf16.msra.mxu0 0
        %4119 = vmatprep.subr.bf16.mxu0 0
        %4120 = vmatpush2.bf16.msra.mxu0 0
        %4121 = vmatprep.mubr.bf16.mxu0 0
        %4122 = vmatmul.mubr.bf16.gmra.mxu0 %v3690
        %v4123 = vpop.f32.mrf.mxu0
        %v4124 = vadd.f32 %v3963, %v4123
        %v4125 = vpop.f32.mrf.mxu0
        %v4126 = vpop.f32.mrf.mxu0
        %v4127 = vadd.f32 %v3966, %v4126
        %v4128 = vpop.f32.mrf.mxu0
        %4129 = vmatprep.mubr.bf16.mxu0 0
        %4130 = vmatmul.mubr.bf16.gmra.mxu0 %v3693
        %v4131 = vpop.f32.mrf.mxu0
        %v4132 = vadd.f32 %v3971, %v4131
        %v4133 = vpop.f32.mrf.mxu0
        %v4134 = vpop.f32.mrf.mxu0
        %v4135 = vadd.f32 %v3974, %v4134
        %v4136 = vpop.f32.mrf.mxu0
        %4137 = vmatprep.mubr.bf16.mxu0 0
        %4138 = vmatmul.mubr.bf16.gmra.mxu0 %v3696
        %v4139 = vpop.f32.mrf.mxu0
        %v4140 = vadd.f32 %v3979, %v4139
        %v4141 = vpop.f32.mrf.mxu0
        %v4142 = vpop.f32.mrf.mxu0
        %v4143 = vadd.f32 %v3982, %v4142
        %v4144 = vpop.f32.mrf.mxu0
        %4145 = vmatprep.mubr.bf16.mxu0 0
        %4146 = vmatmul.mubr.bf16.gmra.mxu0 %v3699
        %v4147 = vpop.f32.mrf.mxu0
        %v4148 = vadd.f32 %v3987, %v4147
        %v4149 = vpop.f32.mrf.mxu0
        %v4150 = vpop.f32.mrf.mxu0
        %v4151 = vadd.f32 %v3990, %v4150
        %v4152 = vpop.f32.mrf.mxu0
        %4153 = vmatprep.mubr.bf16.mxu0 0
        %4154 = vmatmul.mubr.bf16.gmra.mxu0 %v3702
        %v4155 = vpop.f32.mrf.mxu0
        %v4156 = vadd.f32 %v3995, %v4155
        %v4157 = vpop.f32.mrf.mxu0
        %v4158 = vpop.f32.mrf.mxu0
        %v4159 = vadd.f32 %v3998, %v4158
        %v4160 = vpop.f32.mrf.mxu0
        %4161 = vmatprep.mubr.bf16.mxu0 0
        %4162 = vmatmul.mubr.bf16.gmra.mxu0 %v3705
        %v4163 = vpop.f32.mrf.mxu0
        %v4164 = vadd.f32 %v4003, %v4163
        %v4165 = vpop.f32.mrf.mxu0
        %v4166 = vpop.f32.mrf.mxu0
        %v4167 = vadd.f32 %v4006, %v4166
        %v4168 = vpop.f32.mrf.mxu0
        %4169 = vmatprep.mubr.bf16.mxu0 0
        %4170 = vmatmul.mubr.bf16.gmra.mxu0 %v3708
        %v4171 = vpop.f32.mrf.mxu0
        %v4172 = vadd.f32 %v4011, %v4171
        %v4173 = vpop.f32.mrf.mxu0
        %v4174 = vpop.f32.mrf.mxu0
        %v4175 = vadd.f32 %v4014, %v4174
        %v4176 = vpop.f32.mrf.mxu0
        %4177 = vmatprep.mubr.bf16.mxu0 0
        %4178 = vmatmul.mubr.bf16.gmra.mxu0 %v3711
        %v4179 = vpop.f32.mrf.mxu0
        %v4180 = vadd.f32 %v4019, %v4179
        %v4181 = vpop.f32.mrf.mxu0
        %v4182 = vpop.f32.mrf.mxu0
        %v4183 = vadd.f32 %v4022, %v4182
        %v4184 = vpop.f32.mrf.mxu0
        %4185 = vmatprep.mubr.bf16.mxu0 0
        %4186 = vmatmul.mubr.bf16.gmra.mxu0 %v3714
        %v4187 = vpop.f32.mrf.mxu0
        %v4188 = vadd.f32 %v4027, %v4187
        %v4189 = vpop.f32.mrf.mxu0
        %v4190 = vpop.f32.mrf.mxu0
        %v4191 = vadd.f32 %v4030, %v4190
        %v4192 = vpop.f32.mrf.mxu0
        %4193 = vmatprep.mubr.bf16.mxu0 0
        %4194 = vmatmul.mubr.bf16.gmra.mxu0 %v3717
        %v4195 = vpop.f32.mrf.mxu0
        %v4196 = vadd.f32 %v4035, %v4195
        %v4197 = vpop.f32.mrf.mxu0
        %v4198 = vpop.f32.mrf.mxu0
        %v4199 = vadd.f32 %v4038, %v4198
        %v4200 = vpop.f32.mrf.mxu0
        %4201 = vmatprep.mubr.bf16.mxu0 0
        %4202 = vmatmul.mubr.bf16.gmra.mxu0 %v3720
        %v4203 = vpop.f32.mrf.mxu0
        %v4204 = vadd.f32 %v4043, %v4203
        %v4205 = vpop.f32.mrf.mxu0
        %v4206 = vpop.f32.mrf.mxu0
        %v4207 = vadd.f32 %v4046, %v4206
        %v4208 = vpop.f32.mrf.mxu0
        %4209 = vmatprep.mubr.bf16.mxu0 0
        %4210 = vmatmul.mubr.bf16.gmra.mxu0 %v3723
        %v4211 = vpop.f32.mrf.mxu0
        %v4212 = vadd.f32 %v4051, %v4211
        %v4213 = vpop.f32.mrf.mxu0
        %v4214 = vpop.f32.mrf.mxu0
        %v4215 = vadd.f32 %v4054, %v4214
        %v4216 = vpop.f32.mrf.mxu0
        %4217 = vmatprep.mubr.bf16.mxu0 0
        %4218 = vmatmul.mubr.bf16.gmra.mxu0 %v3726
        %v4219 = vpop.f32.mrf.mxu0
        %v4220 = vadd.f32 %v4059, %v4219
        %v4221 = vpop.f32.mrf.mxu0
        %v4222 = vpop.f32.mrf.mxu0
        %v4223 = vadd.f32 %v4062, %v4222
        %v4224 = vpop.f32.mrf.mxu0
        %4225 = vmatprep.mubr.bf16.mxu0 0
        %4226 = vmatmul.mubr.bf16.gmra.mxu0 %v3729
        %v4227 = vpop.f32.mrf.mxu0
        %v4228 = vadd.f32 %v4067, %v4227
        %v4229 = vpop.f32.mrf.mxu0
        %v4230 = vpop.f32.mrf.mxu0
        %v4231 = vadd.f32 %v4070, %v4230
        %v4232 = vpop.f32.mrf.mxu0
        %4233 = vmatprep.mubr.bf16.mxu0 0
        %4234 = vmatmul.mubr.bf16.gmra.mxu0 %v3732
        %v4235 = vpop.f32.mrf.mxu0
        %v4236 = vadd.f32 %v4075, %v4235
        %v4237 = vpop.f32.mrf.mxu0
        %v4238 = vpop.f32.mrf.mxu0
        %v4239 = vadd.f32 %v4078, %v4238
        %v4240 = vpop.f32.mrf.mxu0
        %4241 = vmatprep.mubr.bf16.mxu0 0
        %4242 = vmatmul.mubr.bf16.gmra.mxu0 %v3735
        %v4243 = vpop.f32.mrf.mxu0
        %v4244 = vadd.f32 %v4083, %v4243
        %v4245 = vpop.f32.mrf.mxu0
        %v4246 = vpop.f32.mrf.mxu0
        %v4247 = vadd.f32 %v4086, %v4246
        %v4248 = vpop.f32.mrf.mxu0
        %4249 = vdwg.mxu0
        %v4250 = vadd.f32 %v3289, %v4124
        %v4251 = vadd.f32 %v3292, %v4127
        %v4252 = vadd.f32 %v3297, %v4132
        %v4253 = vadd.f32 %v3300, %v4135
        %v4254 = vadd.f32 %v3305, %v4140
        %v4255 = vadd.f32 %v3308, %v4143
        %v4256 = vadd.f32 %v3313, %v4148
        %v4257 = vadd.f32 %v3316, %v4151
        %v4258 = vadd.f32 %v3321, %v4156
        %v4259 = vadd.f32 %v3324, %v4159
        %v4260 = vadd.f32 %v3329, %v4164
        %v4261 = vadd.f32 %v3332, %v4167
        %v4262 = vadd.f32 %v3337, %v4172
        %v4263 = vadd.f32 %v3340, %v4175
        %v4264 = vadd.f32 %v3345, %v4180
        %v4265 = vadd.f32 %v3348, %v4183
        %v4266 = vadd.f32 %v3353, %v4188
        %v4267 = vadd.f32 %v3356, %v4191
        %v4268 = vadd.f32 %v3361, %v4196
        %v4269 = vadd.f32 %v3364, %v4199
        %v4270 = vadd.f32 %v3369, %v4204
        %v4271 = vadd.f32 %v3372, %v4207
        %v4272 = vadd.f32 %v3377, %v4212
        %v4273 = vadd.f32 %v3380, %v4215
        %v4274 = vadd.f32 %v3385, %v4220
        %v4275 = vadd.f32 %v3388, %v4223
        %v4276 = vadd.f32 %v3393, %v4228
        %v4277 = vadd.f32 %v3396, %v4231
        %v4278 = vadd.f32 %v3401, %v4236
        %v4279 = vadd.f32 %v3404, %v4239
        %v4280 = vadd.f32 %v3409, %v4244
        %v4281 = vadd.f32 %v3412, %v4247
        %v4282 = vld [vmem:[%s2] sm:$0x1]
        %v4284 = vlaneseq
        %v4285 = vshrl.u32 %v4284, 7
        %v4286 = vsub.s32 0, %v4285
        %v4287 = vrot.slane %v4282, %v4286
        %v4289 = vadd.f32 %v4250, %v4287
        %v4290 = vadd.f32 %v4251, %v4287
        %v4291 = vadd.f32 %v4252, %v4287
        %v4292 = vadd.f32 %v4253, %v4287
        %v4293 = vadd.f32 %v4254, %v4287
        %v4294 = vadd.f32 %v4255, %v4287
        %v4295 = vadd.f32 %v4256, %v4287
        %v4296 = vadd.f32 %v4257, %v4287
        %v4297 = vadd.f32 %v4258, %v4287
        %v4298 = vadd.f32 %v4259, %v4287
        %v4299 = vadd.f32 %v4260, %v4287
        %v4300 = vadd.f32 %v4261, %v4287
        %v4301 = vadd.f32 %v4262, %v4287
        %v4302 = vadd.f32 %v4263, %v4287
        %v4303 = vadd.f32 %v4264, %v4287
        %v4304 = vadd.f32 %v4265, %v4287
        %v4305 = vadd.f32 %v4266, %v4287
        %v4306 = vadd.f32 %v4267, %v4287
        %v4307 = vadd.f32 %v4268, %v4287
        %v4308 = vadd.f32 %v4269, %v4287
        %v4309 = vadd.f32 %v4270, %v4287
        %v4310 = vadd.f32 %v4271, %v4287
        %v4311 = vadd.f32 %v4272, %v4287
        %v4312 = vadd.f32 %v4273, %v4287
        %v4313 = vadd.f32 %v4274, %v4287
        %v4314 = vadd.f32 %v4275, %v4287
        %v4315 = vadd.f32 %v4276, %v4287
        %v4316 = vadd.f32 %v4277, %v4287
        %v4317 = vadd.f32 %v4278, %v4287
        %v4318 = vadd.f32 %v4279, %v4287
        %v4319 = vadd.f32 %v4280, %v4287
        %v4320 = vadd.f32 %v4281, %v4287
        %v4321 = vmax.f32 %v4289, 0.0
        %v4322 = vmax.f32 %v4290, 0.0
        %v4323 = vmax.f32 %v4291, 0.0
        %v4324 = vmax.f32 %v4292, 0.0
        %v4325 = vmax.f32 %v4293, 0.0
        %v4326 = vmax.f32 %v4294, 0.0
        %v4327 = vmax.f32 %v4295, 0.0
        %v4328 = vmax.f32 %v4296, 0.0
        %v4329 = vmax.f32 %v4297, 0.0
        %v4330 = vmax.f32 %v4298, 0.0
        %v4331 = vmax.f32 %v4299, 0.0
        %v4332 = vmax.f32 %v4300, 0.0
        %v4333 = vmax.f32 %v4301, 0.0
        %v4334 = vmax.f32 %v4302, 0.0
        %v4335 = vmax.f32 %v4303, 0.0
        %v4336 = vmax.f32 %v4304, 0.0
        %v4337 = vmax.f32 %v4305, 0.0
        %v4338 = vmax.f32 %v4306, 0.0
        %v4339 = vmax.f32 %v4307, 0.0
        %v4340 = vmax.f32 %v4308, 0.0
        %v4341 = vmax.f32 %v4309, 0.0
        %v4342 = vmax.f32 %v4310, 0.0
        %v4343 = vmax.f32 %v4311, 0.0
        %v4344 = vmax.f32 %v4312, 0.0
        %v4345 = vmax.f32 %v4313, 0.0
        %v4346 = vmax.f32 %v4314, 0.0
        %v4347 = vmax.f32 %v4315, 0.0
        %v4348 = vmax.f32 %v4316, 0.0
        %v4349 = vmax.f32 %v4317, 0.0
        %v4350 = vmax.f32 %v4318, 0.0
        %v4351 = vmax.f32 %v4319, 0.0
        %v4352 = vmax.f32 %v4320, 0.0
        %v4353 = vpack.c.bf16 %v4322, %v4321
        %v4354 = vpack.c.bf16 %v4324, %v4323
        %v4355 = vpack.c.bf16 %v4326, %v4325
        %v4356 = vpack.c.bf16 %v4328, %v4327
        %v4357 = vpack.c.bf16 %v4330, %v4329
        %v4358 = vpack.c.bf16 %v4332, %v4331
        %v4359 = vpack.c.bf16 %v4334, %v4333
        %v4360 = vpack.c.bf16 %v4336, %v4335
        %v4361 = vpack.c.bf16 %v4338, %v4337
        %v4362 = vpack.c.bf16 %v4340, %v4339
        %v4363 = vpack.c.bf16 %v4342, %v4341
        %v4364 = vpack.c.bf16 %v4344, %v4343
        %v4365 = vpack.c.bf16 %v4346, %v4345
        %v4366 = vpack.c.bf16 %v4348, %v4347
        %v4367 = vpack.c.bf16 %v4350, %v4349
        %v4368 = vpack.c.bf16 %v4352, %v4351
        %v4385 = vunpack.c.l.b16 %v4353
        %v4386 = vunpack.c.h.b16 %v4353
        %v4387 = vunpack.c.l.b16 %v4354
        %v4388 = vunpack.c.h.b16 %v4354
        %v4389 = vunpack.c.l.b16 %v4355
        %v4390 = vunpack.c.h.b16 %v4355
        %v4391 = vunpack.c.l.b16 %v4356
        %v4392 = vunpack.c.h.b16 %v4356
        %v4393 = vunpack.c.l.b16 %v4357
        %v4394 = vunpack.c.h.b16 %v4357
        %v4395 = vunpack.c.l.b16 %v4358
        %v4396 = vunpack.c.h.b16 %v4358
        %v4397 = vunpack.c.l.b16 %v4359
        %v4398 = vunpack.c.h.b16 %v4359
        %v4399 = vunpack.c.l.b16 %v4360
        %v4400 = vunpack.c.h.b16 %v4360
        %v4401 = vunpack.c.l.b16 %v4361
        %v4402 = vunpack.c.h.b16 %v4361
        %v4403 = vunpack.c.l.b16 %v4362
        %v4404 = vunpack.c.h.b16 %v4362
        %v4405 = vunpack.c.l.b16 %v4363
        %v4406 = vunpack.c.h.b16 %v4363
        %v4407 = vunpack.c.l.b16 %v4364
        %v4408 = vunpack.c.h.b16 %v4364
        %v4409 = vunpack.c.l.b16 %v4365
        %v4410 = vunpack.c.h.b16 %v4365
        %v4411 = vunpack.c.l.b16 %v4366
        %v4412 = vunpack.c.h.b16 %v4366
        %v4413 = vunpack.c.l.b16 %v4367
        %v4414 = vunpack.c.h.b16 %v4367
        %v4415 = vunpack.c.l.b16 %v4368
        %v4416 = vunpack.c.h.b16 %v4368
        %v4417 = vpack.c.b16 %v4385, %v4385
        %v4418 = vpack.c.b16 %v4386, %v4386
        %v4419 = vpack.c.b16 %v4387, %v4387
        %v4420 = vpack.c.b16 %v4388, %v4388
        %v4421 = vpack.c.b16 %v4389, %v4389
        %v4422 = vpack.c.b16 %v4390, %v4390
        %v4423 = vpack.c.b16 %v4391, %v4391
        %v4424 = vpack.c.b16 %v4392, %v4392
        %v4425 = vpack.c.b16 %v4393, %v4393
        %v4426 = vpack.c.b16 %v4394, %v4394
        %v4427 = vpack.c.b16 %v4395, %v4395
        %v4428 = vpack.c.b16 %v4396, %v4396
        %v4429 = vpack.c.b16 %v4397, %v4397
        %v4430 = vpack.c.b16 %v4398, %v4398
        %v4431 = vpack.c.b16 %v4399, %v4399
        %v4432 = vpack.c.b16 %v4400, %v4400
        %v4433 = vpack.c.b16 %v4401, %v4401
        %v4434 = vpack.c.b16 %v4402, %v4402
        %v4435 = vpack.c.b16 %v4403, %v4403
        %v4436 = vpack.c.b16 %v4404, %v4404
        %v4437 = vpack.c.b16 %v4405, %v4405
        %v4438 = vpack.c.b16 %v4406, %v4406
        %v4439 = vpack.c.b16 %v4407, %v4407
        %v4440 = vpack.c.b16 %v4408, %v4408
        %v4441 = vpack.c.b16 %v4409, %v4409
        %v4442 = vpack.c.b16 %v4410, %v4410
        %v4443 = vpack.c.b16 %v4411, %v4411
        %v4444 = vpack.c.b16 %v4412, %v4412
        %v4445 = vpack.c.b16 %v4413, %v4413
        %v4446 = vpack.c.b16 %v4414, %v4414
        %v4447 = vpack.c.b16 %v4415, %v4415
        %v4448 = vpack.c.b16 %v4416, %v4416
        %4481 = vst [vmem:[%s556 + $0x4] sm:$0xf] %v4417
        %4482 = vst [vmem:[%s556 + $0x8] sm:$0xf] %v4418
        %4483 = vst [vmem:[%s556 + $0x14] sm:$0xf] %v4419
        %4484 = vst [vmem:[%s556 + $0x18] sm:$0xf] %v4420
        %4485 = vst [vmem:[%s556 + $0x24] sm:$0xf] %v4421
        %4486 = vst [vmem:[%s556 + $0x28] sm:$0xf] %v4422
        %4487 = vst [vmem:[%s556 + $0x34] sm:$0xf] %v4423
        %4488 = vst [vmem:[%s556 + $0x38] sm:$0xf] %v4424
        %4489 = vst [vmem:[%s556 + $0x44] sm:$0xf] %v4425
        %4490 = vst [vmem:[%s556 + $0x48] sm:$0xf] %v4426
        %4491 = vst [vmem:[%s556 + $0x54] sm:$0xf] %v4427
        %4492 = vst [vmem:[%s556 + $0x58] sm:$0xf] %v4428
        %4493 = vst [vmem:[%s556 + $0x64] sm:$0xf] %v4429
        %4494 = vst [vmem:[%s556 + $0x68] sm:$0xf] %v4430
        %4495 = vst [vmem:[%s556 + $0x74] sm:$0xf] %v4431
        %4496 = vst [vmem:[%s556 + $0x78] sm:$0xf] %v4432
        %4497 = vst [vmem:[%s556 + $0x84] sm:$0xf] %v4433
        %4498 = vst [vmem:[%s556 + $0x88] sm:$0xf] %v4434
        %4499 = vst [vmem:[%s556 + $0x94] sm:$0xf] %v4435
        %4500 = vst [vmem:[%s556 + $0x98] sm:$0xf] %v4436
        %4501 = vst [vmem:[%s556 + $0xa4] sm:$0xf] %v4437
        %4502 = vst [vmem:[%s556 + $0xa8] sm:$0xf] %v4438
        %4503 = vst [vmem:[%s556 + $0xb4] sm:$0xf] %v4439
        %4504 = vst [vmem:[%s556 + $0xb8] sm:$0xf] %v4440
        %4505 = vst [vmem:[%s556 + $0xc4] sm:$0xf] %v4441
        %4506 = vst [vmem:[%s556 + $0xc8] sm:$0xf] %v4442
        %4507 = vst [vmem:[%s556 + $0xd4] sm:$0xf] %v4443
        %4508 = vst [vmem:[%s556 + $0xd8] sm:$0xf] %v4444
        %4509 = vst [vmem:[%s556 + $0xe4] sm:$0xf] %v4445
        %4510 = vst [vmem:[%s556 + $0xe8] sm:$0xf] %v4446
        %4511 = vst [vmem:[%s556 + $0xf4] sm:$0xf] %v4447
        %4512 = vst [vmem:[%s556 + $0xf8] sm:$0xf] %v4448
        %v4513 = vld [vmem:[#allocation2] sm:$0x8]
        %v4514 = vld [vmem:[#allocation2 + $0x4] sm:$0xf]
        %v4515 = vld [vmem:[#allocation2 + $0x8] sm:$0xf]
        %v4516 = vld [vmem:[#allocation2 + $0x10] sm:$0x8]
        %v4517 = vld [vmem:[#allocation2 + $0x14] sm:$0xf]
        %v4518 = vld [vmem:[#allocation2 + $0x18] sm:$0xf]
        %v4519 = vld [vmem:[#allocation2 + $0x20] sm:$0x8]
        %v4520 = vld [vmem:[#allocation2 + $0x24] sm:$0xf]
        %v4521 = vld [vmem:[#allocation2 + $0x28] sm:$0xf]
        %v4522 = vld [vmem:[#allocation2 + $0x30] sm:$0x8]
        %v4523 = vld [vmem:[#allocation2 + $0x34] sm:$0xf]
        %v4524 = vld [vmem:[#allocation2 + $0x38] sm:$0xf]
        %v4525 = vld [vmem:[#allocation2 + $0x40] sm:$0x8]
        %v4526 = vld [vmem:[#allocation2 + $0x44] sm:$0xf]
        %v4527 = vld [vmem:[#allocation2 + $0x48] sm:$0xf]
        %v4528 = vld [vmem:[#allocation2 + $0x50] sm:$0x8]
        %v4529 = vld [vmem:[#allocation2 + $0x54] sm:$0xf]
        %v4530 = vld [vmem:[#allocation2 + $0x58] sm:$0xf]
        %v4531 = vld [vmem:[#allocation2 + $0x60] sm:$0x8]
        %v4532 = vld [vmem:[#allocation2 + $0x64] sm:$0xf]
        %v4533 = vld [vmem:[#allocation2 + $0x68] sm:$0xf]
        %v4534 = vld [vmem:[#allocation2 + $0x70] sm:$0x8]
        %v4535 = vld [vmem:[#allocation2 + $0x74] sm:$0xf]
        %v4536 = vld [vmem:[#allocation2 + $0x78] sm:$0xf]
        %v4537 = vld [vmem:[#allocation2 + $0x80] sm:$0x8]
        %v4538 = vld [vmem:[#allocation2 + $0x84] sm:$0xf]
        %v4539 = vld [vmem:[#allocation2 + $0x88] sm:$0xf]
        %v4540 = vld [vmem:[#allocation2 + $0x90] sm:$0x8]
        %v4541 = vld [vmem:[#allocation2 + $0x94] sm:$0xf]
        %v4542 = vld [vmem:[#allocation2 + $0x98] sm:$0xf]
        %v4543 = vld [vmem:[#allocation2 + $0xa0] sm:$0x8]
        %v4544 = vld [vmem:[#allocation2 + $0xa4] sm:$0xf]
        %v4545 = vld [vmem:[#allocation2 + $0xa8] sm:$0xf]
        %v4546 = vld [vmem:[#allocation2 + $0xb0] sm:$0x8]
        %v4547 = vld [vmem:[#allocation2 + $0xb4] sm:$0xf]
        %v4548 = vld [vmem:[#allocation2 + $0xb8] sm:$0xf]
        %v4549 = vld [vmem:[#allocation2 + $0xc0] sm:$0x8]
        %v4550 = vld [vmem:[#allocation2 + $0xc4] sm:$0xf]
        %v4551 = vld [vmem:[#allocation2 + $0xc8] sm:$0xf]
        %v4552 = vld [vmem:[#allocation2 + $0xd0] sm:$0x8]
        %v4553 = vld [vmem:[#allocation2 + $0xd4] sm:$0xf]
        %v4554 = vld [vmem:[#allocation2 + $0xd8] sm:$0xf]
        %v4555 = vld [vmem:[#allocation2 + $0xe0] sm:$0x8]
        %v4556 = vld [vmem:[#allocation2 + $0xe4] sm:$0xf]
        %v4557 = vld [vmem:[#allocation2 + $0xe8] sm:$0xf]
        %v4558 = vld [vmem:[#allocation2 + $0xf0] sm:$0x8]
        %v4559 = vld [vmem:[#allocation2 + $0xf4] sm:$0xf]
        %v4560 = vld [vmem:[#allocation2 + $0xf8] sm:$0xf]
        %v4561 = vld [vmem:[#allocation2 + $0x100] sm:$0x8]
        %v4562 = vld [vmem:[#allocation2 + $0x104] sm:$0xf]
        %v4563 = vld [vmem:[#allocation2 + $0x108] sm:$0xf]
        %v4564 = vld [vmem:[#allocation2 + $0x110] sm:$0x8]
        %v4565 = vld [vmem:[#allocation2 + $0x114] sm:$0xf]
        %v4566 = vld [vmem:[#allocation2 + $0x118] sm:$0xf]
        %v4568 = vshrl.u32 %v4513, 16
        %v4570 = vrot.slane %v4568, 7
        %v4571 = vrot.slane %v4570, 4
        %v4573 = vshrl.u32 %v4514, 16
        %v4575 = vrot.slane %v4573, 7
        %v4576 = vshll.u32 %v4514, 16
        %v4578 = vor.u32 %v4575, %v4576
        %v4579 = vsel %vm644, %v4571, %v4578
        %v4580 = vrot.slane %v4575, 4
        %v4582 = vshrl.u32 %v4515, 16
        %v4584 = vrot.slane %v4582, 7
        %v4585 = vshll.u32 %v4515, 16
        %v4587 = vor.u32 %v4584, %v4585
        %v4588 = vsel %vm644, %v4580, %v4587
        %v4590 = vshrl.u32 %v4516, 16
        %v4592 = vrot.slane %v4590, 7
        %v4593 = vrot.slane %v4592, 4
        %v4595 = vshrl.u32 %v4517, 16
        %v4597 = vrot.slane %v4595, 7
        %v4598 = vshll.u32 %v4517, 16
        %v4600 = vor.u32 %v4597, %v4598
        %v4601 = vsel %vm644, %v4593, %v4600
        %v4602 = vrot.slane %v4597, 4
        %v4604 = vshrl.u32 %v4518, 16
        %v4606 = vrot.slane %v4604, 7
        %v4607 = vshll.u32 %v4518, 16
        %v4609 = vor.u32 %v4606, %v4607
        %v4610 = vsel %vm644, %v4602, %v4609
        %v4612 = vshrl.u32 %v4519, 16
        %v4614 = vrot.slane %v4612, 7
        %v4615 = vrot.slane %v4614, 4
        %v4617 = vshrl.u32 %v4520, 16
        %v4619 = vrot.slane %v4617, 7
        %v4620 = vshll.u32 %v4520, 16
        %v4622 = vor.u32 %v4619, %v4620
        %v4623 = vsel %vm644, %v4615, %v4622
        %v4624 = vrot.slane %v4619, 4
        %v4626 = vshrl.u32 %v4521, 16
        %v4628 = vrot.slane %v4626, 7
        %v4629 = vshll.u32 %v4521, 16
        %v4631 = vor.u32 %v4628, %v4629
        %v4632 = vsel %vm644, %v4624, %v4631
        %v4634 = vshrl.u32 %v4522, 16
        %v4636 = vrot.slane %v4634, 7
        %v4637 = vrot.slane %v4636, 4
        %v4639 = vshrl.u32 %v4523, 16
        %v4641 = vrot.slane %v4639, 7
        %v4642 = vshll.u32 %v4523, 16
        %v4644 = vor.u32 %v4641, %v4642
        %v4645 = vsel %vm644, %v4637, %v4644
        %v4646 = vrot.slane %v4641, 4
        %v4648 = vshrl.u32 %v4524, 16
        %v4650 = vrot.slane %v4648, 7
        %v4651 = vshll.u32 %v4524, 16
        %v4653 = vor.u32 %v4650, %v4651
        %v4654 = vsel %vm644, %v4646, %v4653
        %v4656 = vshrl.u32 %v4525, 16
        %v4658 = vrot.slane %v4656, 7
        %v4659 = vrot.slane %v4658, 4
        %v4661 = vshrl.u32 %v4526, 16
        %v4663 = vrot.slane %v4661, 7
        %v4664 = vshll.u32 %v4526, 16
        %v4666 = vor.u32 %v4663, %v4664
        %v4667 = vsel %vm644, %v4659, %v4666
        %v4668 = vrot.slane %v4663, 4
        %v4670 = vshrl.u32 %v4527, 16
        %v4672 = vrot.slane %v4670, 7
        %v4673 = vshll.u32 %v4527, 16
        %v4675 = vor.u32 %v4672, %v4673
        %v4676 = vsel %vm644, %v4668, %v4675
        %v4678 = vshrl.u32 %v4528, 16
        %v4680 = vrot.slane %v4678, 7
        %v4681 = vrot.slane %v4680, 4
        %v4683 = vshrl.u32 %v4529, 16
        %v4685 = vrot.slane %v4683, 7
        %v4686 = vshll.u32 %v4529, 16
        %v4688 = vor.u32 %v4685, %v4686
        %v4689 = vsel %vm644, %v4681, %v4688
        %v4690 = vrot.slane %v4685, 4
        %v4692 = vshrl.u32 %v4530, 16
        %v4694 = vrot.slane %v4692, 7
        %v4695 = vshll.u32 %v4530, 16
        %v4697 = vor.u32 %v4694, %v4695
        %v4698 = vsel %vm644, %v4690, %v4697
        %v4700 = vshrl.u32 %v4531, 16
        %v4702 = vrot.slane %v4700, 7
        %v4703 = vrot.slane %v4702, 4
        %v4705 = vshrl.u32 %v4532, 16
        %v4707 = vrot.slane %v4705, 7
        %v4708 = vshll.u32 %v4532, 16
        %v4710 = vor.u32 %v4707, %v4708
        %v4711 = vsel %vm644, %v4703, %v4710
        %v4712 = vrot.slane %v4707, 4
        %v4714 = vshrl.u32 %v4533, 16
        %v4716 = vrot.slane %v4714, 7
        %v4717 = vshll.u32 %v4533, 16
        %v4719 = vor.u32 %v4716, %v4717
        %v4720 = vsel %vm644, %v4712, %v4719
        %v4722 = vshrl.u32 %v4534, 16
        %v4724 = vrot.slane %v4722, 7
        %v4725 = vrot.slane %v4724, 4
        %v4727 = vshrl.u32 %v4535, 16
        %v4729 = vrot.slane %v4727, 7
        %v4730 = vshll.u32 %v4535, 16
        %v4732 = vor.u32 %v4729, %v4730
        %v4733 = vsel %vm644, %v4725, %v4732
        %v4734 = vrot.slane %v4729, 4
        %v4736 = vshrl.u32 %v4536, 16
        %v4738 = vrot.slane %v4736, 7
        %v4739 = vshll.u32 %v4536, 16
        %v4741 = vor.u32 %v4738, %v4739
        %v4742 = vsel %vm644, %v4734, %v4741
        %v4744 = vshrl.u32 %v4537, 16
        %v4746 = vrot.slane %v4744, 7
        %v4747 = vrot.slane %v4746, 4
        %v4749 = vshrl.u32 %v4538, 16
        %v4751 = vrot.slane %v4749, 7
        %v4752 = vshll.u32 %v4538, 16
        %v4754 = vor.u32 %v4751, %v4752
        %v4755 = vsel %vm644, %v4747, %v4754
        %v4756 = vrot.slane %v4751, 4
        %v4758 = vshrl.u32 %v4539, 16
        %v4760 = vrot.slane %v4758, 7
        %v4761 = vshll.u32 %v4539, 16
        %v4763 = vor.u32 %v4760, %v4761
        %v4764 = vsel %vm644, %v4756, %v4763
        %v4766 = vshrl.u32 %v4540, 16
        %v4768 = vrot.slane %v4766, 7
        %v4769 = vrot.slane %v4768, 4
        %v4771 = vshrl.u32 %v4541, 16
        %v4773 = vrot.slane %v4771, 7
        %v4774 = vshll.u32 %v4541, 16
        %v4776 = vor.u32 %v4773, %v4774
        %v4777 = vsel %vm644, %v4769, %v4776
        %v4778 = vrot.slane %v4773, 4
        %v4780 = vshrl.u32 %v4542, 16
        %v4782 = vrot.slane %v4780, 7
        %v4783 = vshll.u32 %v4542, 16
        %v4785 = vor.u32 %v4782, %v4783
        %v4786 = vsel %vm644, %v4778, %v4785
        %v4788 = vshrl.u32 %v4543, 16
        %v4790 = vrot.slane %v4788, 7
        %v4791 = vrot.slane %v4790, 4
        %v4793 = vshrl.u32 %v4544, 16
        %v4795 = vrot.slane %v4793, 7
        %v4796 = vshll.u32 %v4544, 16
        %v4798 = vor.u32 %v4795, %v4796
        %v4799 = vsel %vm644, %v4791, %v4798
        %v4800 = vrot.slane %v4795, 4
        %v4802 = vshrl.u32 %v4545, 16
        %v4804 = vrot.slane %v4802, 7
        %v4805 = vshll.u32 %v4545, 16
        %v4807 = vor.u32 %v4804, %v4805
        %v4808 = vsel %vm644, %v4800, %v4807
        %v4810 = vshrl.u32 %v4546, 16
        %v4812 = vrot.slane %v4810, 7
        %v4813 = vrot.slane %v4812, 4
        %v4815 = vshrl.u32 %v4547, 16
        %v4817 = vrot.slane %v4815, 7
        %v4818 = vshll.u32 %v4547, 16
        %v4820 = vor.u32 %v4817, %v4818
        %v4821 = vsel %vm644, %v4813, %v4820
        %v4822 = vrot.slane %v4817, 4
        %v4824 = vshrl.u32 %v4548, 16
        %v4826 = vrot.slane %v4824, 7
        %v4827 = vshll.u32 %v4548, 16
        %v4829 = vor.u32 %v4826, %v4827
        %v4830 = vsel %vm644, %v4822, %v4829
        %v4832 = vshrl.u32 %v4549, 16
        %v4834 = vrot.slane %v4832, 7
        %v4835 = vrot.slane %v4834, 4
        %v4837 = vshrl.u32 %v4550, 16
        %v4839 = vrot.slane %v4837, 7
        %v4840 = vshll.u32 %v4550, 16
        %v4842 = vor.u32 %v4839, %v4840
        %v4843 = vsel %vm644, %v4835, %v4842
        %v4844 = vrot.slane %v4839, 4
        %v4846 = vshrl.u32 %v4551, 16
        %v4848 = vrot.slane %v4846, 7
        %v4849 = vshll.u32 %v4551, 16
        %v4851 = vor.u32 %v4848, %v4849
        %v4852 = vsel %vm644, %v4844, %v4851
        %v4854 = vshrl.u32 %v4552, 16
        %v4856 = vrot.slane %v4854, 7
        %v4857 = vrot.slane %v4856, 4
        %v4859 = vshrl.u32 %v4553, 16
        %v4861 = vrot.slane %v4859, 7
        %v4862 = vshll.u32 %v4553, 16
        %v4864 = vor.u32 %v4861, %v4862
        %v4865 = vsel %vm644, %v4857, %v4864
        %v4866 = vrot.slane %v4861, 4
        %v4868 = vshrl.u32 %v4554, 16
        %v4870 = vrot.slane %v4868, 7
        %v4871 = vshll.u32 %v4554, 16
        %v4873 = vor.u32 %v4870, %v4871
        %v4874 = vsel %vm644, %v4866, %v4873
        %v4876 = vshrl.u32 %v4555, 16
        %v4878 = vrot.slane %v4876, 7
        %v4879 = vrot.slane %v4878, 4
        %v4881 = vshrl.u32 %v4556, 16
        %v4883 = vrot.slane %v4881, 7
        %v4884 = vshll.u32 %v4556, 16
        %v4886 = vor.u32 %v4883, %v4884
        %v4887 = vsel %vm644, %v4879, %v4886
        %v4888 = vrot.slane %v4883, 4
        %v4890 = vshrl.u32 %v4557, 16
        %v4892 = vrot.slane %v4890, 7
        %v4893 = vshll.u32 %v4557, 16
        %v4895 = vor.u32 %v4892, %v4893
        %v4896 = vsel %vm644, %v4888, %v4895
        %v4898 = vshrl.u32 %v4558, 16
        %v4900 = vrot.slane %v4898, 7
        %v4901 = vrot.slane %v4900, 4
        %v4903 = vshrl.u32 %v4559, 16
        %v4905 = vrot.slane %v4903, 7
        %v4906 = vshll.u32 %v4559, 16
        %v4908 = vor.u32 %v4905, %v4906
        %v4909 = vsel %vm644, %v4901, %v4908
        %v4910 = vrot.slane %v4905, 4
        %v4912 = vshrl.u32 %v4560, 16
        %v4914 = vrot.slane %v4912, 7
        %v4915 = vshll.u32 %v4560, 16
        %v4917 = vor.u32 %v4914, %v4915
        %v4918 = vsel %vm644, %v4910, %v4917
        %v4920 = vshrl.u32 %v4561, 16
        %v4922 = vrot.slane %v4920, 7
        %v4923 = vrot.slane %v4922, 4
        %v4925 = vshrl.u32 %v4562, 16
        %v4927 = vrot.slane %v4925, 7
        %v4928 = vshll.u32 %v4562, 16
        %v4930 = vor.u32 %v4927, %v4928
        %v4931 = vsel %vm644, %v4923, %v4930
        %v4932 = vrot.slane %v4927, 4
        %v4934 = vshrl.u32 %v4563, 16
        %v4936 = vrot.slane %v4934, 7
        %v4937 = vshll.u32 %v4563, 16
        %v4939 = vor.u32 %v4936, %v4937
        %v4940 = vsel %vm644, %v4932, %v4939
        %v4942 = vshrl.u32 %v4564, 16
        %v4944 = vrot.slane %v4942, 7
        %v4945 = vrot.slane %v4944, 4
        %v4947 = vshrl.u32 %v4565, 16
        %v4949 = vrot.slane %v4947, 7
        %v4950 = vshll.u32 %v4565, 16
        %v4952 = vor.u32 %v4949, %v4950
        %v4953 = vsel %vm644, %v4945, %v4952
        %v4954 = vrot.slane %v4949, 4
        %v4956 = vshrl.u32 %v4566, 16
        %v4958 = vrot.slane %v4956, 7
        %v4959 = vshll.u32 %v4566, 16
        %v4961 = vor.u32 %v4958, %v4959
        %v4962 = vsel %vm644, %v4954, %v4961
        %4999 = vst [vmem:[#allocation3] sm:$0xf] %v4579
        %5000 = vst [vmem:[#allocation3 + $0xc] sm:$0xf] %v4588
        %5001 = vst [vmem:[#allocation3 + $0x18] sm:$0xf] %v4601
        %5002 = vst [vmem:[#allocation3 + $0x24] sm:$0xf] %v4610
        %5003 = vst [vmem:[#allocation3 + $0x30] sm:$0xf] %v4623
        %5004 = vst [vmem:[#allocation3 + $0x3c] sm:$0xf] %v4632
        %5005 = vst [vmem:[#allocation3 + $0x48] sm:$0xf] %v4645
        %5006 = vst [vmem:[#allocation3 + $0x54] sm:$0xf] %v4654
        %5007 = vst [vmem:[#allocation3 + $0x60] sm:$0xf] %v4667
        %5008 = vst [vmem:[#allocation3 + $0x6c] sm:$0xf] %v4676
        %5009 = vst [vmem:[#allocation3 + $0x78] sm:$0xf] %v4689
        %5010 = vst [vmem:[#allocation3 + $0x84] sm:$0xf] %v4698
        %5011 = vst [vmem:[#allocation3 + $0x90] sm:$0xf] %v4711
        %5012 = vst [vmem:[#allocation3 + $0x9c] sm:$0xf] %v4720
        %5013 = vst [vmem:[#allocation3 + $0xa8] sm:$0xf] %v4733
        %5014 = vst [vmem:[#allocation3 + $0xb4] sm:$0xf] %v4742
        %5015 = vst [vmem:[#allocation3 + $0xc0] sm:$0xf] %v4755
        %5016 = vst [vmem:[#allocation3 + $0xcc] sm:$0xf] %v4764
        %5017 = vst [vmem:[#allocation3 + $0xd8] sm:$0xf] %v4777
        %5018 = vst [vmem:[#allocation3 + $0xe4] sm:$0xf] %v4786
        %5019 = vst [vmem:[#allocation3 + $0xf0] sm:$0xf] %v4799
        %5020 = vst [vmem:[#allocation3 + $0xfc] sm:$0xf] %v4808
        %5021 = vst [vmem:[#allocation3 + $0x108] sm:$0xf] %v4821
        %5022 = vst [vmem:[#allocation3 + $0x114] sm:$0xf] %v4830
        %5023 = vst [vmem:[#allocation3 + $0x120] sm:$0xf] %v4843
        %5024 = vst [vmem:[#allocation3 + $0x12c] sm:$0xf] %v4852
        %5025 = vst [vmem:[#allocation3 + $0x138] sm:$0xf] %v4865
        %5026 = vst [vmem:[#allocation3 + $0x144] sm:$0xf] %v4874
        %5027 = vst [vmem:[#allocation3 + $0x150] sm:$0xf] %v4887
        %5028 = vst [vmem:[#allocation3 + $0x15c] sm:$0xf] %v4896
        %5029 = vst [vmem:[#allocation3 + $0x168] sm:$0xf] %v4909
        %5030 = vst [vmem:[#allocation3 + $0x174] sm:$0xf] %v4918
        %5031 = vst [vmem:[#allocation3 + $0x180] sm:$0xf] %v4931
        %5032 = vst [vmem:[#allocation3 + $0x18c] sm:$0xf] %v4940
        %5033 = vst [vmem:[#allocation3 + $0x198] sm:$0xf] %v4953
        %5034 = vst [vmem:[#allocation3 + $0x1a4] sm:$0xf] %v4962
        %v5035 = vld [vmem:[#allocation2 + $0x4] sm:$0xf]
        %v5036 = vld [vmem:[#allocation2 + $0x8] sm:$0xf]
        %v5037 = vld [vmem:[#allocation2 + $0x14] sm:$0xf]
        %v5038 = vld [vmem:[#allocation2 + $0x18] sm:$0xf]
        %v5039 = vld [vmem:[#allocation2 + $0x24] sm:$0xf]
        %v5040 = vld [vmem:[#allocation2 + $0x28] sm:$0xf]
        %v5041 = vld [vmem:[#allocation2 + $0x34] sm:$0xf]
        %v5042 = vld [vmem:[#allocation2 + $0x38] sm:$0xf]
        %v5043 = vld [vmem:[#allocation2 + $0x44] sm:$0xf]
        %v5044 = vld [vmem:[#allocation2 + $0x48] sm:$0xf]
        %v5045 = vld [vmem:[#allocation2 + $0x54] sm:$0xf]
        %v5046 = vld [vmem:[#allocation2 + $0x58] sm:$0xf]
        %v5047 = vld [vmem:[#allocation2 + $0x64] sm:$0xf]
        %v5048 = vld [vmem:[#allocation2 + $0x68] sm:$0xf]
        %v5049 = vld [vmem:[#allocation2 + $0x74] sm:$0xf]
        %v5050 = vld [vmem:[#allocation2 + $0x78] sm:$0xf]
        %v5051 = vld [vmem:[#allocation2 + $0x84] sm:$0xf]
        %v5052 = vld [vmem:[#allocation2 + $0x88] sm:$0xf]
        %v5053 = vld [vmem:[#allocation2 + $0x94] sm:$0xf]
        %v5054 = vld [vmem:[#allocation2 + $0x98] sm:$0xf]
        %v5055 = vld [vmem:[#allocation2 + $0xa4] sm:$0xf]
        %v5056 = vld [vmem:[#allocation2 + $0xa8] sm:$0xf]
        %v5057 = vld [vmem:[#allocation2 + $0xb4] sm:$0xf]
        %v5058 = vld [vmem:[#allocation2 + $0xb8] sm:$0xf]
        %v5059 = vld [vmem:[#allocation2 + $0xc4] sm:$0xf]
        %v5060 = vld [vmem:[#allocation2 + $0xc8] sm:$0xf]
        %v5061 = vld [vmem:[#allocation2 + $0xd4] sm:$0xf]
        %v5062 = vld [vmem:[#allocation2 + $0xd8] sm:$0xf]
        %v5063 = vld [vmem:[#allocation2 + $0xe4] sm:$0xf]
        %v5064 = vld [vmem:[#allocation2 + $0xe8] sm:$0xf]
        %v5065 = vld [vmem:[#allocation2 + $0xf4] sm:$0xf]
        %v5066 = vld [vmem:[#allocation2 + $0xf8] sm:$0xf]
        %v5067 = vld [vmem:[#allocation2 + $0x104] sm:$0xf]
        %v5068 = vld [vmem:[#allocation2 + $0x108] sm:$0xf]
        %v5069 = vld [vmem:[#allocation2 + $0x114] sm:$0xf]
        %v5070 = vld [vmem:[#allocation2 + $0x118] sm:$0xf]
        %5071 = vst [vmem:[#allocation3 + $0x4] sm:$0xf] %v5035
        %5072 = vst [vmem:[#allocation3 + $0x10] sm:$0xf] %v5036
        %5073 = vst [vmem:[#allocation3 + $0x1c] sm:$0xf] %v5037
        %5074 = vst [vmem:[#allocation3 + $0x28] sm:$0xf] %v5038
        %5075 = vst [vmem:[#allocation3 + $0x34] sm:$0xf] %v5039
        %5076 = vst [vmem:[#allocation3 + $0x40] sm:$0xf] %v5040
        %5077 = vst [vmem:[#allocation3 + $0x4c] sm:$0xf] %v5041
        %5078 = vst [vmem:[#allocation3 + $0x58] sm:$0xf] %v5042
        %5079 = vst [vmem:[#allocation3 + $0x64] sm:$0xf] %v5043
        %5080 = vst [vmem:[#allocation3 + $0x70] sm:$0xf] %v5044
        %5081 = vst [vmem:[#allocation3 + $0x7c] sm:$0xf] %v5045
        %5082 = vst [vmem:[#allocation3 + $0x88] sm:$0xf] %v5046
        %5083 = vst [vmem:[#allocation3 + $0x94] sm:$0xf] %v5047
        %5084 = vst [vmem:[#allocation3 + $0xa0] sm:$0xf] %v5048
        %5085 = vst [vmem:[#allocation3 + $0xac] sm:$0xf] %v5049
        %5086 = vst [vmem:[#allocation3 + $0xb8] sm:$0xf] %v5050
        %5087 = vst [vmem:[#allocation3 + $0xc4] sm:$0xf] %v5051
        %5088 = vst [vmem:[#allocation3 + $0xd0] sm:$0xf] %v5052
        %5089 = vst [vmem:[#allocation3 + $0xdc] sm:$0xf] %v5053
        %5090 = vst [vmem:[#allocation3 + $0xe8] sm:$0xf] %v5054
        %5091 = vst [vmem:[#allocation3 + $0xf4] sm:$0xf] %v5055
        %5092 = vst [vmem:[#allocation3 + $0x100] sm:$0xf] %v5056
        %5093 = vst [vmem:[#allocation3 + $0x10c] sm:$0xf] %v5057
        %5094 = vst [vmem:[#allocation3 + $0x118] sm:$0xf] %v5058
        %5095 = vst [vmem:[#allocation3 + $0x124] sm:$0xf] %v5059
        %5096 = vst [vmem:[#allocation3 + $0x130] sm:$0xf] %v5060
        %5097 = vst [vmem:[#allocation3 + $0x13c] sm:$0xf] %v5061
        %5098 = vst [vmem:[#allocation3 + $0x148] sm:$0xf] %v5062
        %5099 = vst [vmem:[#allocation3 + $0x154] sm:$0xf] %v5063
        %5100 = vst [vmem:[#allocation3 + $0x160] sm:$0xf] %v5064
        %5101 = vst [vmem:[#allocation3 + $0x16c] sm:$0xf] %v5065
        %5102 = vst [vmem:[#allocation3 + $0x178] sm:$0xf] %v5066
        %5103 = vst [vmem:[#allocation3 + $0x184] sm:$0xf] %v5067
        %5104 = vst [vmem:[#allocation3 + $0x190] sm:$0xf] %v5068
        %5105 = vst [vmem:[#allocation3 + $0x19c] sm:$0xf] %v5069
        %5106 = vst [vmem:[#allocation3 + $0x1a8] sm:$0xf] %v5070
        %v5107 = vld [vmem:[#allocation2 + $0x4] sm:$0xf]
        %v5108 = vld [vmem:[#allocation2 + $0x8] sm:$0xf]
        %v5109 = vld [vmem:[#allocation2 + $0xc] sm:$0x1]
        %v5110 = vld [vmem:[#allocation2 + $0x14] sm:$0xf]
        %v5111 = vld [vmem:[#allocation2 + $0x18] sm:$0xf]
        %v5112 = vld [vmem:[#allocation2 + $0x1c] sm:$0x1]
        %v5113 = vld [vmem:[#allocation2 + $0x24] sm:$0xf]
        %v5114 = vld [vmem:[#allocation2 + $0x28] sm:$0xf]
        %v5115 = vld [vmem:[#allocation2 + $0x2c] sm:$0x1]
        %v5116 = vld [vmem:[#allocation2 + $0x34] sm:$0xf]
        %v5117 = vld [vmem:[#allocation2 + $0x38] sm:$0xf]
        %v5118 = vld [vmem:[#allocation2 + $0x3c] sm:$0x1]
        %v5119 = vld [vmem:[#allocation2 + $0x44] sm:$0xf]
        %v5120 = vld [vmem:[#allocation2 + $0x48] sm:$0xf]
        %v5121 = vld [vmem:[#allocation2 + $0x4c] sm:$0x1]
        %v5122 = vld [vmem:[#allocation2 + $0x54] sm:$0xf]
        %v5123 = vld [vmem:[#allocation2 + $0x58] sm:$0xf]
        %v5124 = vld [vmem:[#allocation2 + $0x5c] sm:$0x1]
        %v5125 = vld [vmem:[#allocation2 + $0x64] sm:$0xf]
        %v5126 = vld [vmem:[#allocation2 + $0x68] sm:$0xf]
        %v5127 = vld [vmem:[#allocation2 + $0x6c] sm:$0x1]
        %v5128 = vld [vmem:[#allocation2 + $0x74] sm:$0xf]
        %v5129 = vld [vmem:[#allocation2 + $0x78] sm:$0xf]
        %v5130 = vld [vmem:[#allocation2 + $0x7c] sm:$0x1]
        %v5131 = vld [vmem:[#allocation2 + $0x84] sm:$0xf]
        %v5132 = vld [vmem:[#allocation2 + $0x88] sm:$0xf]
        %v5133 = vld [vmem:[#allocation2 + $0x8c] sm:$0x1]
        %v5134 = vld [vmem:[#allocation2 + $0x94] sm:$0xf]
        %v5135 = vld [vmem:[#allocation2 + $0x98] sm:$0xf]
        %v5136 = vld [vmem:[#allocation2 + $0x9c] sm:$0x1]
        %v5137 = vld [vmem:[#allocation2 + $0xa4] sm:$0xf]
        %v5138 = vld [vmem:[#allocation2 + $0xa8] sm:$0xf]
        %v5139 = vld [vmem:[#allocation2 + $0xac] sm:$0x1]
        %v5140 = vld [vmem:[#allocation2 + $0xb4] sm:$0xf]
        %v5141 = vld [vmem:[#allocation2 + $0xb8] sm:$0xf]
        %v5142 = vld [vmem:[#allocation2 + $0xbc] sm:$0x1]
        %v5143 = vld [vmem:[#allocation2 + $0xc4] sm:$0xf]
        %v5144 = vld [vmem:[#allocation2 + $0xc8] sm:$0xf]
        %v5145 = vld [vmem:[#allocation2 + $0xcc] sm:$0x1]
        %v5146 = vld [vmem:[#allocation2 + $0xd4] sm:$0xf]
        %v5147 = vld [vmem:[#allocation2 + $0xd8] sm:$0xf]
        %v5148 = vld [vmem:[#allocation2 + $0xdc] sm:$0x1]
        %v5149 = vld [vmem:[#allocation2 + $0xe4] sm:$0xf]
        %v5150 = vld [vmem:[#allocation2 + $0xe8] sm:$0xf]
        %v5151 = vld [vmem:[#allocation2 + $0xec] sm:$0x1]
        %v5152 = vld [vmem:[#allocation2 + $0xf4] sm:$0xf]
        %v5153 = vld [vmem:[#allocation2 + $0xf8] sm:$0xf]
        %v5154 = vld [vmem:[#allocation2 + $0xfc] sm:$0x1]
        %v5155 = vld [vmem:[#allocation2 + $0x104] sm:$0xf]
        %v5156 = vld [vmem:[#allocation2 + $0x108] sm:$0xf]
        %v5157 = vld [vmem:[#allocation2 + $0x10c] sm:$0x1]
        %v5158 = vld [vmem:[#allocation2 + $0x114] sm:$0xf]
        %v5159 = vld [vmem:[#allocation2 + $0x118] sm:$0xf]
        %v5160 = vld [vmem:[#allocation2 + $0x11c] sm:$0x1]
        %v5162 = vshrl.u32 %v5107, 16
        %v5164 = vrot.slane %v5162, 4
        %v5165 = vshll.u32 %v5107, 16
        %v5167 = vrot.slane %v5165, 5
        %v5168 = vor.u32 %v5164, %v5167
        %v5169 = vrot.slane %v5168, 4
        %v5171 = vshll.u32 %v5108, 16
        %v5173 = vrot.slane %v5171, 5
        %v5174 = vsel %vm1241, %v5169, %v5173
        %v5175 = vshrl.u32 %v5108, 16
        %v5177 = vrot.slane %v5175, 4
        %v5178 = vor.u32 %v5177, %v5173
        %v5179 = vrot.slane %v5178, 4
        %v5181 = vshll.u32 %v5109, 16
        %v5183 = vrot.slane %v5181, 5
        %v5184 = vsel %vm1241, %v5179, %v5183
        %v5186 = vshrl.u32 %v5110, 16
        %v5188 = vrot.slane %v5186, 4
        %v5189 = vshll.u32 %v5110, 16
        %v5191 = vrot.slane %v5189, 5
        %v5192 = vor.u32 %v5188, %v5191
        %v5193 = vrot.slane %v5192, 4
        %v5195 = vshll.u32 %v5111, 16
        %v5197 = vrot.slane %v5195, 5
        %v5198 = vsel %vm1241, %v5193, %v5197
        %v5199 = vshrl.u32 %v5111, 16
        %v5201 = vrot.slane %v5199, 4
        %v5202 = vor.u32 %v5201, %v5197
        %v5203 = vrot.slane %v5202, 4
        %v5205 = vshll.u32 %v5112, 16
        %v5207 = vrot.slane %v5205, 5
        %v5208 = vsel %vm1241, %v5203, %v5207
        %v5210 = vshrl.u32 %v5113, 16
        %v5212 = vrot.slane %v5210, 4
        %v5213 = vshll.u32 %v5113, 16
        %v5215 = vrot.slane %v5213, 5
        %v5216 = vor.u32 %v5212, %v5215
        %v5217 = vrot.slane %v5216, 4
        %v5219 = vshll.u32 %v5114, 16
        %v5221 = vrot.slane %v5219, 5
        %v5222 = vsel %vm1241, %v5217, %v5221
        %v5223 = vshrl.u32 %v5114, 16
        %v5225 = vrot.slane %v5223, 4
        %v5226 = vor.u32 %v5225, %v5221
        %v5227 = vrot.slane %v5226, 4
        %v5229 = vshll.u32 %v5115, 16
        %v5231 = vrot.slane %v5229, 5
        %v5232 = vsel %vm1241, %v5227, %v5231
        %v5234 = vshrl.u32 %v5116, 16
        %v5236 = vrot.slane %v5234, 4
        %v5237 = vshll.u32 %v5116, 16
        %v5239 = vrot.slane %v5237, 5
        %v5240 = vor.u32 %v5236, %v5239
        %v5241 = vrot.slane %v5240, 4
        %v5243 = vshll.u32 %v5117, 16
        %v5245 = vrot.slane %v5243, 5
        %v5246 = vsel %vm1241, %v5241, %v5245
        %v5247 = vshrl.u32 %v5117, 16
        %v5249 = vrot.slane %v5247, 4
        %v5250 = vor.u32 %v5249, %v5245
        %v5251 = vrot.slane %v5250, 4
        %v5253 = vshll.u32 %v5118, 16
        %v5255 = vrot.slane %v5253, 5
        %v5256 = vsel %vm1241, %v5251, %v5255
        %v5258 = vshrl.u32 %v5119, 16
        %v5260 = vrot.slane %v5258, 4
        %v5261 = vshll.u32 %v5119, 16
        %v5263 = vrot.slane %v5261, 5
        %v5264 = vor.u32 %v5260, %v5263
        %v5265 = vrot.slane %v5264, 4
        %v5267 = vshll.u32 %v5120, 16
        %v5269 = vrot.slane %v5267, 5
        %v5270 = vsel %vm1241, %v5265, %v5269
        %v5271 = vshrl.u32 %v5120, 16
        %v5273 = vrot.slane %v5271, 4
        %v5274 = vor.u32 %v5273, %v5269
        %v5275 = vrot.slane %v5274, 4
        %v5277 = vshll.u32 %v5121, 16
        %v5279 = vrot.slane %v5277, 5
        %v5280 = vsel %vm1241, %v5275, %v5279
        %v5282 = vshrl.u32 %v5122, 16
        %v5284 = vrot.slane %v5282, 4
        %v5285 = vshll.u32 %v5122, 16
        %v5287 = vrot.slane %v5285, 5
        %v5288 = vor.u32 %v5284, %v5287
        %v5289 = vrot.slane %v5288, 4
        %v5291 = vshll.u32 %v5123, 16
        %v5293 = vrot.slane %v5291, 5
        %v5294 = vsel %vm1241, %v5289, %v5293
        %v5295 = vshrl.u32 %v5123, 16
        %v5297 = vrot.slane %v5295, 4
        %v5298 = vor.u32 %v5297, %v5293
        %v5299 = vrot.slane %v5298, 4
        %v5301 = vshll.u32 %v5124, 16
        %v5303 = vrot.slane %v5301, 5
        %v5304 = vsel %vm1241, %v5299, %v5303
        %v5306 = vshrl.u32 %v5125, 16
        %v5308 = vrot.slane %v5306, 4
        %v5309 = vshll.u32 %v5125, 16
        %v5311 = vrot.slane %v5309, 5
        %v5312 = vor.u32 %v5308, %v5311
        %v5313 = vrot.slane %v5312, 4
        %v5315 = vshll.u32 %v5126, 16
        %v5317 = vrot.slane %v5315, 5
        %v5318 = vsel %vm1241, %v5313, %v5317
        %v5319 = vshrl.u32 %v5126, 16
        %v5321 = vrot.slane %v5319, 4
        %v5322 = vor.u32 %v5321, %v5317
        %v5323 = vrot.slane %v5322, 4
        %v5325 = vshll.u32 %v5127, 16
        %v5327 = vrot.slane %v5325, 5
        %v5328 = vsel %vm1241, %v5323, %v5327
        %v5330 = vshrl.u32 %v5128, 16
        %v5332 = vrot.slane %v5330, 4
        %v5333 = vshll.u32 %v5128, 16
        %v5335 = vrot.slane %v5333, 5
        %v5336 = vor.u32 %v5332, %v5335
        %v5337 = vrot.slane %v5336, 4
        %v5339 = vshll.u32 %v5129, 16
        %v5341 = vrot.slane %v5339, 5
        %v5342 = vsel %vm1241, %v5337, %v5341
        %v5343 = vshrl.u32 %v5129, 16
        %v5345 = vrot.slane %v5343, 4
        %v5346 = vor.u32 %v5345, %v5341
        %v5347 = vrot.slane %v5346, 4
        %v5349 = vshll.u32 %v5130, 16
        %v5351 = vrot.slane %v5349, 5
        %v5352 = vsel %vm1241, %v5347, %v5351
        %v5354 = vshrl.u32 %v5131, 16
        %v5356 = vrot.slane %v5354, 4
        %v5357 = vshll.u32 %v5131, 16
        %v5359 = vrot.slane %v5357, 5
        %v5360 = vor.u32 %v5356, %v5359
        %v5361 = vrot.slane %v5360, 4
        %v5363 = vshll.u32 %v5132, 16
        %v5365 = vrot.slane %v5363, 5
        %v5366 = vsel %vm1241, %v5361, %v5365
        %v5367 = vshrl.u32 %v5132, 16
        %v5369 = vrot.slane %v5367, 4
        %v5370 = vor.u32 %v5369, %v5365
        %v5371 = vrot.slane %v5370, 4
        %v5373 = vshll.u32 %v5133, 16
        %v5375 = vrot.slane %v5373, 5
        %v5376 = vsel %vm1241, %v5371, %v5375
        %v5378 = vshrl.u32 %v5134, 16
        %v5380 = vrot.slane %v5378, 4
        %v5381 = vshll.u32 %v5134, 16
        %v5383 = vrot.slane %v5381, 5
        %v5384 = vor.u32 %v5380, %v5383
        %v5385 = vrot.slane %v5384, 4
        %v5387 = vshll.u32 %v5135, 16
        %v5389 = vrot.slane %v5387, 5
        %v5390 = vsel %vm1241, %v5385, %v5389
        %v5391 = vshrl.u32 %v5135, 16
        %v5393 = vrot.slane %v5391, 4
        %v5394 = vor.u32 %v5393, %v5389
        %v5395 = vrot.slane %v5394, 4
        %v5397 = vshll.u32 %v5136, 16
        %v5399 = vrot.slane %v5397, 5
        %v5400 = vsel %vm1241, %v5395, %v5399
        %v5402 = vshrl.u32 %v5137, 16
        %v5404 = vrot.slane %v5402, 4
        %v5405 = vshll.u32 %v5137, 16
        %v5407 = vrot.slane %v5405, 5
        %v5408 = vor.u32 %v5404, %v5407
        %v5409 = vrot.slane %v5408, 4
        %v5411 = vshll.u32 %v5138, 16
        %v5413 = vrot.slane %v5411, 5
        %v5414 = vsel %vm1241, %v5409, %v5413
        %v5415 = vshrl.u32 %v5138, 16
        %v5417 = vrot.slane %v5415, 4
        %v5418 = vor.u32 %v5417, %v5413
        %v5419 = vrot.slane %v5418, 4
        %v5421 = vshll.u32 %v5139, 16
        %v5423 = vrot.slane %v5421, 5
        %v5424 = vsel %vm1241, %v5419, %v5423
        %v5426 = vshrl.u32 %v5140, 16
        %v5428 = vrot.slane %v5426, 4
        %v5429 = vshll.u32 %v5140, 16
        %v5431 = vrot.slane %v5429, 5
        %v5432 = vor.u32 %v5428, %v5431
        %v5433 = vrot.slane %v5432, 4
        %v5435 = vshll.u32 %v5141, 16
        %v5437 = vrot.slane %v5435, 5
        %v5438 = vsel %vm1241, %v5433, %v5437
        %v5439 = vshrl.u32 %v5141, 16
        %v5441 = vrot.slane %v5439, 4
        %v5442 = vor.u32 %v5441, %v5437
        %v5443 = vrot.slane %v5442, 4
        %v5445 = vshll.u32 %v5142, 16
        %v5447 = vrot.slane %v5445, 5
        %v5448 = vsel %vm1241, %v5443, %v5447
        %v5450 = vshrl.u32 %v5143, 16
        %v5452 = vrot.slane %v5450, 4
        %v5453 = vshll.u32 %v5143, 16
        %v5455 = vrot.slane %v5453, 5
        %v5456 = vor.u32 %v5452, %v5455
        %v5457 = vrot.slane %v5456, 4
        %v5459 = vshll.u32 %v5144, 16
        %v5461 = vrot.slane %v5459, 5
        %v5462 = vsel %vm1241, %v5457, %v5461
        %v5463 = vshrl.u32 %v5144, 16
        %v5465 = vrot.slane %v5463, 4
        %v5466 = vor.u32 %v5465, %v5461
        %v5467 = vrot.slane %v5466, 4
        %v5469 = vshll.u32 %v5145, 16
        %v5471 = vrot.slane %v5469, 5
        %v5472 = vsel %vm1241, %v5467, %v5471
        %v5474 = vshrl.u32 %v5146, 16
        %v5476 = vrot.slane %v5474, 4
        %v5477 = vshll.u32 %v5146, 16
        %v5479 = vrot.slane %v5477, 5
        %v5480 = vor.u32 %v5476, %v5479
        %v5481 = vrot.slane %v5480, 4
        %v5483 = vshll.u32 %v5147, 16
        %v5485 = vrot.slane %v5483, 5
        %v5486 = vsel %vm1241, %v5481, %v5485
        %v5487 = vshrl.u32 %v5147, 16
        %v5489 = vrot.slane %v5487, 4
        %v5490 = vor.u32 %v5489, %v5485
        %v5491 = vrot.slane %v5490, 4
        %v5493 = vshll.u32 %v5148, 16
        %v5495 = vrot.slane %v5493, 5
        %v5496 = vsel %vm1241, %v5491, %v5495
        %v5498 = vshrl.u32 %v5149, 16
        %v5500 = vrot.slane %v5498, 4
        %v5501 = vshll.u32 %v5149, 16
        %v5503 = vrot.slane %v5501, 5
        %v5504 = vor.u32 %v5500, %v5503
        %v5505 = vrot.slane %v5504, 4
        %v5507 = vshll.u32 %v5150, 16
        %v5509 = vrot.slane %v5507, 5
        %v5510 = vsel %vm1241, %v5505, %v5509
        %v5511 = vshrl.u32 %v5150, 16
        %v5513 = vrot.slane %v5511, 4
        %v5514 = vor.u32 %v5513, %v5509
        %v5515 = vrot.slane %v5514, 4
        %v5517 = vshll.u32 %v5151, 16
        %v5519 = vrot.slane %v5517, 5
        %v5520 = vsel %vm1241, %v5515, %v5519
        %v5522 = vshrl.u32 %v5152, 16
        %v5524 = vrot.slane %v5522, 4
        %v5525 = vshll.u32 %v5152, 16
        %v5527 = vrot.slane %v5525, 5
        %v5528 = vor.u32 %v5524, %v5527
        %v5529 = vrot.slane %v5528, 4
        %v5531 = vshll.u32 %v5153, 16
        %v5533 = vrot.slane %v5531, 5
        %v5534 = vsel %vm1241, %v5529, %v5533
        %v5535 = vshrl.u32 %v5153, 16
        %v5537 = vrot.slane %v5535, 4
        %v5538 = vor.u32 %v5537, %v5533
        %v5539 = vrot.slane %v5538, 4
        %v5541 = vshll.u32 %v5154, 16
        %v5543 = vrot.slane %v5541, 5
        %v5544 = vsel %vm1241, %v5539, %v5543
        %v5546 = vshrl.u32 %v5155, 16
        %v5548 = vrot.slane %v5546, 4
        %v5549 = vshll.u32 %v5155, 16
        %v5551 = vrot.slane %v5549, 5
        %v5552 = vor.u32 %v5548, %v5551
        %v5553 = vrot.slane %v5552, 4
        %v5555 = vshll.u32 %v5156, 16
        %v5557 = vrot.slane %v5555, 5
        %v5558 = vsel %vm1241, %v5553, %v5557
        %v5559 = vshrl.u32 %v5156, 16
        %v5561 = vrot.slane %v5559, 4
        %v5562 = vor.u32 %v5561, %v5557
        %v5563 = vrot.slane %v5562, 4
        %v5565 = vshll.u32 %v5157, 16
        %v5567 = vrot.slane %v5565, 5
        %v5568 = vsel %vm1241, %v5563, %v5567
        %v5570 = vshrl.u32 %v5158, 16
        %v5572 = vrot.slane %v5570, 4
        %v5573 = vshll.u32 %v5158, 16
        %v5575 = vrot.slane %v5573, 5
        %v5576 = vor.u32 %v5572, %v5575
        %v5577 = vrot.slane %v5576, 4
        %v5579 = vshll.u32 %v5159, 16
        %v5581 = vrot.slane %v5579, 5
        %v5582 = vsel %vm1241, %v5577, %v5581
        %v5583 = vshrl.u32 %v5159, 16
        %v5585 = vrot.slane %v5583, 4
        %v5586 = vor.u32 %v5585, %v5581
        %v5587 = vrot.slane %v5586, 4
        %v5589 = vshll.u32 %v5160, 16
        %v5591 = vrot.slane %v5589, 5
        %v5592 = vsel %vm1241, %v5587, %v5591
        %5629 = vst [vmem:[#allocation3 + $0x8] sm:$0xf] %v5174
        %5630 = vst [vmem:[#allocation3 + $0x14] sm:$0xf] %v5184
        %5631 = vst [vmem:[#allocation3 + $0x20] sm:$0xf] %v5198
        %5632 = vst [vmem:[#allocation3 + $0x2c] sm:$0xf] %v5208
        %5633 = vst [vmem:[#allocation3 + $0x38] sm:$0xf] %v5222
        %5634 = vst [vmem:[#allocation3 + $0x44] sm:$0xf] %v5232
        %5635 = vst [vmem:[#allocation3 + $0x50] sm:$0xf] %v5246
        %5636 = vst [vmem:[#allocation3 + $0x5c] sm:$0xf] %v5256
        %5637 = vst [vmem:[#allocation3 + $0x68] sm:$0xf] %v5270
        %5638 = vst [vmem:[#allocation3 + $0x74] sm:$0xf] %v5280
        %5639 = vst [vmem:[#allocation3 + $0x80] sm:$0xf] %v5294
        %5640 = vst [vmem:[#allocation3 + $0x8c] sm:$0xf] %v5304
        %5641 = vst [vmem:[#allocation3 + $0x98] sm:$0xf] %v5318
        %5642 = vst [vmem:[#allocation3 + $0xa4] sm:$0xf] %v5328
        %5643 = vst [vmem:[#allocation3 + $0xb0] sm:$0xf] %v5342
        %5644 = vst [vmem:[#allocation3 + $0xbc] sm:$0xf] %v5352
        %5645 = vst [vmem:[#allocation3 + $0xc8] sm:$0xf] %v5366
        %5646 = vst [vmem:[#allocation3 + $0xd4] sm:$0xf] %v5376
        %5647 = vst [vmem:[#allocation3 + $0xe0] sm:$0xf] %v5390
        %5648 = vst [vmem:[#allocation3 + $0xec] sm:$0xf] %v5400
        %5649 = vst [vmem:[#allocation3 + $0xf8] sm:$0xf] %v5414
        %5650 = vst [vmem:[#allocation3 + $0x104] sm:$0xf] %v5424
        %5651 = vst [vmem:[#allocation3 + $0x110] sm:$0xf] %v5438
        %5652 = vst [vmem:[#allocation3 + $0x11c] sm:$0xf] %v5448
        %5653 = vst [vmem:[#allocation3 + $0x128] sm:$0xf] %v5462
        %5654 = vst [vmem:[#allocation3 + $0x134] sm:$0xf] %v5472
        %5655 = vst [vmem:[#allocation3 + $0x140] sm:$0xf] %v5486
        %5656 = vst [vmem:[#allocation3 + $0x14c] sm:$0xf] %v5496
        %5657 = vst [vmem:[#allocation3 + $0x158] sm:$0xf] %v5510
        %5658 = vst [vmem:[#allocation3 + $0x164] sm:$0xf] %v5520
        %5659 = vst [vmem:[#allocation3 + $0x170] sm:$0xf] %v5534
        %5660 = vst [vmem:[#allocation3 + $0x17c] sm:$0xf] %v5544
        %5661 = vst [vmem:[#allocation3 + $0x188] sm:$0xf] %v5558
        %5662 = vst [vmem:[#allocation3 + $0x194] sm:$0xf] %v5568
        %5663 = vst [vmem:[#allocation3 + $0x1a0] sm:$0xf] %v5582
        %5664 = vst [vmem:[#allocation3 + $0x1ac] sm:$0xf] %v5592
        %v5665 = vld [vmem:[#allocation3] sm:$0xff]
        %v5666 = vld [vmem:[#allocation3 + $0x8] sm:$0xf]
        %v5667 = vld [vmem:[#allocation3 + $0xc] sm:$0xff]
        %v5668 = vld [vmem:[#allocation3 + $0x14] sm:$0xf]
        %v5669 = vld [vmem:[#allocation3 + $0x18] sm:$0xff]
        %v5670 = vld [vmem:[#allocation3 + $0x20] sm:$0xf]
        %v5671 = vld [vmem:[#allocation3 + $0x24] sm:$0xff]
        %v5672 = vld [vmem:[#allocation3 + $0x2c] sm:$0xf]
        %v5673 = vld [vmem:[#allocation3 + $0x30] sm:$0xff]
        %v5674 = vld [vmem:[#allocation3 + $0x38] sm:$0xf]
        %v5675 = vld [vmem:[#allocation3 + $0x3c] sm:$0xff]
        %v5676 = vld [vmem:[#allocation3 + $0x44] sm:$0xf]
        %v5677 = vld [vmem:[#allocation3 + $0x48] sm:$0xff]
        %v5678 = vld [vmem:[#allocation3 + $0x50] sm:$0xf]
        %v5679 = vld [vmem:[#allocation3 + $0x54] sm:$0xff]
        %v5680 = vld [vmem:[#allocation3 + $0x5c] sm:$0xf]
        %v5681 = vld [vmem:[#allocation3 + $0x60] sm:$0xff]
        %v5682 = vld [vmem:[#allocation3 + $0x68] sm:$0xf]
        %v5683 = vld [vmem:[#allocation3 + $0x6c] sm:$0xff]
        %v5684 = vld [vmem:[#allocation3 + $0x74] sm:$0xf]
        %v5685 = vld [vmem:[#allocation3 + $0x78] sm:$0xff]
        %v5686 = vld [vmem:[#allocation3 + $0x80] sm:$0xf]
        %v5687 = vld [vmem:[#allocation3 + $0x84] sm:$0xff]
        %v5688 = vld [vmem:[#allocation3 + $0x8c] sm:$0xf]
        %v5689 = vld [vmem:[#allocation3 + $0x90] sm:$0xff]
        %v5690 = vld [vmem:[#allocation3 + $0x98] sm:$0xf]
        %v5691 = vld [vmem:[#allocation3 + $0x9c] sm:$0xff]
        %v5692 = vld [vmem:[#allocation3 + $0xa4] sm:$0xf]
        %v5693 = vld [vmem:[#allocation3 + $0xa8] sm:$0xff]
        %v5694 = vld [vmem:[#allocation3 + $0xb0] sm:$0xf]
        %v5695 = vld [vmem:[#allocation3 + $0xb4] sm:$0xff]
        %v5696 = vld [vmem:[#allocation3 + $0xbc] sm:$0xf]
        %v5697 = vld [vmem:[#allocation3 + $0xc0] sm:$0xff]
        %v5698 = vld [vmem:[#allocation3 + $0xc8] sm:$0xf]
        %v5699 = vld [vmem:[#allocation3 + $0xcc] sm:$0xff]
        %v5700 = vld [vmem:[#allocation3 + $0xd4] sm:$0xf]
        %v5701 = vld [vmem:[#allocation3 + $0xd8] sm:$0xff]
        %v5702 = vld [vmem:[#allocation3 + $0xe0] sm:$0xf]
        %v5703 = vld [vmem:[#allocation3 + $0xe4] sm:$0xff]
        %v5704 = vld [vmem:[#allocation3 + $0xec] sm:$0xf]
        %v5705 = vld [vmem:[#allocation3 + $0xf0] sm:$0xff]
        %v5706 = vld [vmem:[#allocation3 + $0xf8] sm:$0xf]
        %v5707 = vld [vmem:[#allocation3 + $0xfc] sm:$0xff]
        %v5708 = vld [vmem:[#allocation3 + $0x104] sm:$0xf]
        %v5709 = vld [vmem:[#allocation3 + $0x108] sm:$0xff]
        %v5710 = vld [vmem:[#allocation3 + $0x110] sm:$0xf]
        %v5711 = vld [vmem:[#allocation3 + $0x114] sm:$0xff]
        %v5712 = vld [vmem:[#allocation3 + $0x11c] sm:$0xf]
        %v5713 = vld [vmem:[#allocation3 + $0x120] sm:$0xff]
        %v5714 = vld [vmem:[#allocation3 + $0x128] sm:$0xf]
        %v5715 = vld [vmem:[#allocation3 + $0x12c] sm:$0xff]
        %v5716 = vld [vmem:[#allocation3 + $0x134] sm:$0xf]
        %v5717 = vld [vmem:[#allocation3 + $0x138] sm:$0xff]
        %v5718 = vld [vmem:[#allocation3 + $0x140] sm:$0xf]
        %v5719 = vld [vmem:[#allocation3 + $0x144] sm:$0xff]
        %v5720 = vld [vmem:[#allocation3 + $0x14c] sm:$0xf]
        %v5721 = vld [vmem:[#allocation3 + $0x150] sm:$0xff]
        %v5722 = vld [vmem:[#allocation3 + $0x158] sm:$0xf]
        %v5723 = vld [vmem:[#allocation3 + $0x15c] sm:$0xff]
        %v5724 = vld [vmem:[#allocation3 + $0x164] sm:$0xf]
        %v5725 = vld [vmem:[#allocation3 + $0x168] sm:$0xff]
        %v5726 = vld [vmem:[#allocation3 + $0x170] sm:$0xf]
        %v5727 = vld [vmem:[#allocation3 + $0x174] sm:$0xff]
        %v5728 = vld [vmem:[#allocation3 + $0x17c] sm:$0xf]
        %v5729 = vld [vmem:[#allocation9] sm:$0xf]
        %v5730 = vld [vmem:[#allocation9 + $0x4] sm:$0xf]
        %v5731 = vld [vmem:[#allocation9 + $0x8] sm:$0xf]
        %v5732 = vld [vmem:[#allocation9 + $0xc] sm:$0xf]
        %v5733 = vld [vmem:[#allocation9 + $0x10] sm:$0xf]
        %v5734 = vld [vmem:[#allocation9 + $0x14] sm:$0xf]
        %v5735 = vld [vmem:[#allocation9 + $0x18] sm:$0xf]
        %v5736 = vld [vmem:[#allocation9 + $0x1c] sm:$0xf]
        %v5737 = vld [vmem:[#allocation9 + $0x20] sm:$0xf]
        %v5738 = vld [vmem:[#allocation9 + $0x24] sm:$0xf]
        %v5739 = vld [vmem:[#allocation9 + $0x28] sm:$0xf]
        %v5740 = vld [vmem:[#allocation9 + $0x2c] sm:$0xf]
        %v5741 = vld [vmem:[#allocation9 + $0x30] sm:$0xf]
        %v5742 = vld [vmem:[#allocation9 + $0x34] sm:$0xf]
        %v5743 = vld [vmem:[#allocation9 + $0x38] sm:$0xf]
        %v5744 = vld [vmem:[#allocation9 + $0x3c] sm:$0xf]
        %v5745 = vld [vmem:[#allocation9 + $0x40] sm:$0xf]
        %v5746 = vld [vmem:[#allocation9 + $0x44] sm:$0xf]
        %v5747 = vld [vmem:[#allocation9 + $0x48] sm:$0xf]
        %v5748 = vld [vmem:[#allocation9 + $0x4c] sm:$0xf]
        %v5749 = vld [vmem:[#allocation9 + $0x50] sm:$0xf]
        %v5750 = vld [vmem:[#allocation9 + $0x54] sm:$0xf]
        %v5751 = vld [vmem:[#allocation9 + $0x58] sm:$0xf]
        %v5752 = vld [vmem:[#allocation9 + $0x5c] sm:$0xf]
        %v5753 = vld [vmem:[#allocation9 + $0x60] sm:$0xf]
        %v5754 = vld [vmem:[#allocation9 + $0x64] sm:$0xf]
        %v5755 = vld [vmem:[#allocation9 + $0x68] sm:$0xf]
        %v5756 = vld [vmem:[#allocation9 + $0x6c] sm:$0xf]
        %v5757 = vld [vmem:[#allocation9 + $0x70] sm:$0xf]
        %v5758 = vld [vmem:[#allocation9 + $0x74] sm:$0xf]
        %v5759 = vld [vmem:[#allocation9 + $0x78] sm:$0xf]
        %v5760 = vld [vmem:[#allocation9 + $0x7c] sm:$0xf]
        %v5761 = vld [vmem:[#allocation9 + $0x80] sm:$0xf]
        %v5762 = vld [vmem:[#allocation9 + $0x84] sm:$0xf]
        %v5763 = vld [vmem:[#allocation9 + $0x88] sm:$0xf]
        %v5764 = vld [vmem:[#allocation9 + $0x8c] sm:$0xf]
        %v5765 = vld [vmem:[#allocation9 + $0x90] sm:$0xf]
        %v5766 = vld [vmem:[#allocation9 + $0x94] sm:$0xf]
        %v5767 = vld [vmem:[#allocation9 + $0x98] sm:$0xf]
        %v5768 = vld [vmem:[#allocation9 + $0x9c] sm:$0xf]
        %v5769 = vld [vmem:[#allocation9 + $0xa0] sm:$0xf]
        %v5770 = vld [vmem:[#allocation9 + $0xa4] sm:$0xf]
        %v5771 = vld [vmem:[#allocation9 + $0xa8] sm:$0xf]
        %v5772 = vld [vmem:[#allocation9 + $0xac] sm:$0xf]
        %v5773 = vld [vmem:[#allocation9 + $0xb0] sm:$0xf]
        %v5774 = vld [vmem:[#allocation9 + $0xb4] sm:$0xf]
        %v5775 = vld [vmem:[#allocation9 + $0xb8] sm:$0xf]
        %v5776 = vld [vmem:[#allocation9 + $0xbc] sm:$0xf]
        %v5777 = vld [vmem:[%s1858] sm:$0xff]
        %v5778 = vld [vmem:[%s1858 + $0x8] sm:$0xf]
        %v5779 = vld [vmem:[%s1858 + $0xc] sm:$0xff]
        %v5780 = vld [vmem:[%s1858 + $0x14] sm:$0xf]
        %v5781 = vld [vmem:[%s1858 + $0x18] sm:$0xff]
        %v5782 = vld [vmem:[%s1858 + $0x20] sm:$0xf]
        %v5783 = vld [vmem:[%s1858 + $0x24] sm:$0xff]
        %v5784 = vld [vmem:[%s1858 + $0x2c] sm:$0xf]
        %v5785 = vld [vmem:[%s1858 + $0x30] sm:$0xff]
        %v5786 = vld [vmem:[%s1858 + $0x38] sm:$0xf]
        %v5787 = vld [vmem:[%s1858 + $0x3c] sm:$0xff]
        %v5788 = vld [vmem:[%s1858 + $0x44] sm:$0xf]
        %v5789 = vld [vmem:[%s1858 + $0x48] sm:$0xff]
        %v5790 = vld [vmem:[%s1858 + $0x50] sm:$0xf]
        %v5791 = vld [vmem:[%s1858 + $0x54] sm:$0xff]
        %v5792 = vld [vmem:[%s1858 + $0x5c] sm:$0xf]
        %v5793 = vld [vmem:[%s1858 + $0x60] sm:$0xff]
        %v5794 = vld [vmem:[%s1858 + $0x68] sm:$0xf]
        %v5795 = vld [vmem:[%s1858 + $0x6c] sm:$0xff]
        %v5796 = vld [vmem:[%s1858 + $0x74] sm:$0xf]
        %v5797 = vld [vmem:[%s1858 + $0x78] sm:$0xff]
        %v5798 = vld [vmem:[%s1858 + $0x80] sm:$0xf]
        %v5799 = vld [vmem:[%s1858 + $0x84] sm:$0xff]
        %v5800 = vld [vmem:[%s1858 + $0x8c] sm:$0xf]
        %v5801 = vld [vmem:[%s1858 + $0x90] sm:$0xff]
        %v5802 = vld [vmem:[%s1858 + $0x98] sm:$0xf]
        %v5803 = vld [vmem:[%s1858 + $0x9c] sm:$0xff]
        %v5804 = vld [vmem:[%s1858 + $0xa4] sm:$0xf]
        %v5805 = vld [vmem:[%s1858 + $0xa8] sm:$0xff]
        %v5806 = vld [vmem:[%s1858 + $0xb0] sm:$0xf]
        %v5807 = vld [vmem:[%s1858 + $0xb4] sm:$0xff]
        %v5808 = vld [vmem:[%s1858 + $0xbc] sm:$0xf]
        %v5809 = vld [vmem:[%s1858 + $0xc0] sm:$0xff]
        %v5810 = vld [vmem:[%s1858 + $0xc8] sm:$0xf]
        %v5811 = vld [vmem:[%s1858 + $0xcc] sm:$0xff]
        %v5812 = vld [vmem:[%s1858 + $0xd4] sm:$0xf]
        %v5813 = vld [vmem:[%s1858 + $0xd8] sm:$0xff]
        %v5814 = vld [vmem:[%s1858 + $0xe0] sm:$0xf]
        %v5815 = vld [vmem:[%s1858 + $0xe4] sm:$0xff]
        %v5816 = vld [vmem:[%s1858 + $0xec] sm:$0xf]
        %v5817 = vld [vmem:[%s1858 + $0xf0] sm:$0xff]
        %v5818 = vld [vmem:[%s1858 + $0xf8] sm:$0xf]
        %v5819 = vld [vmem:[%s1858 + $0xfc] sm:$0xff]
        %v5820 = vld [vmem:[%s1858 + $0x104] sm:$0xf]
        %v5821 = vld [vmem:[%s1858 + $0x108] sm:$0xff]
        %v5822 = vld [vmem:[%s1858 + $0x110] sm:$0xf]
        %v5823 = vld [vmem:[%s1858 + $0x114] sm:$0xff]
        %v5824 = vld [vmem:[%s1858 + $0x11c] sm:$0xf]
        %v5825 = vld [vmem:[%s1858 + $0x120] sm:$0xff]
        %v5826 = vld [vmem:[%s1858 + $0x128] sm:$0xf]
        %v5827 = vld [vmem:[%s1858 + $0x12c] sm:$0xff]
        %v5828 = vld [vmem:[%s1858 + $0x134] sm:$0xf]
        %v5829 = vld [vmem:[%s1858 + $0x138] sm:$0xff]
        %v5830 = vld [vmem:[%s1858 + $0x140] sm:$0xf]
        %v5831 = vld [vmem:[%s1858 + $0x144] sm:$0xff]
        %v5832 = vld [vmem:[%s1858 + $0x14c] sm:$0xf]
        %v5833 = vld [vmem:[%s1858 + $0x150] sm:$0xff]
        %v5834 = vld [vmem:[%s1858 + $0x158] sm:$0xf]
        %v5835 = vld [vmem:[%s1858 + $0x15c] sm:$0xff]
        %v5836 = vld [vmem:[%s1858 + $0x164] sm:$0xf]
        %v5837 = vld [vmem:[%s1858 + $0x168] sm:$0xff]
        %v5838 = vld [vmem:[%s1858 + $0x170] sm:$0xf]
        %v5839 = vld [vmem:[%s1858 + $0x174] sm:$0xff]
        %v5840 = vld [vmem:[%s1858 + $0x17c] sm:$0xf]
        %v5841 = vld [vmem:[#allocation9 + $0xc0] sm:$0xf]
        %v5842 = vld [vmem:[#allocation9 + $0xc4] sm:$0xf]
        %v5843 = vld [vmem:[#allocation9 + $0xc8] sm:$0xf]
        %v5844 = vld [vmem:[#allocation9 + $0xcc] sm:$0xf]
        %v5845 = vld [vmem:[#allocation9 + $0xd0] sm:$0xf]
        %v5846 = vld [vmem:[#allocation9 + $0xd4] sm:$0xf]
        %v5847 = vld [vmem:[#allocation9 + $0xd8] sm:$0xf]
        %v5848 = vld [vmem:[#allocation9 + $0xdc] sm:$0xf]
        %v5849 = vld [vmem:[#allocation9 + $0xe0] sm:$0xf]
        %v5850 = vld [vmem:[#allocation9 + $0xe4] sm:$0xf]
        %v5851 = vld [vmem:[#allocation9 + $0xe8] sm:$0xf]
        %v5852 = vld [vmem:[#allocation9 + $0xec] sm:$0xf]
        %v5853 = vld [vmem:[#allocation9 + $0xf0] sm:$0xf]
        %v5854 = vld [vmem:[#allocation9 + $0xf4] sm:$0xf]
        %v5855 = vld [vmem:[#allocation9 + $0xf8] sm:$0xf]
        %v5856 = vld [vmem:[#allocation9 + $0xfc] sm:$0xf]
        %v5857 = vld [vmem:[#allocation9 + $0x100] sm:$0xf]
        %v5858 = vld [vmem:[#allocation9 + $0x104] sm:$0xf]
        %v5859 = vld [vmem:[#allocation9 + $0x108] sm:$0xf]
        %v5860 = vld [vmem:[#allocation9 + $0x10c] sm:$0xf]
        %v5861 = vld [vmem:[#allocation9 + $0x110] sm:$0xf]
        %v5862 = vld [vmem:[#allocation9 + $0x114] sm:$0xf]
        %v5863 = vld [vmem:[#allocation9 + $0x118] sm:$0xf]
        %v5864 = vld [vmem:[#allocation9 + $0x11c] sm:$0xf]
        %v5865 = vld [vmem:[#allocation9 + $0x120] sm:$0xf]
        %v5866 = vld [vmem:[#allocation9 + $0x124] sm:$0xf]
        %v5867 = vld [vmem:[#allocation9 + $0x128] sm:$0xf]
        %v5868 = vld [vmem:[#allocation9 + $0x12c] sm:$0xf]
        %v5869 = vld [vmem:[#allocation9 + $0x130] sm:$0xf]
        %v5870 = vld [vmem:[#allocation9 + $0x134] sm:$0xf]
        %v5871 = vld [vmem:[#allocation9 + $0x138] sm:$0xf]
        %v5872 = vld [vmem:[#allocation9 + $0x13c] sm:$0xf]
        %v5873 = vld [vmem:[#allocation9 + $0x140] sm:$0xf]
        %v5874 = vld [vmem:[#allocation9 + $0x144] sm:$0xf]
        %v5875 = vld [vmem:[#allocation9 + $0x148] sm:$0xf]
        %v5876 = vld [vmem:[#allocation9 + $0x14c] sm:$0xf]
        %v5877 = vld [vmem:[#allocation9 + $0x150] sm:$0xf]
        %v5878 = vld [vmem:[#allocation9 + $0x154] sm:$0xf]
        %v5879 = vld [vmem:[#allocation9 + $0x158] sm:$0xf]
        %v5880 = vld [vmem:[#allocation9 + $0x15c] sm:$0xf]
        %v5881 = vld [vmem:[#allocation9 + $0x160] sm:$0xf]
        %v5882 = vld [vmem:[#allocation9 + $0x164] sm:$0xf]
        %v5883 = vld [vmem:[#allocation9 + $0x168] sm:$0xf]
        %v5884 = vld [vmem:[#allocation9 + $0x16c] sm:$0xf]
        %v5885 = vld [vmem:[#allocation9 + $0x170] sm:$0xf]
        %v5886 = vld [vmem:[#allocation9 + $0x174] sm:$0xf]
        %v5887 = vld [vmem:[#allocation9 + $0x178] sm:$0xf]
        %v5888 = vld [vmem:[#allocation9 + $0x17c] sm:$0xf]
        %v5953 = vunpack.c.l.b16 %v5777
        %v5954 = vunpack.c.h.b16 %v5777
        %v5955 = vunpack.c.l.b16 %v5778
        %v5956 = vunpack.c.l.b16 %v5779
        %v5957 = vunpack.c.h.b16 %v5779
        %v5958 = vunpack.c.l.b16 %v5780
        %v5959 = vunpack.c.l.b16 %v5781
        %v5960 = vunpack.c.h.b16 %v5781
        %v5961 = vunpack.c.l.b16 %v5782
        %v5962 = vunpack.c.l.b16 %v5783
        %v5963 = vunpack.c.h.b16 %v5783
        %v5964 = vunpack.c.l.b16 %v5784
        %v5965 = vunpack.c.l.b16 %v5785
        %v5966 = vunpack.c.h.b16 %v5785
        %v5967 = vunpack.c.l.b16 %v5786
        %v5968 = vunpack.c.l.b16 %v5787
        %v5969 = vunpack.c.h.b16 %v5787
        %v5970 = vunpack.c.l.b16 %v5788
        %v5971 = vunpack.c.l.b16 %v5789
        %v5972 = vunpack.c.h.b16 %v5789
        %v5973 = vunpack.c.l.b16 %v5790
        %v5974 = vunpack.c.l.b16 %v5791
        %v5975 = vunpack.c.h.b16 %v5791
        %v5976 = vunpack.c.l.b16 %v5792
        %v5977 = vunpack.c.l.b16 %v5793
        %v5978 = vunpack.c.h.b16 %v5793
        %v5979 = vunpack.c.l.b16 %v5794
        %v5980 = vunpack.c.l.b16 %v5795
        %v5981 = vunpack.c.h.b16 %v5795
        %v5982 = vunpack.c.l.b16 %v5796
        %v5983 = vunpack.c.l.b16 %v5797
        %v5984 = vunpack.c.h.b16 %v5797
        %v5985 = vunpack.c.l.b16 %v5798
        %v5986 = vunpack.c.l.b16 %v5799
        %v5987 = vunpack.c.h.b16 %v5799
        %v5988 = vunpack.c.l.b16 %v5800
        %v5989 = vunpack.c.l.b16 %v5801
        %v5990 = vunpack.c.h.b16 %v5801
        %v5991 = vunpack.c.l.b16 %v5802
        %v5992 = vunpack.c.l.b16 %v5803
        %v5993 = vunpack.c.h.b16 %v5803
        %v5994 = vunpack.c.l.b16 %v5804
        %v5995 = vunpack.c.l.b16 %v5805
        %v5996 = vunpack.c.h.b16 %v5805
        %v5997 = vunpack.c.l.b16 %v5806
        %v5998 = vunpack.c.l.b16 %v5807
        %v5999 = vunpack.c.h.b16 %v5807
        %v6000 = vunpack.c.l.b16 %v5808
        %v6001 = vunpack.c.l.b16 %v5809
        %v6002 = vunpack.c.h.b16 %v5809
        %v6003 = vunpack.c.l.b16 %v5810
        %v6004 = vunpack.c.l.b16 %v5811
        %v6005 = vunpack.c.h.b16 %v5811
        %v6006 = vunpack.c.l.b16 %v5812
        %v6007 = vunpack.c.l.b16 %v5813
        %v6008 = vunpack.c.h.b16 %v5813
        %v6009 = vunpack.c.l.b16 %v5814
        %v6010 = vunpack.c.l.b16 %v5815
        %v6011 = vunpack.c.h.b16 %v5815
        %v6012 = vunpack.c.l.b16 %v5816
        %v6013 = vunpack.c.l.b16 %v5817
        %v6014 = vunpack.c.h.b16 %v5817
        %v6015 = vunpack.c.l.b16 %v5818
        %v6016 = vunpack.c.l.b16 %v5819
        %v6017 = vunpack.c.h.b16 %v5819
        %v6018 = vunpack.c.l.b16 %v5820
        %v6019 = vunpack.c.l.b16 %v5821
        %v6020 = vunpack.c.h.b16 %v5821
        %v6021 = vunpack.c.l.b16 %v5822
        %v6022 = vunpack.c.l.b16 %v5823
        %v6023 = vunpack.c.h.b16 %v5823
        %v6024 = vunpack.c.l.b16 %v5824
        %v6025 = vunpack.c.l.b16 %v5825
        %v6026 = vunpack.c.h.b16 %v5825
        %v6027 = vunpack.c.l.b16 %v5826
        %v6028 = vunpack.c.l.b16 %v5827
        %v6029 = vunpack.c.h.b16 %v5827
        %v6030 = vunpack.c.l.b16 %v5828
        %v6031 = vunpack.c.l.b16 %v5829
        %v6032 = vunpack.c.h.b16 %v5829
        %v6033 = vunpack.c.l.b16 %v5830
        %v6034 = vunpack.c.l.b16 %v5831
        %v6035 = vunpack.c.h.b16 %v5831
        %v6036 = vunpack.c.l.b16 %v5832
        %v6037 = vunpack.c.l.b16 %v5833
        %v6038 = vunpack.c.h.b16 %v5833
        %v6039 = vunpack.c.l.b16 %v5834
        %v6040 = vunpack.c.l.b16 %v5835
        %v6041 = vunpack.c.h.b16 %v5835
        %v6042 = vunpack.c.l.b16 %v5836
        %v6043 = vunpack.c.l.b16 %v5837
        %v6044 = vunpack.c.h.b16 %v5837
        %v6045 = vunpack.c.l.b16 %v5838
        %v6046 = vunpack.c.l.b16 %v5839
        %v6047 = vunpack.c.h.b16 %v5839
        %v6048 = vunpack.c.l.b16 %v5840
        %v6049 = vpack.c.b16 %v5956, %v5953
        %v6050 = vpack.c.b16 %v5957, %v5954
        %v6051 = vpack.c.b16 %v5958, %v5955
        %v6052 = vpack.c.b16 %v5962, %v5959
        %v6053 = vpack.c.b16 %v5963, %v5960
        %v6054 = vpack.c.b16 %v5964, %v5961
        %v6055 = vpack.c.b16 %v5968, %v5965
        %v6056 = vpack.c.b16 %v5969, %v5966
        %v6057 = vpack.c.b16 %v5970, %v5967
        %v6058 = vpack.c.b16 %v5974, %v5971
        %v6059 = vpack.c.b16 %v5975, %v5972
        %v6060 = vpack.c.b16 %v5976, %v5973
        %v6061 = vpack.c.b16 %v5980, %v5977
        %v6062 = vpack.c.b16 %v5981, %v5978
        %v6063 = vpack.c.b16 %v5982, %v5979
        %v6064 = vpack.c.b16 %v5986, %v5983
        %v6065 = vpack.c.b16 %v5987, %v5984
        %v6066 = vpack.c.b16 %v5988, %v5985
        %v6067 = vpack.c.b16 %v5992, %v5989
        %v6068 = vpack.c.b16 %v5993, %v5990
        %v6069 = vpack.c.b16 %v5994, %v5991
        %v6070 = vpack.c.b16 %v5998, %v5995
        %v6071 = vpack.c.b16 %v5999, %v5996
        %v6072 = vpack.c.b16 %v6000, %v5997
        %v6073 = vpack.c.b16 %v6004, %v6001
        %v6074 = vpack.c.b16 %v6005, %v6002
        %v6075 = vpack.c.b16 %v6006, %v6003
        %v6076 = vpack.c.b16 %v6010, %v6007
        %v6077 = vpack.c.b16 %v6011, %v6008
        %v6078 = vpack.c.b16 %v6012, %v6009
        %v6079 = vpack.c.b16 %v6016, %v6013
        %v6080 = vpack.c.b16 %v6017, %v6014
        %v6081 = vpack.c.b16 %v6018, %v6015
        %v6082 = vpack.c.b16 %v6022, %v6019
        %v6083 = vpack.c.b16 %v6023, %v6020
        %v6084 = vpack.c.b16 %v6024, %v6021
        %v6085 = vpack.c.b16 %v6028, %v6025
        %v6086 = vpack.c.b16 %v6029, %v6026
        %v6087 = vpack.c.b16 %v6030, %v6027
        %v6088 = vpack.c.b16 %v6034, %v6031
        %v6089 = vpack.c.b16 %v6035, %v6032
        %v6090 = vpack.c.b16 %v6036, %v6033
        %v6091 = vpack.c.b16 %v6040, %v6037
        %v6092 = vpack.c.b16 %v6041, %v6038
        %v6093 = vpack.c.b16 %v6042, %v6039
        %v6094 = vpack.c.b16 %v6046, %v6043
        %v6095 = vpack.c.b16 %v6047, %v6044
        %v6096 = vpack.c.b16 %v6048, %v6045
        %v6193 = vunpack.c.l.b16 %v5841
        %v6194 = vunpack.c.l.b16 %v5842
        %v6195 = vunpack.c.l.b16 %v5843
        %v6196 = vunpack.c.l.b16 %v5844
        %v6197 = vunpack.c.l.b16 %v5845
        %v6198 = vunpack.c.l.b16 %v5846
        %v6199 = vunpack.c.l.b16 %v5847
        %v6200 = vunpack.c.l.b16 %v5848
        %v6201 = vunpack.c.l.b16 %v5849
        %v6202 = vunpack.c.l.b16 %v5850
        %v6203 = vunpack.c.l.b16 %v5851
        %v6204 = vunpack.c.l.b16 %v5852
        %v6205 = vunpack.c.l.b16 %v5853
        %v6206 = vunpack.c.l.b16 %v5854
        %v6207 = vunpack.c.l.b16 %v5855
        %v6208 = vunpack.c.l.b16 %v5856
        %v6209 = vunpack.c.l.b16 %v5857
        %v6210 = vunpack.c.l.b16 %v5858
        %v6211 = vunpack.c.l.b16 %v5859
        %v6212 = vunpack.c.l.b16 %v5860
        %v6213 = vunpack.c.l.b16 %v5861
        %v6214 = vunpack.c.l.b16 %v5862
        %v6215 = vunpack.c.l.b16 %v5863
        %v6216 = vunpack.c.l.b16 %v5864
        %v6217 = vunpack.c.l.b16 %v5865
        %v6218 = vunpack.c.l.b16 %v5866
        %v6219 = vunpack.c.l.b16 %v5867
        %v6220 = vunpack.c.l.b16 %v5868
        %v6221 = vunpack.c.l.b16 %v5869
        %v6222 = vunpack.c.l.b16 %v5870
        %v6223 = vunpack.c.l.b16 %v5871
        %v6224 = vunpack.c.l.b16 %v5872
        %v6225 = vunpack.c.l.b16 %v5873
        %v6226 = vunpack.c.l.b16 %v5874
        %v6227 = vunpack.c.l.b16 %v5875
        %v6228 = vunpack.c.l.b16 %v5876
        %v6229 = vunpack.c.l.b16 %v5877
        %v6230 = vunpack.c.l.b16 %v5878
        %v6231 = vunpack.c.l.b16 %v5879
        %v6232 = vunpack.c.l.b16 %v5880
        %v6233 = vunpack.c.l.b16 %v5881
        %v6234 = vunpack.c.l.b16 %v5882
        %v6235 = vunpack.c.l.b16 %v5883
        %v6236 = vunpack.c.l.b16 %v5884
        %v6237 = vunpack.c.l.b16 %v5885
        %v6238 = vunpack.c.l.b16 %v5886
        %v6239 = vunpack.c.l.b16 %v5887
        %v6240 = vunpack.c.l.b16 %v5888
        %v6241 = vpack.c.b16 %v6194, %v6193
        %v6242 = vpack.c.b16 %v6196, %v6195
        %v6243 = vpack.c.b16 %v6198, %v6197
        %v6244 = vpack.c.b16 %v6200, %v6199
        %v6245 = vpack.c.b16 %v6202, %v6201
        %v6246 = vpack.c.b16 %v6204, %v6203
        %v6247 = vpack.c.b16 %v6206, %v6205
        %v6248 = vpack.c.b16 %v6208, %v6207
        %v6249 = vpack.c.b16 %v6210, %v6209
        %v6250 = vpack.c.b16 %v6212, %v6211
        %v6251 = vpack.c.b16 %v6214, %v6213
        %v6252 = vpack.c.b16 %v6216, %v6215
        %v6253 = vpack.c.b16 %v6218, %v6217
        %v6254 = vpack.c.b16 %v6220, %v6219
        %v6255 = vpack.c.b16 %v6222, %v6221
        %v6256 = vpack.c.b16 %v6224, %v6223
        %v6257 = vpack.c.b16 %v6226, %v6225
        %v6258 = vpack.c.b16 %v6228, %v6227
        %v6259 = vpack.c.b16 %v6230, %v6229
        %v6260 = vpack.c.b16 %v6232, %v6231
        %v6261 = vpack.c.b16 %v6234, %v6233
        %v6262 = vpack.c.b16 %v6236, %v6235
        %v6263 = vpack.c.b16 %v6238, %v6237
        %v6264 = vpack.c.b16 %v6240, %v6239
        %6289 = vmatprep.subr.bf16.mxu0 0
        %6290 = vmatpush1.bf16.msra.mxu0 %v6248
        %6291 = vmatprep.subr.bf16.mxu0 0
        %6292 = vmatpush1.bf16.msra.mxu0 %v6247
        %6293 = vmatprep.subr.bf16.mxu0 0
        %6294 = vmatpush1.bf16.msra.mxu0 %v6246
        %6295 = vmatprep.subr.bf16.mxu0 0
        %6296 = vmatpush1.bf16.msra.mxu0 %v6245
        %6297 = vmatprep.subr.bf16.mxu0 0
        %6298 = vmatpush1.bf16.msra.mxu0 %v6244
        %6299 = vmatprep.subr.bf16.mxu0 0
        %6300 = vmatpush1.bf16.msra.mxu0 %v6243
        %6301 = vmatprep.subr.bf16.mxu0 0
        %6302 = vmatpush1.bf16.msra.mxu0 %v6242
        %6303 = vmatprep.subr.bf16.mxu0 0
        %6304 = vmatpush1.bf16.msra.mxu0 %v6241
        %6305 = vmatprep.subr.bf16.mxu0 0
        %6306 = vmatpush2.bf16.msra.mxu0 %v6256
        %6307 = vmatprep.subr.bf16.mxu0 0
        %6308 = vmatpush2.bf16.msra.mxu0 %v6255
        %6309 = vmatprep.subr.bf16.mxu0 0
        %6310 = vmatpush2.bf16.msra.mxu0 %v6254
        %6311 = vmatprep.subr.bf16.mxu0 0
        %6312 = vmatpush2.bf16.msra.mxu0 %v6253
        %6313 = vmatprep.subr.bf16.mxu0 0
        %6314 = vmatpush2.bf16.msra.mxu0 %v6252
        %6315 = vmatprep.subr.bf16.mxu0 0
        %6316 = vmatpush2.bf16.msra.mxu0 %v6251
        %6317 = vmatprep.subr.bf16.mxu0 0
        %6318 = vmatpush2.bf16.msra.mxu0 %v6250
        %6319 = vmatprep.subr.bf16.mxu0 0
        %6320 = vmatpush2.bf16.msra.mxu0 %v6249
        %6321 = vmatprep.mubr.bf16.mxu0 %v6050
        %6322 = vmatmul.mubr.bf16.gmra.mxu0 %v6049
        %v6323 = vpop.f32.mrf.mxu0
        %v6324 = vadd.f32 0.0, %v6323
        %v6325 = vpop.f32.mrf.mxu0
        %v6326 = vpop.f32.mrf.mxu0
        %v6327 = vadd.f32 0.0, %v6326
        %v6328 = vpop.f32.mrf.mxu0
        %6329 = vmatprep.mubr.bf16.mxu0 %v6053
        %6330 = vmatmul.mubr.bf16.gmra.mxu0 %v6052
        %v6331 = vpop.f32.mrf.mxu0
        %v6332 = vadd.f32 0.0, %v6331
        %v6333 = vpop.f32.mrf.mxu0
        %v6334 = vpop.f32.mrf.mxu0
        %v6335 = vadd.f32 0.0, %v6334
        %v6336 = vpop.f32.mrf.mxu0
        %6337 = vmatprep.mubr.bf16.mxu0 %v6056
        %6338 = vmatmul.mubr.bf16.gmra.mxu0 %v6055
        %v6339 = vpop.f32.mrf.mxu0
        %v6340 = vadd.f32 0.0, %v6339
        %v6341 = vpop.f32.mrf.mxu0
        %v6342 = vpop.f32.mrf.mxu0
        %v6343 = vadd.f32 0.0, %v6342
        %v6344 = vpop.f32.mrf.mxu0
        %6345 = vmatprep.mubr.bf16.mxu0 %v6059
        %6346 = vmatmul.mubr.bf16.gmra.mxu0 %v6058
        %v6347 = vpop.f32.mrf.mxu0
        %v6348 = vadd.f32 0.0, %v6347
        %v6349 = vpop.f32.mrf.mxu0
        %v6350 = vpop.f32.mrf.mxu0
        %v6351 = vadd.f32 0.0, %v6350
        %v6352 = vpop.f32.mrf.mxu0
        %6353 = vmatprep.mubr.bf16.mxu0 %v6062
        %6354 = vmatmul.mubr.bf16.gmra.mxu0 %v6061
        %v6355 = vpop.f32.mrf.mxu0
        %v6356 = vadd.f32 0.0, %v6355
        %v6357 = vpop.f32.mrf.mxu0
        %v6358 = vpop.f32.mrf.mxu0
        %v6359 = vadd.f32 0.0, %v6358
        %v6360 = vpop.f32.mrf.mxu0
        %6361 = vmatprep.mubr.bf16.mxu0 %v6065
        %6362 = vmatmul.mubr.bf16.gmra.mxu0 %v6064
        %v6363 = vpop.f32.mrf.mxu0
        %v6364 = vadd.f32 0.0, %v6363
        %v6365 = vpop.f32.mrf.mxu0
        %v6366 = vpop.f32.mrf.mxu0
        %v6367 = vadd.f32 0.0, %v6366
        %v6368 = vpop.f32.mrf.mxu0
        %6369 = vmatprep.mubr.bf16.mxu0 %v6068
        %6370 = vmatmul.mubr.bf16.gmra.mxu0 %v6067
        %v6371 = vpop.f32.mrf.mxu0
        %v6372 = vadd.f32 0.0, %v6371
        %v6373 = vpop.f32.mrf.mxu0
        %v6374 = vpop.f32.mrf.mxu0
        %v6375 = vadd.f32 0.0, %v6374
        %v6376 = vpop.f32.mrf.mxu0
        %6377 = vmatprep.mubr.bf16.mxu0 %v6071
        %6378 = vmatmul.mubr.bf16.gmra.mxu0 %v6070
        %v6379 = vpop.f32.mrf.mxu0
        %v6380 = vadd.f32 0.0, %v6379
        %v6381 = vpop.f32.mrf.mxu0
        %v6382 = vpop.f32.mrf.mxu0
        %v6383 = vadd.f32 0.0, %v6382
        %v6384 = vpop.f32.mrf.mxu0
        %6385 = vmatprep.mubr.bf16.mxu0 %v6074
        %6386 = vmatmul.mubr.bf16.gmra.mxu0 %v6073
        %v6387 = vpop.f32.mrf.mxu0
        %v6388 = vadd.f32 0.0, %v6387
        %v6389 = vpop.f32.mrf.mxu0
        %v6390 = vpop.f32.mrf.mxu0
        %v6391 = vadd.f32 0.0, %v6390
        %v6392 = vpop.f32.mrf.mxu0
        %6393 = vmatprep.mubr.bf16.mxu0 %v6077
        %6394 = vmatmul.mubr.bf16.gmra.mxu0 %v6076
        %v6395 = vpop.f32.mrf.mxu0
        %v6396 = vadd.f32 0.0, %v6395
        %v6397 = vpop.f32.mrf.mxu0
        %v6398 = vpop.f32.mrf.mxu0
        %v6399 = vadd.f32 0.0, %v6398
        %v6400 = vpop.f32.mrf.mxu0
        %6401 = vmatprep.mubr.bf16.mxu0 %v6080
        %6402 = vmatmul.mubr.bf16.gmra.mxu0 %v6079
        %v6403 = vpop.f32.mrf.mxu0
        %v6404 = vadd.f32 0.0, %v6403
        %v6405 = vpop.f32.mrf.mxu0
        %v6406 = vpop.f32.mrf.mxu0
        %v6407 = vadd.f32 0.0, %v6406
        %v6408 = vpop.f32.mrf.mxu0
        %6409 = vmatprep.mubr.bf16.mxu0 %v6083
        %6410 = vmatmul.mubr.bf16.gmra.mxu0 %v6082
        %v6411 = vpop.f32.mrf.mxu0
        %v6412 = vadd.f32 0.0, %v6411
        %v6413 = vpop.f32.mrf.mxu0
        %v6414 = vpop.f32.mrf.mxu0
        %v6415 = vadd.f32 0.0, %v6414
        %v6416 = vpop.f32.mrf.mxu0
        %6417 = vmatprep.mubr.bf16.mxu0 %v6086
        %6418 = vmatmul.mubr.bf16.gmra.mxu0 %v6085
        %v6419 = vpop.f32.mrf.mxu0
        %v6420 = vadd.f32 0.0, %v6419
        %v6421 = vpop.f32.mrf.mxu0
        %v6422 = vpop.f32.mrf.mxu0
        %v6423 = vadd.f32 0.0, %v6422
        %v6424 = vpop.f32.mrf.mxu0
        %6425 = vmatprep.mubr.bf16.mxu0 %v6089
        %6426 = vmatmul.mubr.bf16.gmra.mxu0 %v6088
        %v6427 = vpop.f32.mrf.mxu0
        %v6428 = vadd.f32 0.0, %v6427
        %v6429 = vpop.f32.mrf.mxu0
        %v6430 = vpop.f32.mrf.mxu0
        %v6431 = vadd.f32 0.0, %v6430
        %v6432 = vpop.f32.mrf.mxu0
        %6433 = vmatprep.mubr.bf16.mxu0 %v6092
        %6434 = vmatmul.mubr.bf16.gmra.mxu0 %v6091
        %v6435 = vpop.f32.mrf.mxu0
        %v6436 = vadd.f32 0.0, %v6435
        %v6437 = vpop.f32.mrf.mxu0
        %v6438 = vpop.f32.mrf.mxu0
        %v6439 = vadd.f32 0.0, %v6438
        %v6440 = vpop.f32.mrf.mxu0
        %6441 = vmatprep.mubr.bf16.mxu0 %v6095
        %6442 = vmatmul.mubr.bf16.gmra.mxu0 %v6094
        %v6443 = vpop.f32.mrf.mxu0
        %v6444 = vadd.f32 0.0, %v6443
        %v6445 = vpop.f32.mrf.mxu0
        %v6446 = vpop.f32.mrf.mxu0
        %v6447 = vadd.f32 0.0, %v6446
        %v6448 = vpop.f32.mrf.mxu0
        %6449 = vdwg.mxu0
        %6450 = vmatprep.subr.bf16.mxu0 0
        %6451 = vmatpush1.bf16.msra.mxu0 %v6264
        %6452 = vmatprep.subr.bf16.mxu0 0
        %6453 = vmatpush1.bf16.msra.mxu0 %v6263
        %6454 = vmatprep.subr.bf16.mxu0 0
        %6455 = vmatpush1.bf16.msra.mxu0 %v6262
        %6456 = vmatprep.subr.bf16.mxu0 0
        %6457 = vmatpush1.bf16.msra.mxu0 %v6261
        %6458 = vmatprep.subr.bf16.mxu0 0
        %6459 = vmatpush1.bf16.msra.mxu0 %v6260
        %6460 = vmatprep.subr.bf16.mxu0 0
        %6461 = vmatpush1.bf16.msra.mxu0 %v6259
        %6462 = vmatprep.subr.bf16.mxu0 0
        %6463 = vmatpush1.bf16.msra.mxu0 %v6258
        %6464 = vmatprep.subr.bf16.mxu0 0
        %6465 = vmatpush1.bf16.msra.mxu0 %v6257
        %6466 = vmatprep.subr.bf16.mxu0 0
        %6467 = vmatpush2.bf16.msra.mxu0 0
        %6468 = vmatprep.subr.bf16.mxu0 0
        %6469 = vmatpush2.bf16.msra.mxu0 0
        %6470 = vmatprep.subr.bf16.mxu0 0
        %6471 = vmatpush2.bf16.msra.mxu0 0
        %6472 = vmatprep.subr.bf16.mxu0 0
        %6473 = vmatpush2.bf16.msra.mxu0 0
        %6474 = vmatprep.subr.bf16.mxu0 0
        %6475 = vmatpush2.bf16.msra.mxu0 0
        %6476 = vmatprep.subr.bf16.mxu0 0
        %6477 = vmatpush2.bf16.msra.mxu0 0
        %6478 = vmatprep.subr.bf16.mxu0 0
        %6479 = vmatpush2.bf16.msra.mxu0 0
        %6480 = vmatprep.subr.bf16.mxu0 0
        %6481 = vmatpush2.bf16.msra.mxu0 0
        %6482 = vmatprep.mubr.bf16.mxu0 0
        %6483 = vmatmul.mubr.bf16.gmra.mxu0 %v6051
        %v6484 = vpop.f32.mrf.mxu0
        %v6485 = vadd.f32 %v6324, %v6484
        %v6486 = vpop.f32.mrf.mxu0
        %v6487 = vpop.f32.mrf.mxu0
        %v6488 = vadd.f32 %v6327, %v6487
        %v6489 = vpop.f32.mrf.mxu0
        %6490 = vmatprep.mubr.bf16.mxu0 0
        %6491 = vmatmul.mubr.bf16.gmra.mxu0 %v6054
        %v6492 = vpop.f32.mrf.mxu0
        %v6493 = vadd.f32 %v6332, %v6492
        %v6494 = vpop.f32.mrf.mxu0
        %v6495 = vpop.f32.mrf.mxu0
        %v6496 = vadd.f32 %v6335, %v6495
        %v6497 = vpop.f32.mrf.mxu0
        %6498 = vmatprep.mubr.bf16.mxu0 0
        %6499 = vmatmul.mubr.bf16.gmra.mxu0 %v6057
        %v6500 = vpop.f32.mrf.mxu0
        %v6501 = vadd.f32 %v6340, %v6500
        %v6502 = vpop.f32.mrf.mxu0
        %v6503 = vpop.f32.mrf.mxu0
        %v6504 = vadd.f32 %v6343, %v6503
        %v6505 = vpop.f32.mrf.mxu0
        %6506 = vmatprep.mubr.bf16.mxu0 0
        %6507 = vmatmul.mubr.bf16.gmra.mxu0 %v6060
        %v6508 = vpop.f32.mrf.mxu0
        %v6509 = vadd.f32 %v6348, %v6508
        %v6510 = vpop.f32.mrf.mxu0
        %v6511 = vpop.f32.mrf.mxu0
        %v6512 = vadd.f32 %v6351, %v6511
        %v6513 = vpop.f32.mrf.mxu0
        %6514 = vmatprep.mubr.bf16.mxu0 0
        %6515 = vmatmul.mubr.bf16.gmra.mxu0 %v6063
        %v6516 = vpop.f32.mrf.mxu0
        %v6517 = vadd.f32 %v6356, %v6516
        %v6518 = vpop.f32.mrf.mxu0
        %v6519 = vpop.f32.mrf.mxu0
        %v6520 = vadd.f32 %v6359, %v6519
        %v6521 = vpop.f32.mrf.mxu0
        %6522 = vmatprep.mubr.bf16.mxu0 0
        %6523 = vmatmul.mubr.bf16.gmra.mxu0 %v6066
        %v6524 = vpop.f32.mrf.mxu0
        %v6525 = vadd.f32 %v6364, %v6524
        %v6526 = vpop.f32.mrf.mxu0
        %v6527 = vpop.f32.mrf.mxu0
        %v6528 = vadd.f32 %v6367, %v6527
        %v6529 = vpop.f32.mrf.mxu0
        %6530 = vmatprep.mubr.bf16.mxu0 0
        %6531 = vmatmul.mubr.bf16.gmra.mxu0 %v6069
        %v6532 = vpop.f32.mrf.mxu0
        %v6533 = vadd.f32 %v6372, %v6532
        %v6534 = vpop.f32.mrf.mxu0
        %v6535 = vpop.f32.mrf.mxu0
        %v6536 = vadd.f32 %v6375, %v6535
        %v6537 = vpop.f32.mrf.mxu0
        %6538 = vmatprep.mubr.bf16.mxu0 0
        %6539 = vmatmul.mubr.bf16.gmra.mxu0 %v6072
        %v6540 = vpop.f32.mrf.mxu0
        %v6541 = vadd.f32 %v6380, %v6540
        %v6542 = vpop.f32.mrf.mxu0
        %v6543 = vpop.f32.mrf.mxu0
        %v6544 = vadd.f32 %v6383, %v6543
        %v6545 = vpop.f32.mrf.mxu0
        %6546 = vmatprep.mubr.bf16.mxu0 0
        %6547 = vmatmul.mubr.bf16.gmra.mxu0 %v6075
        %v6548 = vpop.f32.mrf.mxu0
        %v6549 = vadd.f32 %v6388, %v6548
        %v6550 = vpop.f32.mrf.mxu0
        %v6551 = vpop.f32.mrf.mxu0
        %v6552 = vadd.f32 %v6391, %v6551
        %v6553 = vpop.f32.mrf.mxu0
        %6554 = vmatprep.mubr.bf16.mxu0 0
        %6555 = vmatmul.mubr.bf16.gmra.mxu0 %v6078
        %v6556 = vpop.f32.mrf.mxu0
        %v6557 = vadd.f32 %v6396, %v6556
        %v6558 = vpop.f32.mrf.mxu0
        %v6559 = vpop.f32.mrf.mxu0
        %v6560 = vadd.f32 %v6399, %v6559
        %v6561 = vpop.f32.mrf.mxu0
        %6562 = vmatprep.mubr.bf16.mxu0 0
        %6563 = vmatmul.mubr.bf16.gmra.mxu0 %v6081
        %v6564 = vpop.f32.mrf.mxu0
        %v6565 = vadd.f32 %v6404, %v6564
        %v6566 = vpop.f32.mrf.mxu0
        %v6567 = vpop.f32.mrf.mxu0
        %v6568 = vadd.f32 %v6407, %v6567
        %v6569 = vpop.f32.mrf.mxu0
        %6570 = vmatprep.mubr.bf16.mxu0 0
        %6571 = vmatmul.mubr.bf16.gmra.mxu0 %v6084
        %v6572 = vpop.f32.mrf.mxu0
        %v6573 = vadd.f32 %v6412, %v6572
        %v6574 = vpop.f32.mrf.mxu0
        %v6575 = vpop.f32.mrf.mxu0
        %v6576 = vadd.f32 %v6415, %v6575
        %v6577 = vpop.f32.mrf.mxu0
        %6578 = vmatprep.mubr.bf16.mxu0 0
        %6579 = vmatmul.mubr.bf16.gmra.mxu0 %v6087
        %v6580 = vpop.f32.mrf.mxu0
        %v6581 = vadd.f32 %v6420, %v6580
        %v6582 = vpop.f32.mrf.mxu0
        %v6583 = vpop.f32.mrf.mxu0
        %v6584 = vadd.f32 %v6423, %v6583
        %v6585 = vpop.f32.mrf.mxu0
        %6586 = vmatprep.mubr.bf16.mxu0 0
        %6587 = vmatmul.mubr.bf16.gmra.mxu0 %v6090
        %v6588 = vpop.f32.mrf.mxu0
        %v6589 = vadd.f32 %v6428, %v6588
        %v6590 = vpop.f32.mrf.mxu0
        %v6591 = vpop.f32.mrf.mxu0
        %v6592 = vadd.f32 %v6431, %v6591
        %v6593 = vpop.f32.mrf.mxu0
        %6594 = vmatprep.mubr.bf16.mxu0 0
        %6595 = vmatmul.mubr.bf16.gmra.mxu0 %v6093
        %v6596 = vpop.f32.mrf.mxu0
        %v6597 = vadd.f32 %v6436, %v6596
        %v6598 = vpop.f32.mrf.mxu0
        %v6599 = vpop.f32.mrf.mxu0
        %v6600 = vadd.f32 %v6439, %v6599
        %v6601 = vpop.f32.mrf.mxu0
        %6602 = vmatprep.mubr.bf16.mxu0 0
        %6603 = vmatmul.mubr.bf16.gmra.mxu0 %v6096
        %v6604 = vpop.f32.mrf.mxu0
        %v6605 = vadd.f32 %v6444, %v6604
        %v6606 = vpop.f32.mrf.mxu0
        %v6607 = vpop.f32.mrf.mxu0
        %v6608 = vadd.f32 %v6447, %v6607
        %v6609 = vpop.f32.mrf.mxu0
        %6610 = vdwg.mxu0
        %v6675 = vunpack.c.l.b16 %v5665
        %v6676 = vunpack.c.h.b16 %v5665
        %v6677 = vunpack.c.l.b16 %v5666
        %v6678 = vunpack.c.l.b16 %v5667
        %v6679 = vunpack.c.h.b16 %v5667
        %v6680 = vunpack.c.l.b16 %v5668
        %v6681 = vunpack.c.l.b16 %v5669
        %v6682 = vunpack.c.h.b16 %v5669
        %v6683 = vunpack.c.l.b16 %v5670
        %v6684 = vunpack.c.l.b16 %v5671
        %v6685 = vunpack.c.h.b16 %v5671
        %v6686 = vunpack.c.l.b16 %v5672
        %v6687 = vunpack.c.l.b16 %v5673
        %v6688 = vunpack.c.h.b16 %v5673
        %v6689 = vunpack.c.l.b16 %v5674
        %v6690 = vunpack.c.l.b16 %v5675
        %v6691 = vunpack.c.h.b16 %v5675
        %v6692 = vunpack.c.l.b16 %v5676
        %v6693 = vunpack.c.l.b16 %v5677
        %v6694 = vunpack.c.h.b16 %v5677
        %v6695 = vunpack.c.l.b16 %v5678
        %v6696 = vunpack.c.l.b16 %v5679
        %v6697 = vunpack.c.h.b16 %v5679
        %v6698 = vunpack.c.l.b16 %v5680
        %v6699 = vunpack.c.l.b16 %v5681
        %v6700 = vunpack.c.h.b16 %v5681
        %v6701 = vunpack.c.l.b16 %v5682
        %v6702 = vunpack.c.l.b16 %v5683
        %v6703 = vunpack.c.h.b16 %v5683
        %v6704 = vunpack.c.l.b16 %v5684
        %v6705 = vunpack.c.l.b16 %v5685
        %v6706 = vunpack.c.h.b16 %v5685
        %v6707 = vunpack.c.l.b16 %v5686
        %v6708 = vunpack.c.l.b16 %v5687
        %v6709 = vunpack.c.h.b16 %v5687
        %v6710 = vunpack.c.l.b16 %v5688
        %v6711 = vunpack.c.l.b16 %v5689
        %v6712 = vunpack.c.h.b16 %v5689
        %v6713 = vunpack.c.l.b16 %v5690
        %v6714 = vunpack.c.l.b16 %v5691
        %v6715 = vunpack.c.h.b16 %v5691
        %v6716 = vunpack.c.l.b16 %v5692
        %v6717 = vunpack.c.l.b16 %v5693
        %v6718 = vunpack.c.h.b16 %v5693
        %v6719 = vunpack.c.l.b16 %v5694
        %v6720 = vunpack.c.l.b16 %v5695
        %v6721 = vunpack.c.h.b16 %v5695
        %v6722 = vunpack.c.l.b16 %v5696
        %v6723 = vunpack.c.l.b16 %v5697
        %v6724 = vunpack.c.h.b16 %v5697
        %v6725 = vunpack.c.l.b16 %v5698
        %v6726 = vunpack.c.l.b16 %v5699
        %v6727 = vunpack.c.h.b16 %v5699
        %v6728 = vunpack.c.l.b16 %v5700
        %v6729 = vunpack.c.l.b16 %v5701
        %v6730 = vunpack.c.h.b16 %v5701
        %v6731 = vunpack.c.l.b16 %v5702
        %v6732 = vunpack.c.l.b16 %v5703
        %v6733 = vunpack.c.h.b16 %v5703
        %v6734 = vunpack.c.l.b16 %v5704
        %v6735 = vunpack.c.l.b16 %v5705
        %v6736 = vunpack.c.h.b16 %v5705
        %v6737 = vunpack.c.l.b16 %v5706
        %v6738 = vunpack.c.l.b16 %v5707
        %v6739 = vunpack.c.h.b16 %v5707
        %v6740 = vunpack.c.l.b16 %v5708
        %v6741 = vunpack.c.l.b16 %v5709
        %v6742 = vunpack.c.h.b16 %v5709
        %v6743 = vunpack.c.l.b16 %v5710
        %v6744 = vunpack.c.l.b16 %v5711
        %v6745 = vunpack.c.h.b16 %v5711
        %v6746 = vunpack.c.l.b16 %v5712
        %v6747 = vunpack.c.l.b16 %v5713
        %v6748 = vunpack.c.h.b16 %v5713
        %v6749 = vunpack.c.l.b16 %v5714
        %v6750 = vunpack.c.l.b16 %v5715
        %v6751 = vunpack.c.h.b16 %v5715
        %v6752 = vunpack.c.l.b16 %v5716
        %v6753 = vunpack.c.l.b16 %v5717
        %v6754 = vunpack.c.h.b16 %v5717
        %v6755 = vunpack.c.l.b16 %v5718
        %v6756 = vunpack.c.l.b16 %v5719
        %v6757 = vunpack.c.h.b16 %v5719
        %v6758 = vunpack.c.l.b16 %v5720
        %v6759 = vunpack.c.l.b16 %v5721
        %v6760 = vunpack.c.h.b16 %v5721
        %v6761 = vunpack.c.l.b16 %v5722
        %v6762 = vunpack.c.l.b16 %v5723
        %v6763 = vunpack.c.h.b16 %v5723
        %v6764 = vunpack.c.l.b16 %v5724
        %v6765 = vunpack.c.l.b16 %v5725
        %v6766 = vunpack.c.h.b16 %v5725
        %v6767 = vunpack.c.l.b16 %v5726
        %v6768 = vunpack.c.l.b16 %v5727
        %v6769 = vunpack.c.h.b16 %v5727
        %v6770 = vunpack.c.l.b16 %v5728
        %v6771 = vpack.c.b16 %v6678, %v6675
        %v6772 = vpack.c.b16 %v6679, %v6676
        %v6773 = vpack.c.b16 %v6680, %v6677
        %v6774 = vpack.c.b16 %v6684, %v6681
        %v6775 = vpack.c.b16 %v6685, %v6682
        %v6776 = vpack.c.b16 %v6686, %v6683
        %v6777 = vpack.c.b16 %v6690, %v6687
        %v6778 = vpack.c.b16 %v6691, %v6688
        %v6779 = vpack.c.b16 %v6692, %v6689
        %v6780 = vpack.c.b16 %v6696, %v6693
        %v6781 = vpack.c.b16 %v6697, %v6694
        %v6782 = vpack.c.b16 %v6698, %v6695
        %v6783 = vpack.c.b16 %v6702, %v6699
        %v6784 = vpack.c.b16 %v6703, %v6700
        %v6785 = vpack.c.b16 %v6704, %v6701
        %v6786 = vpack.c.b16 %v6708, %v6705
        %v6787 = vpack.c.b16 %v6709, %v6706
        %v6788 = vpack.c.b16 %v6710, %v6707
        %v6789 = vpack.c.b16 %v6714, %v6711
        %v6790 = vpack.c.b16 %v6715, %v6712
        %v6791 = vpack.c.b16 %v6716, %v6713
        %v6792 = vpack.c.b16 %v6720, %v6717
        %v6793 = vpack.c.b16 %v6721, %v6718
        %v6794 = vpack.c.b16 %v6722, %v6719
        %v6795 = vpack.c.b16 %v6726, %v6723
        %v6796 = vpack.c.b16 %v6727, %v6724
        %v6797 = vpack.c.b16 %v6728, %v6725
        %v6798 = vpack.c.b16 %v6732, %v6729
        %v6799 = vpack.c.b16 %v6733, %v6730
        %v6800 = vpack.c.b16 %v6734, %v6731
        %v6801 = vpack.c.b16 %v6738, %v6735
        %v6802 = vpack.c.b16 %v6739, %v6736
        %v6803 = vpack.c.b16 %v6740, %v6737
        %v6804 = vpack.c.b16 %v6744, %v6741
        %v6805 = vpack.c.b16 %v6745, %v6742
        %v6806 = vpack.c.b16 %v6746, %v6743
        %v6807 = vpack.c.b16 %v6750, %v6747
        %v6808 = vpack.c.b16 %v6751, %v6748
        %v6809 = vpack.c.b16 %v6752, %v6749
        %v6810 = vpack.c.b16 %v6756, %v6753
        %v6811 = vpack.c.b16 %v6757, %v6754
        %v6812 = vpack.c.b16 %v6758, %v6755
        %v6813 = vpack.c.b16 %v6762, %v6759
        %v6814 = vpack.c.b16 %v6763, %v6760
        %v6815 = vpack.c.b16 %v6764, %v6761
        %v6816 = vpack.c.b16 %v6768, %v6765
        %v6817 = vpack.c.b16 %v6769, %v6766
        %v6818 = vpack.c.b16 %v6770, %v6767
        %v6915 = vunpack.c.l.b16 %v5729
        %v6916 = vunpack.c.l.b16 %v5730
        %v6917 = vunpack.c.l.b16 %v5731
        %v6918 = vunpack.c.l.b16 %v5732
        %v6919 = vunpack.c.l.b16 %v5733
        %v6920 = vunpack.c.l.b16 %v5734
        %v6921 = vunpack.c.l.b16 %v5735
        %v6922 = vunpack.c.l.b16 %v5736
        %v6923 = vunpack.c.l.b16 %v5737
        %v6924 = vunpack.c.l.b16 %v5738
        %v6925 = vunpack.c.l.b16 %v5739
        %v6926 = vunpack.c.l.b16 %v5740
        %v6927 = vunpack.c.l.b16 %v5741
        %v6928 = vunpack.c.l.b16 %v5742
        %v6929 = vunpack.c.l.b16 %v5743
        %v6930 = vunpack.c.l.b16 %v5744
        %v6931 = vunpack.c.l.b16 %v5745
        %v6932 = vunpack.c.l.b16 %v5746
        %v6933 = vunpack.c.l.b16 %v5747
        %v6934 = vunpack.c.l.b16 %v5748
        %v6935 = vunpack.c.l.b16 %v5749
        %v6936 = vunpack.c.l.b16 %v5750
        %v6937 = vunpack.c.l.b16 %v5751
        %v6938 = vunpack.c.l.b16 %v5752
        %v6939 = vunpack.c.l.b16 %v5753
        %v6940 = vunpack.c.l.b16 %v5754
        %v6941 = vunpack.c.l.b16 %v5755
        %v6942 = vunpack.c.l.b16 %v5756
        %v6943 = vunpack.c.l.b16 %v5757
        %v6944 = vunpack.c.l.b16 %v5758
        %v6945 = vunpack.c.l.b16 %v5759
        %v6946 = vunpack.c.l.b16 %v5760
        %v6947 = vunpack.c.l.b16 %v5761
        %v6948 = vunpack.c.l.b16 %v5762
        %v6949 = vunpack.c.l.b16 %v5763
        %v6950 = vunpack.c.l.b16 %v5764
        %v6951 = vunpack.c.l.b16 %v5765
        %v6952 = vunpack.c.l.b16 %v5766
        %v6953 = vunpack.c.l.b16 %v5767
        %v6954 = vunpack.c.l.b16 %v5768
        %v6955 = vunpack.c.l.b16 %v5769
        %v6956 = vunpack.c.l.b16 %v5770
        %v6957 = vunpack.c.l.b16 %v5771
        %v6958 = vunpack.c.l.b16 %v5772
        %v6959 = vunpack.c.l.b16 %v5773
        %v6960 = vunpack.c.l.b16 %v5774
        %v6961 = vunpack.c.l.b16 %v5775
        %v6962 = vunpack.c.l.b16 %v5776
        %v6963 = vpack.c.b16 %v6916, %v6915
        %v6964 = vpack.c.b16 %v6918, %v6917
        %v6965 = vpack.c.b16 %v6920, %v6919
        %v6966 = vpack.c.b16 %v6922, %v6921
        %v6967 = vpack.c.b16 %v6924, %v6923
        %v6968 = vpack.c.b16 %v6926, %v6925
        %v6969 = vpack.c.b16 %v6928, %v6927
        %v6970 = vpack.c.b16 %v6930, %v6929
        %v6971 = vpack.c.b16 %v6932, %v6931
        %v6972 = vpack.c.b16 %v6934, %v6933
        %v6973 = vpack.c.b16 %v6936, %v6935
        %v6974 = vpack.c.b16 %v6938, %v6937
        %v6975 = vpack.c.b16 %v6940, %v6939
        %v6976 = vpack.c.b16 %v6942, %v6941
        %v6977 = vpack.c.b16 %v6944, %v6943
        %v6978 = vpack.c.b16 %v6946, %v6945
        %v6979 = vpack.c.b16 %v6948, %v6947
        %v6980 = vpack.c.b16 %v6950, %v6949
        %v6981 = vpack.c.b16 %v6952, %v6951
        %v6982 = vpack.c.b16 %v6954, %v6953
        %v6983 = vpack.c.b16 %v6956, %v6955
        %v6984 = vpack.c.b16 %v6958, %v6957
        %v6985 = vpack.c.b16 %v6960, %v6959
        %v6986 = vpack.c.b16 %v6962, %v6961
        %7011 = vmatprep.subr.bf16.mxu0 0
        %7012 = vmatpush1.bf16.msra.mxu0 %v6970
        %7013 = vmatprep.subr.bf16.mxu0 0
        %7014 = vmatpush1.bf16.msra.mxu0 %v6969
        %7015 = vmatprep.subr.bf16.mxu0 0
        %7016 = vmatpush1.bf16.msra.mxu0 %v6968
        %7017 = vmatprep.subr.bf16.mxu0 0
        %7018 = vmatpush1.bf16.msra.mxu0 %v6967
        %7019 = vmatprep.subr.bf16.mxu0 0
        %7020 = vmatpush1.bf16.msra.mxu0 %v6966
        %7021 = vmatprep.subr.bf16.mxu0 0
        %7022 = vmatpush1.bf16.msra.mxu0 %v6965
        %7023 = vmatprep.subr.bf16.mxu0 0
        %7024 = vmatpush1.bf16.msra.mxu0 %v6964
        %7025 = vmatprep.subr.bf16.mxu0 0
        %7026 = vmatpush1.bf16.msra.mxu0 %v6963
        %7027 = vmatprep.subr.bf16.mxu0 0
        %7028 = vmatpush2.bf16.msra.mxu0 %v6978
        %7029 = vmatprep.subr.bf16.mxu0 0
        %7030 = vmatpush2.bf16.msra.mxu0 %v6977
        %7031 = vmatprep.subr.bf16.mxu0 0
        %7032 = vmatpush2.bf16.msra.mxu0 %v6976
        %7033 = vmatprep.subr.bf16.mxu0 0
        %7034 = vmatpush2.bf16.msra.mxu0 %v6975
        %7035 = vmatprep.subr.bf16.mxu0 0
        %7036 = vmatpush2.bf16.msra.mxu0 %v6974
        %7037 = vmatprep.subr.bf16.mxu0 0
        %7038 = vmatpush2.bf16.msra.mxu0 %v6973
        %7039 = vmatprep.subr.bf16.mxu0 0
        %7040 = vmatpush2.bf16.msra.mxu0 %v6972
        %7041 = vmatprep.subr.bf16.mxu0 0
        %7042 = vmatpush2.bf16.msra.mxu0 %v6971
        %7043 = vmatprep.mubr.bf16.mxu0 %v6772
        %7044 = vmatmul.mubr.bf16.gmra.mxu0 %v6771
        %v7045 = vpop.f32.mrf.mxu0
        %v7046 = vadd.f32 %v6485, %v7045
        %v7047 = vpop.f32.mrf.mxu0
        %v7048 = vpop.f32.mrf.mxu0
        %v7049 = vadd.f32 %v6488, %v7048
        %v7050 = vpop.f32.mrf.mxu0
        %7051 = vmatprep.mubr.bf16.mxu0 %v6775
        %7052 = vmatmul.mubr.bf16.gmra.mxu0 %v6774
        %v7053 = vpop.f32.mrf.mxu0
        %v7054 = vadd.f32 %v6493, %v7053
        %v7055 = vpop.f32.mrf.mxu0
        %v7056 = vpop.f32.mrf.mxu0
        %v7057 = vadd.f32 %v6496, %v7056
        %v7058 = vpop.f32.mrf.mxu0
        %7059 = vmatprep.mubr.bf16.mxu0 %v6778
        %7060 = vmatmul.mubr.bf16.gmra.mxu0 %v6777
        %v7061 = vpop.f32.mrf.mxu0
        %v7062 = vadd.f32 %v6501, %v7061
        %v7063 = vpop.f32.mrf.mxu0
        %v7064 = vpop.f32.mrf.mxu0
        %v7065 = vadd.f32 %v6504, %v7064
        %v7066 = vpop.f32.mrf.mxu0
        %7067 = vmatprep.mubr.bf16.mxu0 %v6781
        %7068 = vmatmul.mubr.bf16.gmra.mxu0 %v6780
        %v7069 = vpop.f32.mrf.mxu0
        %v7070 = vadd.f32 %v6509, %v7069
        %v7071 = vpop.f32.mrf.mxu0
        %v7072 = vpop.f32.mrf.mxu0
        %v7073 = vadd.f32 %v6512, %v7072
        %v7074 = vpop.f32.mrf.mxu0
        %7075 = vmatprep.mubr.bf16.mxu0 %v6784
        %7076 = vmatmul.mubr.bf16.gmra.mxu0 %v6783
        %v7077 = vpop.f32.mrf.mxu0
        %v7078 = vadd.f32 %v6517, %v7077
        %v7079 = vpop.f32.mrf.mxu0
        %v7080 = vpop.f32.mrf.mxu0
        %v7081 = vadd.f32 %v6520, %v7080
        %v7082 = vpop.f32.mrf.mxu0
        %7083 = vmatprep.mubr.bf16.mxu0 %v6787
        %7084 = vmatmul.mubr.bf16.gmra.mxu0 %v6786
        %v7085 = vpop.f32.mrf.mxu0
        %v7086 = vadd.f32 %v6525, %v7085
        %v7087 = vpop.f32.mrf.mxu0
        %v7088 = vpop.f32.mrf.mxu0
        %v7089 = vadd.f32 %v6528, %v7088
        %v7090 = vpop.f32.mrf.mxu0
        %7091 = vmatprep.mubr.bf16.mxu0 %v6790
        %7092 = vmatmul.mubr.bf16.gmra.mxu0 %v6789
        %v7093 = vpop.f32.mrf.mxu0
        %v7094 = vadd.f32 %v6533, %v7093
        %v7095 = vpop.f32.mrf.mxu0
        %v7096 = vpop.f32.mrf.mxu0
        %v7097 = vadd.f32 %v6536, %v7096
        %v7098 = vpop.f32.mrf.mxu0
        %7099 = vmatprep.mubr.bf16.mxu0 %v6793
        %7100 = vmatmul.mubr.bf16.gmra.mxu0 %v6792
        %v7101 = vpop.f32.mrf.mxu0
        %v7102 = vadd.f32 %v6541, %v7101
        %v7103 = vpop.f32.mrf.mxu0
        %v7104 = vpop.f32.mrf.mxu0
        %v7105 = vadd.f32 %v6544, %v7104
        %v7106 = vpop.f32.mrf.mxu0
        %7107 = vmatprep.mubr.bf16.mxu0 %v6796
        %7108 = vmatmul.mubr.bf16.gmra.mxu0 %v6795
        %v7109 = vpop.f32.mrf.mxu0
        %v7110 = vadd.f32 %v6549, %v7109
        %v7111 = vpop.f32.mrf.mxu0
        %v7112 = vpop.f32.mrf.mxu0
        %v7113 = vadd.f32 %v6552, %v7112
        %v7114 = vpop.f32.mrf.mxu0
        %7115 = vmatprep.mubr.bf16.mxu0 %v6799
        %7116 = vmatmul.mubr.bf16.gmra.mxu0 %v6798
        %v7117 = vpop.f32.mrf.mxu0
        %v7118 = vadd.f32 %v6557, %v7117
        %v7119 = vpop.f32.mrf.mxu0
        %v7120 = vpop.f32.mrf.mxu0
        %v7121 = vadd.f32 %v6560, %v7120
        %v7122 = vpop.f32.mrf.mxu0
        %7123 = vmatprep.mubr.bf16.mxu0 %v6802
        %7124 = vmatmul.mubr.bf16.gmra.mxu0 %v6801
        %v7125 = vpop.f32.mrf.mxu0
        %v7126 = vadd.f32 %v6565, %v7125
        %v7127 = vpop.f32.mrf.mxu0
        %v7128 = vpop.f32.mrf.mxu0
        %v7129 = vadd.f32 %v6568, %v7128
        %v7130 = vpop.f32.mrf.mxu0
        %7131 = vmatprep.mubr.bf16.mxu0 %v6805
        %7132 = vmatmul.mubr.bf16.gmra.mxu0 %v6804
        %v7133 = vpop.f32.mrf.mxu0
        %v7134 = vadd.f32 %v6573, %v7133
        %v7135 = vpop.f32.mrf.mxu0
        %v7136 = vpop.f32.mrf.mxu0
        %v7137 = vadd.f32 %v6576, %v7136
        %v7138 = vpop.f32.mrf.mxu0
        %7139 = vmatprep.mubr.bf16.mxu0 %v6808
        %7140 = vmatmul.mubr.bf16.gmra.mxu0 %v6807
        %v7141 = vpop.f32.mrf.mxu0
        %v7142 = vadd.f32 %v6581, %v7141
        %v7143 = vpop.f32.mrf.mxu0
        %v7144 = vpop.f32.mrf.mxu0
        %v7145 = vadd.f32 %v6584, %v7144
        %v7146 = vpop.f32.mrf.mxu0
        %7147 = vmatprep.mubr.bf16.mxu0 %v6811
        %7148 = vmatmul.mubr.bf16.gmra.mxu0 %v6810
        %v7149 = vpop.f32.mrf.mxu0
        %v7150 = vadd.f32 %v6589, %v7149
        %v7151 = vpop.f32.mrf.mxu0
        %v7152 = vpop.f32.mrf.mxu0
        %v7153 = vadd.f32 %v6592, %v7152
        %v7154 = vpop.f32.mrf.mxu0
        %7155 = vmatprep.mubr.bf16.mxu0 %v6814
        %7156 = vmatmul.mubr.bf16.gmra.mxu0 %v6813
        %v7157 = vpop.f32.mrf.mxu0
        %v7158 = vadd.f32 %v6597, %v7157
        %v7159 = vpop.f32.mrf.mxu0
        %v7160 = vpop.f32.mrf.mxu0
        %v7161 = vadd.f32 %v6600, %v7160
        %v7162 = vpop.f32.mrf.mxu0
        %7163 = vmatprep.mubr.bf16.mxu0 %v6817
        %7164 = vmatmul.mubr.bf16.gmra.mxu0 %v6816
        %v7165 = vpop.f32.mrf.mxu0
        %v7166 = vadd.f32 %v6605, %v7165
        %v7167 = vpop.f32.mrf.mxu0
        %v7168 = vpop.f32.mrf.mxu0
        %v7169 = vadd.f32 %v6608, %v7168
        %v7170 = vpop.f32.mrf.mxu0
        %7171 = vdwg.mxu0
        %7172 = vmatprep.subr.bf16.mxu0 0
        %7173 = vmatpush1.bf16.msra.mxu0 %v6986
        %7174 = vmatprep.subr.bf16.mxu0 0
        %7175 = vmatpush1.bf16.msra.mxu0 %v6985
        %7176 = vmatprep.subr.bf16.mxu0 0
        %7177 = vmatpush1.bf16.msra.mxu0 %v6984
        %7178 = vmatprep.subr.bf16.mxu0 0
        %7179 = vmatpush1.bf16.msra.mxu0 %v6983
        %7180 = vmatprep.subr.bf16.mxu0 0
        %7181 = vmatpush1.bf16.msra.mxu0 %v6982
        %7182 = vmatprep.subr.bf16.mxu0 0
        %7183 = vmatpush1.bf16.msra.mxu0 %v6981
        %7184 = vmatprep.subr.bf16.mxu0 0
        %7185 = vmatpush1.bf16.msra.mxu0 %v6980
        %7186 = vmatprep.subr.bf16.mxu0 0
        %7187 = vmatpush1.bf16.msra.mxu0 %v6979
        %7188 = vmatprep.subr.bf16.mxu0 0
        %7189 = vmatpush2.bf16.msra.mxu0 0
        %7190 = vmatprep.subr.bf16.mxu0 0
        %7191 = vmatpush2.bf16.msra.mxu0 0
        %7192 = vmatprep.subr.bf16.mxu0 0
        %7193 = vmatpush2.bf16.msra.mxu0 0
        %7194 = vmatprep.subr.bf16.mxu0 0
        %7195 = vmatpush2.bf16.msra.mxu0 0
        %7196 = vmatprep.subr.bf16.mxu0 0
        %7197 = vmatpush2.bf16.msra.mxu0 0
        %7198 = vmatprep.subr.bf16.mxu0 0
        %7199 = vmatpush2.bf16.msra.mxu0 0
        %7200 = vmatprep.subr.bf16.mxu0 0
        %7201 = vmatpush2.bf16.msra.mxu0 0
        %7202 = vmatprep.subr.bf16.mxu0 0
        %7203 = vmatpush2.bf16.msra.mxu0 0
        %7204 = vmatprep.mubr.bf16.mxu0 0
        %7205 = vmatmul.mubr.bf16.gmra.mxu0 %v6773
        %v7206 = vpop.f32.mrf.mxu0
        %v7207 = vadd.f32 %v7046, %v7206
        %v7208 = vpop.f32.mrf.mxu0
        %v7209 = vpop.f32.mrf.mxu0
        %v7210 = vadd.f32 %v7049, %v7209
        %v7211 = vpop.f32.mrf.mxu0
        %7212 = vmatprep.mubr.bf16.mxu0 0
        %7213 = vmatmul.mubr.bf16.gmra.mxu0 %v6776
        %v7214 = vpop.f32.mrf.mxu0
        %v7215 = vadd.f32 %v7054, %v7214
        %v7216 = vpop.f32.mrf.mxu0
        %v7217 = vpop.f32.mrf.mxu0
        %v7218 = vadd.f32 %v7057, %v7217
        %v7219 = vpop.f32.mrf.mxu0
        %7220 = vmatprep.mubr.bf16.mxu0 0
        %7221 = vmatmul.mubr.bf16.gmra.mxu0 %v6779
        %v7222 = vpop.f32.mrf.mxu0
        %v7223 = vadd.f32 %v7062, %v7222
        %v7224 = vpop.f32.mrf.mxu0
        %v7225 = vpop.f32.mrf.mxu0
        %v7226 = vadd.f32 %v7065, %v7225
        %v7227 = vpop.f32.mrf.mxu0
        %7228 = vmatprep.mubr.bf16.mxu0 0
        %7229 = vmatmul.mubr.bf16.gmra.mxu0 %v6782
        %v7230 = vpop.f32.mrf.mxu0
        %v7231 = vadd.f32 %v7070, %v7230
        %v7232 = vpop.f32.mrf.mxu0
        %v7233 = vpop.f32.mrf.mxu0
        %v7234 = vadd.f32 %v7073, %v7233
        %v7235 = vpop.f32.mrf.mxu0
        %7236 = vmatprep.mubr.bf16.mxu0 0
        %7237 = vmatmul.mubr.bf16.gmra.mxu0 %v6785
        %v7238 = vpop.f32.mrf.mxu0
        %v7239 = vadd.f32 %v7078, %v7238
        %v7240 = vpop.f32.mrf.mxu0
        %v7241 = vpop.f32.mrf.mxu0
        %v7242 = vadd.f32 %v7081, %v7241
        %v7243 = vpop.f32.mrf.mxu0
        %7244 = vmatprep.mubr.bf16.mxu0 0
        %7245 = vmatmul.mubr.bf16.gmra.mxu0 %v6788
        %v7246 = vpop.f32.mrf.mxu0
        %v7247 = vadd.f32 %v7086, %v7246
        %v7248 = vpop.f32.mrf.mxu0
        %v7249 = vpop.f32.mrf.mxu0
        %v7250 = vadd.f32 %v7089, %v7249
        %v7251 = vpop.f32.mrf.mxu0
        %7252 = vmatprep.mubr.bf16.mxu0 0
        %7253 = vmatmul.mubr.bf16.gmra.mxu0 %v6791
        %v7254 = vpop.f32.mrf.mxu0
        %v7255 = vadd.f32 %v7094, %v7254
        %v7256 = vpop.f32.mrf.mxu0
        %v7257 = vpop.f32.mrf.mxu0
        %v7258 = vadd.f32 %v7097, %v7257
        %v7259 = vpop.f32.mrf.mxu0
        %7260 = vmatprep.mubr.bf16.mxu0 0
        %7261 = vmatmul.mubr.bf16.gmra.mxu0 %v6794
        %v7262 = vpop.f32.mrf.mxu0
        %v7263 = vadd.f32 %v7102, %v7262
        %v7264 = vpop.f32.mrf.mxu0
        %v7265 = vpop.f32.mrf.mxu0
        %v7266 = vadd.f32 %v7105, %v7265
        %v7267 = vpop.f32.mrf.mxu0
        %7268 = vmatprep.mubr.bf16.mxu0 0
        %7269 = vmatmul.mubr.bf16.gmra.mxu0 %v6797
        %v7270 = vpop.f32.mrf.mxu0
        %v7271 = vadd.f32 %v7110, %v7270
        %v7272 = vpop.f32.mrf.mxu0
        %v7273 = vpop.f32.mrf.mxu0
        %v7274 = vadd.f32 %v7113, %v7273
        %v7275 = vpop.f32.mrf.mxu0
        %7276 = vmatprep.mubr.bf16.mxu0 0
        %7277 = vmatmul.mubr.bf16.gmra.mxu0 %v6800
        %v7278 = vpop.f32.mrf.mxu0
        %v7279 = vadd.f32 %v7118, %v7278
        %v7280 = vpop.f32.mrf.mxu0
        %v7281 = vpop.f32.mrf.mxu0
        %v7282 = vadd.f32 %v7121, %v7281
        %v7283 = vpop.f32.mrf.mxu0
        %7284 = vmatprep.mubr.bf16.mxu0 0
        %7285 = vmatmul.mubr.bf16.gmra.mxu0 %v6803
        %v7286 = vpop.f32.mrf.mxu0
        %v7287 = vadd.f32 %v7126, %v7286
        %v7288 = vpop.f32.mrf.mxu0
        %v7289 = vpop.f32.mrf.mxu0
        %v7290 = vadd.f32 %v7129, %v7289
        %v7291 = vpop.f32.mrf.mxu0
        %7292 = vmatprep.mubr.bf16.mxu0 0
        %7293 = vmatmul.mubr.bf16.gmra.mxu0 %v6806
        %v7294 = vpop.f32.mrf.mxu0
        %v7295 = vadd.f32 %v7134, %v7294
        %v7296 = vpop.f32.mrf.mxu0
        %v7297 = vpop.f32.mrf.mxu0
        %v7298 = vadd.f32 %v7137, %v7297
        %v7299 = vpop.f32.mrf.mxu0
        %7300 = vmatprep.mubr.bf16.mxu0 0
        %7301 = vmatmul.mubr.bf16.gmra.mxu0 %v6809
        %v7302 = vpop.f32.mrf.mxu0
        %v7303 = vadd.f32 %v7142, %v7302
        %v7304 = vpop.f32.mrf.mxu0
        %v7305 = vpop.f32.mrf.mxu0
        %v7306 = vadd.f32 %v7145, %v7305
        %v7307 = vpop.f32.mrf.mxu0
        %7308 = vmatprep.mubr.bf16.mxu0 0
        %7309 = vmatmul.mubr.bf16.gmra.mxu0 %v6812
        %v7310 = vpop.f32.mrf.mxu0
        %v7311 = vadd.f32 %v7150, %v7310
        %v7312 = vpop.f32.mrf.mxu0
        %v7313 = vpop.f32.mrf.mxu0
        %v7314 = vadd.f32 %v7153, %v7313
        %v7315 = vpop.f32.mrf.mxu0
        %7316 = vmatprep.mubr.bf16.mxu0 0
        %7317 = vmatmul.mubr.bf16.gmra.mxu0 %v6815
        %v7318 = vpop.f32.mrf.mxu0
        %v7319 = vadd.f32 %v7158, %v7318
        %v7320 = vpop.f32.mrf.mxu0
        %v7321 = vpop.f32.mrf.mxu0
        %v7322 = vadd.f32 %v7161, %v7321
        %v7323 = vpop.f32.mrf.mxu0
        %7324 = vmatprep.mubr.bf16.mxu0 0
        %7325 = vmatmul.mubr.bf16.gmra.mxu0 %v6818
        %v7326 = vpop.f32.mrf.mxu0
        %v7327 = vadd.f32 %v7166, %v7326
        %v7328 = vpop.f32.mrf.mxu0
        %v7329 = vpop.f32.mrf.mxu0
        %v7330 = vadd.f32 %v7169, %v7329
        %v7331 = vpop.f32.mrf.mxu0
        %7332 = vdwg.mxu0
        %v7333 = vld [vmem:[%s3415] sm:$0xff]
        %v7334 = vld [vmem:[%s3415 + $0x8] sm:$0xf]
        %v7335 = vld [vmem:[%s3415 + $0xc] sm:$0xff]
        %v7336 = vld [vmem:[%s3415 + $0x14] sm:$0xf]
        %v7337 = vld [vmem:[%s3415 + $0x18] sm:$0xff]
        %v7338 = vld [vmem:[%s3415 + $0x20] sm:$0xf]
        %v7339 = vld [vmem:[%s3415 + $0x24] sm:$0xff]
        %v7340 = vld [vmem:[%s3415 + $0x2c] sm:$0xf]
        %v7341 = vld [vmem:[%s3415 + $0x30] sm:$0xff]
        %v7342 = vld [vmem:[%s3415 + $0x38] sm:$0xf]
        %v7343 = vld [vmem:[%s3415 + $0x3c] sm:$0xff]
        %v7344 = vld [vmem:[%s3415 + $0x44] sm:$0xf]
        %v7345 = vld [vmem:[%s3415 + $0x48] sm:$0xff]
        %v7346 = vld [vmem:[%s3415 + $0x50] sm:$0xf]
        %v7347 = vld [vmem:[%s3415 + $0x54] sm:$0xff]
        %v7348 = vld [vmem:[%s3415 + $0x5c] sm:$0xf]
        %v7349 = vld [vmem:[%s3415 + $0x60] sm:$0xff]
        %v7350 = vld [vmem:[%s3415 + $0x68] sm:$0xf]
        %v7351 = vld [vmem:[%s3415 + $0x6c] sm:$0xff]
        %v7352 = vld [vmem:[%s3415 + $0x74] sm:$0xf]
        %v7353 = vld [vmem:[%s3415 + $0x78] sm:$0xff]
        %v7354 = vld [vmem:[%s3415 + $0x80] sm:$0xf]
        %v7355 = vld [vmem:[%s3415 + $0x84] sm:$0xff]
        %v7356 = vld [vmem:[%s3415 + $0x8c] sm:$0xf]
        %v7357 = vld [vmem:[%s3415 + $0x90] sm:$0xff]
        %v7358 = vld [vmem:[%s3415 + $0x98] sm:$0xf]
        %v7359 = vld [vmem:[%s3415 + $0x9c] sm:$0xff]
        %v7360 = vld [vmem:[%s3415 + $0xa4] sm:$0xf]
        %v7361 = vld [vmem:[%s3415 + $0xa8] sm:$0xff]
        %v7362 = vld [vmem:[%s3415 + $0xb0] sm:$0xf]
        %v7363 = vld [vmem:[%s3415 + $0xb4] sm:$0xff]
        %v7364 = vld [vmem:[%s3415 + $0xbc] sm:$0xf]
        %v7365 = vld [vmem:[%s3415 + $0xc0] sm:$0xff]
        %v7366 = vld [vmem:[%s3415 + $0xc8] sm:$0xf]
        %v7367 = vld [vmem:[%s3415 + $0xcc] sm:$0xff]
        %v7368 = vld [vmem:[%s3415 + $0xd4] sm:$0xf]
        %v7369 = vld [vmem:[%s3415 + $0xd8] sm:$0xff]
        %v7370 = vld [vmem:[%s3415 + $0xe0] sm:$0xf]
        %v7371 = vld [vmem:[%s3415 + $0xe4] sm:$0xff]
        %v7372 = vld [vmem:[%s3415 + $0xec] sm:$0xf]
        %v7373 = vld [vmem:[%s3415 + $0xf0] sm:$0xff]
        %v7374 = vld [vmem:[%s3415 + $0xf8] sm:$0xf]
        %v7375 = vld [vmem:[%s3415 + $0xfc] sm:$0xff]
        %v7376 = vld [vmem:[%s3415 + $0x104] sm:$0xf]
        %v7377 = vld [vmem:[%s3415 + $0x108] sm:$0xff]
        %v7378 = vld [vmem:[%s3415 + $0x110] sm:$0xf]
        %v7379 = vld [vmem:[%s3415 + $0x114] sm:$0xff]
        %v7380 = vld [vmem:[%s3415 + $0x11c] sm:$0xf]
        %v7381 = vld [vmem:[%s3415 + $0x120] sm:$0xff]
        %v7382 = vld [vmem:[%s3415 + $0x128] sm:$0xf]
        %v7383 = vld [vmem:[%s3415 + $0x12c] sm:$0xff]
        %v7384 = vld [vmem:[%s3415 + $0x134] sm:$0xf]
        %v7385 = vld [vmem:[%s3415 + $0x138] sm:$0xff]
        %v7386 = vld [vmem:[%s3415 + $0x140] sm:$0xf]
        %v7387 = vld [vmem:[%s3415 + $0x144] sm:$0xff]
        %v7388 = vld [vmem:[%s3415 + $0x14c] sm:$0xf]
        %v7389 = vld [vmem:[%s3415 + $0x150] sm:$0xff]
        %v7390 = vld [vmem:[%s3415 + $0x158] sm:$0xf]
        %v7391 = vld [vmem:[%s3415 + $0x15c] sm:$0xff]
        %v7392 = vld [vmem:[%s3415 + $0x164] sm:$0xf]
        %v7393 = vld [vmem:[%s3415 + $0x168] sm:$0xff]
        %v7394 = vld [vmem:[%s3415 + $0x170] sm:$0xf]
        %v7395 = vld [vmem:[%s3415 + $0x174] sm:$0xff]
        %v7396 = vld [vmem:[%s3415 + $0x17c] sm:$0xf]
        %v7397 = vld [vmem:[#allocation9 + $0x180] sm:$0xf]
        %v7398 = vld [vmem:[#allocation9 + $0x184] sm:$0xf]
        %v7399 = vld [vmem:[#allocation9 + $0x188] sm:$0xf]
        %v7400 = vld [vmem:[#allocation9 + $0x18c] sm:$0xf]
        %v7401 = vld [vmem:[#allocation9 + $0x190] sm:$0xf]
        %v7402 = vld [vmem:[#allocation9 + $0x194] sm:$0xf]
        %v7403 = vld [vmem:[#allocation9 + $0x198] sm:$0xf]
        %v7404 = vld [vmem:[#allocation9 + $0x19c] sm:$0xf]
        %v7405 = vld [vmem:[#allocation9 + $0x1a0] sm:$0xf]
        %v7406 = vld [vmem:[#allocation9 + $0x1a4] sm:$0xf]
        %v7407 = vld [vmem:[#allocation9 + $0x1a8] sm:$0xf]
        %v7408 = vld [vmem:[#allocation9 + $0x1ac] sm:$0xf]
        %v7409 = vld [vmem:[#allocation9 + $0x1b0] sm:$0xf]
        %v7410 = vld [vmem:[#allocation9 + $0x1b4] sm:$0xf]
        %v7411 = vld [vmem:[#allocation9 + $0x1b8] sm:$0xf]
        %v7412 = vld [vmem:[#allocation9 + $0x1bc] sm:$0xf]
        %v7413 = vld [vmem:[#allocation9 + $0x1c0] sm:$0xf]
        %v7414 = vld [vmem:[#allocation9 + $0x1c4] sm:$0xf]
        %v7415 = vld [vmem:[#allocation9 + $0x1c8] sm:$0xf]
        %v7416 = vld [vmem:[#allocation9 + $0x1cc] sm:$0xf]
        %v7417 = vld [vmem:[#allocation9 + $0x1d0] sm:$0xf]
        %v7418 = vld [vmem:[#allocation9 + $0x1d4] sm:$0xf]
        %v7419 = vld [vmem:[#allocation9 + $0x1d8] sm:$0xf]
        %v7420 = vld [vmem:[#allocation9 + $0x1dc] sm:$0xf]
        %v7421 = vld [vmem:[#allocation9 + $0x1e0] sm:$0xf]
        %v7422 = vld [vmem:[#allocation9 + $0x1e4] sm:$0xf]
        %v7423 = vld [vmem:[#allocation9 + $0x1e8] sm:$0xf]
        %v7424 = vld [vmem:[#allocation9 + $0x1ec] sm:$0xf]
        %v7425 = vld [vmem:[#allocation9 + $0x1f0] sm:$0xf]
        %v7426 = vld [vmem:[#allocation9 + $0x1f4] sm:$0xf]
        %v7427 = vld [vmem:[#allocation9 + $0x1f8] sm:$0xf]
        %v7428 = vld [vmem:[#allocation9 + $0x1fc] sm:$0xf]
        %v7429 = vld [vmem:[#allocation9 + $0x200] sm:$0xf]
        %v7430 = vld [vmem:[#allocation9 + $0x204] sm:$0xf]
        %v7431 = vld [vmem:[#allocation9 + $0x208] sm:$0xf]
        %v7432 = vld [vmem:[#allocation9 + $0x20c] sm:$0xf]
        %v7433 = vld [vmem:[#allocation9 + $0x210] sm:$0xf]
        %v7434 = vld [vmem:[#allocation9 + $0x214] sm:$0xf]
        %v7435 = vld [vmem:[#allocation9 + $0x218] sm:$0xf]
        %v7436 = vld [vmem:[#allocation9 + $0x21c] sm:$0xf]
        %v7437 = vld [vmem:[#allocation9 + $0x220] sm:$0xf]
        %v7438 = vld [vmem:[#allocation9 + $0x224] sm:$0xf]
        %v7439 = vld [vmem:[#allocation9 + $0x228] sm:$0xf]
        %v7440 = vld [vmem:[#allocation9 + $0x22c] sm:$0xf]
        %v7441 = vld [vmem:[#allocation9 + $0x230] sm:$0xf]
        %v7442 = vld [vmem:[#allocation9 + $0x234] sm:$0xf]
        %v7443 = vld [vmem:[#allocation9 + $0x238] sm:$0xf]
        %v7444 = vld [vmem:[#allocation9 + $0x23c] sm:$0xf]
        %v7509 = vunpack.c.l.b16 %v7333
        %v7510 = vunpack.c.h.b16 %v7333
        %v7511 = vunpack.c.l.b16 %v7334
        %v7512 = vunpack.c.l.b16 %v7335
        %v7513 = vunpack.c.h.b16 %v7335
        %v7514 = vunpack.c.l.b16 %v7336
        %v7515 = vunpack.c.l.b16 %v7337
        %v7516 = vunpack.c.h.b16 %v7337
        %v7517 = vunpack.c.l.b16 %v7338
        %v7518 = vunpack.c.l.b16 %v7339
        %v7519 = vunpack.c.h.b16 %v7339
        %v7520 = vunpack.c.l.b16 %v7340
        %v7521 = vunpack.c.l.b16 %v7341
        %v7522 = vunpack.c.h.b16 %v7341
        %v7523 = vunpack.c.l.b16 %v7342
        %v7524 = vunpack.c.l.b16 %v7343
        %v7525 = vunpack.c.h.b16 %v7343
        %v7526 = vunpack.c.l.b16 %v7344
        %v7527 = vunpack.c.l.b16 %v7345
        %v7528 = vunpack.c.h.b16 %v7345
        %v7529 = vunpack.c.l.b16 %v7346
        %v7530 = vunpack.c.l.b16 %v7347
        %v7531 = vunpack.c.h.b16 %v7347
        %v7532 = vunpack.c.l.b16 %v7348
        %v7533 = vunpack.c.l.b16 %v7349
        %v7534 = vunpack.c.h.b16 %v7349
        %v7535 = vunpack.c.l.b16 %v7350
        %v7536 = vunpack.c.l.b16 %v7351
        %v7537 = vunpack.c.h.b16 %v7351
        %v7538 = vunpack.c.l.b16 %v7352
        %v7539 = vunpack.c.l.b16 %v7353
        %v7540 = vunpack.c.h.b16 %v7353
        %v7541 = vunpack.c.l.b16 %v7354
        %v7542 = vunpack.c.l.b16 %v7355
        %v7543 = vunpack.c.h.b16 %v7355
        %v7544 = vunpack.c.l.b16 %v7356
        %v7545 = vunpack.c.l.b16 %v7357
        %v7546 = vunpack.c.h.b16 %v7357
        %v7547 = vunpack.c.l.b16 %v7358
        %v7548 = vunpack.c.l.b16 %v7359
        %v7549 = vunpack.c.h.b16 %v7359
        %v7550 = vunpack.c.l.b16 %v7360
        %v7551 = vunpack.c.l.b16 %v7361
        %v7552 = vunpack.c.h.b16 %v7361
        %v7553 = vunpack.c.l.b16 %v7362
        %v7554 = vunpack.c.l.b16 %v7363
        %v7555 = vunpack.c.h.b16 %v7363
        %v7556 = vunpack.c.l.b16 %v7364
        %v7557 = vunpack.c.l.b16 %v7365
        %v7558 = vunpack.c.h.b16 %v7365
        %v7559 = vunpack.c.l.b16 %v7366
        %v7560 = vunpack.c.l.b16 %v7367
        %v7561 = vunpack.c.h.b16 %v7367
        %v7562 = vunpack.c.l.b16 %v7368
        %v7563 = vunpack.c.l.b16 %v7369
        %v7564 = vunpack.c.h.b16 %v7369
        %v7565 = vunpack.c.l.b16 %v7370
        %v7566 = vunpack.c.l.b16 %v7371
        %v7567 = vunpack.c.h.b16 %v7371
        %v7568 = vunpack.c.l.b16 %v7372
        %v7569 = vunpack.c.l.b16 %v7373
        %v7570 = vunpack.c.h.b16 %v7373
        %v7571 = vunpack.c.l.b16 %v7374
        %v7572 = vunpack.c.l.b16 %v7375
        %v7573 = vunpack.c.h.b16 %v7375
        %v7574 = vunpack.c.l.b16 %v7376
        %v7575 = vunpack.c.l.b16 %v7377
        %v7576 = vunpack.c.h.b16 %v7377
        %v7577 = vunpack.c.l.b16 %v7378
        %v7578 = vunpack.c.l.b16 %v7379
        %v7579 = vunpack.c.h.b16 %v7379
        %v7580 = vunpack.c.l.b16 %v7380
        %v7581 = vunpack.c.l.b16 %v7381
        %v7582 = vunpack.c.h.b16 %v7381
        %v7583 = vunpack.c.l.b16 %v7382
        %v7584 = vunpack.c.l.b16 %v7383
        %v7585 = vunpack.c.h.b16 %v7383
        %v7586 = vunpack.c.l.b16 %v7384
        %v7587 = vunpack.c.l.b16 %v7385
        %v7588 = vunpack.c.h.b16 %v7385
        %v7589 = vunpack.c.l.b16 %v7386
        %v7590 = vunpack.c.l.b16 %v7387
        %v7591 = vunpack.c.h.b16 %v7387
        %v7592 = vunpack.c.l.b16 %v7388
        %v7593 = vunpack.c.l.b16 %v7389
        %v7594 = vunpack.c.h.b16 %v7389
        %v7595 = vunpack.c.l.b16 %v7390
        %v7596 = vunpack.c.l.b16 %v7391
        %v7597 = vunpack.c.h.b16 %v7391
        %v7598 = vunpack.c.l.b16 %v7392
        %v7599 = vunpack.c.l.b16 %v7393
        %v7600 = vunpack.c.h.b16 %v7393
        %v7601 = vunpack.c.l.b16 %v7394
        %v7602 = vunpack.c.l.b16 %v7395
        %v7603 = vunpack.c.h.b16 %v7395
        %v7604 = vunpack.c.l.b16 %v7396
        %v7605 = vpack.c.b16 %v7512, %v7509
        %v7606 = vpack.c.b16 %v7513, %v7510
        %v7607 = vpack.c.b16 %v7514, %v7511
        %v7608 = vpack.c.b16 %v7518, %v7515
        %v7609 = vpack.c.b16 %v7519, %v7516
        %v7610 = vpack.c.b16 %v7520, %v7517
        %v7611 = vpack.c.b16 %v7524, %v7521
        %v7612 = vpack.c.b16 %v7525, %v7522
        %v7613 = vpack.c.b16 %v7526, %v7523
        %v7614 = vpack.c.b16 %v7530, %v7527
        %v7615 = vpack.c.b16 %v7531, %v7528
        %v7616 = vpack.c.b16 %v7532, %v7529
        %v7617 = vpack.c.b16 %v7536, %v7533
        %v7618 = vpack.c.b16 %v7537, %v7534
        %v7619 = vpack.c.b16 %v7538, %v7535
        %v7620 = vpack.c.b16 %v7542, %v7539
        %v7621 = vpack.c.b16 %v7543, %v7540
        %v7622 = vpack.c.b16 %v7544, %v7541
        %v7623 = vpack.c.b16 %v7548, %v7545
        %v7624 = vpack.c.b16 %v7549, %v7546
        %v7625 = vpack.c.b16 %v7550, %v7547
        %v7626 = vpack.c.b16 %v7554, %v7551
        %v7627 = vpack.c.b16 %v7555, %v7552
        %v7628 = vpack.c.b16 %v7556, %v7553
        %v7629 = vpack.c.b16 %v7560, %v7557
        %v7630 = vpack.c.b16 %v7561, %v7558
        %v7631 = vpack.c.b16 %v7562, %v7559
        %v7632 = vpack.c.b16 %v7566, %v7563
        %v7633 = vpack.c.b16 %v7567, %v7564
        %v7634 = vpack.c.b16 %v7568, %v7565
        %v7635 = vpack.c.b16 %v7572, %v7569
        %v7636 = vpack.c.b16 %v7573, %v7570
        %v7637 = vpack.c.b16 %v7574, %v7571
        %v7638 = vpack.c.b16 %v7578, %v7575
        %v7639 = vpack.c.b16 %v7579, %v7576
        %v7640 = vpack.c.b16 %v7580, %v7577
        %v7641 = vpack.c.b16 %v7584, %v7581
        %v7642 = vpack.c.b16 %v7585, %v7582
        %v7643 = vpack.c.b16 %v7586, %v7583
        %v7644 = vpack.c.b16 %v7590, %v7587
        %v7645 = vpack.c.b16 %v7591, %v7588
        %v7646 = vpack.c.b16 %v7592, %v7589
        %v7647 = vpack.c.b16 %v7596, %v7593
        %v7648 = vpack.c.b16 %v7597, %v7594
        %v7649 = vpack.c.b16 %v7598, %v7595
        %v7650 = vpack.c.b16 %v7602, %v7599
        %v7651 = vpack.c.b16 %v7603, %v7600
        %v7652 = vpack.c.b16 %v7604, %v7601
        %v7749 = vunpack.c.l.b16 %v7397
        %v7750 = vunpack.c.l.b16 %v7398
        %v7751 = vunpack.c.l.b16 %v7399
        %v7752 = vunpack.c.l.b16 %v7400
        %v7753 = vunpack.c.l.b16 %v7401
        %v7754 = vunpack.c.l.b16 %v7402
        %v7755 = vunpack.c.l.b16 %v7403
        %v7756 = vunpack.c.l.b16 %v7404
        %v7757 = vunpack.c.l.b16 %v7405
        %v7758 = vunpack.c.l.b16 %v7406
        %v7759 = vunpack.c.l.b16 %v7407
        %v7760 = vunpack.c.l.b16 %v7408
        %v7761 = vunpack.c.l.b16 %v7409
        %v7762 = vunpack.c.l.b16 %v7410
        %v7763 = vunpack.c.l.b16 %v7411
        %v7764 = vunpack.c.l.b16 %v7412
        %v7765 = vunpack.c.l.b16 %v7413
        %v7766 = vunpack.c.l.b16 %v7414
        %v7767 = vunpack.c.l.b16 %v7415
        %v7768 = vunpack.c.l.b16 %v7416
        %v7769 = vunpack.c.l.b16 %v7417
        %v7770 = vunpack.c.l.b16 %v7418
        %v7771 = vunpack.c.l.b16 %v7419
        %v7772 = vunpack.c.l.b16 %v7420
        %v7773 = vunpack.c.l.b16 %v7421
        %v7774 = vunpack.c.l.b16 %v7422
        %v7775 = vunpack.c.l.b16 %v7423
        %v7776 = vunpack.c.l.b16 %v7424
        %v7777 = vunpack.c.l.b16 %v7425
        %v7778 = vunpack.c.l.b16 %v7426
        %v7779 = vunpack.c.l.b16 %v7427
        %v7780 = vunpack.c.l.b16 %v7428
        %v7781 = vunpack.c.l.b16 %v7429
        %v7782 = vunpack.c.l.b16 %v7430
        %v7783 = vunpack.c.l.b16 %v7431
        %v7784 = vunpack.c.l.b16 %v7432
        %v7785 = vunpack.c.l.b16 %v7433
        %v7786 = vunpack.c.l.b16 %v7434
        %v7787 = vunpack.c.l.b16 %v7435
        %v7788 = vunpack.c.l.b16 %v7436
        %v7789 = vunpack.c.l.b16 %v7437
        %v7790 = vunpack.c.l.b16 %v7438
        %v7791 = vunpack.c.l.b16 %v7439
        %v7792 = vunpack.c.l.b16 %v7440
        %v7793 = vunpack.c.l.b16 %v7441
        %v7794 = vunpack.c.l.b16 %v7442
        %v7795 = vunpack.c.l.b16 %v7443
        %v7796 = vunpack.c.l.b16 %v7444
        %v7797 = vpack.c.b16 %v7750, %v7749
        %v7798 = vpack.c.b16 %v7752, %v7751
        %v7799 = vpack.c.b16 %v7754, %v7753
        %v7800 = vpack.c.b16 %v7756, %v7755
        %v7801 = vpack.c.b16 %v7758, %v7757
        %v7802 = vpack.c.b16 %v7760, %v7759
        %v7803 = vpack.c.b16 %v7762, %v7761
        %v7804 = vpack.c.b16 %v7764, %v7763
        %v7805 = vpack.c.b16 %v7766, %v7765
        %v7806 = vpack.c.b16 %v7768, %v7767
        %v7807 = vpack.c.b16 %v7770, %v7769
        %v7808 = vpack.c.b16 %v7772, %v7771
        %v7809 = vpack.c.b16 %v7774, %v7773
        %v7810 = vpack.c.b16 %v7776, %v7775
        %v7811 = vpack.c.b16 %v7778, %v7777
        %v7812 = vpack.c.b16 %v7780, %v7779
        %v7813 = vpack.c.b16 %v7782, %v7781
        %v7814 = vpack.c.b16 %v7784, %v7783
        %v7815 = vpack.c.b16 %v7786, %v7785
        %v7816 = vpack.c.b16 %v7788, %v7787
        %v7817 = vpack.c.b16 %v7790, %v7789
        %v7818 = vpack.c.b16 %v7792, %v7791
        %v7819 = vpack.c.b16 %v7794, %v7793
        %v7820 = vpack.c.b16 %v7796, %v7795
        %7845 = vmatprep.subr.bf16.mxu0 0
        %7846 = vmatpush1.bf16.msra.mxu0 %v7804
        %7847 = vmatprep.subr.bf16.mxu0 0
        %7848 = vmatpush1.bf16.msra.mxu0 %v7803
        %7849 = vmatprep.subr.bf16.mxu0 0
        %7850 = vmatpush1.bf16.msra.mxu0 %v7802
        %7851 = vmatprep.subr.bf16.mxu0 0
        %7852 = vmatpush1.bf16.msra.mxu0 %v7801
        %7853 = vmatprep.subr.bf16.mxu0 0
        %7854 = vmatpush1.bf16.msra.mxu0 %v7800
        %7855 = vmatprep.subr.bf16.mxu0 0
        %7856 = vmatpush1.bf16.msra.mxu0 %v7799
        %7857 = vmatprep.subr.bf16.mxu0 0
        %7858 = vmatpush1.bf16.msra.mxu0 %v7798
        %7859 = vmatprep.subr.bf16.mxu0 0
        %7860 = vmatpush1.bf16.msra.mxu0 %v7797
        %7861 = vmatprep.subr.bf16.mxu0 0
        %7862 = vmatpush2.bf16.msra.mxu0 %v7812
        %7863 = vmatprep.subr.bf16.mxu0 0
        %7864 = vmatpush2.bf16.msra.mxu0 %v7811
        %7865 = vmatprep.subr.bf16.mxu0 0
        %7866 = vmatpush2.bf16.msra.mxu0 %v7810
        %7867 = vmatprep.subr.bf16.mxu0 0
        %7868 = vmatpush2.bf16.msra.mxu0 %v7809
        %7869 = vmatprep.subr.bf16.mxu0 0
        %7870 = vmatpush2.bf16.msra.mxu0 %v7808
        %7871 = vmatprep.subr.bf16.mxu0 0
        %7872 = vmatpush2.bf16.msra.mxu0 %v7807
        %7873 = vmatprep.subr.bf16.mxu0 0
        %7874 = vmatpush2.bf16.msra.mxu0 %v7806
        %7875 = vmatprep.subr.bf16.mxu0 0
        %7876 = vmatpush2.bf16.msra.mxu0 %v7805
        %7877 = vmatprep.mubr.bf16.mxu0 %v7606
        %7878 = vmatmul.mubr.bf16.gmra.mxu0 %v7605
        %v7879 = vpop.f32.mrf.mxu0
        %v7880 = vadd.f32 0.0, %v7879
        %v7881 = vpop.f32.mrf.mxu0
        %v7882 = vpop.f32.mrf.mxu0
        %v7883 = vadd.f32 0.0, %v7882
        %v7884 = vpop.f32.mrf.mxu0
        %7885 = vmatprep.mubr.bf16.mxu0 %v7609
        %7886 = vmatmul.mubr.bf16.gmra.mxu0 %v7608
        %v7887 = vpop.f32.mrf.mxu0
        %v7888 = vadd.f32 0.0, %v7887
        %v7889 = vpop.f32.mrf.mxu0
        %v7890 = vpop.f32.mrf.mxu0
        %v7891 = vadd.f32 0.0, %v7890
        %v7892 = vpop.f32.mrf.mxu0
        %7893 = vmatprep.mubr.bf16.mxu0 %v7612
        %7894 = vmatmul.mubr.bf16.gmra.mxu0 %v7611
        %v7895 = vpop.f32.mrf.mxu0
        %v7896 = vadd.f32 0.0, %v7895
        %v7897 = vpop.f32.mrf.mxu0
        %v7898 = vpop.f32.mrf.mxu0
        %v7899 = vadd.f32 0.0, %v7898
        %v7900 = vpop.f32.mrf.mxu0
        %7901 = vmatprep.mubr.bf16.mxu0 %v7615
        %7902 = vmatmul.mubr.bf16.gmra.mxu0 %v7614
        %v7903 = vpop.f32.mrf.mxu0
        %v7904 = vadd.f32 0.0, %v7903
        %v7905 = vpop.f32.mrf.mxu0
        %v7906 = vpop.f32.mrf.mxu0
        %v7907 = vadd.f32 0.0, %v7906
        %v7908 = vpop.f32.mrf.mxu0
        %7909 = vmatprep.mubr.bf16.mxu0 %v7618
        %7910 = vmatmul.mubr.bf16.gmra.mxu0 %v7617
        %v7911 = vpop.f32.mrf.mxu0
        %v7912 = vadd.f32 0.0, %v7911
        %v7913 = vpop.f32.mrf.mxu0
        %v7914 = vpop.f32.mrf.mxu0
        %v7915 = vadd.f32 0.0, %v7914
        %v7916 = vpop.f32.mrf.mxu0
        %7917 = vmatprep.mubr.bf16.mxu0 %v7621
        %7918 = vmatmul.mubr.bf16.gmra.mxu0 %v7620
        %v7919 = vpop.f32.mrf.mxu0
        %v7920 = vadd.f32 0.0, %v7919
        %v7921 = vpop.f32.mrf.mxu0
        %v7922 = vpop.f32.mrf.mxu0
        %v7923 = vadd.f32 0.0, %v7922
        %v7924 = vpop.f32.mrf.mxu0
        %7925 = vmatprep.mubr.bf16.mxu0 %v7624
        %7926 = vmatmul.mubr.bf16.gmra.mxu0 %v7623
        %v7927 = vpop.f32.mrf.mxu0
        %v7928 = vadd.f32 0.0, %v7927
        %v7929 = vpop.f32.mrf.mxu0
        %v7930 = vpop.f32.mrf.mxu0
        %v7931 = vadd.f32 0.0, %v7930
        %v7932 = vpop.f32.mrf.mxu0
        %7933 = vmatprep.mubr.bf16.mxu0 %v7627
        %7934 = vmatmul.mubr.bf16.gmra.mxu0 %v7626
        %v7935 = vpop.f32.mrf.mxu0
        %v7936 = vadd.f32 0.0, %v7935
        %v7937 = vpop.f32.mrf.mxu0
        %v7938 = vpop.f32.mrf.mxu0
        %v7939 = vadd.f32 0.0, %v7938
        %v7940 = vpop.f32.mrf.mxu0
        %7941 = vmatprep.mubr.bf16.mxu0 %v7630
        %7942 = vmatmul.mubr.bf16.gmra.mxu0 %v7629
        %v7943 = vpop.f32.mrf.mxu0
        %v7944 = vadd.f32 0.0, %v7943
        %v7945 = vpop.f32.mrf.mxu0
        %v7946 = vpop.f32.mrf.mxu0
        %v7947 = vadd.f32 0.0, %v7946
        %v7948 = vpop.f32.mrf.mxu0
        %7949 = vmatprep.mubr.bf16.mxu0 %v7633
        %7950 = vmatmul.mubr.bf16.gmra.mxu0 %v7632
        %v7951 = vpop.f32.mrf.mxu0
        %v7952 = vadd.f32 0.0, %v7951
        %v7953 = vpop.f32.mrf.mxu0
        %v7954 = vpop.f32.mrf.mxu0
        %v7955 = vadd.f32 0.0, %v7954
        %v7956 = vpop.f32.mrf.mxu0
        %7957 = vmatprep.mubr.bf16.mxu0 %v7636
        %7958 = vmatmul.mubr.bf16.gmra.mxu0 %v7635
        %v7959 = vpop.f32.mrf.mxu0
        %v7960 = vadd.f32 0.0, %v7959
        %v7961 = vpop.f32.mrf.mxu0
        %v7962 = vpop.f32.mrf.mxu0
        %v7963 = vadd.f32 0.0, %v7962
        %v7964 = vpop.f32.mrf.mxu0
        %7965 = vmatprep.mubr.bf16.mxu0 %v7639
        %7966 = vmatmul.mubr.bf16.gmra.mxu0 %v7638
        %v7967 = vpop.f32.mrf.mxu0
        %v7968 = vadd.f32 0.0, %v7967
        %v7969 = vpop.f32.mrf.mxu0
        %v7970 = vpop.f32.mrf.mxu0
        %v7971 = vadd.f32 0.0, %v7970
        %v7972 = vpop.f32.mrf.mxu0
        %7973 = vmatprep.mubr.bf16.mxu0 %v7642
        %7974 = vmatmul.mubr.bf16.gmra.mxu0 %v7641
        %v7975 = vpop.f32.mrf.mxu0
        %v7976 = vadd.f32 0.0, %v7975
        %v7977 = vpop.f32.mrf.mxu0
        %v7978 = vpop.f32.mrf.mxu0
        %v7979 = vadd.f32 0.0, %v7978
        %v7980 = vpop.f32.mrf.mxu0
        %7981 = vmatprep.mubr.bf16.mxu0 %v7645
        %7982 = vmatmul.mubr.bf16.gmra.mxu0 %v7644
        %v7983 = vpop.f32.mrf.mxu0
        %v7984 = vadd.f32 0.0, %v7983
        %v7985 = vpop.f32.mrf.mxu0
        %v7986 = vpop.f32.mrf.mxu0
        %v7987 = vadd.f32 0.0, %v7986
        %v7988 = vpop.f32.mrf.mxu0
        %7989 = vmatprep.mubr.bf16.mxu0 %v7648
        %7990 = vmatmul.mubr.bf16.gmra.mxu0 %v7647
        %v7991 = vpop.f32.mrf.mxu0
        %v7992 = vadd.f32 0.0, %v7991
        %v7993 = vpop.f32.mrf.mxu0
        %v7994 = vpop.f32.mrf.mxu0
        %v7995 = vadd.f32 0.0, %v7994
        %v7996 = vpop.f32.mrf.mxu0
        %7997 = vmatprep.mubr.bf16.mxu0 %v7651
        %7998 = vmatmul.mubr.bf16.gmra.mxu0 %v7650
        %v7999 = vpop.f32.mrf.mxu0
        %v8000 = vadd.f32 0.0, %v7999
        %v8001 = vpop.f32.mrf.mxu0
        %v8002 = vpop.f32.mrf.mxu0
        %v8003 = vadd.f32 0.0, %v8002
        %v8004 = vpop.f32.mrf.mxu0
        %8005 = vdwg.mxu0
        %8006 = vmatprep.subr.bf16.mxu0 0
        %8007 = vmatpush1.bf16.msra.mxu0 %v7820
        %8008 = vmatprep.subr.bf16.mxu0 0
        %8009 = vmatpush1.bf16.msra.mxu0 %v7819
        %8010 = vmatprep.subr.bf16.mxu0 0
        %8011 = vmatpush1.bf16.msra.mxu0 %v7818
        %8012 = vmatprep.subr.bf16.mxu0 0
        %8013 = vmatpush1.bf16.msra.mxu0 %v7817
        %8014 = vmatprep.subr.bf16.mxu0 0
        %8015 = vmatpush1.bf16.msra.mxu0 %v7816
        %8016 = vmatprep.subr.bf16.mxu0 0
        %8017 = vmatpush1.bf16.msra.mxu0 %v7815
        %8018 = vmatprep.subr.bf16.mxu0 0
        %8019 = vmatpush1.bf16.msra.mxu0 %v7814
        %8020 = vmatprep.subr.bf16.mxu0 0
        %8021 = vmatpush1.bf16.msra.mxu0 %v7813
        %8022 = vmatprep.subr.bf16.mxu0 0
        %8023 = vmatpush2.bf16.msra.mxu0 0
        %8024 = vmatprep.subr.bf16.mxu0 0
        %8025 = vmatpush2.bf16.msra.mxu0 0
        %8026 = vmatprep.subr.bf16.mxu0 0
        %8027 = vmatpush2.bf16.msra.mxu0 0
        %8028 = vmatprep.subr.bf16.mxu0 0
        %8029 = vmatpush2.bf16.msra.mxu0 0
        %8030 = vmatprep.subr.bf16.mxu0 0
        %8031 = vmatpush2.bf16.msra.mxu0 0
        %8032 = vmatprep.subr.bf16.mxu0 0
        %8033 = vmatpush2.bf16.msra.mxu0 0
        %8034 = vmatprep.subr.bf16.mxu0 0
        %8035 = vmatpush2.bf16.msra.mxu0 0
        %8036 = vmatprep.subr.bf16.mxu0 0
        %8037 = vmatpush2.bf16.msra.mxu0 0
        %8038 = vmatprep.mubr.bf16.mxu0 0
        %8039 = vmatmul.mubr.bf16.gmra.mxu0 %v7607
        %v8040 = vpop.f32.mrf.mxu0
        %v8041 = vadd.f32 %v7880, %v8040
        %v8042 = vpop.f32.mrf.mxu0
        %v8043 = vpop.f32.mrf.mxu0
        %v8044 = vadd.f32 %v7883, %v8043
        %v8045 = vpop.f32.mrf.mxu0
        %8046 = vmatprep.mubr.bf16.mxu0 0
        %8047 = vmatmul.mubr.bf16.gmra.mxu0 %v7610
        %v8048 = vpop.f32.mrf.mxu0
        %v8049 = vadd.f32 %v7888, %v8048
        %v8050 = vpop.f32.mrf.mxu0
        %v8051 = vpop.f32.mrf.mxu0
        %v8052 = vadd.f32 %v7891, %v8051
        %v8053 = vpop.f32.mrf.mxu0
        %8054 = vmatprep.mubr.bf16.mxu0 0
        %8055 = vmatmul.mubr.bf16.gmra.mxu0 %v7613
        %v8056 = vpop.f32.mrf.mxu0
        %v8057 = vadd.f32 %v7896, %v8056
        %v8058 = vpop.f32.mrf.mxu0
        %v8059 = vpop.f32.mrf.mxu0
        %v8060 = vadd.f32 %v7899, %v8059
        %v8061 = vpop.f32.mrf.mxu0
        %8062 = vmatprep.mubr.bf16.mxu0 0
        %8063 = vmatmul.mubr.bf16.gmra.mxu0 %v7616
        %v8064 = vpop.f32.mrf.mxu0
        %v8065 = vadd.f32 %v7904, %v8064
        %v8066 = vpop.f32.mrf.mxu0
        %v8067 = vpop.f32.mrf.mxu0
        %v8068 = vadd.f32 %v7907, %v8067
        %v8069 = vpop.f32.mrf.mxu0
        %8070 = vmatprep.mubr.bf16.mxu0 0
        %8071 = vmatmul.mubr.bf16.gmra.mxu0 %v7619
        %v8072 = vpop.f32.mrf.mxu0
        %v8073 = vadd.f32 %v7912, %v8072
        %v8074 = vpop.f32.mrf.mxu0
        %v8075 = vpop.f32.mrf.mxu0
        %v8076 = vadd.f32 %v7915, %v8075
        %v8077 = vpop.f32.mrf.mxu0
        %8078 = vmatprep.mubr.bf16.mxu0 0
        %8079 = vmatmul.mubr.bf16.gmra.mxu0 %v7622
        %v8080 = vpop.f32.mrf.mxu0
        %v8081 = vadd.f32 %v7920, %v8080
        %v8082 = vpop.f32.mrf.mxu0
        %v8083 = vpop.f32.mrf.mxu0
        %v8084 = vadd.f32 %v7923, %v8083
        %v8085 = vpop.f32.mrf.mxu0
        %8086 = vmatprep.mubr.bf16.mxu0 0
        %8087 = vmatmul.mubr.bf16.gmra.mxu0 %v7625
        %v8088 = vpop.f32.mrf.mxu0
        %v8089 = vadd.f32 %v7928, %v8088
        %v8090 = vpop.f32.mrf.mxu0
        %v8091 = vpop.f32.mrf.mxu0
        %v8092 = vadd.f32 %v7931, %v8091
        %v8093 = vpop.f32.mrf.mxu0
        %8094 = vmatprep.mubr.bf16.mxu0 0
        %8095 = vmatmul.mubr.bf16.gmra.mxu0 %v7628
        %v8096 = vpop.f32.mrf.mxu0
        %v8097 = vadd.f32 %v7936, %v8096
        %v8098 = vpop.f32.mrf.mxu0
        %v8099 = vpop.f32.mrf.mxu0
        %v8100 = vadd.f32 %v7939, %v8099
        %v8101 = vpop.f32.mrf.mxu0
        %8102 = vmatprep.mubr.bf16.mxu0 0
        %8103 = vmatmul.mubr.bf16.gmra.mxu0 %v7631
        %v8104 = vpop.f32.mrf.mxu0
        %v8105 = vadd.f32 %v7944, %v8104
        %v8106 = vpop.f32.mrf.mxu0
        %v8107 = vpop.f32.mrf.mxu0
        %v8108 = vadd.f32 %v7947, %v8107
        %v8109 = vpop.f32.mrf.mxu0
        %8110 = vmatprep.mubr.bf16.mxu0 0
        %8111 = vmatmul.mubr.bf16.gmra.mxu0 %v7634
        %v8112 = vpop.f32.mrf.mxu0
        %v8113 = vadd.f32 %v7952, %v8112
        %v8114 = vpop.f32.mrf.mxu0
        %v8115 = vpop.f32.mrf.mxu0
        %v8116 = vadd.f32 %v7955, %v8115
        %v8117 = vpop.f32.mrf.mxu0
        %8118 = vmatprep.mubr.bf16.mxu0 0
        %8119 = vmatmul.mubr.bf16.gmra.mxu0 %v7637
        %v8120 = vpop.f32.mrf.mxu0
        %v8121 = vadd.f32 %v7960, %v8120
        %v8122 = vpop.f32.mrf.mxu0
        %v8123 = vpop.f32.mrf.mxu0
        %v8124 = vadd.f32 %v7963, %v8123
        %v8125 = vpop.f32.mrf.mxu0
        %8126 = vmatprep.mubr.bf16.mxu0 0
        %8127 = vmatmul.mubr.bf16.gmra.mxu0 %v7640
        %v8128 = vpop.f32.mrf.mxu0
        %v8129 = vadd.f32 %v7968, %v8128
        %v8130 = vpop.f32.mrf.mxu0
        %v8131 = vpop.f32.mrf.mxu0
        %v8132 = vadd.f32 %v7971, %v8131
        %v8133 = vpop.f32.mrf.mxu0
        %8134 = vmatprep.mubr.bf16.mxu0 0
        %8135 = vmatmul.mubr.bf16.gmra.mxu0 %v7643
        %v8136 = vpop.f32.mrf.mxu0
        %v8137 = vadd.f32 %v7976, %v8136
        %v8138 = vpop.f32.mrf.mxu0
        %v8139 = vpop.f32.mrf.mxu0
        %v8140 = vadd.f32 %v7979, %v8139
        %v8141 = vpop.f32.mrf.mxu0
        %8142 = vmatprep.mubr.bf16.mxu0 0
        %8143 = vmatmul.mubr.bf16.gmra.mxu0 %v7646
        %v8144 = vpop.f32.mrf.mxu0
        %v8145 = vadd.f32 %v7984, %v8144
        %v8146 = vpop.f32.mrf.mxu0
        %v8147 = vpop.f32.mrf.mxu0
        %v8148 = vadd.f32 %v7987, %v8147
        %v8149 = vpop.f32.mrf.mxu0
        %8150 = vmatprep.mubr.bf16.mxu0 0
        %8151 = vmatmul.mubr.bf16.gmra.mxu0 %v7649
        %v8152 = vpop.f32.mrf.mxu0
        %v8153 = vadd.f32 %v7992, %v8152
        %v8154 = vpop.f32.mrf.mxu0
        %v8155 = vpop.f32.mrf.mxu0
        %v8156 = vadd.f32 %v7995, %v8155
        %v8157 = vpop.f32.mrf.mxu0
        %8158 = vmatprep.mubr.bf16.mxu0 0
        %8159 = vmatmul.mubr.bf16.gmra.mxu0 %v7652
        %v8160 = vpop.f32.mrf.mxu0
        %v8161 = vadd.f32 %v8000, %v8160
        %v8162 = vpop.f32.mrf.mxu0
        %v8163 = vpop.f32.mrf.mxu0
        %v8164 = vadd.f32 %v8003, %v8163
        %v8165 = vpop.f32.mrf.mxu0
        %8166 = vdwg.mxu0
        %v8167 = vadd.f32 %v7207, %v8041
        %v8168 = vadd.f32 %v7210, %v8044
        %v8169 = vadd.f32 %v7215, %v8049
        %v8170 = vadd.f32 %v7218, %v8052
        %v8171 = vadd.f32 %v7223, %v8057
        %v8172 = vadd.f32 %v7226, %v8060
        %v8173 = vadd.f32 %v7231, %v8065
        %v8174 = vadd.f32 %v7234, %v8068
        %v8175 = vadd.f32 %v7239, %v8073
        %v8176 = vadd.f32 %v7242, %v8076
        %v8177 = vadd.f32 %v7247, %v8081
        %v8178 = vadd.f32 %v7250, %v8084
        %v8179 = vadd.f32 %v7255, %v8089
        %v8180 = vadd.f32 %v7258, %v8092
        %v8181 = vadd.f32 %v7263, %v8097
        %v8182 = vadd.f32 %v7266, %v8100
        %v8183 = vadd.f32 %v7271, %v8105
        %v8184 = vadd.f32 %v7274, %v8108
        %v8185 = vadd.f32 %v7279, %v8113
        %v8186 = vadd.f32 %v7282, %v8116
        %v8187 = vadd.f32 %v7287, %v8121
        %v8188 = vadd.f32 %v7290, %v8124
        %v8189 = vadd.f32 %v7295, %v8129
        %v8190 = vadd.f32 %v7298, %v8132
        %v8191 = vadd.f32 %v7303, %v8137
        %v8192 = vadd.f32 %v7306, %v8140
        %v8193 = vadd.f32 %v7311, %v8145
        %v8194 = vadd.f32 %v7314, %v8148
        %v8195 = vadd.f32 %v7319, %v8153
        %v8196 = vadd.f32 %v7322, %v8156
        %v8197 = vadd.f32 %v7327, %v8161
        %v8198 = vadd.f32 %v7330, %v8164
        %v8199 = vld [vmem:[%s4] sm:$0x1]
        %v8201 = vlaneseq
        %v8202 = vshrl.u32 %v8201, 7
        %v8203 = vsub.s32 0, %v8202
        %v8204 = vrot.slane %v8199, %v8203
        %v8206 = vadd.f32 %v8167, %v8204
        %v8207 = vadd.f32 %v8168, %v8204
        %v8208 = vadd.f32 %v8169, %v8204
        %v8209 = vadd.f32 %v8170, %v8204
        %v8210 = vadd.f32 %v8171, %v8204
        %v8211 = vadd.f32 %v8172, %v8204
        %v8212 = vadd.f32 %v8173, %v8204
        %v8213 = vadd.f32 %v8174, %v8204
        %v8214 = vadd.f32 %v8175, %v8204
        %v8215 = vadd.f32 %v8176, %v8204
        %v8216 = vadd.f32 %v8177, %v8204
        %v8217 = vadd.f32 %v8178, %v8204
        %v8218 = vadd.f32 %v8179, %v8204
        %v8219 = vadd.f32 %v8180, %v8204
        %v8220 = vadd.f32 %v8181, %v8204
        %v8221 = vadd.f32 %v8182, %v8204
        %v8222 = vadd.f32 %v8183, %v8204
        %v8223 = vadd.f32 %v8184, %v8204
        %v8224 = vadd.f32 %v8185, %v8204
        %v8225 = vadd.f32 %v8186, %v8204
        %v8226 = vadd.f32 %v8187, %v8204
        %v8227 = vadd.f32 %v8188, %v8204
        %v8228 = vadd.f32 %v8189, %v8204
        %v8229 = vadd.f32 %v8190, %v8204
        %v8230 = vadd.f32 %v8191, %v8204
        %v8231 = vadd.f32 %v8192, %v8204
        %v8232 = vadd.f32 %v8193, %v8204
        %v8233 = vadd.f32 %v8194, %v8204
        %v8234 = vadd.f32 %v8195, %v8204
        %v8235 = vadd.f32 %v8196, %v8204
        %v8236 = vadd.f32 %v8197, %v8204
        %v8237 = vadd.f32 %v8198, %v8204
        %v8238 = vld [vmem:[%s237] sm:$0xff]
        %v8239 = vld [vmem:[%s237 + $0x8] sm:$0xff]
        %v8240 = vld [vmem:[%s237 + $0x10] sm:$0xff]
        %v8241 = vld [vmem:[%s237 + $0x18] sm:$0xff]
        %v8242 = vld [vmem:[%s237 + $0x20] sm:$0xff]
        %v8243 = vld [vmem:[%s237 + $0x28] sm:$0xff]
        %v8244 = vld [vmem:[%s237 + $0x30] sm:$0xff]
        %v8245 = vld [vmem:[%s237 + $0x38] sm:$0xff]
        %v8246 = vld [vmem:[%s237 + $0x40] sm:$0xff]
        %v8247 = vld [vmem:[%s237 + $0x48] sm:$0xff]
        %v8248 = vld [vmem:[%s237 + $0x50] sm:$0xff]
        %v8249 = vld [vmem:[%s237 + $0x58] sm:$0xff]
        %v8250 = vld [vmem:[%s237 + $0x60] sm:$0xff]
        %v8251 = vld [vmem:[%s237 + $0x68] sm:$0xff]
        %v8252 = vld [vmem:[%s237 + $0x70] sm:$0xff]
        %v8253 = vld [vmem:[%s237 + $0x78] sm:$0xff]
        %v8254 = vld [vmem:[%s237 + $0x80] sm:$0xff]
        %v8255 = vld [vmem:[%s237 + $0x88] sm:$0xff]
        %v8256 = vld [vmem:[%s237 + $0x90] sm:$0xff]
        %v8257 = vld [vmem:[%s237 + $0x98] sm:$0xff]
        %v8258 = vld [vmem:[%s237 + $0xa0] sm:$0xff]
        %v8259 = vld [vmem:[%s237 + $0xa8] sm:$0xff]
        %v8260 = vld [vmem:[%s237 + $0xb0] sm:$0xff]
        %v8261 = vld [vmem:[%s237 + $0xb8] sm:$0xff]
        %v8262 = vld [vmem:[%s237 + $0xc0] sm:$0xff]
        %v8263 = vld [vmem:[%s237 + $0xc8] sm:$0xff]
        %v8264 = vld [vmem:[%s237 + $0xd0] sm:$0xff]
        %v8265 = vld [vmem:[%s237 + $0xd8] sm:$0xff]
        %v8266 = vld [vmem:[%s237 + $0xe0] sm:$0xff]
        %v8267 = vld [vmem:[%s237 + $0xe8] sm:$0xff]
        %v8268 = vld [vmem:[%s237 + $0xf0] sm:$0xff]
        %v8269 = vld [vmem:[%s237 + $0xf8] sm:$0xff]
        %v8270 = vadd.f32 %v8206, %v8238
        %v8271 = vadd.f32 %v8207, %v8239
        %v8272 = vadd.f32 %v8208, %v8240
        %v8273 = vadd.f32 %v8209, %v8241
        %v8274 = vadd.f32 %v8210, %v8242
        %v8275 = vadd.f32 %v8211, %v8243
        %v8276 = vadd.f32 %v8212, %v8244
        %v8277 = vadd.f32 %v8213, %v8245
        %v8278 = vadd.f32 %v8214, %v8246
        %v8279 = vadd.f32 %v8215, %v8247
        %v8280 = vadd.f32 %v8216, %v8248
        %v8281 = vadd.f32 %v8217, %v8249
        %v8282 = vadd.f32 %v8218, %v8250
        %v8283 = vadd.f32 %v8219, %v8251
        %v8284 = vadd.f32 %v8220, %v8252
        %v8285 = vadd.f32 %v8221, %v8253
        %v8286 = vadd.f32 %v8222, %v8254
        %v8287 = vadd.f32 %v8223, %v8255
        %v8288 = vadd.f32 %v8224, %v8256
        %v8289 = vadd.f32 %v8225, %v8257
        %v8290 = vadd.f32 %v8226, %v8258
        %v8291 = vadd.f32 %v8227, %v8259
        %v8292 = vadd.f32 %v8228, %v8260
        %v8293 = vadd.f32 %v8229, %v8261
        %v8294 = vadd.f32 %v8230, %v8262
        %v8295 = vadd.f32 %v8231, %v8263
        %v8296 = vadd.f32 %v8232, %v8264
        %v8297 = vadd.f32 %v8233, %v8265
        %v8298 = vadd.f32 %v8234, %v8266
        %v8299 = vadd.f32 %v8235, %v8267
        %v8300 = vadd.f32 %v8236, %v8268
        %v8301 = vadd.f32 %v8237, %v8269
        %v8302 = vmax.f32 %v8270, 0.0
        %v8303 = vmax.f32 %v8271, 0.0
        %v8304 = vmax.f32 %v8272, 0.0
        %v8305 = vmax.f32 %v8273, 0.0
        %v8306 = vmax.f32 %v8274, 0.0
        %v8307 = vmax.f32 %v8275, 0.0
        %v8308 = vmax.f32 %v8276, 0.0
        %v8309 = vmax.f32 %v8277, 0.0
        %v8310 = vmax.f32 %v8278, 0.0
        %v8311 = vmax.f32 %v8279, 0.0
        %v8312 = vmax.f32 %v8280, 0.0
        %v8313 = vmax.f32 %v8281, 0.0
        %v8314 = vmax.f32 %v8282, 0.0
        %v8315 = vmax.f32 %v8283, 0.0
        %v8316 = vmax.f32 %v8284, 0.0
        %v8317 = vmax.f32 %v8285, 0.0
        %v8318 = vmax.f32 %v8286, 0.0
        %v8319 = vmax.f32 %v8287, 0.0
        %v8320 = vmax.f32 %v8288, 0.0
        %v8321 = vmax.f32 %v8289, 0.0
        %v8322 = vmax.f32 %v8290, 0.0
        %v8323 = vmax.f32 %v8291, 0.0
        %v8324 = vmax.f32 %v8292, 0.0
        %v8325 = vmax.f32 %v8293, 0.0
        %v8326 = vmax.f32 %v8294, 0.0
        %v8327 = vmax.f32 %v8295, 0.0
        %v8328 = vmax.f32 %v8296, 0.0
        %v8329 = vmax.f32 %v8297, 0.0
        %v8330 = vmax.f32 %v8298, 0.0
        %v8331 = vmax.f32 %v8299, 0.0
        %v8332 = vmax.f32 %v8300, 0.0
        %v8333 = vmax.f32 %v8301, 0.0
        %8334 = vst [vmem:[%s271] sm:$0xff] %v8302
        %8335 = vst [vmem:[%s271 + $0x8] sm:$0xff] %v8303
        %8336 = vst [vmem:[%s271 + $0x10] sm:$0xff] %v8304
        %8337 = vst [vmem:[%s271 + $0x18] sm:$0xff] %v8305
        %8338 = vst [vmem:[%s271 + $0x20] sm:$0xff] %v8306
        %8339 = vst [vmem:[%s271 + $0x28] sm:$0xff] %v8307
        %8340 = vst [vmem:[%s271 + $0x30] sm:$0xff] %v8308
        %8341 = vst [vmem:[%s271 + $0x38] sm:$0xff] %v8309
        %8342 = vst [vmem:[%s271 + $0x40] sm:$0xff] %v8310
        %8343 = vst [vmem:[%s271 + $0x48] sm:$0xff] %v8311
        %8344 = vst [vmem:[%s271 + $0x50] sm:$0xff] %v8312
        %8345 = vst [vmem:[%s271 + $0x58] sm:$0xff] %v8313
        %8346 = vst [vmem:[%s271 + $0x60] sm:$0xff] %v8314
        %8347 = vst [vmem:[%s271 + $0x68] sm:$0xff] %v8315
        %8348 = vst [vmem:[%s271 + $0x70] sm:$0xff] %v8316
        %8349 = vst [vmem:[%s271 + $0x78] sm:$0xff] %v8317
        %8350 = vst [vmem:[%s271 + $0x80] sm:$0xff] %v8318
        %8351 = vst [vmem:[%s271 + $0x88] sm:$0xff] %v8319
        %8352 = vst [vmem:[%s271 + $0x90] sm:$0xff] %v8320
        %8353 = vst [vmem:[%s271 + $0x98] sm:$0xff] %v8321
        %8354 = vst [vmem:[%s271 + $0xa0] sm:$0xff] %v8322
        %8355 = vst [vmem:[%s271 + $0xa8] sm:$0xff] %v8323
        %8356 = vst [vmem:[%s271 + $0xb0] sm:$0xff] %v8324
        %8357 = vst [vmem:[%s271 + $0xb8] sm:$0xff] %v8325
        %8358 = vst [vmem:[%s271 + $0xc0] sm:$0xff] %v8326
        %8359 = vst [vmem:[%s271 + $0xc8] sm:$0xff] %v8327
        %8360 = vst [vmem:[%s271 + $0xd0] sm:$0xff] %v8328
        %8361 = vst [vmem:[%s271 + $0xd8] sm:$0xff] %v8329
        %8362 = vst [vmem:[%s271 + $0xe0] sm:$0xff] %v8330
        %8363 = vst [vmem:[%s271 + $0xe8] sm:$0xff] %v8331
        %8364 = vst [vmem:[%s271 + $0xf0] sm:$0xff] %v8332
        %8365 = vst [vmem:[%s271 + $0xf8] sm:$0xff] %v8333
        %s8366 = sand.u32 %s141, 1
        %s8367 = scalar_lea.sflag [#allocation6], %s8366
        %s8368 = sand.u32 %s141, 1
        %s8369 = smul.addr %s8368, 256
        %s8370 = scalar_lea.vmem [#allocation10], %s8369
        // Predicated region
        $region53: #{tpu_custom_call.1} parent=39 // pred_check
          %p8371 = pneg %p151
        $region54: #{tpu_custom_call.1} parent=39 // pred_check_branch
          %8373 = sbr.rel (%p8371) target = $region56
        $region55: #{tpu_custom_call.1} parent=39 // pred_region
          %s8375 = ssub.s32 4096, 4096
          %8376 = vsyncadd %s8367, %s8375
          %s8377 = smul.addr %s23, 32
          %s8378 = smul.addr %s8377, 128
          %s8379 = scalar_lea.hbm %s5, %s8378
          %s8380 = sshll.u32 %s8370, 4
          %s8381 = int_to_ptr.vmem [resolvable:$true] %s8380
          %8386 = dma.vmem_to_hbm [thread:$0]  %s8381, 4096, %s8379, %s8367, 128, 128, 8
        $region56: #{tpu_custom_call.1} parent=39 // pred_fallthru
          _
      $region40: #{tpu_custom_call.1} parent=5 // pred_fallthru
        _
      %p8387 = scmp.le.s32.totalorder 2, %s18
      // Predicated region
      $region57: #{tpu_custom_call.1} parent=5 // pred_check
        %p8388 = pneg %p8387
      $region58: #{tpu_custom_call.1} parent=5 // pred_check_branch
        %8390 = sbr.rel (%p8388) target = $region60
      $region59: #{tpu_custom_call.1} parent=5 // pred_region
        %s8391 = ssub.s32 %s18, 2
        // Predicated region
        $region61: #{tpu_custom_call.1} parent=59 // pred_check
          %p8392 = pneg %p157
        $region62: #{tpu_custom_call.1} parent=59 // pred_check_branch
          %8394 = sbr.rel (%p8392) target = $region64
        $region63: #{tpu_custom_call.1} parent=59 // pred_region
          %s8395 = sand.u32 %s142, 1
          %s8396 = scalar_lea.sflag [#allocation6], %s8395
          %s8397 = sand.u32 %s142, 1
          %s8398 = smul.addr %s8397, 256
          %s8399 = scalar_lea.vmem [#allocation10], %s8398
          %8400 = dma.done %s8396, 4096
        $region64: #{tpu_custom_call.1} parent=59 // pred_fallthru
          _
      $region60: #{tpu_custom_call.1} parent=5 // pred_fallthru
        _
    $region6: #{tpu_custom_call.1} parent=1 // loop_footer
      %s22 = sadd.s32 1, %s18
    $region7: #{tpu_custom_call.1} parent=1 // loop_footer_branch
      %17 = sbr.rel target = $region3
    $region8: #{tpu_custom_call.1} parent=1 // loop_exit
      _
    %8401 = vsyncpa [#allocation5], 1
    %s8402 = scalar_lea.sflag [#allocation5], 1
    %8403 = vsyncpa %s8402, 1
    %8404 = vsyncpa [#allocation8], 1
    %8405 = vsyncpa [#allocation6], 1
    %s8406 = scalar_lea.sflag [#allocation6], 1
    %8407 = vsyncpa %s8406, 1

</llo_original>
